<compile_context>
chip_gen: v6e
topology: v6e:2x2x1
jax: 0.10.0
libtpu: 0.0.40
codegen_flags: <defaults>
</compile_context>

<pallas_src>
import functools

import numpy as np
import jax
import jax.numpy as jnp
from jax.experimental import pallas as pl
from jax.experimental.pallas import tpu as pltpu


# --------------------------- generation-aware tiling ---------------------------

def _tpu_vmem_bytes():
    try:
        return int(pltpu.get_tpu_info().vmem_capacity_bytes)
    except Exception:
        return 64 << 20            # conservative default (v7x-sized VMEM)


_VMEM_BYTES = _tpu_vmem_bytes()
_BIG_VMEM = _VMEM_BYTES >= (100 << 20)            # v5e / v6e (128 MiB) vs v7x (64 MiB)
_ROW_CAP = 8192 if _BIG_VMEM else 2048            # bigger row tiles on v5e/v6e
_STEP_BUDGET = (12 << 20) if _BIG_VMEM else (6 << 20)   # per-step payload budget
_MODE_TARGET = (8 << 20) if _BIG_VMEM else (4 << 20)    # spectral-weight tile target


def _isize(dt):
    return np.dtype(dt).itemsize


def _pick_tm(M, bytes_per_row, *, min_steps=2, align=8):
    """Row tile for the streaming (row-parallel) kernels.

    * `align`-aligned (keeps the (8,128) sublane constraint),
    * per-step payload <= _STEP_BUDGET (double-buffering stays inside scoped VMEM,
      including on v7x's 64 MiB),
    * leaves >= `min_steps` grid steps whenever M allows (v7x has 2 TensorCores),
    * prefers divisors of M; otherwise returns an aligned tile for a cdiv grid.
    """
    if M <= align:
        return M
    limit = min(_ROW_CAP, _STEP_BUDGET // max(bytes_per_row, 1), M)
    limit = max(align, (limit // align) * align)
    upper = min(limit, max(align, M // min_steps))
    upper = max(align, (upper // align) * align)
    for cand in range(upper, align - 1, -align):
        if M % cand == 0:
            return cand
    return upper   # non-dividing aligned tile; callers use pl.cdiv grids


def _pick_mode_blocks(Mm, per_mode_bytes, *, min_steps=2):
    """Grid steps for the spectral contraction: keep the per-step payload around
    _MODE_TARGET bytes while leaving >= 2 steps for megacore."""
    want = max(min_steps, -(-(Mm * per_mode_bytes) // _MODE_TARGET))
    for g in range(min(want, Mm), Mm + 1):
        if Mm % g == 0:
            return g
    return Mm


# -------------------------------- Pallas kernels --------------------------------

def _fc0_kernel(x_ref, w_ref, b_ref, o_ref):
    # Lift 3 -> width with VPU broadcast FMAs; a K=3 matmul would waste an MXU pass.
    x = x_ref[...]                                   # (tm, K_in) f32, K_in tiny & static
    w = w_ref[...]                                   # (K_in, N) f32
    acc = x[:, 0:1] * w[0:1, :]
    for k in range(1, x.shape[1]):
        acc = acc + x[:, k:k + 1] * w[k:k + 1, :]
    o_ref[...] = (acc + b_ref[...]).astype(o_ref.dtype)


def pallas_fc0(x, w, b, *, out_dtype=jnp.bfloat16):
    """y = x @ w + b for the 3-channel lifting layer (VPU path), bf16 output."""
    M, K = x.shape
    N = w.shape[1]
    bpr = K * _isize(x.dtype) + N * _isize(out_dtype)
    tm = _pick_tm(M, bpr)
    return pl.pallas_call(
        _fc0_kernel,
        out_shape=jax.ShapeDtypeStruct((M, N), out_dtype),
        grid_spec=pltpu.PrefetchScalarGridSpec(
            num_scalar_prefetch=0,
            grid=(pl.cdiv(M, tm),),
            in_specs=[
                pl.BlockSpec((tm, K), lambda i: (i, 0)),
                pl.BlockSpec((K, N), lambda i: (0, 0)),
                pl.BlockSpec((1, N), lambda i: (0, 0)),
            ],
            out_specs=pl.BlockSpec((tm, N), lambda i: (i, 0)),
        ),
        compiler_params=pltpu.CompilerParams(dimension_semantics=("parallel",)),
        cost_estimate=pl.CostEstimate(
            flops=2 * M * K * N, transcendentals=0,
            bytes_accessed=M * bpr + 4 * (K * N + N)),
    )(x, w, b.reshape(1, N))


def _linear_add_relu_kernel(x_ref, w_ref, b_ref, s_ref, o_ref):
    # relu(x @ w + b + s): fused 1x1 conv (W path) + spectral residual + ReLU.
    # x/w arrive in bf16 (MXU operands), f32 accumulation; residual/bias/ReLU in f32.
    y = jnp.dot(x_ref[...], w_ref[...], preferred_element_type=jnp.float32)
    y = y + b_ref[...] + s_ref[...]
    o_ref[...] = jnp.maximum(y, 0.0).astype(o_ref.dtype)


def pallas_linear_add_relu(x, w, b, s, *, out_dtype=jnp.bfloat16):
    M, K = x.shape
    N = w.shape[1]
    bpr = K * _isize(x.dtype) + N * _isize(s.dtype) + N * _isize(out_dtype)
    tm = _pick_tm(M, bpr)
    return pl.pallas_call(
        _linear_add_relu_kernel,
        out_shape=jax.ShapeDtypeStruct((M, N), out_dtype),
        grid_spec=pltpu.PrefetchScalarGridSpec(
            num_scalar_prefetch=0,
            grid=(pl.cdiv(M, tm),),
            in_specs=[
                pl.BlockSpec((tm, K), lambda i: (i, 0)),
                pl.BlockSpec((K, N), lambda i: (0, 0)),
                pl.BlockSpec((1, N), lambda i: (0, 0)),
                pl.BlockSpec((tm, N), lambda i: (i, 0)),
            ],
            out_specs=pl.BlockSpec((tm, N), lambda i: (i, 0)),
        ),
        compiler_params=pltpu.CompilerParams(dimension_semantics=("parallel",)),
        cost_estimate=pl.CostEstimate(
            flops=2 * M * K * N + 2 * M * N, transcendentals=0,
            bytes_accessed=M * bpr + 2 * K * N + 4 * N),
    )(x, w, b.reshape(1, N), s)


def _head_kernel(x_ref, w1_ref, b1_ref, w2t_ref, b2_ref, o_ref):
    # fc1 (+ReLU) and fc2 fused: the (tm, 128) fc1 activation never touches HBM.
    # fc2 is a multiply + lane-reduce (no MXU N=1 matmul, no XLU transpose of h).
    h = jnp.dot(x_ref[...], w1_ref[...], preferred_element_type=jnp.float32)
    h = jnp.maximum(h + b1_ref[...], 0.0)                        # (tm, 128) f32
    y = jnp.sum(h * w2t_ref[...].astype(jnp.float32), axis=-1, keepdims=True)
    o_ref[...] = (y + b2_ref[...]).astype(o_ref.dtype)           # (tm, 1)


def pallas_fc_head(x, w1, b1, w2, b2):
    """Fused projection head: relu(x @ w1 + b1) @ w2 + b2, returned flat (M,)."""
    M, K = x.shape
    H1 = w1.shape[1]
    bpr = K * _isize(x.dtype) + 4
    tm = _pick_tm(M, bpr)
    out = pl.pallas_call(
        _head_kernel,
        out_shape=jax.ShapeDtypeStruct((M, 1), jnp.float32),
        grid_spec=pltpu.PrefetchScalarGridSpec(
            num_scalar_prefetch=0,
            grid=(pl.cdiv(M, tm),),
            in_specs=[
                pl.BlockSpec((tm, K), lambda i: (i, 0)),
                pl.BlockSpec((K, H1), lambda i: (0, 0)),
                pl.BlockSpec((1, H1), lambda i: (0, 0)),
                pl.BlockSpec((1, H1), lambda i: (0, 0)),
                pl.BlockSpec((1, 1), lambda i: (0, 0)),
            ],
            out_specs=pl.BlockSpec((tm, 1), lambda i: (i, 0)),
        ),
        compiler_params=pltpu.CompilerParams(dimension_semantics=("parallel",)),
        cost_estimate=pl.CostEstimate(
            flops=2 * M * K * H1 + 3 * M * H1, transcendentals=0,
            bytes_accessed=M * bpr + 2 * (K * H1 + 2 * H1) + 4 * (H1 + 1)),
    )(x, w1, b1.reshape(1, H1), w2.reshape(1, H1), b2.reshape(1, 1))
    return out.reshape(M)


def _cmul_kernel(ar_ref, ai_ref, wr_ref, wi_ref, or_ref, oi_ref):
    # Per-mode complex channel contraction with de-duplicated bf16 weights:
    #   or = ar@wr - ai@wi ;  oi = ar@wi + ai@wr     (bf16 MXU operands, f32 acc)
    ar, ai = ar_ref[...], ai_ref[...]
    wr, wi = wr_ref[...], wi_ref[...]
    rr = jnp.einsum('mbi,mio->mbo', ar, wr, preferred_element_type=jnp.float32)
    ii = jnp.einsum('mbi,mio->mbo', ai, wi, preferred_element_type=jnp.float32)
    ri = jnp.einsum('mbi,mio->mbo', ar, wi, preferred_element_type=jnp.float32)
    ir = jnp.einsum('mbi,mio->mbo', ai, wr, preferred_element_type=jnp.float32)
    or_ref[...] = rr - ii
    oi_ref[...] = ri + ir


def pallas_complex_mul(ar, ai, wr, wi):
    """Per-Fourier-mode channel contraction.

    ar/ai: (Mm, B, Ci) bf16;  wr/wi: (Mm, Ci, Co) bf16  ->  (or, oi): (Mm, B, Co) f32
    """
    Mm, B, Ci = ar.shape
    Co = wr.shape[-1]
    per_mode_bytes = (2 * Ci * Co * _isize(wr.dtype)       # wr + wi
                      + 2 * B * Ci * _isize(ar.dtype)      # ar + ai
                      + 2 * B * Co * 4)                    # or + oi (f32)
    g = _pick_mode_blocks(Mm, per_mode_bytes)
    mblk = Mm // g
    return pl.pallas_call(
        _cmul_kernel,
        out_shape=(jax.ShapeDtypeStruct((Mm, B, Co), jnp.float32),
                   jax.ShapeDtypeStruct((Mm, B, Co), jnp.float32)),
        grid_spec=pltpu.PrefetchScalarGridSpec(
            num_scalar_prefetch=0,
            grid=(g,),
            in_specs=[
                pl.BlockSpec((mblk, B, Ci), lambda i: (i, 0, 0)),
                pl.BlockSpec((mblk, B, Ci), lambda i: (i, 0, 0)),
                pl.BlockSpec((mblk, Ci, Co), lambda i: (i, 0, 0)),
                pl.BlockSpec((mblk, Ci, Co), lambda i: (i, 0, 0)),
            ],
            out_specs=[
                pl.BlockSpec((mblk, B, Co), lambda i: (i, 0, 0)),
                pl.BlockSpec((mblk, B, Co), lambda i: (i, 0, 0)),
            ],
        ),
        compiler_params=pltpu.CompilerParams(dimension_semantics=("parallel",)),
        cost_estimate=pl.CostEstimate(
            flops=8 * Mm * B * Ci * Co, transcendentals=0,
            bytes_accessed=Mm * per_mode_bytes),
    )(ar, ai, wr, wi)


# ------------------------------ FNO building blocks ------------------------------

def spectral_conv2d(x, wr, wi, m1, m2):
    """SpectralConv2d.forward with pre-packed mode-major bf16 weights.

    x: (B, H, W, Ci) activations (bf16/f32);  wr/wi: (2*m1*m2, Ci, Co) bf16.
    Returns (B, H, W, Co) float32.
    """
    B, H, W, Ci = x.shape
    Co = wr.shape[-1]
    Wf = W // 2 + 1
    Mm = 2 * m1 * m2

    # Run the FFT in NCHW so the XLA FFT custom-call operates on the innermost
    # spatial dims (no hidden full-tensor transposes around the FFT).
    x_nchw = jnp.transpose(x, (0, 3, 1, 2)).astype(jnp.float32)
    # torch.rfft(x, 2, normalized=True, onesided=True) == rfft2(norm='ortho').
    x_ft = jnp.fft.rfft2(x_nchw, axes=(2, 3), norm='ortho')       # (B, Ci, H, Wf) c64

    # Only the small mode corners get rearranged to the mode-major layout.
    corners = jnp.concatenate(
        [x_ft[:, :, :m1, :m2], x_ft[:, :, H - m1:, :m2]], axis=2)  # (B, Ci, 2m1, m2)
    a = jnp.transpose(corners, (2, 3, 0, 1)).reshape(Mm, B, Ci)
    ar = jnp.real(a).astype(jnp.bfloat16)
    ai = jnp.imag(a).astype(jnp.bfloat16)

    o_r, o_i = pallas_complex_mul(ar, ai, wr, wi)                  # (Mm, B, Co) f32 x2

    out_c = jax.lax.complex(o_r, o_i).reshape(2 * m1, m2, B, Co)
    out_c = jnp.transpose(out_c, (2, 3, 0, 1))                     # (B, Co, 2m1, m2)

    # Assemble out_ft by concatenation with zero blocks (fuses into the irfft2
    # input) instead of zeros + scatter updates.
    zero_cols = jnp.zeros((B, Co, m1, Wf - m2), dtype=out_c.dtype)
    top = jnp.concatenate([out_c[:, :, :m1], zero_cols], axis=3)   # (B, Co, m1, Wf)
    bot = jnp.concatenate([out_c[:, :, m1:], zero_cols], axis=3)   # (B, Co, m1, Wf)
    if H >= 2 * m1:
        mid = jnp.zeros((B, Co, H - 2 * m1, Wf), dtype=out_c.dtype)
        out_ft = jnp.concatenate([top, mid, bot], axis=2)
    else:  # overlapping corners: keep the reference overwrite semantics
        out_ft = jnp.zeros((B, Co, H, Wf), dtype=out_c.dtype)
        out_ft = out_ft.at[:, :, :m1, :m2].set(out_c[:, :, :m1])
        out_ft = out_ft.at[:, :, H - m1:, :m2].set(out_c[:, :, m1:])

    # TODO(synk): FFT / inverse FFT have no Pallas primitive; they remain XLA FFTs.
    y = jnp.fft.irfft2(out_ft, s=(H, W), axes=(2, 3), norm='ortho')  # (B, Co, H, W)
    return jnp.transpose(y, (0, 2, 3, 1))                            # (B, H, W, Co) f32


def fno2d_forward(params, x, *, m1, m2):
    """FNO2d.forward.  x: (B, H, W, 3) -> (B, H, W) after squeeze."""
    B, H, W, _ = x.shape
    width = params['fc0_w'].shape[1]
    M = B * H * W

    # fc0: lift to `width` channels (VPU kernel), activations carried in bf16.
    h = pallas_fc0(x.reshape(M, -1), params['fc0_w'], params['fc0_b'])
    h = h.reshape(B, H, W, width)

    # 4 Fourier layers: relu( SpectralConv(h) + Conv1x1(h) )
    for l in range(4):
        spec = spectral_conv2d(h, params[f'conv{l}_wr'], params[f'conv{l}_wi'], m1, m2)
        h = pallas_linear_add_relu(
            h.reshape(M, width), params[f'w{l}_w'], params[f'w{l}_b'],
            spec.reshape(M, width),
        ).reshape(B, H, W, width)

    # fc1 (+ReLU) + fc2 fused in one kernel.
    y = pallas_fc_head(h.reshape(M, width), params['fc1_w'], params['fc1_b'],
                       params['fc2_w'], params['fc2_b'])
    return jnp.squeeze(y.reshape(B, H, W, 1))


# -------------------------------- parameter init --------------------------------

def init_raw_params(key, width, m1, m2):
    """Parameters in the PyTorch module's native layouts (all f32)."""
    ks = iter(jax.random.split(key, 32))
    p = {}
    p['fc0_w'] = 0.1 * jax.random.normal(next(ks), (3, width), jnp.float32)
    p['fc0_b'] = 0.01 * jax.random.normal(next(ks), (width,), jnp.float32)
    spec_scale = 1.0 / (width * width)
    for l in range(4):
        p[f'conv{l}_w1'] = spec_scale * jax.random.uniform(
            next(ks), (width, width, m1, m2, 2), jnp.float32)
        p[f'conv{l}_w2'] = spec_scale * jax.random.uniform(
            next(ks), (width, width, m1, m2, 2), jnp.float32)
        # Conv1d(width, width, 1): stored pre-transposed as (in, out) for x @ W
        p[f'w{l}_w'] = (1.0 / width ** 0.5) * jax.random.normal(
            next(ks), (width, width), jnp.float32)
        p[f'w{l}_b'] = 0.01 * jax.random.normal(next(ks), (width,), jnp.float32)
    p['fc1_w'] = (1.0 / width ** 0.5) * jax.random.normal(next(ks), (width, 128), jnp.float32)
    p['fc1_b'] = 0.01 * jax.random.normal(next(ks), (128,), jnp.float32)
    p['fc2_w'] = (1.0 / 128 ** 0.5) * jax.random.normal(next(ks), (128, 1), jnp.float32)
    p['fc2_b'] = 0.01 * jax.random.normal(next(ks), (1,), jnp.float32)
    return p


def pack_params(raw, m1, m2):
    """One-time repack (done at init, never per forward): mode-major bf16 spectral
    weights with NO real/imag duplication, bf16 dense matmul weights, f32 biases."""
    p = {'fc0_w': raw['fc0_w'], 'fc0_b': raw['fc0_b'],
         'fc1_w': raw['fc1_w'].astype(jnp.bfloat16), 'fc1_b': raw['fc1_b'],
         'fc2_w': raw['fc2_w'].astype(jnp.bfloat16), 'fc2_b': raw['fc2_b']}
    Mm = 2 * m1 * m2
    for l in range(4):
        w = jnp.concatenate([raw[f'conv{l}_w1'], raw[f'conv{l}_w2']], axis=2)
        Ci, Co = w.shape[0], w.shape[1]
        # (Ci, Co, 2m1, m2, 2) -> mode-major (Mm, Ci, Co), real / imag kept separate.
        p[f'conv{l}_wr'] = jnp.transpose(w[..., 0], (2, 3, 0, 1)).reshape(
            Mm, Ci, Co).astype(jnp.bfloat16)
        p[f'conv{l}_wi'] = jnp.transpose(w[..., 1], (2, 3, 0, 1)).reshape(
            Mm, Ci, Co).astype(jnp.bfloat16)
        p[f'w{l}_w'] = raw[f'w{l}_w'].astype(jnp.bfloat16)
        p[f'w{l}_b'] = raw[f'w{l}_b']
    return p


# -------------------------------------- main --------------------------------------

if __name__ == "__main__":
    # Small shapes consistent with the module: (B, s, s, 3) input, width=64.
    B, S, WIDTH, M1, M2 = 2, 16, 64, 6, 6

    key = jax.random.PRNGKey(0)
    k_x, k_p = jax.random.split(key)
    x = jax.random.normal(k_x, (B, S, S, 3), jnp.float32)
    params = pack_params(init_raw_params(k_p, WIDTH, M1, M2), M1, M2)

    fwd = jax.jit(functools.partial(fno2d_forward, m1=M1, m2=M2))
    out = jax.block_until_ready(fwd(params, x))
    assert out.shape == (B, S, S), out.shape
    assert bool(jnp.all(jnp.isfinite(out)))
    print("KERNEL_OK")
</pallas_src>

<mosaic_0001>
module attributes {stable_mosaic.version = 11 : i64} {
  func.func @_fc0_kernel(%arg0: i32, %arg1: memref<256x3xf32, #tpu.memory_space<vmem>>, %arg2: memref<3x64xf32, #tpu.memory_space<vmem>>, %arg3: memref<1x64xf32, #tpu.memory_space<vmem>>, %arg4: memref<256x64xbf16, #tpu.memory_space<vmem>>) attributes {dimension_semantics = [#tpu.dimension_semantics<parallel>], iteration_bounds = array<i64: 2>, scalar_prefetch = 0 : i64, scratch_operands = 0 : i64, tpu.core_type = #tpu.core_type<tc>, window_params = [{transform_indices = @transform_0, window_bounds = array<i64: 256, 3>}, {pipeline_mode = #tpu.pipeline_mode<synchronous>, transform_indices = @transform_1, window_bounds = array<i64: 3, 64>}, {pipeline_mode = #tpu.pipeline_mode<synchronous>, transform_indices = @transform_2, window_bounds = array<i64: 1, 64>}, {transform_indices = @transform_3, window_bounds = array<i64: 256, 64>}]} {
    %c0 = arith.constant 0 : index
    %c0_0 = arith.constant 0 : index
    %0 = vector.load %arg1[%c0, %c0_0] : memref<256x3xf32, #tpu.memory_space<vmem>>, vector<256x3xf32>
    %c0_1 = arith.constant 0 : index
    %c0_2 = arith.constant 0 : index
    %1 = vector.load %arg2[%c0_1, %c0_2] : memref<3x64xf32, #tpu.memory_space<vmem>>, vector<3x64xf32>
    %2 = vector.extract_strided_slice %0 {offsets = [0, 0], sizes = [256, 1], strides = [1, 1]} : vector<256x3xf32> to vector<256x1xf32>
    %3 = vector.extract_strided_slice %1 {offsets = [0, 0], sizes = [1, 64], strides = [1, 1]} : vector<3x64xf32> to vector<1x64xf32>
    %4 = vector.broadcast %2 : vector<256x1xf32> to vector<256x64xf32>
    %5 = vector.broadcast %3 : vector<1x64xf32> to vector<256x64xf32>
    %6 = arith.mulf %4, %5 : vector<256x64xf32>
    %7 = vector.extract_strided_slice %0 {offsets = [0, 1], sizes = [256, 1], strides = [1, 1]} : vector<256x3xf32> to vector<256x1xf32>
    %8 = vector.extract_strided_slice %1 {offsets = [1, 0], sizes = [1, 64], strides = [1, 1]} : vector<3x64xf32> to vector<1x64xf32>
    %9 = vector.broadcast %7 : vector<256x1xf32> to vector<256x64xf32>
    %10 = vector.broadcast %8 : vector<1x64xf32> to vector<256x64xf32>
    %11 = arith.mulf %9, %10 : vector<256x64xf32>
    %12 = arith.addf %6, %11 : vector<256x64xf32>
    %13 = vector.extract_strided_slice %0 {offsets = [0, 2], sizes = [256, 1], strides = [1, 1]} : vector<256x3xf32> to vector<256x1xf32>
    %14 = vector.extract_strided_slice %1 {offsets = [2, 0], sizes = [1, 64], strides = [1, 1]} : vector<3x64xf32> to vector<1x64xf32>
    %15 = vector.broadcast %13 : vector<256x1xf32> to vector<256x64xf32>
    %16 = vector.broadcast %14 : vector<1x64xf32> to vector<256x64xf32>
    %17 = arith.mulf %15, %16 : vector<256x64xf32>
    %18 = arith.addf %12, %17 : vector<256x64xf32>
    %c0_3 = arith.constant 0 : index
    %c0_4 = arith.constant 0 : index
    %19 = vector.load %arg3[%c0_3, %c0_4] : memref<1x64xf32, #tpu.memory_space<vmem>>, vector<1x64xf32>
    %20 = vector.broadcast %19 : vector<1x64xf32> to vector<256x64xf32>
    %21 = arith.addf %18, %20 : vector<256x64xf32>
    %22 = arith.truncf %21 : vector<256x64xf32> to vector<256x64xbf16>
    %c0_5 = arith.constant 0 : index
    %c0_6 = arith.constant 0 : index
    %23 = vector.load %arg4[%c0_5, %c0_6] : memref<256x64xbf16, #tpu.memory_space<vmem>>, vector<256x64xbf16>
    tpu.vector_store %arg4[%c0_5, %c0_6], %22 {strides = array<i32>} : memref<256x64xbf16, #tpu.memory_space<vmem>>, vector<256x64xbf16>,
    return
  }
  func.func @transform_0(%arg0: i32) -> (i32, i32) {
    %c0_i32 = arith.constant 0 : i32
    %c0_i32_0 = arith.constant 0 : i32
    return %arg0, %c0_i32 : i32, i32
  }
  func.func @transform_1(%arg0: i32) -> (i32, i32) {
    %c0_i32 = arith.constant 0 : i32
    %c0_i32_0 = arith.constant 0 : i32
    %c0_i32_1 = arith.constant 0 : i32
    return %c0_i32, %c0_i32_0 : i32, i32
  }
  func.func @transform_2(%arg0: i32) -> (i32, i32) {
    %c0_i32 = arith.constant 0 : i32
    %c0_i32_0 = arith.constant 0 : i32
    %c0_i32_1 = arith.constant 0 : i32
    return %c0_i32, %c0_i32_0 : i32, i32
  }
  func.func @transform_3(%arg0: i32) -> (i32, i32) {
    %c0_i32 = arith.constant 0 : i32
    %c0_i32_0 = arith.constant 0 : i32
    return %arg0, %c0_i32 : i32, i32
  }
}

module attributes {stable_mosaic.version = 11 : i64} {
  func.func @_cmul_kernel(%arg0: i32, %arg1: memref<36x2x64xbf16, #tpu.memory_space<vmem>>, %arg2: memref<36x2x64xbf16, #tpu.memory_space<vmem>>, %arg3: memref<36x64x64xbf16, #tpu.memory_space<vmem>>, %arg4: memref<36x64x64xbf16, #tpu.memory_space<vmem>>, %arg5: memref<36x2x64xf32, #tpu.memory_space<vmem>>, %arg6: memref<36x2x64xf32, #tpu.memory_space<vmem>>) attributes {dimension_semantics = [#tpu.dimension_semantics<parallel>], iteration_bounds = array<i64: 2>, scalar_prefetch = 0 : i64, scratch_operands = 0 : i64, tpu.core_type = #tpu.core_type<tc>, window_params = [{transform_indices = @transform_0, window_bounds = array<i64: 36, 2, 64>}, {transform_indices = @transform_1, window_bounds = array<i64: 36, 2, 64>}, {transform_indices = @transform_2, window_bounds = array<i64: 36, 64, 64>}, {transform_indices = @transform_3, window_bounds = array<i64: 36, 64, 64>}, {transform_indices = @transform_4, window_bounds = array<i64: 36, 2, 64>}, {transform_indices = @transform_5, window_bounds = array<i64: 36, 2, 64>}]} {
    %c0 = arith.constant 0 : index
    %c0_0 = arith.constant 0 : index
    %c0_1 = arith.constant 0 : index
    %0 = vector.load %arg1[%c0, %c0_0, %c0_1] : memref<36x2x64xbf16, #tpu.memory_space<vmem>>, vector<36x2x64xbf16>
    %c0_2 = arith.constant 0 : index
    %c0_3 = arith.constant 0 : index
    %c0_4 = arith.constant 0 : index
    %1 = vector.load %arg2[%c0_2, %c0_3, %c0_4] : memref<36x2x64xbf16, #tpu.memory_space<vmem>>, vector<36x2x64xbf16>
    %c0_5 = arith.constant 0 : index
    %c0_6 = arith.constant 0 : index
    %c0_7 = arith.constant 0 : index
    %2 = vector.load %arg3[%c0_5, %c0_6, %c0_7] : memref<36x64x64xbf16, #tpu.memory_space<vmem>>, vector<36x64x64xbf16>
    %c0_8 = arith.constant 0 : index
    %c0_9 = arith.constant 0 : index
    %c0_10 = arith.constant 0 : index
    %3 = vector.load %arg4[%c0_8, %c0_9, %c0_10] : memref<36x64x64xbf16, #tpu.memory_space<vmem>>, vector<36x64x64xbf16>
    "tpu.trace_start"() <{level = 10 : i32, message = "mbi,mio->mbo"}> : () -> ()
    %cst = arith.constant dense<0.000000e+00> : vector<36x2x64xf32>
    %4 = tpu.matmul %0, %2, %cst {dimension_numbers = #tpu.dot_dimension_numbers<[2], [1], [1], [2], [0, 0, 0, 1, 1, 2], [0], [0]>} : vector<36x2x64xbf16>, vector<36x64x64xbf16>, vector<36x2x64xf32> -> vector<36x2x64xf32>
    %cst_11 = arith.constant dense<0.000000e+00> : vector<36x2x64xf32>
    %5 = tpu.matmul %1, %3, %cst_11 {dimension_numbers = #tpu.dot_dimension_numbers<[2], [1], [1], [2], [0, 0, 0, 1, 1, 2], [0], [0]>} : vector<36x2x64xbf16>, vector<36x64x64xbf16>, vector<36x2x64xf32> -> vector<36x2x64xf32>
    %cst_12 = arith.constant dense<0.000000e+00> : vector<36x2x64xf32>
    %6 = tpu.matmul %0, %3, %cst_12 {dimension_numbers = #tpu.dot_dimension_numbers<[2], [1], [1], [2], [0, 0, 0, 1, 1, 2], [0], [0]>} : vector<36x2x64xbf16>, vector<36x64x64xbf16>, vector<36x2x64xf32> -> vector<36x2x64xf32>
    %cst_13 = arith.constant dense<0.000000e+00> : vector<36x2x64xf32>
    %7 = tpu.matmul %1, %2, %cst_13 {dimension_numbers = #tpu.dot_dimension_numbers<[2], [1], [1], [2], [0, 0, 0, 1, 1, 2], [0], [0]>} : vector<36x2x64xbf16>, vector<36x64x64xbf16>, vector<36x2x64xf32> -> vector<36x2x64xf32>
    "tpu.trace_stop"() : () -> ()
    %8 = arith.subf %4, %5 : vector<36x2x64xf32>
    %c0_14 = arith.constant 0 : index
    %c0_15 = arith.constant 0 : index
    %c0_16 = arith.constant 0 : index
    %9 = vector.load %arg5[%c0_14, %c0_15, %c0_16] : memref<36x2x64xf32, #tpu.memory_space<vmem>>, vector<36x2x64xf32>
    tpu.vector_store %arg5[%c0_14, %c0_15, %c0_16], %8 {strides = array<i32>} : memref<36x2x64xf32, #tpu.memory_space<vmem>>, vector<36x2x64xf32>,
    %10 = arith.addf %6, %7 : vector<36x2x64xf32>
    %c0_17 = arith.constant 0 : index
    %c0_18 = arith.constant 0 : index
    %c0_19 = arith.constant 0 : index
    %11 = vector.load %arg6[%c0_17, %c0_18, %c0_19] : memref<36x2x64xf32, #tpu.memory_space<vmem>>, vector<36x2x64xf32>
    tpu.vector_store %arg6[%c0_17, %c0_18, %c0_19], %10 {strides = array<i32>} : memref<36x2x64xf32, #tpu.memory_space<vmem>>, vector<36x2x64xf32>,
    return
  }
  func.func @transform_0(%arg0: i32) -> (i32, i32, i32) {
    %c0_i32 = arith.constant 0 : i32
    %c0_i32_0 = arith.constant 0 : i32
    %c0_i32_1 = arith.constant 0 : i32
    return %arg0, %c0_i32, %c0_i32_0 : i32, i32, i32
  }
  func.func @transform_1(%arg0: i32) -> (i32, i32, i32) {
    %c0_i32 = arith.constant 0 : i32
    %c0_i32_0 = arith.constant 0 : i32
    %c0_i32_1 = arith.constant 0 : i32
    return %arg0, %c0_i32, %c0_i32_0 : i32, i32, i32
  }
  func.func @transform_2(%arg0: i32) -> (i32, i32, i32) {
    %c0_i32 = arith.constant 0 : i32
    %c0_i32_0 = arith.constant 0 : i32
    %c0_i32_1 = arith.constant 0 : i32
    return %arg0, %c0_i32, %c0_i32_0 : i32, i32, i32
  }
  func.func @transform_3(%arg0: i32) -> (i32, i32, i32) {
    %c0_i32 = arith.constant 0 : i32
    %c0_i32_0 = arith.constant 0 : i32
    %c0_i32_1 = arith.constant 0 : i32
    return %arg0, %c0_i32, %c0_i32_0 : i32, i32, i32
  }
  func.func @transform_4(%arg0: i32) -> (i32, i32, i32) {
    %c0_i32 = arith.constant 0 : i32
    %c0_i32_0 = arith.constant 0 : i32
    %c0_i32_1 = arith.constant 0 : i32
    return %arg0, %c0_i32, %c0_i32_0 : i32, i32, i32
  }
  func.func @transform_5(%arg0: i32) -> (i32, i32, i32) {
    %c0_i32 = arith.constant 0 : i32
    %c0_i32_0 = arith.constant 0 : i32
    %c0_i32_1 = arith.constant 0 : i32
    return %arg0, %c0_i32, %c0_i32_0 : i32, i32, i32
  }
}

module attributes {stable_mosaic.version = 11 : i64} {
  func.func @_linear_add_relu_kernel(%arg0: i32, %arg1: memref<256x64xbf16, #tpu.memory_space<vmem>>, %arg2: memref<64x64xbf16, #tpu.memory_space<vmem>>, %arg3: memref<1x64xf32, #tpu.memory_space<vmem>>, %arg4: memref<256x64xf32, #tpu.memory_space<vmem>>, %arg5: memref<256x64xbf16, #tpu.memory_space<vmem>>) attributes {dimension_semantics = [#tpu.dimension_semantics<parallel>], iteration_bounds = array<i64: 2>, scalar_prefetch = 0 : i64, scratch_operands = 0 : i64, tpu.core_type = #tpu.core_type<tc>, window_params = [{transform_indices = @transform_0, window_bounds = array<i64: 256, 64>}, {pipeline_mode = #tpu.pipeline_mode<synchronous>, transform_indices = @transform_1, window_bounds = array<i64: 64, 64>}, {pipeline_mode = #tpu.pipeline_mode<synchronous>, transform_indices = @transform_2, window_bounds = array<i64: 1, 64>}, {transform_indices = @transform_3, window_bounds = array<i64: 256, 64>}, {transform_indices = @transform_4, window_bounds = array<i64: 256, 64>}]} {
    %c0 = arith.constant 0 : index
    %c0_0 = arith.constant 0 : index
    %0 = vector.load %arg1[%c0, %c0_0] : memref<256x64xbf16, #tpu.memory_space<vmem>>, vector<256x64xbf16>
    %c0_1 = arith.constant 0 : index
    %c0_2 = arith.constant 0 : index
    %1 = vector.load %arg2[%c0_1, %c0_2] : memref<64x64xbf16, #tpu.memory_space<vmem>>, vector<64x64xbf16>
    %cst = arith.constant dense<0.000000e+00> : vector<256x64xf32>
    %2 = tpu.matmul %0, %1, %cst {dimension_numbers = #tpu.dot_dimension_numbers<[1], [0], [0], [1], [0, 0, 1, 1], [], []>} : vector<256x64xbf16>, vector<64x64xbf16>, vector<256x64xf32> -> vector<256x64xf32>
    %c0_3 = arith.constant 0 : index
    %c0_4 = arith.constant 0 : index
    %3 = vector.load %arg3[%c0_3, %c0_4] : memref<1x64xf32, #tpu.memory_space<vmem>>, vector<1x64xf32>
    %4 = vector.broadcast %3 : vector<1x64xf32> to vector<256x64xf32>
    %5 = arith.addf %2, %4 : vector<256x64xf32>
    %c0_5 = arith.constant 0 : index
    %c0_6 = arith.constant 0 : index
    %6 = vector.load %arg4[%c0_5, %c0_6] : memref<256x64xf32, #tpu.memory_space<vmem>>, vector<256x64xf32>
    %7 = arith.addf %5, %6 : vector<256x64xf32>
    %cst_7 = arith.constant 0.000000e+00 : f32
    %8 = vector.broadcast %cst_7 : f32 to vector<256x64xf32>
    %9 = arith.maximumf %7, %8 : vector<256x64xf32>
    %10 = arith.truncf %9 : vector<256x64xf32> to vector<256x64xbf16>
    %c0_8 = arith.constant 0 : index
    %c0_9 = arith.constant 0 : index
    %11 = vector.load %arg5[%c0_8, %c0_9] : memref<256x64xbf16, #tpu.memory_space<vmem>>, vector<256x64xbf16>
    tpu.vector_store %arg5[%c0_8, %c0_9], %10 {strides = array<i32>} : memref<256x64xbf16, #tpu.memory_space<vmem>>, vector<256x64xbf16>,
    return
  }
  func.func @transform_0(%arg0: i32) -> (i32, i32) {
    %c0_i32 = arith.constant 0 : i32
    %c0_i32_0 = arith.constant 0 : i32
    return %arg0, %c0_i32 : i32, i32
  }
  func.func @transform_1(%arg0: i32) -> (i32, i32) {
    %c0_i32 = arith.constant 0 : i32
    %c0_i32_0 = arith.constant 0 : i32
    %c0_i32_1 = arith.constant 0 : i32
    return %c0_i32, %c0_i32_0 : i32, i32
  }
  func.func @transform_2(%arg0: i32) -> (i32, i32) {
    %c0_i32 = arith.constant 0 : i32
    %c0_i32_0 = arith.constant 0 : i32
    %c0_i32_1 = arith.constant 0 : i32
    return %c0_i32, %c0_i32_0 : i32, i32
  }
  func.func @transform_3(%arg0: i32) -> (i32, i32) {
    %c0_i32 = arith.constant 0 : i32
    %c0_i32_0 = arith.constant 0 : i32
    return %arg0, %c0_i32 : i32, i32
  }
  func.func @transform_4(%arg0: i32) -> (i32, i32) {
    %c0_i32 = arith.constant 0 : i32
    %c0_i32_0 = arith.constant 0 : i32
    return %arg0, %c0_i32 : i32, i32
  }
}

module attributes {stable_mosaic.version = 11 : i64} {
  func.func @_head_kernel(%arg0: i32, %arg1: memref<256x64xbf16, #tpu.memory_space<vmem>>, %arg2: memref<64x128xbf16, #tpu.memory_space<vmem>>, %arg3: memref<1x128xf32, #tpu.memory_space<vmem>>, %arg4: memref<1x128xbf16, #tpu.memory_space<vmem>>, %arg5: memref<1x1xf32, #tpu.memory_space<vmem>>, %arg6: memref<256x1xf32, #tpu.memory_space<vmem>>) attributes {dimension_semantics = [#tpu.dimension_semantics<parallel>], iteration_bounds = array<i64: 2>, scalar_prefetch = 0 : i64, scratch_operands = 0 : i64, tpu.core_type = #tpu.core_type<tc>, window_params = [{transform_indices = @transform_0, window_bounds = array<i64: 256, 64>}, {pipeline_mode = #tpu.pipeline_mode<synchronous>, transform_indices = @transform_1, window_bounds = array<i64: 64, 128>}, {pipeline_mode = #tpu.pipeline_mode<synchronous>, transform_indices = @transform_2, window_bounds = array<i64: 1, 128>}, {pipeline_mode = #tpu.pipeline_mode<synchronous>, transform_indices = @transform_3, window_bounds = array<i64: 1, 128>}, {pipeline_mode = #tpu.pipeline_mode<synchronous>, transform_indices = @transform_4, window_bounds = array<i64: 1, 1>}, {transform_indices = @transform_5, window_bounds = array<i64: 256, 1>}]} {
    %c0 = arith.constant 0 : index
    %c0_0 = arith.constant 0 : index
    %0 = vector.load %arg1[%c0, %c0_0] : memref<256x64xbf16, #tpu.memory_space<vmem>>, vector<256x64xbf16>
    %c0_1 = arith.constant 0 : index
    %c0_2 = arith.constant 0 : index
    %1 = vector.load %arg2[%c0_1, %c0_2] : memref<64x128xbf16, #tpu.memory_space<vmem>>, vector<64x128xbf16>
    %cst = arith.constant dense<0.000000e+00> : vector<256x128xf32>
    %2 = tpu.matmul %0, %1, %cst {dimension_numbers = #tpu.dot_dimension_numbers<[1], [0], [0], [1], [0, 0, 1, 1], [], []>} : vector<256x64xbf16>, vector<64x128xbf16>, vector<256x128xf32> -> vector<256x128xf32>
    %c0_3 = arith.constant 0 : index
    %c0_4 = arith.constant 0 : index
    %3 = vector.load %arg3[%c0_3, %c0_4] : memref<1x128xf32, #tpu.memory_space<vmem>>, vector<1x128xf32>
    %4 = vector.broadcast %3 : vector<1x128xf32> to vector<256x128xf32>
    %5 = arith.addf %2, %4 : vector<256x128xf32>
    %cst_5 = arith.constant 0.000000e+00 : f32
    %6 = vector.broadcast %cst_5 : f32 to vector<256x128xf32>
    %7 = arith.maximumf %5, %6 : vector<256x128xf32>
    %c0_6 = arith.constant 0 : index
    %c0_7 = arith.constant 0 : index
    %8 = vector.load %arg4[%c0_6, %c0_7] : memref<1x128xbf16, #tpu.memory_space<vmem>>, vector<1x128xbf16>
    %9 = arith.extf %8 : vector<1x128xbf16> to vector<1x128xf32>
    %10 = vector.broadcast %9 : vector<1x128xf32> to vector<256x128xf32>
    %11 = arith.mulf %7, %10 : vector<256x128xf32>
    %cst_8 = arith.constant dense<0.000000e+00> : vector<256xf32>
    %12 = vector.multi_reduction <add>, %11, %cst_8 [1] : vector<256x128xf32> to vector<256xf32>
    %13 = vector.shape_cast %12 : vector<256xf32> to vector<256x1xf32>
    %c0_9 = arith.constant 0 : index
    %c0_10 = arith.constant 0 : index
    %14 = vector.load %arg5[%c0_9, %c0_10] : memref<1x1xf32, #tpu.memory_space<vmem>>, vector<1x1xf32>
    %15 = vector.broadcast %14 : vector<1x1xf32> to vector<256x1xf32>
    %16 = arith.addf %13, %15 : vector<256x1xf32>
    %c0_11 = arith.constant 0 : index
    %c0_12 = arith.constant 0 : index
    %17 = vector.load %arg6[%c0_11, %c0_12] : memref<256x1xf32, #tpu.memory_space<vmem>>, vector<256x1xf32>
    tpu.vector_store %arg6[%c0_11, %c0_12], %16 {strides = array<i32>} : memref<256x1xf32, #tpu.memory_space<vmem>>, vector<256x1xf32>,
    return
  }
  func.func @transform_0(%arg0: i32) -> (i32, i32) {
    %c0_i32 = arith.constant 0 : i32
    %c0_i32_0 = arith.constant 0 : i32
    return %arg0, %c0_i32 : i32, i32
  }
  func.func @transform_1(%arg0: i32) -> (i32, i32) {
    %c0_i32 = arith.constant 0 : i32
    %c0_i32_0 = arith.constant 0 : i32
    %c0_i32_1 = arith.constant 0 : i32
    return %c0_i32, %c0_i32_0 : i32, i32
  }
  func.func @transform_2(%arg0: i32) -> (i32, i32) {
    %c0_i32 = arith.constant 0 : i32
    %c0_i32_0 = arith.constant 0 : i32
    %c0_i32_1 = arith.constant 0 : i32
    return %c0_i32, %c0_i32_0 : i32, i32
  }
  func.func @transform_3(%arg0: i32) -> (i32, i32) {
    %c0_i32 = arith.constant 0 : i32
    %c0_i32_0 = arith.constant 0 : i32
    %c0_i32_1 = arith.constant 0 : i32
    return %c0_i32, %c0_i32_0 : i32, i32
  }
  func.func @transform_4(%arg0: i32) -> (i32, i32) {
    %c0_i32 = arith.constant 0 : i32
    %c0_i32_0 = arith.constant 0 : i32
    %c0_i32_1 = arith.constant 0 : i32
    return %c0_i32, %c0_i32_0 : i32, i32
  }
  func.func @transform_5(%arg0: i32) -> (i32, i32) {
    %c0_i32 = arith.constant 0 : i32
    %c0_i32_0 = arith.constant 0 : i32
    return %arg0, %c0_i32 : i32, i32
  }
}

</mosaic_0001>

<llo_original>
// kernel: fno2d_forward.10
$region0: #{fno2d_forward.10}
  #allocation0 [shape = 'u32[]', space=smem, size = 0x4, offset = 0x4, fixed_abs, tag = 'smem constant byte address 0x4 - core index']
  #allocation1 [shape = 'u32[144,128]{1,0:T(1,128)}', space=vmem, size = 0x12000, scoped, tag = 'internal scratch']
  %s0 = inlined_call_operand.vmem [shape: f32[512,3], index: 0, kind: input, shape index: {}]
  %s1 = inlined_call_operand.hbm [shape: f32[3,64], index: 1, kind: input, shape index: {}]
  %s2 = inlined_call_operand.hbm [shape: f32[1,64], index: 2, kind: input, shape index: {}]
  %s3 = inlined_call_operand.vmem [shape: bf16[512,64], index: 3, kind: output, shape index: {}]
  %s4 = sld [smem:[#allocation0]]
  $region53: #{fno2d_forward.10} parent=0
    _
  %s6 = ssub.s32 1, %s4
  %s7 = scalar_select 0, %s6, %s4
  $region1: #{fno2d_forward.10} parent=0
    #allocation2 [shape = 'u8[2048]{0}', space=vmem, size = 0x800, scoped, tag = 'input window, operand 1, single buffered']
    #allocation3 [shape = 's32[2]{0}', space=sflag, size = 0x8, scoped, tag = 'scoped memory for fno2d_forward.10']
    #allocation4 [shape = 'u8[512]{0}', space=vmem, size = 0x400, scoped, tag = 'input window, operand 2, single buffered']
    #allocation5 [shape = 's32[1]{0}', space=sflag, size = 0x4, scoped, tag = 'scoped memory for fno2d_forward.10']
    %8 = vsyncpa [#allocation3], 0
    %9 = vsyncpa [#allocation5], 0
    loop: start=0, step=1, limit=4
    $region2: #{fno2d_forward.10} parent=1 // loop_pre_header
      _
    $region3: #{fno2d_forward.10} parent=1 // loop_header
      %s11 = sphi 0, %s15
      %p12 = scmp.ge.s32.totalorder %s11, 4
      %s21 = sphi 0, %s23
      %s24 = sphi 0, %s21
      %s25 = sphi 0, %s24
      %s41 = sphi 0, %s25
      %s45 = sphi 0, %s45
      %s47 = sphi 0, %s45
      %s48 = sphi 0, %s47
      %s62 = sphi 0, %s48
      %s66 = sphi 0, %s66
      %s68 = sphi 0, %s66
      %s69 = sphi 0, %s68
      %s83 = sphi 0, %s69
      %s89 = sphi 0, %s91
      %s92 = sphi 0, %s89
      %s93 = sphi 0, %s92
      %s109 = sphi 0, %s93
    $region4: #{fno2d_forward.10} parent=1 // loop_header_branch
      %14 = sbr.rel (%p12) target = $region8
    $region5: #{fno2d_forward.10} parent=1 // loop_body
      %s16 = ssub.s32 %s11, 1
      %s17 = ssub.s32 %s11, 2
      %s18 = sadd.s32 %s11, 1
      %s19 = ssub.s32 %s11, %s18
      %p20 = scmp.eq.s32.totalorder %s19, 0
      %s22 = sadd.s32 %s21, 1
      %s23 = scalar_select %p20, %s21, %s22
      %p26 = pneg %p20
      %p27 = scmp.eq.s32.totalorder %s11, 1
      %p28 = por %p26, %p27
      %p29 = scmp.ne.s32.totalorder %s21, %s24
      %p30 = scmp.eq.s32.totalorder %s11, 0
      %p31 = por %p29, %p30
      %p32 = scmp.ne.s32.totalorder %s21, %s24
      %p33 = scmp.eq.s32.totalorder %s16, 1
      %p34 = por %p32, %p33
      %p35 = scmp.ne.s32.totalorder %s24, %s25
      %p36 = scmp.eq.s32.totalorder %s16, 0
      %p37 = por %p35, %p36
      %p38 = scmp.ne.s32.totalorder %s24, %s25
      %p39 = scmp.eq.s32.totalorder %s17, 1
      %p40 = por %p38, %p39
      %p42 = scmp.ne.s32.totalorder %s25, %s41
      %p43 = scmp.eq.s32.totalorder %s17, 0
      %p44 = por %p42, %p43
      %s46 = sadd.s32 %s45, 1
      %p49 = scmp.eq.s32.totalorder %s11, 1
      %p50 = scmp.ne.s32.totalorder %s45, %s47
      %p51 = scmp.eq.s32.totalorder %s11, 0
      %p52 = por %p50, %p51
      %p53 = scmp.ne.s32.totalorder %s45, %s47
      %p54 = scmp.eq.s32.totalorder %s16, 1
      %p55 = por %p53, %p54
      %p56 = scmp.ne.s32.totalorder %s47, %s48
      %p57 = scmp.eq.s32.totalorder %s16, 0
      %p58 = por %p56, %p57
      %p59 = scmp.ne.s32.totalorder %s47, %s48
      %p60 = scmp.eq.s32.totalorder %s17, 1
      %p61 = por %p59, %p60
      %p63 = scmp.ne.s32.totalorder %s48, %s62
      %p64 = scmp.eq.s32.totalorder %s17, 0
      %p65 = por %p63, %p64
      %s67 = sadd.s32 %s66, 1
      %p70 = scmp.eq.s32.totalorder %s11, 1
      %p71 = scmp.ne.s32.totalorder %s66, %s68
      %p72 = scmp.eq.s32.totalorder %s11, 0
      %p73 = por %p71, %p72
      %p74 = scmp.ne.s32.totalorder %s66, %s68
      %p75 = scmp.eq.s32.totalorder %s16, 1
      %p76 = por %p74, %p75
      %p77 = scmp.ne.s32.totalorder %s68, %s69
      %p78 = scmp.eq.s32.totalorder %s16, 0
      %p79 = por %p77, %p78
      %p80 = scmp.ne.s32.totalorder %s68, %s69
      %p81 = scmp.eq.s32.totalorder %s17, 1
      %p82 = por %p80, %p81
      %p84 = scmp.ne.s32.totalorder %s69, %s83
      %p85 = scmp.eq.s32.totalorder %s17, 0
      %p86 = por %p84, %p85
      %s87 = ssub.s32 %s11, %s18
      %p88 = scmp.eq.s32.totalorder %s87, 0
      %s90 = sadd.s32 %s89, 1
      %s91 = scalar_select %p88, %s89, %s90
      %p94 = pneg %p88
      %p95 = scmp.eq.s32.totalorder %s11, 1
      %p96 = por %p94, %p95
      %p97 = scmp.ne.s32.totalorder %s89, %s92
      %p98 = scmp.eq.s32.totalorder %s11, 0
      %p99 = por %p97, %p98
      %p100 = scmp.ne.s32.totalorder %s89, %s92
      %p101 = scmp.eq.s32.totalorder %s16, 1
      %p102 = por %p100, %p101
      %p103 = scmp.ne.s32.totalorder %s92, %s93
      %p104 = scmp.eq.s32.totalorder %s16, 0
      %p105 = por %p103, %p104
      %p106 = scmp.ne.s32.totalorder %s92, %s93
      %p107 = scmp.eq.s32.totalorder %s17, 1
      %p108 = por %p106, %p107
      %p110 = scmp.ne.s32.totalorder %s93, %s109
      %p111 = scmp.eq.s32.totalorder %s17, 0
      %p112 = por %p110, %p111
      %p113 = scmp.le.s32.totalorder 1, %s11
      %p114 = scmp.lt.s32.totalorder %s11, 3
      %p115 = pnand %p113, %p114
      %p116 = pneg %p115
      // Predicated region
      $region9: #{fno2d_forward.10} parent=5 // pred_check
        _
      $region10: #{fno2d_forward.10} parent=5 // pred_check_branch
        %118 = sbr.rel (%p115) target = $region12
      $region11: #{fno2d_forward.10} parent=5 // pred_region
        %s119 = ssub.s32 %s11, 1
        // Predicated region
        $region13: #{fno2d_forward.10} parent=11 // pred_check
          %p120 = pneg %p58
        $region14: #{fno2d_forward.10} parent=11 // pred_check_branch
          %122 = sbr.rel (%p120) target = $region16
        $region15: #{fno2d_forward.10} parent=11 // pred_region
          %s124 = ssub.s32 64, 64
          %125 = vsyncadd [#allocation3], %s124
          %s127 = sshll.u32 [#allocation2], 4
          %s128 = int_to_ptr.vmem [resolvable:$true] %s127
          %130 = dma.hbm_to_vmem [thread:$0]  %s1, 64, %s128, [#allocation3]
        $region16: #{fno2d_forward.10} parent=11 // pred_fallthru
          _
        // Predicated region
        $region17: #{fno2d_forward.10} parent=11 // pred_check
          %p131 = pneg %p79
        $region18: #{fno2d_forward.10} parent=11 // pred_check_branch
          %133 = sbr.rel (%p131) target = $region20
        $region19: #{fno2d_forward.10} parent=11 // pred_region
          %s135 = ssub.s32 16, 16
          %136 = vsyncadd [#allocation5], %s135
          %s138 = sshll.u32 [#allocation4], 4
          %s139 = int_to_ptr.vmem [resolvable:$true] %s138
          %141 = dma.hbm_to_vmem [thread:$0]  %s2, 16, %s139, [#allocation5]
        $region20: #{fno2d_forward.10} parent=11 // pred_fallthru
          _
      $region12: #{fno2d_forward.10} parent=5 // pred_fallthru
        _
      %p142 = scmp.lt.s32.totalorder %s11, 2
      // Predicated region
      $region21: #{fno2d_forward.10} parent=5 // pred_check
        %p143 = pneg %p142
      $region22: #{fno2d_forward.10} parent=5 // pred_check_branch
        %145 = sbr.rel (%p143) target = $region24
      $region23: #{fno2d_forward.10} parent=5 // pred_region
        // Predicated region
        $region25: #{fno2d_forward.10} parent=23 // pred_check
          %p146 = pneg %p31
        $region26: #{fno2d_forward.10} parent=23 // pred_check_branch
          %148 = sbr.rel (%p146) target = $region28
        $region27: #{fno2d_forward.10} parent=23 // pred_region
          %s149 = smul.u32 32, %s11
          %p150 = scmp.lt.s32.totalorder %s149, 63
          %s151 = scalar_select %p150, %s149, 63
          %s152 = smul.addr %s151, 8
          %s153 = scalar_lea.vmem %s0, %s152
          %s154 = smul.u32 32, %s11
        $region28: #{fno2d_forward.10} parent=23 // pred_fallthru
          _
      $region24: #{fno2d_forward.10} parent=5 // pred_fallthru
        _
      %p155 = scmp.le.s32.totalorder 1, %s11
      %p156 = scmp.lt.s32.totalorder %s11, 3
      %p157 = pnand %p155, %p156
      %p158 = pneg %p157
      // Predicated region
      $region29: #{fno2d_forward.10} parent=5 // pred_check
        _
      $region30: #{fno2d_forward.10} parent=5 // pred_check_branch
        %160 = sbr.rel (%p157) target = $region32
      $region31: #{fno2d_forward.10} parent=5 // pred_region
        %s161 = ssub.s32 %s11, 1
        // Predicated region
        $region33: #{fno2d_forward.10} parent=31 // pred_check
          %p162 = pneg %p58
        $region34: #{fno2d_forward.10} parent=31 // pred_check_branch
          %164 = sbr.rel (%p162) target = $region36
        $region35: #{fno2d_forward.10} parent=31 // pred_region
          %165 = dma.done [#allocation3], 64
        $region36: #{fno2d_forward.10} parent=31 // pred_fallthru
          _
        // Predicated region
        $region37: #{fno2d_forward.10} parent=31 // pred_check
          %p166 = pneg %p79
        $region38: #{fno2d_forward.10} parent=31 // pred_check_branch
          %168 = sbr.rel (%p166) target = $region40
        $region39: #{fno2d_forward.10} parent=31 // pred_region
          %169 = dma.done [#allocation5], 16
        $region40: #{fno2d_forward.10} parent=31 // pred_fallthru
          _
        %s170 = smul.u32 32, %s16
        %p171 = scmp.lt.s32.totalorder %s170, 63
        %s172 = scalar_select %p171, %s170, 63
        %s173 = smul.addr %s172, 8
        %s174 = scalar_lea.vmem %s0, %s173
        %p175 = pneg %p37
        %p176 = pneg %p34
        %p177 = pneg %p58
        %p178 = pneg %p55
        %p179 = pneg %p79
        %p180 = pneg %p76
        %p181 = pneg %p105
        %p182 = pneg %p102
        %s183 = smul.u32 32, %s16
        %p184 = scmp.lt.s32.totalorder %s183, 63
        %s185 = scalar_select %p184, %s183, 63
        %s186 = smul.addr %s185, 4
        %s187 = scalar_lea.vmem %s3, %s186
        %s188 = smul.u32 32, %s16
        %p189 = scmp.lt.s32.totalorder %s188, 63
        %s190 = scalar_select %p189, %s188, 63
        %s191 = smul.addr %s190, 8
        %s192 = scalar_lea.vmem %s0, %s191
        %s193 = smul.u32 32, %s16
        %s194 = smul.u32 32, %s16
        %p195 = scmp.lt.s32.totalorder %s194, 63
        %s196 = scalar_select %p195, %s194, 63
        %s197 = smul.addr %s196, 4
        %s198 = scalar_lea.vmem %s3, %s197
        %s199 = smul.u32 32, %s16
        %v200 = vld [vmem:[%s192] sm:$0xff]
        %v201 = vld [vmem:[%s192 + $0x8] sm:$0xff]
        %v202 = vld [vmem:[%s192 + $0x10] sm:$0xff]
        %v203 = vld [vmem:[%s192 + $0x18] sm:$0xff]
        %v204 = vld [vmem:[%s192 + $0x20] sm:$0xff]
        %v205 = vld [vmem:[%s192 + $0x28] sm:$0xff]
        %v206 = vld [vmem:[%s192 + $0x30] sm:$0xff]
        %v207 = vld [vmem:[%s192 + $0x38] sm:$0xff]
        %v208 = vld [vmem:[%s192 + $0x40] sm:$0xff]
        %v209 = vld [vmem:[%s192 + $0x48] sm:$0xff]
        %v210 = vld [vmem:[%s192 + $0x50] sm:$0xff]
        %v211 = vld [vmem:[%s192 + $0x58] sm:$0xff]
        %v212 = vld [vmem:[%s192 + $0x60] sm:$0xff]
        %v213 = vld [vmem:[%s192 + $0x68] sm:$0xff]
        %v214 = vld [vmem:[%s192 + $0x70] sm:$0xff]
        %v215 = vld [vmem:[%s192 + $0x78] sm:$0xff]
        %v216 = vld [vmem:[%s192 + $0x80] sm:$0xff]
        %v217 = vld [vmem:[%s192 + $0x88] sm:$0xff]
        %v218 = vld [vmem:[%s192 + $0x90] sm:$0xff]
        %v219 = vld [vmem:[%s192 + $0x98] sm:$0xff]
        %v220 = vld [vmem:[%s192 + $0xa0] sm:$0xff]
        %v221 = vld [vmem:[%s192 + $0xa8] sm:$0xff]
        %v222 = vld [vmem:[%s192 + $0xb0] sm:$0xff]
        %v223 = vld [vmem:[%s192 + $0xb8] sm:$0xff]
        %v224 = vld [vmem:[%s192 + $0xc0] sm:$0xff]
        %v225 = vld [vmem:[%s192 + $0xc8] sm:$0xff]
        %v226 = vld [vmem:[%s192 + $0xd0] sm:$0xff]
        %v227 = vld [vmem:[%s192 + $0xd8] sm:$0xff]
        %v228 = vld [vmem:[%s192 + $0xe0] sm:$0xff]
        %v229 = vld [vmem:[%s192 + $0xe8] sm:$0xff]
        %v230 = vld [vmem:[%s192 + $0xf0] sm:$0xff]
        %v231 = vld [vmem:[%s192 + $0xf8] sm:$0xff]
        %v232 = vld [vmem:[#allocation2] sm:$0x7]
        %234 = vset.pattern.permute.xlu0 0
        %235 = vperm.xlu0 %234, %v200
        %v236 = vpop.permute.xlu0 %235
        %239 = vset.pattern.permute.xlu0 0
        %240 = vperm.xlu0 %239, %v201
        %v241 = vpop.permute.xlu0 %240
        %244 = vset.pattern.permute.xlu0 0
        %245 = vperm.xlu0 %244, %v202
        %v246 = vpop.permute.xlu0 %245
        %249 = vset.pattern.permute.xlu0 0
        %250 = vperm.xlu0 %249, %v203
        %v251 = vpop.permute.xlu0 %250
        %254 = vset.pattern.permute.xlu0 0
        %255 = vperm.xlu0 %254, %v204
        %v256 = vpop.permute.xlu0 %255
        %259 = vset.pattern.permute.xlu0 0
        %260 = vperm.xlu0 %259, %v205
        %v261 = vpop.permute.xlu0 %260
        %264 = vset.pattern.permute.xlu0 0
        %265 = vperm.xlu0 %264, %v206
        %v266 = vpop.permute.xlu0 %265
        %269 = vset.pattern.permute.xlu0 0
        %270 = vperm.xlu0 %269, %v207
        %v271 = vpop.permute.xlu0 %270
        %274 = vset.pattern.permute.xlu0 0
        %275 = vperm.xlu0 %274, %v208
        %v276 = vpop.permute.xlu0 %275
        %279 = vset.pattern.permute.xlu0 0
        %280 = vperm.xlu0 %279, %v209
        %v281 = vpop.permute.xlu0 %280
        %284 = vset.pattern.permute.xlu0 0
        %285 = vperm.xlu0 %284, %v210
        %v286 = vpop.permute.xlu0 %285
        %289 = vset.pattern.permute.xlu0 0
        %290 = vperm.xlu0 %289, %v211
        %v291 = vpop.permute.xlu0 %290
        %294 = vset.pattern.permute.xlu0 0
        %295 = vperm.xlu0 %294, %v212
        %v296 = vpop.permute.xlu0 %295
        %299 = vset.pattern.permute.xlu0 0
        %300 = vperm.xlu0 %299, %v213
        %v301 = vpop.permute.xlu0 %300
        %304 = vset.pattern.permute.xlu0 0
        %305 = vperm.xlu0 %304, %v214
        %v306 = vpop.permute.xlu0 %305
        %309 = vset.pattern.permute.xlu0 0
        %310 = vperm.xlu0 %309, %v215
        %v311 = vpop.permute.xlu0 %310
        %314 = vset.pattern.permute.xlu0 0
        %315 = vperm.xlu0 %314, %v216
        %v316 = vpop.permute.xlu0 %315
        %319 = vset.pattern.permute.xlu0 0
        %320 = vperm.xlu0 %319, %v217
        %v321 = vpop.permute.xlu0 %320
        %324 = vset.pattern.permute.xlu0 0
        %325 = vperm.xlu0 %324, %v218
        %v326 = vpop.permute.xlu0 %325
        %329 = vset.pattern.permute.xlu0 0
        %330 = vperm.xlu0 %329, %v219
        %v331 = vpop.permute.xlu0 %330
        %334 = vset.pattern.permute.xlu0 0
        %335 = vperm.xlu0 %334, %v220
        %v336 = vpop.permute.xlu0 %335
        %339 = vset.pattern.permute.xlu0 0
        %340 = vperm.xlu0 %339, %v221
        %v341 = vpop.permute.xlu0 %340
        %344 = vset.pattern.permute.xlu0 0
        %345 = vperm.xlu0 %344, %v222
        %v346 = vpop.permute.xlu0 %345
        %349 = vset.pattern.permute.xlu0 0
        %350 = vperm.xlu0 %349, %v223
        %v351 = vpop.permute.xlu0 %350
        %354 = vset.pattern.permute.xlu0 0
        %355 = vperm.xlu0 %354, %v224
        %v356 = vpop.permute.xlu0 %355
        %359 = vset.pattern.permute.xlu0 0
        %360 = vperm.xlu0 %359, %v225
        %v361 = vpop.permute.xlu0 %360
        %364 = vset.pattern.permute.xlu0 0
        %365 = vperm.xlu0 %364, %v226
        %v366 = vpop.permute.xlu0 %365
        %369 = vset.pattern.permute.xlu0 0
        %370 = vperm.xlu0 %369, %v227
        %v371 = vpop.permute.xlu0 %370
        %374 = vset.pattern.permute.xlu0 0
        %375 = vperm.xlu0 %374, %v228
        %v376 = vpop.permute.xlu0 %375
        %379 = vset.pattern.permute.xlu0 0
        %380 = vperm.xlu0 %379, %v229
        %v381 = vpop.permute.xlu0 %380
        %384 = vset.pattern.permute.xlu0 0
        %385 = vperm.xlu0 %384, %v230
        %v386 = vpop.permute.xlu0 %385
        %389 = vset.pattern.permute.xlu0 0
        %390 = vperm.xlu0 %389, %v231
        %v391 = vpop.permute.xlu0 %390
        %v393 = vlaneseq
        %v394 = vshrl.u32 %v393, 7
        %v395 = vsub.s32 0, %v394
        %v396 = vrot.slane %v232, %v395
        %v397 = vmul.f32 %v236, %v396
        %v398 = vmul.f32 %v241, %v396
        %v399 = vmul.f32 %v246, %v396
        %v400 = vmul.f32 %v251, %v396
        %v401 = vmul.f32 %v256, %v396
        %v402 = vmul.f32 %v261, %v396
        %v403 = vmul.f32 %v266, %v396
        %v404 = vmul.f32 %v271, %v396
        %v405 = vmul.f32 %v276, %v396
        %v406 = vmul.f32 %v281, %v396
        %v407 = vmul.f32 %v286, %v396
        %v408 = vmul.f32 %v291, %v396
        %v409 = vmul.f32 %v296, %v396
        %v410 = vmul.f32 %v301, %v396
        %v411 = vmul.f32 %v306, %v396
        %v412 = vmul.f32 %v311, %v396
        %v413 = vmul.f32 %v316, %v396
        %v414 = vmul.f32 %v321, %v396
        %v415 = vmul.f32 %v326, %v396
        %v416 = vmul.f32 %v331, %v396
        %v417 = vmul.f32 %v336, %v396
        %v418 = vmul.f32 %v341, %v396
        %v419 = vmul.f32 %v346, %v396
        %v420 = vmul.f32 %v351, %v396
        %v421 = vmul.f32 %v356, %v396
        %v422 = vmul.f32 %v361, %v396
        %v423 = vmul.f32 %v366, %v396
        %v424 = vmul.f32 %v371, %v396
        %v425 = vmul.f32 %v376, %v396
        %v426 = vmul.f32 %v381, %v396
        %v427 = vmul.f32 %v386, %v396
        %v428 = vmul.f32 %v391, %v396
        %429 = vset.pattern.permute.xlu0 1
        %430 = vperm.xlu0 %429, %v200
        %v431 = vpop.permute.xlu0 %430
        %433 = vset.pattern.permute.xlu0 1
        %434 = vperm.xlu0 %433, %v201
        %v435 = vpop.permute.xlu0 %434
        %437 = vset.pattern.permute.xlu0 1
        %438 = vperm.xlu0 %437, %v202
        %v439 = vpop.permute.xlu0 %438
        %441 = vset.pattern.permute.xlu0 1
        %442 = vperm.xlu0 %441, %v203
        %v443 = vpop.permute.xlu0 %442
        %445 = vset.pattern.permute.xlu0 1
        %446 = vperm.xlu0 %445, %v204
        %v447 = vpop.permute.xlu0 %446
        %449 = vset.pattern.permute.xlu0 1
        %450 = vperm.xlu0 %449, %v205
        %v451 = vpop.permute.xlu0 %450
        %453 = vset.pattern.permute.xlu0 1
        %454 = vperm.xlu0 %453, %v206
        %v455 = vpop.permute.xlu0 %454
        %457 = vset.pattern.permute.xlu0 1
        %458 = vperm.xlu0 %457, %v207
        %v459 = vpop.permute.xlu0 %458
        %461 = vset.pattern.permute.xlu0 1
        %462 = vperm.xlu0 %461, %v208
        %v463 = vpop.permute.xlu0 %462
        %465 = vset.pattern.permute.xlu0 1
        %466 = vperm.xlu0 %465, %v209
        %v467 = vpop.permute.xlu0 %466
        %469 = vset.pattern.permute.xlu0 1
        %470 = vperm.xlu0 %469, %v210
        %v471 = vpop.permute.xlu0 %470
        %473 = vset.pattern.permute.xlu0 1
        %474 = vperm.xlu0 %473, %v211
        %v475 = vpop.permute.xlu0 %474
        %477 = vset.pattern.permute.xlu0 1
        %478 = vperm.xlu0 %477, %v212
        %v479 = vpop.permute.xlu0 %478
        %481 = vset.pattern.permute.xlu0 1
        %482 = vperm.xlu0 %481, %v213
        %v483 = vpop.permute.xlu0 %482
        %485 = vset.pattern.permute.xlu0 1
        %486 = vperm.xlu0 %485, %v214
        %v487 = vpop.permute.xlu0 %486
        %489 = vset.pattern.permute.xlu0 1
        %490 = vperm.xlu0 %489, %v215
        %v491 = vpop.permute.xlu0 %490
        %493 = vset.pattern.permute.xlu0 1
        %494 = vperm.xlu0 %493, %v216
        %v495 = vpop.permute.xlu0 %494
        %497 = vset.pattern.permute.xlu0 1
        %498 = vperm.xlu0 %497, %v217
        %v499 = vpop.permute.xlu0 %498
        %501 = vset.pattern.permute.xlu0 1
        %502 = vperm.xlu0 %501, %v218
        %v503 = vpop.permute.xlu0 %502
        %505 = vset.pattern.permute.xlu0 1
        %506 = vperm.xlu0 %505, %v219
        %v507 = vpop.permute.xlu0 %506
        %509 = vset.pattern.permute.xlu0 1
        %510 = vperm.xlu0 %509, %v220
        %v511 = vpop.permute.xlu0 %510
        %513 = vset.pattern.permute.xlu0 1
        %514 = vperm.xlu0 %513, %v221
        %v515 = vpop.permute.xlu0 %514
        %517 = vset.pattern.permute.xlu0 1
        %518 = vperm.xlu0 %517, %v222
        %v519 = vpop.permute.xlu0 %518
        %521 = vset.pattern.permute.xlu0 1
        %522 = vperm.xlu0 %521, %v223
        %v523 = vpop.permute.xlu0 %522
        %525 = vset.pattern.permute.xlu0 1
        %526 = vperm.xlu0 %525, %v224
        %v527 = vpop.permute.xlu0 %526
        %529 = vset.pattern.permute.xlu0 1
        %530 = vperm.xlu0 %529, %v225
        %v531 = vpop.permute.xlu0 %530
        %533 = vset.pattern.permute.xlu0 1
        %534 = vperm.xlu0 %533, %v226
        %v535 = vpop.permute.xlu0 %534
        %537 = vset.pattern.permute.xlu0 1
        %538 = vperm.xlu0 %537, %v227
        %v539 = vpop.permute.xlu0 %538
        %541 = vset.pattern.permute.xlu0 1
        %542 = vperm.xlu0 %541, %v228
        %v543 = vpop.permute.xlu0 %542
        %545 = vset.pattern.permute.xlu0 1
        %546 = vperm.xlu0 %545, %v229
        %v547 = vpop.permute.xlu0 %546
        %549 = vset.pattern.permute.xlu0 1
        %550 = vperm.xlu0 %549, %v230
        %v551 = vpop.permute.xlu0 %550
        %553 = vset.pattern.permute.xlu0 1
        %554 = vperm.xlu0 %553, %v231
        %v555 = vpop.permute.xlu0 %554
        %v557 = vlaneseq
        %v558 = vshrl.u32 %v557, 7
        %v559 = vsub.s32 1, %v558
        %v560 = vrot.slane %v232, %v559
        %v561 = vmul.f32 %v431, %v560
        %v562 = vmul.f32 %v435, %v560
        %v563 = vmul.f32 %v439, %v560
        %v564 = vmul.f32 %v443, %v560
        %v565 = vmul.f32 %v447, %v560
        %v566 = vmul.f32 %v451, %v560
        %v567 = vmul.f32 %v455, %v560
        %v568 = vmul.f32 %v459, %v560
        %v569 = vmul.f32 %v463, %v560
        %v570 = vmul.f32 %v467, %v560
        %v571 = vmul.f32 %v471, %v560
        %v572 = vmul.f32 %v475, %v560
        %v573 = vmul.f32 %v479, %v560
        %v574 = vmul.f32 %v483, %v560
        %v575 = vmul.f32 %v487, %v560
        %v576 = vmul.f32 %v491, %v560
        %v577 = vmul.f32 %v495, %v560
        %v578 = vmul.f32 %v499, %v560
        %v579 = vmul.f32 %v503, %v560
        %v580 = vmul.f32 %v507, %v560
        %v581 = vmul.f32 %v511, %v560
        %v582 = vmul.f32 %v515, %v560
        %v583 = vmul.f32 %v519, %v560
        %v584 = vmul.f32 %v523, %v560
        %v585 = vmul.f32 %v527, %v560
        %v586 = vmul.f32 %v531, %v560
        %v587 = vmul.f32 %v535, %v560
        %v588 = vmul.f32 %v539, %v560
        %v589 = vmul.f32 %v543, %v560
        %v590 = vmul.f32 %v547, %v560
        %v591 = vmul.f32 %v551, %v560
        %v592 = vmul.f32 %v555, %v560
        %v593 = vadd.f32 %v397, %v561
        %v594 = vadd.f32 %v398, %v562
        %v595 = vadd.f32 %v399, %v563
        %v596 = vadd.f32 %v400, %v564
        %v597 = vadd.f32 %v401, %v565
        %v598 = vadd.f32 %v402, %v566
        %v599 = vadd.f32 %v403, %v567
        %v600 = vadd.f32 %v404, %v568
        %v601 = vadd.f32 %v405, %v569
        %v602 = vadd.f32 %v406, %v570
        %v603 = vadd.f32 %v407, %v571
        %v604 = vadd.f32 %v408, %v572
        %v605 = vadd.f32 %v409, %v573
        %v606 = vadd.f32 %v410, %v574
        %v607 = vadd.f32 %v411, %v575
        %v608 = vadd.f32 %v412, %v576
        %v609 = vadd.f32 %v413, %v577
        %v610 = vadd.f32 %v414, %v578
        %v611 = vadd.f32 %v415, %v579
        %v612 = vadd.f32 %v416, %v580
        %v613 = vadd.f32 %v417, %v581
        %v614 = vadd.f32 %v418, %v582
        %v615 = vadd.f32 %v419, %v583
        %v616 = vadd.f32 %v420, %v584
        %v617 = vadd.f32 %v421, %v585
        %v618 = vadd.f32 %v422, %v586
        %v619 = vadd.f32 %v423, %v587
        %v620 = vadd.f32 %v424, %v588
        %v621 = vadd.f32 %v425, %v589
        %v622 = vadd.f32 %v426, %v590
        %v623 = vadd.f32 %v427, %v591
        %v624 = vadd.f32 %v428, %v592
        %625 = vset.pattern.permute.xlu0 2
        %626 = vperm.xlu0 %625, %v200
        %v627 = vpop.permute.xlu0 %626
        %629 = vset.pattern.permute.xlu0 2
        %630 = vperm.xlu0 %629, %v201
        %v631 = vpop.permute.xlu0 %630
        %633 = vset.pattern.permute.xlu0 2
        %634 = vperm.xlu0 %633, %v202
        %v635 = vpop.permute.xlu0 %634
        %637 = vset.pattern.permute.xlu0 2
        %638 = vperm.xlu0 %637, %v203
        %v639 = vpop.permute.xlu0 %638
        %641 = vset.pattern.permute.xlu0 2
        %642 = vperm.xlu0 %641, %v204
        %v643 = vpop.permute.xlu0 %642
        %645 = vset.pattern.permute.xlu0 2
        %646 = vperm.xlu0 %645, %v205
        %v647 = vpop.permute.xlu0 %646
        %649 = vset.pattern.permute.xlu0 2
        %650 = vperm.xlu0 %649, %v206
        %v651 = vpop.permute.xlu0 %650
        %653 = vset.pattern.permute.xlu0 2
        %654 = vperm.xlu0 %653, %v207
        %v655 = vpop.permute.xlu0 %654
        %657 = vset.pattern.permute.xlu0 2
        %658 = vperm.xlu0 %657, %v208
        %v659 = vpop.permute.xlu0 %658
        %661 = vset.pattern.permute.xlu0 2
        %662 = vperm.xlu0 %661, %v209
        %v663 = vpop.permute.xlu0 %662
        %665 = vset.pattern.permute.xlu0 2
        %666 = vperm.xlu0 %665, %v210
        %v667 = vpop.permute.xlu0 %666
        %669 = vset.pattern.permute.xlu0 2
        %670 = vperm.xlu0 %669, %v211
        %v671 = vpop.permute.xlu0 %670
        %673 = vset.pattern.permute.xlu0 2
        %674 = vperm.xlu0 %673, %v212
        %v675 = vpop.permute.xlu0 %674
        %677 = vset.pattern.permute.xlu0 2
        %678 = vperm.xlu0 %677, %v213
        %v679 = vpop.permute.xlu0 %678
        %681 = vset.pattern.permute.xlu0 2
        %682 = vperm.xlu0 %681, %v214
        %v683 = vpop.permute.xlu0 %682
        %685 = vset.pattern.permute.xlu0 2
        %686 = vperm.xlu0 %685, %v215
        %v687 = vpop.permute.xlu0 %686
        %689 = vset.pattern.permute.xlu0 2
        %690 = vperm.xlu0 %689, %v216
        %v691 = vpop.permute.xlu0 %690
        %693 = vset.pattern.permute.xlu0 2
        %694 = vperm.xlu0 %693, %v217
        %v695 = vpop.permute.xlu0 %694
        %697 = vset.pattern.permute.xlu0 2
        %698 = vperm.xlu0 %697, %v218
        %v699 = vpop.permute.xlu0 %698
        %701 = vset.pattern.permute.xlu0 2
        %702 = vperm.xlu0 %701, %v219
        %v703 = vpop.permute.xlu0 %702
        %705 = vset.pattern.permute.xlu0 2
        %706 = vperm.xlu0 %705, %v220
        %v707 = vpop.permute.xlu0 %706
        %709 = vset.pattern.permute.xlu0 2
        %710 = vperm.xlu0 %709, %v221
        %v711 = vpop.permute.xlu0 %710
        %713 = vset.pattern.permute.xlu0 2
        %714 = vperm.xlu0 %713, %v222
        %v715 = vpop.permute.xlu0 %714
        %717 = vset.pattern.permute.xlu0 2
        %718 = vperm.xlu0 %717, %v223
        %v719 = vpop.permute.xlu0 %718
        %721 = vset.pattern.permute.xlu0 2
        %722 = vperm.xlu0 %721, %v224
        %v723 = vpop.permute.xlu0 %722
        %725 = vset.pattern.permute.xlu0 2
        %726 = vperm.xlu0 %725, %v225
        %v727 = vpop.permute.xlu0 %726
        %729 = vset.pattern.permute.xlu0 2
        %730 = vperm.xlu0 %729, %v226
        %v731 = vpop.permute.xlu0 %730
        %733 = vset.pattern.permute.xlu0 2
        %734 = vperm.xlu0 %733, %v227
        %v735 = vpop.permute.xlu0 %734
        %737 = vset.pattern.permute.xlu0 2
        %738 = vperm.xlu0 %737, %v228
        %v739 = vpop.permute.xlu0 %738
        %741 = vset.pattern.permute.xlu0 2
        %742 = vperm.xlu0 %741, %v229
        %v743 = vpop.permute.xlu0 %742
        %745 = vset.pattern.permute.xlu0 2
        %746 = vperm.xlu0 %745, %v230
        %v747 = vpop.permute.xlu0 %746
        %749 = vset.pattern.permute.xlu0 2
        %750 = vperm.xlu0 %749, %v231
        %v751 = vpop.permute.xlu0 %750
        %v753 = vlaneseq
        %v754 = vshrl.u32 %v753, 7
        %v755 = vsub.s32 2, %v754
        %v756 = vrot.slane %v232, %v755
        %v757 = vmul.f32 %v627, %v756
        %v758 = vmul.f32 %v631, %v756
        %v759 = vmul.f32 %v635, %v756
        %v760 = vmul.f32 %v639, %v756
        %v761 = vmul.f32 %v643, %v756
        %v762 = vmul.f32 %v647, %v756
        %v763 = vmul.f32 %v651, %v756
        %v764 = vmul.f32 %v655, %v756
        %v765 = vmul.f32 %v659, %v756
        %v766 = vmul.f32 %v663, %v756
        %v767 = vmul.f32 %v667, %v756
        %v768 = vmul.f32 %v671, %v756
        %v769 = vmul.f32 %v675, %v756
        %v770 = vmul.f32 %v679, %v756
        %v771 = vmul.f32 %v683, %v756
        %v772 = vmul.f32 %v687, %v756
        %v773 = vmul.f32 %v691, %v756
        %v774 = vmul.f32 %v695, %v756
        %v775 = vmul.f32 %v699, %v756
        %v776 = vmul.f32 %v703, %v756
        %v777 = vmul.f32 %v707, %v756
        %v778 = vmul.f32 %v711, %v756
        %v779 = vmul.f32 %v715, %v756
        %v780 = vmul.f32 %v719, %v756
        %v781 = vmul.f32 %v723, %v756
        %v782 = vmul.f32 %v727, %v756
        %v783 = vmul.f32 %v731, %v756
        %v784 = vmul.f32 %v735, %v756
        %v785 = vmul.f32 %v739, %v756
        %v786 = vmul.f32 %v743, %v756
        %v787 = vmul.f32 %v747, %v756
        %v788 = vmul.f32 %v751, %v756
        %v789 = vadd.f32 %v593, %v757
        %v790 = vadd.f32 %v594, %v758
        %v791 = vadd.f32 %v595, %v759
        %v792 = vadd.f32 %v596, %v760
        %v793 = vadd.f32 %v597, %v761
        %v794 = vadd.f32 %v598, %v762
        %v795 = vadd.f32 %v599, %v763
        %v796 = vadd.f32 %v600, %v764
        %v797 = vadd.f32 %v601, %v765
        %v798 = vadd.f32 %v602, %v766
        %v799 = vadd.f32 %v603, %v767
        %v800 = vadd.f32 %v604, %v768
        %v801 = vadd.f32 %v605, %v769
        %v802 = vadd.f32 %v606, %v770
        %v803 = vadd.f32 %v607, %v771
        %v804 = vadd.f32 %v608, %v772
        %v805 = vadd.f32 %v609, %v773
        %v806 = vadd.f32 %v610, %v774
        %v807 = vadd.f32 %v611, %v775
        %v808 = vadd.f32 %v612, %v776
        %v809 = vadd.f32 %v613, %v777
        %v810 = vadd.f32 %v614, %v778
        %v811 = vadd.f32 %v615, %v779
        %v812 = vadd.f32 %v616, %v780
        %v813 = vadd.f32 %v617, %v781
        %v814 = vadd.f32 %v618, %v782
        %v815 = vadd.f32 %v619, %v783
        %v816 = vadd.f32 %v620, %v784
        %v817 = vadd.f32 %v621, %v785
        %v818 = vadd.f32 %v622, %v786
        %v819 = vadd.f32 %v623, %v787
        %v820 = vadd.f32 %v624, %v788
        %v821 = vld [vmem:[#allocation4] sm:$0x1]
        %v823 = vlaneseq
        %v824 = vshrl.u32 %v823, 7
        %v825 = vsub.s32 0, %v824
        %v826 = vrot.slane %v821, %v825
        %v828 = vadd.f32 %v789, %v826
        %v829 = vadd.f32 %v790, %v826
        %v830 = vadd.f32 %v791, %v826
        %v831 = vadd.f32 %v792, %v826
        %v832 = vadd.f32 %v793, %v826
        %v833 = vadd.f32 %v794, %v826
        %v834 = vadd.f32 %v795, %v826
        %v835 = vadd.f32 %v796, %v826
        %v836 = vadd.f32 %v797, %v826
        %v837 = vadd.f32 %v798, %v826
        %v838 = vadd.f32 %v799, %v826
        %v839 = vadd.f32 %v800, %v826
        %v840 = vadd.f32 %v801, %v826
        %v841 = vadd.f32 %v802, %v826
        %v842 = vadd.f32 %v803, %v826
        %v843 = vadd.f32 %v804, %v826
        %v844 = vadd.f32 %v805, %v826
        %v845 = vadd.f32 %v806, %v826
        %v846 = vadd.f32 %v807, %v826
        %v847 = vadd.f32 %v808, %v826
        %v848 = vadd.f32 %v809, %v826
        %v849 = vadd.f32 %v810, %v826
        %v850 = vadd.f32 %v811, %v826
        %v851 = vadd.f32 %v812, %v826
        %v852 = vadd.f32 %v813, %v826
        %v853 = vadd.f32 %v814, %v826
        %v854 = vadd.f32 %v815, %v826
        %v855 = vadd.f32 %v816, %v826
        %v856 = vadd.f32 %v817, %v826
        %v857 = vadd.f32 %v818, %v826
        %v858 = vadd.f32 %v819, %v826
        %v859 = vadd.f32 %v820, %v826
        %v860 = vpack.c.bf16 %v829, %v828
        %v861 = vpack.c.bf16 %v831, %v830
        %v862 = vpack.c.bf16 %v833, %v832
        %v863 = vpack.c.bf16 %v835, %v834
        %v864 = vpack.c.bf16 %v837, %v836
        %v865 = vpack.c.bf16 %v839, %v838
        %v866 = vpack.c.bf16 %v841, %v840
        %v867 = vpack.c.bf16 %v843, %v842
        %v868 = vpack.c.bf16 %v845, %v844
        %v869 = vpack.c.bf16 %v847, %v846
        %v870 = vpack.c.bf16 %v849, %v848
        %v871 = vpack.c.bf16 %v851, %v850
        %v872 = vpack.c.bf16 %v853, %v852
        %v873 = vpack.c.bf16 %v855, %v854
        %v874 = vpack.c.bf16 %v857, %v856
        %v875 = vpack.c.bf16 %v859, %v858
        %v892 = vunpack.c.l.b16 %v860
        %v893 = vunpack.c.h.b16 %v860
        %v894 = vunpack.c.l.b16 %v861
        %v895 = vunpack.c.h.b16 %v861
        %v896 = vunpack.c.l.b16 %v862
        %v897 = vunpack.c.h.b16 %v862
        %v898 = vunpack.c.l.b16 %v863
        %v899 = vunpack.c.h.b16 %v863
        %v900 = vunpack.c.l.b16 %v864
        %v901 = vunpack.c.h.b16 %v864
        %v902 = vunpack.c.l.b16 %v865
        %v903 = vunpack.c.h.b16 %v865
        %v904 = vunpack.c.l.b16 %v866
        %v905 = vunpack.c.h.b16 %v866
        %v906 = vunpack.c.l.b16 %v867
        %v907 = vunpack.c.h.b16 %v867
        %v908 = vunpack.c.l.b16 %v868
        %v909 = vunpack.c.h.b16 %v868
        %v910 = vunpack.c.l.b16 %v869
        %v911 = vunpack.c.h.b16 %v869
        %v912 = vunpack.c.l.b16 %v870
        %v913 = vunpack.c.h.b16 %v870
        %v914 = vunpack.c.l.b16 %v871
        %v915 = vunpack.c.h.b16 %v871
        %v916 = vunpack.c.l.b16 %v872
        %v917 = vunpack.c.h.b16 %v872
        %v918 = vunpack.c.l.b16 %v873
        %v919 = vunpack.c.h.b16 %v873
        %v920 = vunpack.c.l.b16 %v874
        %v921 = vunpack.c.h.b16 %v874
        %v922 = vunpack.c.l.b16 %v875
        %v923 = vunpack.c.h.b16 %v875
        %v924 = vpack.c.b16 %v892, %v892
        %v925 = vpack.c.b16 %v893, %v893
        %v926 = vpack.c.b16 %v894, %v894
        %v927 = vpack.c.b16 %v895, %v895
        %v928 = vpack.c.b16 %v896, %v896
        %v929 = vpack.c.b16 %v897, %v897
        %v930 = vpack.c.b16 %v898, %v898
        %v931 = vpack.c.b16 %v899, %v899
        %v932 = vpack.c.b16 %v900, %v900
        %v933 = vpack.c.b16 %v901, %v901
        %v934 = vpack.c.b16 %v902, %v902
        %v935 = vpack.c.b16 %v903, %v903
        %v936 = vpack.c.b16 %v904, %v904
        %v937 = vpack.c.b16 %v905, %v905
        %v938 = vpack.c.b16 %v906, %v906
        %v939 = vpack.c.b16 %v907, %v907
        %v940 = vpack.c.b16 %v908, %v908
        %v941 = vpack.c.b16 %v909, %v909
        %v942 = vpack.c.b16 %v910, %v910
        %v943 = vpack.c.b16 %v911, %v911
        %v944 = vpack.c.b16 %v912, %v912
        %v945 = vpack.c.b16 %v913, %v913
        %v946 = vpack.c.b16 %v914, %v914
        %v947 = vpack.c.b16 %v915, %v915
        %v948 = vpack.c.b16 %v916, %v916
        %v949 = vpack.c.b16 %v917, %v917
        %v950 = vpack.c.b16 %v918, %v918
        %v951 = vpack.c.b16 %v919, %v919
        %v952 = vpack.c.b16 %v920, %v920
        %v953 = vpack.c.b16 %v921, %v921
        %v954 = vpack.c.b16 %v922, %v922
        %v955 = vpack.c.b16 %v923, %v923
        %vm988 = vcmask 519168
        %989 = vst.msk [vmem:[%s198] sm:$0xf] %vm988, %v924
        %990 = vst.msk [vmem:[%s198 + $0x4] sm:$0xf] %vm988, %v925
        %991 = vst.msk [vmem:[%s198 + $0x8] sm:$0xf] %vm988, %v926
        %992 = vst.msk [vmem:[%s198 + $0xc] sm:$0xf] %vm988, %v927
        %993 = vst.msk [vmem:[%s198 + $0x10] sm:$0xf] %vm988, %v928
        %994 = vst.msk [vmem:[%s198 + $0x14] sm:$0xf] %vm988, %v929
        %995 = vst.msk [vmem:[%s198 + $0x18] sm:$0xf] %vm988, %v930
        %996 = vst.msk [vmem:[%s198 + $0x1c] sm:$0xf] %vm988, %v931
        %997 = vst.msk [vmem:[%s198 + $0x20] sm:$0xf] %vm988, %v932
        %998 = vst.msk [vmem:[%s198 + $0x24] sm:$0xf] %vm988, %v933
        %999 = vst.msk [vmem:[%s198 + $0x28] sm:$0xf] %vm988, %v934
        %1000 = vst.msk [vmem:[%s198 + $0x2c] sm:$0xf] %vm988, %v935
        %1001 = vst.msk [vmem:[%s198 + $0x30] sm:$0xf] %vm988, %v936
        %1002 = vst.msk [vmem:[%s198 + $0x34] sm:$0xf] %vm988, %v937
        %1003 = vst.msk [vmem:[%s198 + $0x38] sm:$0xf] %vm988, %v938
        %1004 = vst.msk [vmem:[%s198 + $0x3c] sm:$0xf] %vm988, %v939
        %1005 = vst.msk [vmem:[%s198 + $0x40] sm:$0xf] %vm988, %v940
        %1006 = vst.msk [vmem:[%s198 + $0x44] sm:$0xf] %vm988, %v941
        %1007 = vst.msk [vmem:[%s198 + $0x48] sm:$0xf] %vm988, %v942
        %1008 = vst.msk [vmem:[%s198 + $0x4c] sm:$0xf] %vm988, %v943
        %1009 = vst.msk [vmem:[%s198 + $0x50] sm:$0xf] %vm988, %v944
        %1010 = vst.msk [vmem:[%s198 + $0x54] sm:$0xf] %vm988, %v945
        %1011 = vst.msk [vmem:[%s198 + $0x58] sm:$0xf] %vm988, %v946
        %1012 = vst.msk [vmem:[%s198 + $0x5c] sm:$0xf] %vm988, %v947
        %1013 = vst.msk [vmem:[%s198 + $0x60] sm:$0xf] %vm988, %v948
        %1014 = vst.msk [vmem:[%s198 + $0x64] sm:$0xf] %vm988, %v949
        %1015 = vst.msk [vmem:[%s198 + $0x68] sm:$0xf] %vm988, %v950
        %1016 = vst.msk [vmem:[%s198 + $0x6c] sm:$0xf] %vm988, %v951
        %1017 = vst.msk [vmem:[%s198 + $0x70] sm:$0xf] %vm988, %v952
        %1018 = vst.msk [vmem:[%s198 + $0x74] sm:$0xf] %vm988, %v953
        %1019 = vst.msk [vmem:[%s198 + $0x78] sm:$0xf] %vm988, %v954
        %1020 = vst.msk [vmem:[%s198 + $0x7c] sm:$0xf] %vm988, %v955
        %s1021 = smul.u32 32, %s16
        %p1022 = scmp.lt.s32.totalorder %s1021, 63
        %s1023 = scalar_select %p1022, %s1021, 63
        %s1024 = smul.addr %s1023, 4
        %s1025 = scalar_lea.vmem %s3, %s1024
        // Predicated region
        $region41: #{fno2d_forward.10} parent=31 // pred_check
          %p1026 = pneg %p102
        $region42: #{fno2d_forward.10} parent=31 // pred_check_branch
          %1028 = sbr.rel (%p1026) target = $region44
        $region43: #{fno2d_forward.10} parent=31 // pred_region
          %s1029 = smul.u32 32, %s16
        $region44: #{fno2d_forward.10} parent=31 // pred_fallthru
          _
      $region32: #{fno2d_forward.10} parent=5 // pred_fallthru
        _
      %p1030 = scmp.le.s32.totalorder 2, %s11
      // Predicated region
      $region45: #{fno2d_forward.10} parent=5 // pred_check
        %p1031 = pneg %p1030
      $region46: #{fno2d_forward.10} parent=5 // pred_check_branch
        %1033 = sbr.rel (%p1031) target = $region48
      $region47: #{fno2d_forward.10} parent=5 // pred_region
        %s1034 = ssub.s32 %s11, 2
        // Predicated region
        $region49: #{fno2d_forward.10} parent=47 // pred_check
          %p1035 = pneg %p108
        $region50: #{fno2d_forward.10} parent=47 // pred_check_branch
          %1037 = sbr.rel (%p1035) target = $region52
        $region51: #{fno2d_forward.10} parent=47 // pred_region
          %s1038 = smul.u32 32, %s17
          %p1039 = scmp.lt.s32.totalorder %s1038, 63
          %s1040 = scalar_select %p1039, %s1038, 63
          %s1041 = smul.addr %s1040, 4
          %s1042 = scalar_lea.vmem %s3, %s1041
        $region52: #{fno2d_forward.10} parent=47 // pred_fallthru
          _
      $region48: #{fno2d_forward.10} parent=5 // pred_fallthru
        _
    $region6: #{fno2d_forward.10} parent=1 // loop_footer
      %s15 = sadd.s32 1, %s11
    $region7: #{fno2d_forward.10} parent=1 // loop_footer_branch
      %10 = sbr.rel target = $region3
    $region8: #{fno2d_forward.10} parent=1 // loop_exit
      _
    %1043 = vsyncpa [#allocation3], 1
    %s1044 = scalar_lea.sflag [#allocation3], 1
    %1045 = vsyncpa %s1044, 1
    %1046 = vsyncpa [#allocation5], 1

// kernel: reverse.8
$region0: #{reverse.8}
  #allocation0 [shape = 's32[1]{0}', space=sflag, size = 0x4, scoped, tag = 'scoped memory for reverse.8']
  %s0 = inlined_call_operand.vmem [shape: f32[2,64,16,7], index: 0, kind: input, shape index: {}]
  %s1 = inlined_call_operand.vmem [shape: f32[2,64,16,7], index: 1, kind: output, shape index: {}]
  %s2 = scalar_lea.vmem %s0, 96
  %v3 = vld [vmem:[%s2] sm:$0xff]
  %4 = vst [vmem:[%s1] sm:$0xff] %v3
  %s5 = scalar_lea.vmem %s0, 208
  %v6 = vld [vmem:[%s5] sm:$0xff]
  %s7 = scalar_lea.vmem %s1, 112
  %8 = vst [vmem:[%s7] sm:$0xff] %v6
  %s9 = scalar_lea.vmem %s0, 80
  %v10 = vld [vmem:[%s9] sm:$0xff]
  %s11 = scalar_lea.vmem %s1, 16
  %12 = vst [vmem:[%s11] sm:$0xff] %v10
  %s13 = scalar_lea.vmem %s0, 192
  %v14 = vld [vmem:[%s13] sm:$0xff]
  %s15 = scalar_lea.vmem %s1, 128
  %16 = vst [vmem:[%s15] sm:$0xff] %v14
  %s17 = scalar_lea.vmem %s0, 64
  %v18 = vld [vmem:[%s17] sm:$0xff]
  %s19 = scalar_lea.vmem %s1, 32
  %20 = vst [vmem:[%s19] sm:$0xff] %v18
  %s21 = scalar_lea.vmem %s0, 176
  %v22 = vld [vmem:[%s21] sm:$0xff]
  %s23 = scalar_lea.vmem %s1, 144
  %24 = vst [vmem:[%s23] sm:$0xff] %v22
  %s25 = scalar_lea.vmem %s0, 48
  %v26 = vld [vmem:[%s25] sm:$0xff]
  %s27 = scalar_lea.vmem %s1, 48
  %28 = vst [vmem:[%s27] sm:$0xff] %v26
  %s29 = scalar_lea.vmem %s0, 160
  %v30 = vld [vmem:[%s29] sm:$0xff]
  %s31 = scalar_lea.vmem %s1, 160
  %32 = vst [vmem:[%s31] sm:$0xff] %v30
  %s33 = scalar_lea.vmem %s0, 32
  %v34 = vld [vmem:[%s33] sm:$0xff]
  %s35 = scalar_lea.vmem %s1, 64
  %36 = vst [vmem:[%s35] sm:$0xff] %v34
  %s37 = scalar_lea.vmem %s0, 144
  %v38 = vld [vmem:[%s37] sm:$0xff]
  %s39 = scalar_lea.vmem %s1, 176
  %40 = vst [vmem:[%s39] sm:$0xff] %v38
  %s41 = scalar_lea.vmem %s0, 16
  %v42 = vld [vmem:[%s41] sm:$0xff]
  %s43 = scalar_lea.vmem %s1, 80
  %44 = vst [vmem:[%s43] sm:$0xff] %v42
  %s45 = scalar_lea.vmem %s0, 128
  %v46 = vld [vmem:[%s45] sm:$0xff]
  %s47 = scalar_lea.vmem %s1, 192
  %48 = vst [vmem:[%s47] sm:$0xff] %v46
  %v49 = vld [vmem:[%s0] sm:$0xff]
  %s50 = scalar_lea.vmem %s1, 96
  %51 = vst [vmem:[%s50] sm:$0xff] %v49
  %s52 = scalar_lea.vmem %s0, 112
  %v53 = vld [vmem:[%s52] sm:$0xff]
  %s54 = scalar_lea.vmem %s1, 208
  %55 = vst [vmem:[%s54] sm:$0xff] %v53
  %s56 = scalar_lea.vmem %s0, 104
  %v57 = vld [vmem:[%s56] sm:$0xff]
  %s58 = scalar_lea.vmem %s1, 8
  %59 = vst [vmem:[%s58] sm:$0xff] %v57
  %s60 = scalar_lea.vmem %s0, 216
  %v61 = vld [vmem:[%s60] sm:$0xff]
  %s62 = scalar_lea.vmem %s1, 120
  %63 = vst [vmem:[%s62] sm:$0xff] %v61
  %s64 = scalar_lea.vmem %s0, 88
  %v65 = vld [vmem:[%s64] sm:$0xff]
  %s66 = scalar_lea.vmem %s1, 24
  %67 = vst [vmem:[%s66] sm:$0xff] %v65
  %s68 = scalar_lea.vmem %s0, 200
  %v69 = vld [vmem:[%s68] sm:$0xff]
  %s70 = scalar_lea.vmem %s1, 136
  %71 = vst [vmem:[%s70] sm:$0xff] %v69
  %s72 = scalar_lea.vmem %s0, 72
  %v73 = vld [vmem:[%s72] sm:$0xff]
  %s74 = scalar_lea.vmem %s1, 40
  %75 = vst [vmem:[%s74] sm:$0xff] %v73
  %s76 = scalar_lea.vmem %s0, 184
  %v77 = vld [vmem:[%s76] sm:$0xff]
  %s78 = scalar_lea.vmem %s1, 152
  %79 = vst [vmem:[%s78] sm:$0xff] %v77
  %s80 = scalar_lea.vmem %s0, 56
  %v81 = vld [vmem:[%s80] sm:$0xff]
  %s82 = scalar_lea.vmem %s1, 56
  %83 = vst [vmem:[%s82] sm:$0xff] %v81
  %s84 = scalar_lea.vmem %s0, 168
  %v85 = vld [vmem:[%s84] sm:$0xff]
  %s86 = scalar_lea.vmem %s1, 168
  %87 = vst [vmem:[%s86] sm:$0xff] %v85
  %s88 = scalar_lea.vmem %s0, 40
  %v89 = vld [vmem:[%s88] sm:$0xff]
  %s90 = scalar_lea.vmem %s1, 72
  %91 = vst [vmem:[%s90] sm:$0xff] %v89
  %s92 = scalar_lea.vmem %s0, 152
  %v93 = vld [vmem:[%s92] sm:$0xff]
  %s94 = scalar_lea.vmem %s1, 184
  %95 = vst [vmem:[%s94] sm:$0xff] %v93
  %s96 = scalar_lea.vmem %s0, 24
  %v97 = vld [vmem:[%s96] sm:$0xff]
  %s98 = scalar_lea.vmem %s1, 88
  %99 = vst [vmem:[%s98] sm:$0xff] %v97
  %s100 = scalar_lea.vmem %s0, 136
  %v101 = vld [vmem:[%s100] sm:$0xff]
  %s102 = scalar_lea.vmem %s1, 200
  %103 = vst [vmem:[%s102] sm:$0xff] %v101
  %s104 = scalar_lea.vmem %s0, 8
  %v105 = vld [vmem:[%s104] sm:$0xff]
  %s106 = scalar_lea.vmem %s1, 104
  %107 = vst [vmem:[%s106] sm:$0xff] %v105
  %s108 = scalar_lea.vmem %s0, 120
  %v109 = vld [vmem:[%s108] sm:$0xff]
  %s110 = scalar_lea.vmem %s1, 216
  %111 = vst [vmem:[%s110] sm:$0xff] %v109

// kernel: fno2d_forward.11
$region0: #{fno2d_forward.11}
  #allocation0 [shape = 'u32[]', space=smem, size = 0x4, offset = 0x4, fixed_abs, tag = 'smem constant byte address 0x4 - core index']
  #allocation1 [shape = 'u32[144,128]{1,0:T(1,128)}', space=vmem, size = 0x12000, scoped, tag = 'internal scratch']
  %s0 = inlined_call_operand.vmem [shape: bf16[72,2,64], index: 0, kind: input, shape index: {}]
  %s1 = inlined_call_operand.vmem [shape: bf16[72,2,64], index: 1, kind: input, shape index: {}]
  %s2 = inlined_call_operand.vmem [shape: bf16[72,64,64], index: 2, kind: input, shape index: {}]
  %s3 = inlined_call_operand.vmem [shape: bf16[72,64,64], index: 3, kind: input, shape index: {}]
  %s4 = inlined_call_operand.vmem [shape: f32[72,2,64], index: 4, kind: output, shape index: {0}]
  %s5 = inlined_call_operand.vmem [shape: f32[72,2,64], index: 5, kind: output, shape index: {1}]
  %6 = xla_tuple %s4, %s5
  %s7 = sld [smem:[#allocation0]]
  $region57: #{fno2d_forward.11} parent=0
    _
  %s9 = ssub.s32 1, %s7
  %s10 = scalar_select 0, %s9, %s7
  loop: start=0, step=1, limit=4
  $region2: #{fno2d_forward.11} parent=0 // loop_pre_header
    _
  $region3: #{fno2d_forward.11} parent=0 // loop_header
    %s12 = sphi 0, %s16
    %p13 = scmp.ge.s32.totalorder %s12, 4
    %s22 = sphi 0, %s24
    %s25 = sphi 0, %s22
    %s26 = sphi 0, %s25
    %s42 = sphi 0, %s26
    %s48 = sphi 0, %s50
    %s51 = sphi 0, %s48
    %s52 = sphi 0, %s51
    %s68 = sphi 0, %s52
    %s74 = sphi 0, %s76
    %s77 = sphi 0, %s74
    %s78 = sphi 0, %s77
    %s94 = sphi 0, %s78
    %s100 = sphi 0, %s102
    %s103 = sphi 0, %s100
    %s104 = sphi 0, %s103
    %s120 = sphi 0, %s104
    %s126 = sphi 0, %s128
    %s129 = sphi 0, %s126
    %s130 = sphi 0, %s129
    %s146 = sphi 0, %s130
    %s152 = sphi 0, %s154
    %s155 = sphi 0, %s152
    %s156 = sphi 0, %s155
    %s172 = sphi 0, %s156
  $region4: #{fno2d_forward.11} parent=0 // loop_header_branch
    %15 = sbr.rel (%p13) target = $region8
  $region5: #{fno2d_forward.11} parent=0 // loop_body
    %s17 = ssub.s32 %s12, 1
    %s18 = ssub.s32 %s12, 2
    %s19 = sadd.s32 %s12, 1
    %s20 = ssub.s32 %s12, %s19
    %p21 = scmp.eq.s32.totalorder %s20, 0
    %s23 = sadd.s32 %s22, 1
    %s24 = scalar_select %p21, %s22, %s23
    %p27 = pneg %p21
    %p28 = scmp.eq.s32.totalorder %s12, 1
    %p29 = por %p27, %p28
    %p30 = scmp.ne.s32.totalorder %s22, %s25
    %p31 = scmp.eq.s32.totalorder %s12, 0
    %p32 = por %p30, %p31
    %p33 = scmp.ne.s32.totalorder %s22, %s25
    %p34 = scmp.eq.s32.totalorder %s17, 1
    %p35 = por %p33, %p34
    %p36 = scmp.ne.s32.totalorder %s25, %s26
    %p37 = scmp.eq.s32.totalorder %s17, 0
    %p38 = por %p36, %p37
    %p39 = scmp.ne.s32.totalorder %s25, %s26
    %p40 = scmp.eq.s32.totalorder %s18, 1
    %p41 = por %p39, %p40
    %p43 = scmp.ne.s32.totalorder %s26, %s42
    %p44 = scmp.eq.s32.totalorder %s18, 0
    %p45 = por %p43, %p44
    %s46 = ssub.s32 %s12, %s19
    %p47 = scmp.eq.s32.totalorder %s46, 0
    %s49 = sadd.s32 %s48, 1
    %s50 = scalar_select %p47, %s48, %s49
    %p53 = pneg %p47
    %p54 = scmp.eq.s32.totalorder %s12, 1
    %p55 = por %p53, %p54
    %p56 = scmp.ne.s32.totalorder %s48, %s51
    %p57 = scmp.eq.s32.totalorder %s12, 0
    %p58 = por %p56, %p57
    %p59 = scmp.ne.s32.totalorder %s48, %s51
    %p60 = scmp.eq.s32.totalorder %s17, 1
    %p61 = por %p59, %p60
    %p62 = scmp.ne.s32.totalorder %s51, %s52
    %p63 = scmp.eq.s32.totalorder %s17, 0
    %p64 = por %p62, %p63
    %p65 = scmp.ne.s32.totalorder %s51, %s52
    %p66 = scmp.eq.s32.totalorder %s18, 1
    %p67 = por %p65, %p66
    %p69 = scmp.ne.s32.totalorder %s52, %s68
    %p70 = scmp.eq.s32.totalorder %s18, 0
    %p71 = por %p69, %p70
    %s72 = ssub.s32 %s12, %s19
    %p73 = scmp.eq.s32.totalorder %s72, 0
    %s75 = sadd.s32 %s74, 1
    %s76 = scalar_select %p73, %s74, %s75
    %p79 = pneg %p73
    %p80 = scmp.eq.s32.totalorder %s12, 1
    %p81 = por %p79, %p80
    %p82 = scmp.ne.s32.totalorder %s74, %s77
    %p83 = scmp.eq.s32.totalorder %s12, 0
    %p84 = por %p82, %p83
    %p85 = scmp.ne.s32.totalorder %s74, %s77
    %p86 = scmp.eq.s32.totalorder %s17, 1
    %p87 = por %p85, %p86
    %p88 = scmp.ne.s32.totalorder %s77, %s78
    %p89 = scmp.eq.s32.totalorder %s17, 0
    %p90 = por %p88, %p89
    %p91 = scmp.ne.s32.totalorder %s77, %s78
    %p92 = scmp.eq.s32.totalorder %s18, 1
    %p93 = por %p91, %p92
    %p95 = scmp.ne.s32.totalorder %s78, %s94
    %p96 = scmp.eq.s32.totalorder %s18, 0
    %p97 = por %p95, %p96
    %s98 = ssub.s32 %s12, %s19
    %p99 = scmp.eq.s32.totalorder %s98, 0
    %s101 = sadd.s32 %s100, 1
    %s102 = scalar_select %p99, %s100, %s101
    %p105 = pneg %p99
    %p106 = scmp.eq.s32.totalorder %s12, 1
    %p107 = por %p105, %p106
    %p108 = scmp.ne.s32.totalorder %s100, %s103
    %p109 = scmp.eq.s32.totalorder %s12, 0
    %p110 = por %p108, %p109
    %p111 = scmp.ne.s32.totalorder %s100, %s103
    %p112 = scmp.eq.s32.totalorder %s17, 1
    %p113 = por %p111, %p112
    %p114 = scmp.ne.s32.totalorder %s103, %s104
    %p115 = scmp.eq.s32.totalorder %s17, 0
    %p116 = por %p114, %p115
    %p117 = scmp.ne.s32.totalorder %s103, %s104
    %p118 = scmp.eq.s32.totalorder %s18, 1
    %p119 = por %p117, %p118
    %p121 = scmp.ne.s32.totalorder %s104, %s120
    %p122 = scmp.eq.s32.totalorder %s18, 0
    %p123 = por %p121, %p122
    %s124 = ssub.s32 %s12, %s19
    %p125 = scmp.eq.s32.totalorder %s124, 0
    %s127 = sadd.s32 %s126, 1
    %s128 = scalar_select %p125, %s126, %s127
    %p131 = pneg %p125
    %p132 = scmp.eq.s32.totalorder %s12, 1
    %p133 = por %p131, %p132
    %p134 = scmp.ne.s32.totalorder %s126, %s129
    %p135 = scmp.eq.s32.totalorder %s12, 0
    %p136 = por %p134, %p135
    %p137 = scmp.ne.s32.totalorder %s126, %s129
    %p138 = scmp.eq.s32.totalorder %s17, 1
    %p139 = por %p137, %p138
    %p140 = scmp.ne.s32.totalorder %s129, %s130
    %p141 = scmp.eq.s32.totalorder %s17, 0
    %p142 = por %p140, %p141
    %p143 = scmp.ne.s32.totalorder %s129, %s130
    %p144 = scmp.eq.s32.totalorder %s18, 1
    %p145 = por %p143, %p144
    %p147 = scmp.ne.s32.totalorder %s130, %s146
    %p148 = scmp.eq.s32.totalorder %s18, 0
    %p149 = por %p147, %p148
    %s150 = ssub.s32 %s12, %s19
    %p151 = scmp.eq.s32.totalorder %s150, 0
    %s153 = sadd.s32 %s152, 1
    %s154 = scalar_select %p151, %s152, %s153
    %p157 = pneg %p151
    %p158 = scmp.eq.s32.totalorder %s12, 1
    %p159 = por %p157, %p158
    %p160 = scmp.ne.s32.totalorder %s152, %s155
    %p161 = scmp.eq.s32.totalorder %s12, 0
    %p162 = por %p160, %p161
    %p163 = scmp.ne.s32.totalorder %s152, %s155
    %p164 = scmp.eq.s32.totalorder %s17, 1
    %p165 = por %p163, %p164
    %p166 = scmp.ne.s32.totalorder %s155, %s156
    %p167 = scmp.eq.s32.totalorder %s17, 0
    %p168 = por %p166, %p167
    %p169 = scmp.ne.s32.totalorder %s155, %s156
    %p170 = scmp.eq.s32.totalorder %s18, 1
    %p171 = por %p169, %p170
    %p173 = scmp.ne.s32.totalorder %s156, %s172
    %p174 = scmp.eq.s32.totalorder %s18, 0
    %p175 = por %p173, %p174
    %p176 = scmp.le.s32.totalorder 1, %s12
    %p177 = scmp.lt.s32.totalorder %s12, 3
    %p178 = pnand %p176, %p177
    %p179 = pneg %p178
    // Predicated region
    $region9: #{fno2d_forward.11} parent=5 // pred_check
      _
    $region10: #{fno2d_forward.11} parent=5 // pred_check_branch
      %181 = sbr.rel (%p178) target = $region12
    $region11: #{fno2d_forward.11} parent=5 // pred_region
      %s182 = ssub.s32 %s12, 1
    $region12: #{fno2d_forward.11} parent=5 // pred_fallthru
      _
    %p183 = scmp.lt.s32.totalorder %s12, 2
    // Predicated region
    $region13: #{fno2d_forward.11} parent=5 // pred_check
      %p184 = pneg %p183
    $region14: #{fno2d_forward.11} parent=5 // pred_check_branch
      %186 = sbr.rel (%p184) target = $region16
    $region15: #{fno2d_forward.11} parent=5 // pred_region
      // Predicated region
      $region17: #{fno2d_forward.11} parent=15 // pred_check
        %p187 = pneg %p32
      $region18: #{fno2d_forward.11} parent=15 // pred_check_branch
        %189 = sbr.rel (%p187) target = $region20
      $region19: #{fno2d_forward.11} parent=15 // pred_region
        %s190 = smul.u32 36, %s12
        %p191 = scmp.lt.s32.totalorder %s190, 71
        %s192 = scalar_select %p191, %s190, 71
        %s193 = scalar_lea.vmem %s0, %s192
        %s194 = smul.u32 36, %s12
      $region20: #{fno2d_forward.11} parent=15 // pred_fallthru
        _
      // Predicated region
      $region21: #{fno2d_forward.11} parent=15 // pred_check
        %p195 = pneg %p58
      $region22: #{fno2d_forward.11} parent=15 // pred_check_branch
        %197 = sbr.rel (%p195) target = $region24
      $region23: #{fno2d_forward.11} parent=15 // pred_region
        %s198 = smul.u32 36, %s12
        %p199 = scmp.lt.s32.totalorder %s198, 71
        %s200 = scalar_select %p199, %s198, 71
        %s201 = scalar_lea.vmem %s1, %s200
        %s202 = smul.u32 36, %s12
      $region24: #{fno2d_forward.11} parent=15 // pred_fallthru
        _
      // Predicated region
      $region25: #{fno2d_forward.11} parent=15 // pred_check
        %p203 = pneg %p84
      $region26: #{fno2d_forward.11} parent=15 // pred_check_branch
        %205 = sbr.rel (%p203) target = $region28
      $region27: #{fno2d_forward.11} parent=15 // pred_region
        %s206 = smul.u32 36, %s12
        %p207 = scmp.lt.s32.totalorder %s206, 71
        %s208 = scalar_select %p207, %s206, 71
        %s209 = smul.addr %s208, 8
        %s210 = smul.addr %s209, 4
        %s211 = scalar_lea.vmem %s2, %s210
        %s212 = smul.u32 36, %s12
      $region28: #{fno2d_forward.11} parent=15 // pred_fallthru
        _
      // Predicated region
      $region29: #{fno2d_forward.11} parent=15 // pred_check
        %p213 = pneg %p110
      $region30: #{fno2d_forward.11} parent=15 // pred_check_branch
        %215 = sbr.rel (%p213) target = $region32
      $region31: #{fno2d_forward.11} parent=15 // pred_region
        %s216 = smul.u32 36, %s12
        %p217 = scmp.lt.s32.totalorder %s216, 71
        %s218 = scalar_select %p217, %s216, 71
        %s219 = smul.addr %s218, 8
        %s220 = smul.addr %s219, 4
        %s221 = scalar_lea.vmem %s3, %s220
        %s222 = smul.u32 36, %s12
      $region32: #{fno2d_forward.11} parent=15 // pred_fallthru
        _
    $region16: #{fno2d_forward.11} parent=5 // pred_fallthru
      _
    %p223 = scmp.le.s32.totalorder 1, %s12
    %p224 = scmp.lt.s32.totalorder %s12, 3
    %p225 = pnand %p223, %p224
    %p226 = pneg %p225
    // Predicated region
    $region33: #{fno2d_forward.11} parent=5 // pred_check
      _
    $region34: #{fno2d_forward.11} parent=5 // pred_check_branch
      %228 = sbr.rel (%p225) target = $region36
    $region35: #{fno2d_forward.11} parent=5 // pred_region
      %s229 = ssub.s32 %s12, 1
      %s230 = smul.u32 36, %s17
      %p231 = scmp.lt.s32.totalorder %s230, 71
      %s232 = scalar_select %p231, %s230, 71
      %s233 = scalar_lea.vmem %s0, %s232
      %p234 = pneg %p38
      %p235 = pneg %p35
      %s236 = smul.u32 36, %s17
      %p237 = scmp.lt.s32.totalorder %s236, 71
      %s238 = scalar_select %p237, %s236, 71
      %s239 = scalar_lea.vmem %s1, %s238
      %p240 = pneg %p64
      %p241 = pneg %p61
      %s242 = smul.u32 36, %s17
      %p243 = scmp.lt.s32.totalorder %s242, 71
      %s244 = scalar_select %p243, %s242, 71
      %s245 = smul.addr %s244, 8
      %s246 = smul.addr %s245, 4
      %s247 = scalar_lea.vmem %s2, %s246
      %p248 = pneg %p90
      %p249 = pneg %p87
      %s250 = smul.u32 36, %s17
      %p251 = scmp.lt.s32.totalorder %s250, 71
      %s252 = scalar_select %p251, %s250, 71
      %s253 = smul.addr %s252, 8
      %s254 = smul.addr %s253, 4
      %s255 = scalar_lea.vmem %s3, %s254
      %p256 = pneg %p116
      %p257 = pneg %p113
      %p258 = pneg %p142
      %p259 = pneg %p139
      %s260 = smul.u32 36, %s17
      %p261 = scmp.lt.s32.totalorder %s260, 71
      %s262 = scalar_select %p261, %s260, 71
      %s263 = smul.addr %s262, 2
      %s264 = scalar_lea.vmem %s4, %s263
      %p265 = pneg %p168
      %p266 = pneg %p165
      %s267 = smul.u32 36, %s17
      %p268 = scmp.lt.s32.totalorder %s267, 71
      %s269 = scalar_select %p268, %s267, 71
      %s270 = smul.addr %s269, 2
      %s271 = scalar_lea.vmem %s5, %s270
      %s272 = smul.u32 36, %s17
      %p273 = scmp.lt.s32.totalorder %s272, 71
      %s274 = scalar_select %p273, %s272, 71
      %s275 = scalar_lea.vmem %s0, %s274
      %s276 = smul.u32 36, %s17
      %s277 = smul.u32 36, %s17
      %p278 = scmp.lt.s32.totalorder %s277, 71
      %s279 = scalar_select %p278, %s277, 71
      %s280 = scalar_lea.vmem %s1, %s279
      %s281 = smul.u32 36, %s17
      %s282 = smul.u32 36, %s17
      %p283 = scmp.lt.s32.totalorder %s282, 71
      %s284 = scalar_select %p283, %s282, 71
      %s285 = smul.addr %s284, 8
      %s286 = smul.addr %s285, 4
      %s287 = scalar_lea.vmem %s2, %s286
      %s288 = smul.u32 36, %s17
      %s289 = smul.u32 36, %s17
      %p290 = scmp.lt.s32.totalorder %s289, 71
      %s291 = scalar_select %p290, %s289, 71
      %s292 = smul.addr %s291, 8
      %s293 = smul.addr %s292, 4
      %s294 = scalar_lea.vmem %s3, %s293
      %s295 = smul.u32 36, %s17
      %s296 = smul.u32 36, %s17
      %p297 = scmp.lt.s32.totalorder %s296, 71
      %s298 = scalar_select %p297, %s296, 71
      %s299 = smul.addr %s298, 2
      %s300 = scalar_lea.vmem %s4, %s299
      %s301 = smul.u32 36, %s17
      %s302 = smul.u32 36, %s17
      %p303 = scmp.lt.s32.totalorder %s302, 71
      %s304 = scalar_select %p303, %s302, 71
      %s305 = smul.addr %s304, 2
      %s306 = scalar_lea.vmem %s5, %s305
      %s307 = smul.u32 36, %s17
      %v309 = vld [vmem:[%s275] sm:$0x1]
      %v310 = vld [vmem:[%s275 + $0x1] sm:$0x1]
      %v311 = vld [vmem:[%s275 + $0x2] sm:$0x1]
      %v312 = vld [vmem:[%s275 + $0x3] sm:$0x1]
      %v313 = vld [vmem:[%s275 + $0x4] sm:$0x1]
      %v314 = vld [vmem:[%s275 + $0x5] sm:$0x1]
      %v315 = vld [vmem:[%s275 + $0x6] sm:$0x1]
      %v316 = vld [vmem:[%s275 + $0x7] sm:$0x1]
      %v317 = vld [vmem:[%s275 + $0x8] sm:$0x1]
      %v318 = vld [vmem:[%s275 + $0x9] sm:$0x1]
      %v319 = vld [vmem:[%s275 + $0xa] sm:$0x1]
      %v320 = vld [vmem:[%s275 + $0xb] sm:$0x1]
      %v321 = vld [vmem:[%s275 + $0xc] sm:$0x1]
      %v322 = vld [vmem:[%s275 + $0xd] sm:$0x1]
      %v323 = vld [vmem:[%s275 + $0xe] sm:$0x1]
      %v324 = vld [vmem:[%s275 + $0xf] sm:$0x1]
      %v325 = vld [vmem:[%s275 + $0x10] sm:$0x1]
      %v326 = vld [vmem:[%s275 + $0x11] sm:$0x1]
      %v327 = vld [vmem:[%s275 + $0x12] sm:$0x1]
      %v328 = vld [vmem:[%s275 + $0x13] sm:$0x1]
      %v329 = vld [vmem:[%s275 + $0x14] sm:$0x1]
      %v330 = vld [vmem:[%s275 + $0x15] sm:$0x1]
      %v331 = vld [vmem:[%s275 + $0x16] sm:$0x1]
      %v332 = vld [vmem:[%s275 + $0x17] sm:$0x1]
      %v333 = vld [vmem:[%s275 + $0x18] sm:$0x1]
      %v334 = vld [vmem:[%s275 + $0x19] sm:$0x1]
      %v335 = vld [vmem:[%s275 + $0x1a] sm:$0x1]
      %v336 = vld [vmem:[%s275 + $0x1b] sm:$0x1]
      %v337 = vld [vmem:[%s275 + $0x1c] sm:$0x1]
      %v338 = vld [vmem:[%s275 + $0x1d] sm:$0x1]
      %v339 = vld [vmem:[%s275 + $0x1e] sm:$0x1]
      %v340 = vld [vmem:[%s275 + $0x1f] sm:$0x1]
      %v341 = vld [vmem:[%s275 + $0x20] sm:$0x1]
      %v342 = vld [vmem:[%s275 + $0x21] sm:$0x1]
      %v343 = vld [vmem:[%s275 + $0x22] sm:$0x1]
      %v344 = vld [vmem:[%s275 + $0x23] sm:$0x1]
      %v345 = vld [vmem:[%s280] sm:$0x1]
      %v346 = vld [vmem:[%s280 + $0x1] sm:$0x1]
      %v347 = vld [vmem:[%s280 + $0x2] sm:$0x1]
      %v348 = vld [vmem:[%s280 + $0x3] sm:$0x1]
      %v349 = vld [vmem:[%s280 + $0x4] sm:$0x1]
      %v350 = vld [vmem:[%s280 + $0x5] sm:$0x1]
      %v351 = vld [vmem:[%s280 + $0x6] sm:$0x1]
      %v352 = vld [vmem:[%s280 + $0x7] sm:$0x1]
      %v353 = vld [vmem:[%s280 + $0x8] sm:$0x1]
      %v354 = vld [vmem:[%s280 + $0x9] sm:$0x1]
      %v355 = vld [vmem:[%s280 + $0xa] sm:$0x1]
      %v356 = vld [vmem:[%s280 + $0xb] sm:$0x1]
      %v357 = vld [vmem:[%s280 + $0xc] sm:$0x1]
      %v358 = vld [vmem:[%s280 + $0xd] sm:$0x1]
      %v359 = vld [vmem:[%s280 + $0xe] sm:$0x1]
      %v360 = vld [vmem:[%s280 + $0xf] sm:$0x1]
      %v361 = vld [vmem:[%s280 + $0x10] sm:$0x1]
      %v362 = vld [vmem:[%s280 + $0x11] sm:$0x1]
      %v363 = vld [vmem:[%s280 + $0x12] sm:$0x1]
      %v364 = vld [vmem:[%s280 + $0x13] sm:$0x1]
      %v365 = vld [vmem:[%s280 + $0x14] sm:$0x1]
      %v366 = vld [vmem:[%s280 + $0x15] sm:$0x1]
      %v367 = vld [vmem:[%s280 + $0x16] sm:$0x1]
      %v368 = vld [vmem:[%s280 + $0x17] sm:$0x1]
      %v369 = vld [vmem:[%s280 + $0x18] sm:$0x1]
      %v370 = vld [vmem:[%s280 + $0x19] sm:$0x1]
      %v371 = vld [vmem:[%s280 + $0x1a] sm:$0x1]
      %v372 = vld [vmem:[%s280 + $0x1b] sm:$0x1]
      %v373 = vld [vmem:[%s280 + $0x1c] sm:$0x1]
      %v374 = vld [vmem:[%s280 + $0x1d] sm:$0x1]
      %v375 = vld [vmem:[%s280 + $0x1e] sm:$0x1]
      %v376 = vld [vmem:[%s280 + $0x1f] sm:$0x1]
      %v377 = vld [vmem:[%s280 + $0x20] sm:$0x1]
      %v378 = vld [vmem:[%s280 + $0x21] sm:$0x1]
      %v379 = vld [vmem:[%s280 + $0x22] sm:$0x1]
      %v380 = vld [vmem:[%s280 + $0x23] sm:$0x1]
      %v381 = vld [vmem:[%s287] sm:$0xf]
      %v382 = vld [vmem:[%s287 + $0x4] sm:$0xf]
      %v383 = vld [vmem:[%s287 + $0x8] sm:$0xf]
      %v384 = vld [vmem:[%s287 + $0xc] sm:$0xf]
      %v385 = vld [vmem:[%s287 + $0x10] sm:$0xf]
      %v386 = vld [vmem:[%s287 + $0x14] sm:$0xf]
      %v387 = vld [vmem:[%s287 + $0x18] sm:$0xf]
      %v388 = vld [vmem:[%s287 + $0x1c] sm:$0xf]
      %v389 = vld [vmem:[%s287 + $0x20] sm:$0xf]
      %v390 = vld [vmem:[%s287 + $0x24] sm:$0xf]
      %v391 = vld [vmem:[%s287 + $0x28] sm:$0xf]
      %v392 = vld [vmem:[%s287 + $0x2c] sm:$0xf]
      %v393 = vld [vmem:[%s287 + $0x30] sm:$0xf]
      %v394 = vld [vmem:[%s287 + $0x34] sm:$0xf]
      %v395 = vld [vmem:[%s287 + $0x38] sm:$0xf]
      %v396 = vld [vmem:[%s287 + $0x3c] sm:$0xf]
      %v397 = vld [vmem:[%s287 + $0x40] sm:$0xf]
      %v398 = vld [vmem:[%s287 + $0x44] sm:$0xf]
      %v399 = vld [vmem:[%s287 + $0x48] sm:$0xf]
      %v400 = vld [vmem:[%s287 + $0x4c] sm:$0xf]
      %v401 = vld [vmem:[%s287 + $0x50] sm:$0xf]
      %v402 = vld [vmem:[%s287 + $0x54] sm:$0xf]
      %v403 = vld [vmem:[%s287 + $0x58] sm:$0xf]
      %v404 = vld [vmem:[%s287 + $0x5c] sm:$0xf]
      %v405 = vld [vmem:[%s287 + $0x60] sm:$0xf]
      %v406 = vld [vmem:[%s287 + $0x64] sm:$0xf]
      %v407 = vld [vmem:[%s287 + $0x68] sm:$0xf]
      %v408 = vld [vmem:[%s287 + $0x6c] sm:$0xf]
      %v409 = vld [vmem:[%s287 + $0x70] sm:$0xf]
      %v410 = vld [vmem:[%s287 + $0x74] sm:$0xf]
      %v411 = vld [vmem:[%s287 + $0x78] sm:$0xf]
      %v412 = vld [vmem:[%s287 + $0x7c] sm:$0xf]
      %v413 = vld [vmem:[%s287 + $0x80] sm:$0xf]
      %v414 = vld [vmem:[%s287 + $0x84] sm:$0xf]
      %v415 = vld [vmem:[%s287 + $0x88] sm:$0xf]
      %v416 = vld [vmem:[%s287 + $0x8c] sm:$0xf]
      %v417 = vld [vmem:[%s287 + $0x90] sm:$0xf]
      %v418 = vld [vmem:[%s287 + $0x94] sm:$0xf]
      %v419 = vld [vmem:[%s287 + $0x98] sm:$0xf]
      %v420 = vld [vmem:[%s287 + $0x9c] sm:$0xf]
      %v421 = vld [vmem:[%s287 + $0xa0] sm:$0xf]
      %v422 = vld [vmem:[%s287 + $0xa4] sm:$0xf]
      %v423 = vld [vmem:[%s287 + $0xa8] sm:$0xf]
      %v424 = vld [vmem:[%s287 + $0xac] sm:$0xf]
      %v425 = vld [vmem:[%s287 + $0xb0] sm:$0xf]
      %v426 = vld [vmem:[%s287 + $0xb4] sm:$0xf]
      %v427 = vld [vmem:[%s287 + $0xb8] sm:$0xf]
      %v428 = vld [vmem:[%s287 + $0xbc] sm:$0xf]
      %v429 = vld [vmem:[%s287 + $0xc0] sm:$0xf]
      %v430 = vld [vmem:[%s287 + $0xc4] sm:$0xf]
      %v431 = vld [vmem:[%s287 + $0xc8] sm:$0xf]
      %v432 = vld [vmem:[%s287 + $0xcc] sm:$0xf]
      %v433 = vld [vmem:[%s287 + $0xd0] sm:$0xf]
      %v434 = vld [vmem:[%s287 + $0xd4] sm:$0xf]
      %v435 = vld [vmem:[%s287 + $0xd8] sm:$0xf]
      %v436 = vld [vmem:[%s287 + $0xdc] sm:$0xf]
      %v437 = vld [vmem:[%s287 + $0xe0] sm:$0xf]
      %v438 = vld [vmem:[%s287 + $0xe4] sm:$0xf]
      %v439 = vld [vmem:[%s287 + $0xe8] sm:$0xf]
      %v440 = vld [vmem:[%s287 + $0xec] sm:$0xf]
      %v441 = vld [vmem:[%s287 + $0xf0] sm:$0xf]
      %v442 = vld [vmem:[%s287 + $0xf4] sm:$0xf]
      %v443 = vld [vmem:[%s287 + $0xf8] sm:$0xf]
      %v444 = vld [vmem:[%s287 + $0xfc] sm:$0xf]
      %v445 = vld [vmem:[%s287 + $0x100] sm:$0xf]
      %v446 = vld [vmem:[%s287 + $0x104] sm:$0xf]
      %v447 = vld [vmem:[%s287 + $0x108] sm:$0xf]
      %v448 = vld [vmem:[%s287 + $0x10c] sm:$0xf]
      %v449 = vld [vmem:[%s287 + $0x110] sm:$0xf]
      %v450 = vld [vmem:[%s287 + $0x114] sm:$0xf]
      %v451 = vld [vmem:[%s287 + $0x118] sm:$0xf]
      %v452 = vld [vmem:[%s287 + $0x11c] sm:$0xf]
      %v453 = vld [vmem:[%s287 + $0x120] sm:$0xf]
      %v454 = vld [vmem:[%s287 + $0x124] sm:$0xf]
      %v455 = vld [vmem:[%s287 + $0x128] sm:$0xf]
      %v456 = vld [vmem:[%s287 + $0x12c] sm:$0xf]
      %v457 = vld [vmem:[%s287 + $0x130] sm:$0xf]
      %v458 = vld [vmem:[%s287 + $0x134] sm:$0xf]
      %v459 = vld [vmem:[%s287 + $0x138] sm:$0xf]
      %v460 = vld [vmem:[%s287 + $0x13c] sm:$0xf]
      %v461 = vld [vmem:[%s287 + $0x140] sm:$0xf]
      %v462 = vld [vmem:[%s287 + $0x144] sm:$0xf]
      %v463 = vld [vmem:[%s287 + $0x148] sm:$0xf]
      %v464 = vld [vmem:[%s287 + $0x14c] sm:$0xf]
      %v465 = vld [vmem:[%s287 + $0x150] sm:$0xf]
      %v466 = vld [vmem:[%s287 + $0x154] sm:$0xf]
      %v467 = vld [vmem:[%s287 + $0x158] sm:$0xf]
      %v468 = vld [vmem:[%s287 + $0x15c] sm:$0xf]
      %v469 = vld [vmem:[%s287 + $0x160] sm:$0xf]
      %v470 = vld [vmem:[%s287 + $0x164] sm:$0xf]
      %v471 = vld [vmem:[%s287 + $0x168] sm:$0xf]
      %v472 = vld [vmem:[%s287 + $0x16c] sm:$0xf]
      %v473 = vld [vmem:[%s287 + $0x170] sm:$0xf]
      %v474 = vld [vmem:[%s287 + $0x174] sm:$0xf]
      %v475 = vld [vmem:[%s287 + $0x178] sm:$0xf]
      %v476 = vld [vmem:[%s287 + $0x17c] sm:$0xf]
      %v477 = vld [vmem:[%s287 + $0x180] sm:$0xf]
      %v478 = vld [vmem:[%s287 + $0x184] sm:$0xf]
      %v479 = vld [vmem:[%s287 + $0x188] sm:$0xf]
      %v480 = vld [vmem:[%s287 + $0x18c] sm:$0xf]
      %v481 = vld [vmem:[%s287 + $0x190] sm:$0xf]
      %v482 = vld [vmem:[%s287 + $0x194] sm:$0xf]
      %v483 = vld [vmem:[%s287 + $0x198] sm:$0xf]
      %v484 = vld [vmem:[%s287 + $0x19c] sm:$0xf]
      %v485 = vld [vmem:[%s287 + $0x1a0] sm:$0xf]
      %v486 = vld [vmem:[%s287 + $0x1a4] sm:$0xf]
      %v487 = vld [vmem:[%s287 + $0x1a8] sm:$0xf]
      %v488 = vld [vmem:[%s287 + $0x1ac] sm:$0xf]
      %v489 = vld [vmem:[%s287 + $0x1b0] sm:$0xf]
      %v490 = vld [vmem:[%s287 + $0x1b4] sm:$0xf]
      %v491 = vld [vmem:[%s287 + $0x1b8] sm:$0xf]
      %v492 = vld [vmem:[%s287 + $0x1bc] sm:$0xf]
      %v493 = vld [vmem:[%s287 + $0x1c0] sm:$0xf]
      %v494 = vld [vmem:[%s287 + $0x1c4] sm:$0xf]
      %v495 = vld [vmem:[%s287 + $0x1c8] sm:$0xf]
      %v496 = vld [vmem:[%s287 + $0x1cc] sm:$0xf]
      %v497 = vld [vmem:[%s287 + $0x1d0] sm:$0xf]
      %v498 = vld [vmem:[%s287 + $0x1d4] sm:$0xf]
      %v499 = vld [vmem:[%s287 + $0x1d8] sm:$0xf]
      %v500 = vld [vmem:[%s287 + $0x1dc] sm:$0xf]
      %v501 = vld [vmem:[%s287 + $0x1e0] sm:$0xf]
      %v502 = vld [vmem:[%s287 + $0x1e4] sm:$0xf]
      %v503 = vld [vmem:[%s287 + $0x1e8] sm:$0xf]
      %v504 = vld [vmem:[%s287 + $0x1ec] sm:$0xf]
      %v505 = vld [vmem:[%s287 + $0x1f0] sm:$0xf]
      %v506 = vld [vmem:[%s287 + $0x1f4] sm:$0xf]
      %v507 = vld [vmem:[%s287 + $0x1f8] sm:$0xf]
      %v508 = vld [vmem:[%s287 + $0x1fc] sm:$0xf]
      %v509 = vld [vmem:[%s287 + $0x200] sm:$0xf]
      %v510 = vld [vmem:[%s287 + $0x204] sm:$0xf]
      %v511 = vld [vmem:[%s287 + $0x208] sm:$0xf]
      %v512 = vld [vmem:[%s287 + $0x20c] sm:$0xf]
      %v513 = vld [vmem:[%s287 + $0x210] sm:$0xf]
      %v514 = vld [vmem:[%s287 + $0x214] sm:$0xf]
      %v515 = vld [vmem:[%s287 + $0x218] sm:$0xf]
      %v516 = vld [vmem:[%s287 + $0x21c] sm:$0xf]
      %v517 = vld [vmem:[%s287 + $0x220] sm:$0xf]
      %v518 = vld [vmem:[%s287 + $0x224] sm:$0xf]
      %v519 = vld [vmem:[%s287 + $0x228] sm:$0xf]
      %v520 = vld [vmem:[%s287 + $0x22c] sm:$0xf]
      %v521 = vld [vmem:[%s287 + $0x230] sm:$0xf]
      %v522 = vld [vmem:[%s287 + $0x234] sm:$0xf]
      %v523 = vld [vmem:[%s287 + $0x238] sm:$0xf]
      %v524 = vld [vmem:[%s287 + $0x23c] sm:$0xf]
      %v525 = vld [vmem:[%s287 + $0x240] sm:$0xf]
      %v526 = vld [vmem:[%s287 + $0x244] sm:$0xf]
      %v527 = vld [vmem:[%s287 + $0x248] sm:$0xf]
      %v528 = vld [vmem:[%s287 + $0x24c] sm:$0xf]
      %v529 = vld [vmem:[%s287 + $0x250] sm:$0xf]
      %v530 = vld [vmem:[%s287 + $0x254] sm:$0xf]
      %v531 = vld [vmem:[%s287 + $0x258] sm:$0xf]
      %v532 = vld [vmem:[%s287 + $0x25c] sm:$0xf]
      %v533 = vld [vmem:[%s287 + $0x260] sm:$0xf]
      %v534 = vld [vmem:[%s287 + $0x264] sm:$0xf]
      %v535 = vld [vmem:[%s287 + $0x268] sm:$0xf]
      %v536 = vld [vmem:[%s287 + $0x26c] sm:$0xf]
      %v537 = vld [vmem:[%s287 + $0x270] sm:$0xf]
      %v538 = vld [vmem:[%s287 + $0x274] sm:$0xf]
      %v539 = vld [vmem:[%s287 + $0x278] sm:$0xf]
      %v540 = vld [vmem:[%s287 + $0x27c] sm:$0xf]
      %v541 = vld [vmem:[%s287 + $0x280] sm:$0xf]
      %v542 = vld [vmem:[%s287 + $0x284] sm:$0xf]
      %v543 = vld [vmem:[%s287 + $0x288] sm:$0xf]
      %v544 = vld [vmem:[%s287 + $0x28c] sm:$0xf]
      %v545 = vld [vmem:[%s287 + $0x290] sm:$0xf]
      %v546 = vld [vmem:[%s287 + $0x294] sm:$0xf]
      %v547 = vld [vmem:[%s287 + $0x298] sm:$0xf]
      %v548 = vld [vmem:[%s287 + $0x29c] sm:$0xf]
      %v549 = vld [vmem:[%s287 + $0x2a0] sm:$0xf]
      %v550 = vld [vmem:[%s287 + $0x2a4] sm:$0xf]
      %v551 = vld [vmem:[%s287 + $0x2a8] sm:$0xf]
      %v552 = vld [vmem:[%s287 + $0x2ac] sm:$0xf]
      %v553 = vld [vmem:[%s287 + $0x2b0] sm:$0xf]
      %v554 = vld [vmem:[%s287 + $0x2b4] sm:$0xf]
      %v555 = vld [vmem:[%s287 + $0x2b8] sm:$0xf]
      %v556 = vld [vmem:[%s287 + $0x2bc] sm:$0xf]
      %v557 = vld [vmem:[%s287 + $0x2c0] sm:$0xf]
      %v558 = vld [vmem:[%s287 + $0x2c4] sm:$0xf]
      %v559 = vld [vmem:[%s287 + $0x2c8] sm:$0xf]
      %v560 = vld [vmem:[%s287 + $0x2cc] sm:$0xf]
      %v561 = vld [vmem:[%s287 + $0x2d0] sm:$0xf]
      %v562 = vld [vmem:[%s287 + $0x2d4] sm:$0xf]
      %v563 = vld [vmem:[%s287 + $0x2d8] sm:$0xf]
      %v564 = vld [vmem:[%s287 + $0x2dc] sm:$0xf]
      %v565 = vld [vmem:[%s287 + $0x2e0] sm:$0xf]
      %v566 = vld [vmem:[%s287 + $0x2e4] sm:$0xf]
      %v567 = vld [vmem:[%s287 + $0x2e8] sm:$0xf]
      %v568 = vld [vmem:[%s287 + $0x2ec] sm:$0xf]
      %v569 = vld [vmem:[%s287 + $0x2f0] sm:$0xf]
      %v570 = vld [vmem:[%s287 + $0x2f4] sm:$0xf]
      %v571 = vld [vmem:[%s287 + $0x2f8] sm:$0xf]
      %v572 = vld [vmem:[%s287 + $0x2fc] sm:$0xf]
      %v573 = vld [vmem:[%s287 + $0x300] sm:$0xf]
      %v574 = vld [vmem:[%s287 + $0x304] sm:$0xf]
      %v575 = vld [vmem:[%s287 + $0x308] sm:$0xf]
      %v576 = vld [vmem:[%s287 + $0x30c] sm:$0xf]
      %v577 = vld [vmem:[%s287 + $0x310] sm:$0xf]
      %v578 = vld [vmem:[%s287 + $0x314] sm:$0xf]
      %v579 = vld [vmem:[%s287 + $0x318] sm:$0xf]
      %v580 = vld [vmem:[%s287 + $0x31c] sm:$0xf]
      %v581 = vld [vmem:[%s287 + $0x320] sm:$0xf]
      %v582 = vld [vmem:[%s287 + $0x324] sm:$0xf]
      %v583 = vld [vmem:[%s287 + $0x328] sm:$0xf]
      %v584 = vld [vmem:[%s287 + $0x32c] sm:$0xf]
      %v585 = vld [vmem:[%s287 + $0x330] sm:$0xf]
      %v586 = vld [vmem:[%s287 + $0x334] sm:$0xf]
      %v587 = vld [vmem:[%s287 + $0x338] sm:$0xf]
      %v588 = vld [vmem:[%s287 + $0x33c] sm:$0xf]
      %v589 = vld [vmem:[%s287 + $0x340] sm:$0xf]
      %v590 = vld [vmem:[%s287 + $0x344] sm:$0xf]
      %v591 = vld [vmem:[%s287 + $0x348] sm:$0xf]
      %v592 = vld [vmem:[%s287 + $0x34c] sm:$0xf]
      %v593 = vld [vmem:[%s287 + $0x350] sm:$0xf]
      %v594 = vld [vmem:[%s287 + $0x354] sm:$0xf]
      %v595 = vld [vmem:[%s287 + $0x358] sm:$0xf]
      %v596 = vld [vmem:[%s287 + $0x35c] sm:$0xf]
      %v597 = vld [vmem:[%s287 + $0x360] sm:$0xf]
      %v598 = vld [vmem:[%s287 + $0x364] sm:$0xf]
      %v599 = vld [vmem:[%s287 + $0x368] sm:$0xf]
      %v600 = vld [vmem:[%s287 + $0x36c] sm:$0xf]
      %v601 = vld [vmem:[%s287 + $0x370] sm:$0xf]
      %v602 = vld [vmem:[%s287 + $0x374] sm:$0xf]
      %v603 = vld [vmem:[%s287 + $0x378] sm:$0xf]
      %v604 = vld [vmem:[%s287 + $0x37c] sm:$0xf]
      %v605 = vld [vmem:[%s287 + $0x380] sm:$0xf]
      %v606 = vld [vmem:[%s287 + $0x384] sm:$0xf]
      %v607 = vld [vmem:[%s287 + $0x388] sm:$0xf]
      %v608 = vld [vmem:[%s287 + $0x38c] sm:$0xf]
      %v609 = vld [vmem:[%s287 + $0x390] sm:$0xf]
      %v610 = vld [vmem:[%s287 + $0x394] sm:$0xf]
      %v611 = vld [vmem:[%s287 + $0x398] sm:$0xf]
      %v612 = vld [vmem:[%s287 + $0x39c] sm:$0xf]
      %v613 = vld [vmem:[%s287 + $0x3a0] sm:$0xf]
      %v614 = vld [vmem:[%s287 + $0x3a4] sm:$0xf]
      %v615 = vld [vmem:[%s287 + $0x3a8] sm:$0xf]
      %v616 = vld [vmem:[%s287 + $0x3ac] sm:$0xf]
      %v617 = vld [vmem:[%s287 + $0x3b0] sm:$0xf]
      %v618 = vld [vmem:[%s287 + $0x3b4] sm:$0xf]
      %v619 = vld [vmem:[%s287 + $0x3b8] sm:$0xf]
      %v620 = vld [vmem:[%s287 + $0x3bc] sm:$0xf]
      %v621 = vld [vmem:[%s287 + $0x3c0] sm:$0xf]
      %v622 = vld [vmem:[%s287 + $0x3c4] sm:$0xf]
      %v623 = vld [vmem:[%s287 + $0x3c8] sm:$0xf]
      %v624 = vld [vmem:[%s287 + $0x3cc] sm:$0xf]
      %v625 = vld [vmem:[%s287 + $0x3d0] sm:$0xf]
      %v626 = vld [vmem:[%s287 + $0x3d4] sm:$0xf]
      %v627 = vld [vmem:[%s287 + $0x3d8] sm:$0xf]
      %v628 = vld [vmem:[%s287 + $0x3dc] sm:$0xf]
      %v629 = vld [vmem:[%s287 + $0x3e0] sm:$0xf]
      %v630 = vld [vmem:[%s287 + $0x3e4] sm:$0xf]
      %v631 = vld [vmem:[%s287 + $0x3e8] sm:$0xf]
      %v632 = vld [vmem:[%s287 + $0x3ec] sm:$0xf]
      %v633 = vld [vmem:[%s287 + $0x3f0] sm:$0xf]
      %v634 = vld [vmem:[%s287 + $0x3f4] sm:$0xf]
      %v635 = vld [vmem:[%s287 + $0x3f8] sm:$0xf]
      %v636 = vld [vmem:[%s287 + $0x3fc] sm:$0xf]
      %v637 = vld [vmem:[%s287 + $0x400] sm:$0xf]
      %v638 = vld [vmem:[%s287 + $0x404] sm:$0xf]
      %v639 = vld [vmem:[%s287 + $0x408] sm:$0xf]
      %v640 = vld [vmem:[%s287 + $0x40c] sm:$0xf]
      %v641 = vld [vmem:[%s287 + $0x410] sm:$0xf]
      %v642 = vld [vmem:[%s287 + $0x414] sm:$0xf]
      %v643 = vld [vmem:[%s287 + $0x418] sm:$0xf]
      %v644 = vld [vmem:[%s287 + $0x41c] sm:$0xf]
      %v645 = vld [vmem:[%s287 + $0x420] sm:$0xf]
      %v646 = vld [vmem:[%s287 + $0x424] sm:$0xf]
      %v647 = vld [vmem:[%s287 + $0x428] sm:$0xf]
      %v648 = vld [vmem:[%s287 + $0x42c] sm:$0xf]
      %v649 = vld [vmem:[%s287 + $0x430] sm:$0xf]
      %v650 = vld [vmem:[%s287 + $0x434] sm:$0xf]
      %v651 = vld [vmem:[%s287 + $0x438] sm:$0xf]
      %v652 = vld [vmem:[%s287 + $0x43c] sm:$0xf]
      %v653 = vld [vmem:[%s287 + $0x440] sm:$0xf]
      %v654 = vld [vmem:[%s287 + $0x444] sm:$0xf]
      %v655 = vld [vmem:[%s287 + $0x448] sm:$0xf]
      %v656 = vld [vmem:[%s287 + $0x44c] sm:$0xf]
      %v657 = vld [vmem:[%s287 + $0x450] sm:$0xf]
      %v658 = vld [vmem:[%s287 + $0x454] sm:$0xf]
      %v659 = vld [vmem:[%s287 + $0x458] sm:$0xf]
      %v660 = vld [vmem:[%s287 + $0x45c] sm:$0xf]
      %v661 = vld [vmem:[%s287 + $0x460] sm:$0xf]
      %v662 = vld [vmem:[%s287 + $0x464] sm:$0xf]
      %v663 = vld [vmem:[%s287 + $0x468] sm:$0xf]
      %v664 = vld [vmem:[%s287 + $0x46c] sm:$0xf]
      %v665 = vld [vmem:[%s287 + $0x470] sm:$0xf]
      %v666 = vld [vmem:[%s287 + $0x474] sm:$0xf]
      %v667 = vld [vmem:[%s287 + $0x478] sm:$0xf]
      %v668 = vld [vmem:[%s287 + $0x47c] sm:$0xf]
      %v669 = vld [vmem:[%s294] sm:$0xf]
      %v670 = vld [vmem:[%s294 + $0x4] sm:$0xf]
      %v671 = vld [vmem:[%s294 + $0x8] sm:$0xf]
      %v672 = vld [vmem:[%s294 + $0xc] sm:$0xf]
      %v673 = vld [vmem:[%s294 + $0x10] sm:$0xf]
      %v674 = vld [vmem:[%s294 + $0x14] sm:$0xf]
      %v675 = vld [vmem:[%s294 + $0x18] sm:$0xf]
      %v676 = vld [vmem:[%s294 + $0x1c] sm:$0xf]
      %v677 = vld [vmem:[%s294 + $0x20] sm:$0xf]
      %v678 = vld [vmem:[%s294 + $0x24] sm:$0xf]
      %v679 = vld [vmem:[%s294 + $0x28] sm:$0xf]
      %v680 = vld [vmem:[%s294 + $0x2c] sm:$0xf]
      %v681 = vld [vmem:[%s294 + $0x30] sm:$0xf]
      %v682 = vld [vmem:[%s294 + $0x34] sm:$0xf]
      %v683 = vld [vmem:[%s294 + $0x38] sm:$0xf]
      %v684 = vld [vmem:[%s294 + $0x3c] sm:$0xf]
      %v685 = vld [vmem:[%s294 + $0x40] sm:$0xf]
      %v686 = vld [vmem:[%s294 + $0x44] sm:$0xf]
      %v687 = vld [vmem:[%s294 + $0x48] sm:$0xf]
      %v688 = vld [vmem:[%s294 + $0x4c] sm:$0xf]
      %v689 = vld [vmem:[%s294 + $0x50] sm:$0xf]
      %v690 = vld [vmem:[%s294 + $0x54] sm:$0xf]
      %v691 = vld [vmem:[%s294 + $0x58] sm:$0xf]
      %v692 = vld [vmem:[%s294 + $0x5c] sm:$0xf]
      %v693 = vld [vmem:[%s294 + $0x60] sm:$0xf]
      %v694 = vld [vmem:[%s294 + $0x64] sm:$0xf]
      %v695 = vld [vmem:[%s294 + $0x68] sm:$0xf]
      %v696 = vld [vmem:[%s294 + $0x6c] sm:$0xf]
      %v697 = vld [vmem:[%s294 + $0x70] sm:$0xf]
      %v698 = vld [vmem:[%s294 + $0x74] sm:$0xf]
      %v699 = vld [vmem:[%s294 + $0x78] sm:$0xf]
      %v700 = vld [vmem:[%s294 + $0x7c] sm:$0xf]
      %v701 = vld [vmem:[%s294 + $0x80] sm:$0xf]
      %v702 = vld [vmem:[%s294 + $0x84] sm:$0xf]
      %v703 = vld [vmem:[%s294 + $0x88] sm:$0xf]
      %v704 = vld [vmem:[%s294 + $0x8c] sm:$0xf]
      %v705 = vld [vmem:[%s294 + $0x90] sm:$0xf]
      %v706 = vld [vmem:[%s294 + $0x94] sm:$0xf]
      %v707 = vld [vmem:[%s294 + $0x98] sm:$0xf]
      %v708 = vld [vmem:[%s294 + $0x9c] sm:$0xf]
      %v709 = vld [vmem:[%s294 + $0xa0] sm:$0xf]
      %v710 = vld [vmem:[%s294 + $0xa4] sm:$0xf]
      %v711 = vld [vmem:[%s294 + $0xa8] sm:$0xf]
      %v712 = vld [vmem:[%s294 + $0xac] sm:$0xf]
      %v713 = vld [vmem:[%s294 + $0xb0] sm:$0xf]
      %v714 = vld [vmem:[%s294 + $0xb4] sm:$0xf]
      %v715 = vld [vmem:[%s294 + $0xb8] sm:$0xf]
      %v716 = vld [vmem:[%s294 + $0xbc] sm:$0xf]
      %v717 = vld [vmem:[%s294 + $0xc0] sm:$0xf]
      %v718 = vld [vmem:[%s294 + $0xc4] sm:$0xf]
      %v719 = vld [vmem:[%s294 + $0xc8] sm:$0xf]
      %v720 = vld [vmem:[%s294 + $0xcc] sm:$0xf]
      %v721 = vld [vmem:[%s294 + $0xd0] sm:$0xf]
      %v722 = vld [vmem:[%s294 + $0xd4] sm:$0xf]
      %v723 = vld [vmem:[%s294 + $0xd8] sm:$0xf]
      %v724 = vld [vmem:[%s294 + $0xdc] sm:$0xf]
      %v725 = vld [vmem:[%s294 + $0xe0] sm:$0xf]
      %v726 = vld [vmem:[%s294 + $0xe4] sm:$0xf]
      %v727 = vld [vmem:[%s294 + $0xe8] sm:$0xf]
      %v728 = vld [vmem:[%s294 + $0xec] sm:$0xf]
      %v729 = vld [vmem:[%s294 + $0xf0] sm:$0xf]
      %v730 = vld [vmem:[%s294 + $0xf4] sm:$0xf]
      %v731 = vld [vmem:[%s294 + $0xf8] sm:$0xf]
      %v732 = vld [vmem:[%s294 + $0xfc] sm:$0xf]
      %v733 = vld [vmem:[%s294 + $0x100] sm:$0xf]
      %v734 = vld [vmem:[%s294 + $0x104] sm:$0xf]
      %v735 = vld [vmem:[%s294 + $0x108] sm:$0xf]
      %v736 = vld [vmem:[%s294 + $0x10c] sm:$0xf]
      %v737 = vld [vmem:[%s294 + $0x110] sm:$0xf]
      %v738 = vld [vmem:[%s294 + $0x114] sm:$0xf]
      %v739 = vld [vmem:[%s294 + $0x118] sm:$0xf]
      %v740 = vld [vmem:[%s294 + $0x11c] sm:$0xf]
      %v741 = vld [vmem:[%s294 + $0x120] sm:$0xf]
      %v742 = vld [vmem:[%s294 + $0x124] sm:$0xf]
      %v743 = vld [vmem:[%s294 + $0x128] sm:$0xf]
      %v744 = vld [vmem:[%s294 + $0x12c] sm:$0xf]
      %v745 = vld [vmem:[%s294 + $0x130] sm:$0xf]
      %v746 = vld [vmem:[%s294 + $0x134] sm:$0xf]
      %v747 = vld [vmem:[%s294 + $0x138] sm:$0xf]
      %v748 = vld [vmem:[%s294 + $0x13c] sm:$0xf]
      %v749 = vld [vmem:[%s294 + $0x140] sm:$0xf]
      %v750 = vld [vmem:[%s294 + $0x144] sm:$0xf]
      %v751 = vld [vmem:[%s294 + $0x148] sm:$0xf]
      %v752 = vld [vmem:[%s294 + $0x14c] sm:$0xf]
      %v753 = vld [vmem:[%s294 + $0x150] sm:$0xf]
      %v754 = vld [vmem:[%s294 + $0x154] sm:$0xf]
      %v755 = vld [vmem:[%s294 + $0x158] sm:$0xf]
      %v756 = vld [vmem:[%s294 + $0x15c] sm:$0xf]
      %v757 = vld [vmem:[%s294 + $0x160] sm:$0xf]
      %v758 = vld [vmem:[%s294 + $0x164] sm:$0xf]
      %v759 = vld [vmem:[%s294 + $0x168] sm:$0xf]
      %v760 = vld [vmem:[%s294 + $0x16c] sm:$0xf]
      %v761 = vld [vmem:[%s294 + $0x170] sm:$0xf]
      %v762 = vld [vmem:[%s294 + $0x174] sm:$0xf]
      %v763 = vld [vmem:[%s294 + $0x178] sm:$0xf]
      %v764 = vld [vmem:[%s294 + $0x17c] sm:$0xf]
      %v765 = vld [vmem:[%s294 + $0x180] sm:$0xf]
      %v766 = vld [vmem:[%s294 + $0x184] sm:$0xf]
      %v767 = vld [vmem:[%s294 + $0x188] sm:$0xf]
      %v768 = vld [vmem:[%s294 + $0x18c] sm:$0xf]
      %v769 = vld [vmem:[%s294 + $0x190] sm:$0xf]
      %v770 = vld [vmem:[%s294 + $0x194] sm:$0xf]
      %v771 = vld [vmem:[%s294 + $0x198] sm:$0xf]
      %v772 = vld [vmem:[%s294 + $0x19c] sm:$0xf]
      %v773 = vld [vmem:[%s294 + $0x1a0] sm:$0xf]
      %v774 = vld [vmem:[%s294 + $0x1a4] sm:$0xf]
      %v775 = vld [vmem:[%s294 + $0x1a8] sm:$0xf]
      %v776 = vld [vmem:[%s294 + $0x1ac] sm:$0xf]
      %v777 = vld [vmem:[%s294 + $0x1b0] sm:$0xf]
      %v778 = vld [vmem:[%s294 + $0x1b4] sm:$0xf]
      %v779 = vld [vmem:[%s294 + $0x1b8] sm:$0xf]
      %v780 = vld [vmem:[%s294 + $0x1bc] sm:$0xf]
      %v781 = vld [vmem:[%s294 + $0x1c0] sm:$0xf]
      %v782 = vld [vmem:[%s294 + $0x1c4] sm:$0xf]
      %v783 = vld [vmem:[%s294 + $0x1c8] sm:$0xf]
      %v784 = vld [vmem:[%s294 + $0x1cc] sm:$0xf]
      %v785 = vld [vmem:[%s294 + $0x1d0] sm:$0xf]
      %v786 = vld [vmem:[%s294 + $0x1d4] sm:$0xf]
      %v787 = vld [vmem:[%s294 + $0x1d8] sm:$0xf]
      %v788 = vld [vmem:[%s294 + $0x1dc] sm:$0xf]
      %v789 = vld [vmem:[%s294 + $0x1e0] sm:$0xf]
      %v790 = vld [vmem:[%s294 + $0x1e4] sm:$0xf]
      %v791 = vld [vmem:[%s294 + $0x1e8] sm:$0xf]
      %v792 = vld [vmem:[%s294 + $0x1ec] sm:$0xf]
      %v793 = vld [vmem:[%s294 + $0x1f0] sm:$0xf]
      %v794 = vld [vmem:[%s294 + $0x1f4] sm:$0xf]
      %v795 = vld [vmem:[%s294 + $0x1f8] sm:$0xf]
      %v796 = vld [vmem:[%s294 + $0x1fc] sm:$0xf]
      %v797 = vld [vmem:[%s294 + $0x200] sm:$0xf]
      %v798 = vld [vmem:[%s294 + $0x204] sm:$0xf]
      %v799 = vld [vmem:[%s294 + $0x208] sm:$0xf]
      %v800 = vld [vmem:[%s294 + $0x20c] sm:$0xf]
      %v801 = vld [vmem:[%s294 + $0x210] sm:$0xf]
      %v802 = vld [vmem:[%s294 + $0x214] sm:$0xf]
      %v803 = vld [vmem:[%s294 + $0x218] sm:$0xf]
      %v804 = vld [vmem:[%s294 + $0x21c] sm:$0xf]
      %v805 = vld [vmem:[%s294 + $0x220] sm:$0xf]
      %v806 = vld [vmem:[%s294 + $0x224] sm:$0xf]
      %v807 = vld [vmem:[%s294 + $0x228] sm:$0xf]
      %v808 = vld [vmem:[%s294 + $0x22c] sm:$0xf]
      %v809 = vld [vmem:[%s294 + $0x230] sm:$0xf]
      %v810 = vld [vmem:[%s294 + $0x234] sm:$0xf]
      %v811 = vld [vmem:[%s294 + $0x238] sm:$0xf]
      %v812 = vld [vmem:[%s294 + $0x23c] sm:$0xf]
      %v813 = vld [vmem:[%s294 + $0x240] sm:$0xf]
      %v814 = vld [vmem:[%s294 + $0x244] sm:$0xf]
      %v815 = vld [vmem:[%s294 + $0x248] sm:$0xf]
      %v816 = vld [vmem:[%s294 + $0x24c] sm:$0xf]
      %v817 = vld [vmem:[%s294 + $0x250] sm:$0xf]
      %v818 = vld [vmem:[%s294 + $0x254] sm:$0xf]
      %v819 = vld [vmem:[%s294 + $0x258] sm:$0xf]
      %v820 = vld [vmem:[%s294 + $0x25c] sm:$0xf]
      %v821 = vld [vmem:[%s294 + $0x260] sm:$0xf]
      %v822 = vld [vmem:[%s294 + $0x264] sm:$0xf]
      %v823 = vld [vmem:[%s294 + $0x268] sm:$0xf]
      %v824 = vld [vmem:[%s294 + $0x26c] sm:$0xf]
      %v825 = vld [vmem:[%s294 + $0x270] sm:$0xf]
      %v826 = vld [vmem:[%s294 + $0x274] sm:$0xf]
      %v827 = vld [vmem:[%s294 + $0x278] sm:$0xf]
      %v828 = vld [vmem:[%s294 + $0x27c] sm:$0xf]
      %v829 = vld [vmem:[%s294 + $0x280] sm:$0xf]
      %v830 = vld [vmem:[%s294 + $0x284] sm:$0xf]
      %v831 = vld [vmem:[%s294 + $0x288] sm:$0xf]
      %v832 = vld [vmem:[%s294 + $0x28c] sm:$0xf]
      %v833 = vld [vmem:[%s294 + $0x290] sm:$0xf]
      %v834 = vld [vmem:[%s294 + $0x294] sm:$0xf]
      %v835 = vld [vmem:[%s294 + $0x298] sm:$0xf]
      %v836 = vld [vmem:[%s294 + $0x29c] sm:$0xf]
      %v837 = vld [vmem:[%s294 + $0x2a0] sm:$0xf]
      %v838 = vld [vmem:[%s294 + $0x2a4] sm:$0xf]
      %v839 = vld [vmem:[%s294 + $0x2a8] sm:$0xf]
      %v840 = vld [vmem:[%s294 + $0x2ac] sm:$0xf]
      %v841 = vld [vmem:[%s294 + $0x2b0] sm:$0xf]
      %v842 = vld [vmem:[%s294 + $0x2b4] sm:$0xf]
      %v843 = vld [vmem:[%s294 + $0x2b8] sm:$0xf]
      %v844 = vld [vmem:[%s294 + $0x2bc] sm:$0xf]
      %v845 = vld [vmem:[%s294 + $0x2c0] sm:$0xf]
      %v846 = vld [vmem:[%s294 + $0x2c4] sm:$0xf]
      %v847 = vld [vmem:[%s294 + $0x2c8] sm:$0xf]
      %v848 = vld [vmem:[%s294 + $0x2cc] sm:$0xf]
      %v849 = vld [vmem:[%s294 + $0x2d0] sm:$0xf]
      %v850 = vld [vmem:[%s294 + $0x2d4] sm:$0xf]
      %v851 = vld [vmem:[%s294 + $0x2d8] sm:$0xf]
      %v852 = vld [vmem:[%s294 + $0x2dc] sm:$0xf]
      %v853 = vld [vmem:[%s294 + $0x2e0] sm:$0xf]
      %v854 = vld [vmem:[%s294 + $0x2e4] sm:$0xf]
      %v855 = vld [vmem:[%s294 + $0x2e8] sm:$0xf]
      %v856 = vld [vmem:[%s294 + $0x2ec] sm:$0xf]
      %v857 = vld [vmem:[%s294 + $0x2f0] sm:$0xf]
      %v858 = vld [vmem:[%s294 + $0x2f4] sm:$0xf]
      %v859 = vld [vmem:[%s294 + $0x2f8] sm:$0xf]
      %v860 = vld [vmem:[%s294 + $0x2fc] sm:$0xf]
      %v861 = vld [vmem:[%s294 + $0x300] sm:$0xf]
      %v862 = vld [vmem:[%s294 + $0x304] sm:$0xf]
      %v863 = vld [vmem:[%s294 + $0x308] sm:$0xf]
      %v864 = vld [vmem:[%s294 + $0x30c] sm:$0xf]
      %v865 = vld [vmem:[%s294 + $0x310] sm:$0xf]
      %v866 = vld [vmem:[%s294 + $0x314] sm:$0xf]
      %v867 = vld [vmem:[%s294 + $0x318] sm:$0xf]
      %v868 = vld [vmem:[%s294 + $0x31c] sm:$0xf]
      %v869 = vld [vmem:[%s294 + $0x320] sm:$0xf]
      %v870 = vld [vmem:[%s294 + $0x324] sm:$0xf]
      %v871 = vld [vmem:[%s294 + $0x328] sm:$0xf]
      %v872 = vld [vmem:[%s294 + $0x32c] sm:$0xf]
      %v873 = vld [vmem:[%s294 + $0x330] sm:$0xf]
      %v874 = vld [vmem:[%s294 + $0x334] sm:$0xf]
      %v875 = vld [vmem:[%s294 + $0x338] sm:$0xf]
      %v876 = vld [vmem:[%s294 + $0x33c] sm:$0xf]
      %v877 = vld [vmem:[%s294 + $0x340] sm:$0xf]
      %v878 = vld [vmem:[%s294 + $0x344] sm:$0xf]
      %v879 = vld [vmem:[%s294 + $0x348] sm:$0xf]
      %v880 = vld [vmem:[%s294 + $0x34c] sm:$0xf]
      %v881 = vld [vmem:[%s294 + $0x350] sm:$0xf]
      %v882 = vld [vmem:[%s294 + $0x354] sm:$0xf]
      %v883 = vld [vmem:[%s294 + $0x358] sm:$0xf]
      %v884 = vld [vmem:[%s294 + $0x35c] sm:$0xf]
      %v885 = vld [vmem:[%s294 + $0x360] sm:$0xf]
      %v886 = vld [vmem:[%s294 + $0x364] sm:$0xf]
      %v887 = vld [vmem:[%s294 + $0x368] sm:$0xf]
      %v888 = vld [vmem:[%s294 + $0x36c] sm:$0xf]
      %v889 = vld [vmem:[%s294 + $0x370] sm:$0xf]
      %v890 = vld [vmem:[%s294 + $0x374] sm:$0xf]
      %v891 = vld [vmem:[%s294 + $0x378] sm:$0xf]
      %v892 = vld [vmem:[%s294 + $0x37c] sm:$0xf]
      %v893 = vld [vmem:[%s294 + $0x380] sm:$0xf]
      %v894 = vld [vmem:[%s294 + $0x384] sm:$0xf]
      %v895 = vld [vmem:[%s294 + $0x388] sm:$0xf]
      %v896 = vld [vmem:[%s294 + $0x38c] sm:$0xf]
      %v897 = vld [vmem:[%s294 + $0x390] sm:$0xf]
      %v898 = vld [vmem:[%s294 + $0x394] sm:$0xf]
      %v899 = vld [vmem:[%s294 + $0x398] sm:$0xf]
      %v900 = vld [vmem:[%s294 + $0x39c] sm:$0xf]
      %v901 = vld [vmem:[%s294 + $0x3a0] sm:$0xf]
      %v902 = vld [vmem:[%s294 + $0x3a4] sm:$0xf]
      %v903 = vld [vmem:[%s294 + $0x3a8] sm:$0xf]
      %v904 = vld [vmem:[%s294 + $0x3ac] sm:$0xf]
      %v905 = vld [vmem:[%s294 + $0x3b0] sm:$0xf]
      %v906 = vld [vmem:[%s294 + $0x3b4] sm:$0xf]
      %v907 = vld [vmem:[%s294 + $0x3b8] sm:$0xf]
      %v908 = vld [vmem:[%s294 + $0x3bc] sm:$0xf]
      %v909 = vld [vmem:[%s294 + $0x3c0] sm:$0xf]
      %v910 = vld [vmem:[%s294 + $0x3c4] sm:$0xf]
      %v911 = vld [vmem:[%s294 + $0x3c8] sm:$0xf]
      %v912 = vld [vmem:[%s294 + $0x3cc] sm:$0xf]
      %v913 = vld [vmem:[%s294 + $0x3d0] sm:$0xf]
      %v914 = vld [vmem:[%s294 + $0x3d4] sm:$0xf]
      %v915 = vld [vmem:[%s294 + $0x3d8] sm:$0xf]
      %v916 = vld [vmem:[%s294 + $0x3dc] sm:$0xf]
      %v917 = vld [vmem:[%s294 + $0x3e0] sm:$0xf]
      %v918 = vld [vmem:[%s294 + $0x3e4] sm:$0xf]
      %v919 = vld [vmem:[%s294 + $0x3e8] sm:$0xf]
      %v920 = vld [vmem:[%s294 + $0x3ec] sm:$0xf]
      %v921 = vld [vmem:[%s294 + $0x3f0] sm:$0xf]
      %v922 = vld [vmem:[%s294 + $0x3f4] sm:$0xf]
      %v923 = vld [vmem:[%s294 + $0x3f8] sm:$0xf]
      %v924 = vld [vmem:[%s294 + $0x3fc] sm:$0xf]
      %v925 = vld [vmem:[%s294 + $0x400] sm:$0xf]
      %v926 = vld [vmem:[%s294 + $0x404] sm:$0xf]
      %v927 = vld [vmem:[%s294 + $0x408] sm:$0xf]
      %v928 = vld [vmem:[%s294 + $0x40c] sm:$0xf]
      %v929 = vld [vmem:[%s294 + $0x410] sm:$0xf]
      %v930 = vld [vmem:[%s294 + $0x414] sm:$0xf]
      %v931 = vld [vmem:[%s294 + $0x418] sm:$0xf]
      %v932 = vld [vmem:[%s294 + $0x41c] sm:$0xf]
      %v933 = vld [vmem:[%s294 + $0x420] sm:$0xf]
      %v934 = vld [vmem:[%s294 + $0x424] sm:$0xf]
      %v935 = vld [vmem:[%s294 + $0x428] sm:$0xf]
      %v936 = vld [vmem:[%s294 + $0x42c] sm:$0xf]
      %v937 = vld [vmem:[%s294 + $0x430] sm:$0xf]
      %v938 = vld [vmem:[%s294 + $0x434] sm:$0xf]
      %v939 = vld [vmem:[%s294 + $0x438] sm:$0xf]
      %v940 = vld [vmem:[%s294 + $0x43c] sm:$0xf]
      %v941 = vld [vmem:[%s294 + $0x440] sm:$0xf]
      %v942 = vld [vmem:[%s294 + $0x444] sm:$0xf]
      %v943 = vld [vmem:[%s294 + $0x448] sm:$0xf]
      %v944 = vld [vmem:[%s294 + $0x44c] sm:$0xf]
      %v945 = vld [vmem:[%s294 + $0x450] sm:$0xf]
      %v946 = vld [vmem:[%s294 + $0x454] sm:$0xf]
      %v947 = vld [vmem:[%s294 + $0x458] sm:$0xf]
      %v948 = vld [vmem:[%s294 + $0x45c] sm:$0xf]
      %v949 = vld [vmem:[%s294 + $0x460] sm:$0xf]
      %v950 = vld [vmem:[%s294 + $0x464] sm:$0xf]
      %v951 = vld [vmem:[%s294 + $0x468] sm:$0xf]
      %v952 = vld [vmem:[%s294 + $0x46c] sm:$0xf]
      %v953 = vld [vmem:[%s294 + $0x470] sm:$0xf]
      %v954 = vld [vmem:[%s294 + $0x474] sm:$0xf]
      %v955 = vld [vmem:[%s294 + $0x478] sm:$0xf]
      %v956 = vld [vmem:[%s294 + $0x47c] sm:$0xf]
      %v965 = vunpack.c.l.b16 %v381
      %v966 = vunpack.c.l.b16 %v382
      %v967 = vunpack.c.l.b16 %v383
      %v968 = vunpack.c.l.b16 %v384
      %v969 = vunpack.c.l.b16 %v385
      %v970 = vunpack.c.l.b16 %v386
      %v971 = vunpack.c.l.b16 %v387
      %v972 = vunpack.c.l.b16 %v388
      %v973 = vpack.c.b16 %v966, %v965
      %v974 = vpack.c.b16 %v968, %v967
      %v975 = vpack.c.b16 %v970, %v969
      %v976 = vpack.c.b16 %v972, %v971
      %vm981 = vcmask 523264
      %v983 = vsel %vm981, %v309, 0
      %985 = vmatprep.subr.bf16.mxu0 0
      %986 = vmatpush1.bf16.msra.mxu0 0
      %987 = vmatprep.subr.bf16.mxu0 0
      %988 = vmatpush1.bf16.msra.mxu0 0
      %989 = vmatprep.subr.bf16.mxu0 0
      %990 = vmatpush1.bf16.msra.mxu0 0
      %991 = vmatprep.subr.bf16.mxu0 0
      %992 = vmatpush1.bf16.msra.mxu0 0
      %993 = vmatprep.subr.bf16.mxu0 0
      %994 = vmatpush1.bf16.msra.mxu0 %v976
      %995 = vmatprep.subr.bf16.mxu0 0
      %996 = vmatpush1.bf16.msra.mxu0 %v975
      %997 = vmatprep.subr.bf16.mxu0 0
      %998 = vmatpush1.bf16.msra.mxu0 %v974
      %999 = vmatprep.subr.bf16.mxu0 0
      %1000 = vmatpush1.bf16.msra.mxu0 %v973
      %1001 = vmatprep.subr.bf16.mxu0 0
      %1002 = vmatpush2.bf16.msra.mxu0 0
      %1003 = vmatprep.subr.bf16.mxu0 0
      %1004 = vmatpush2.bf16.msra.mxu0 0
      %1005 = vmatprep.subr.bf16.mxu0 0
      %1006 = vmatpush2.bf16.msra.mxu0 0
      %1007 = vmatprep.subr.bf16.mxu0 0
      %1008 = vmatpush2.bf16.msra.mxu0 0
      %1009 = vmatprep.subr.bf16.mxu0 0
      %1010 = vmatpush2.bf16.msra.mxu0 0
      %1011 = vmatprep.subr.bf16.mxu0 0
      %1012 = vmatpush2.bf16.msra.mxu0 0
      %1013 = vmatprep.subr.bf16.mxu0 0
      %1014 = vmatpush2.bf16.msra.mxu0 0
      %1015 = vmatprep.subr.bf16.mxu0 0
      %1016 = vmatpush2.bf16.msra.mxu0 0
      %1017 = vmatprep.mubr.bf16.mxu0 0
      %1018 = vmatmul.mubr.bf16.gmra.mxu0 %v983
      %v1019 = vpop.f32.mrf.mxu0
      %v1020 = vadd.f32 0.0, %v1019
      %v1021 = vpop.f32.mrf.mxu0
      %v1022 = vpop.f32.mrf.mxu0
      %v1023 = vpop.f32.mrf.mxu0
      %1024 = vdwg.mxu0
      %v1033 = vunpack.c.l.b16 %v389
      %v1034 = vunpack.c.l.b16 %v390
      %v1035 = vunpack.c.l.b16 %v391
      %v1036 = vunpack.c.l.b16 %v392
      %v1037 = vunpack.c.l.b16 %v393
      %v1038 = vunpack.c.l.b16 %v394
      %v1039 = vunpack.c.l.b16 %v395
      %v1040 = vunpack.c.l.b16 %v396
      %v1041 = vpack.c.b16 %v1034, %v1033
      %v1042 = vpack.c.b16 %v1036, %v1035
      %v1043 = vpack.c.b16 %v1038, %v1037
      %v1044 = vpack.c.b16 %v1040, %v1039
      %v1050 = vsel %vm981, %v310, 0
      %1052 = vmatprep.subr.bf16.mxu0 0
      %1053 = vmatpush1.bf16.msra.mxu0 0
      %1054 = vmatprep.subr.bf16.mxu0 0
      %1055 = vmatpush1.bf16.msra.mxu0 0
      %1056 = vmatprep.subr.bf16.mxu0 0
      %1057 = vmatpush1.bf16.msra.mxu0 0
      %1058 = vmatprep.subr.bf16.mxu0 0
      %1059 = vmatpush1.bf16.msra.mxu0 0
      %1060 = vmatprep.subr.bf16.mxu0 0
      %1061 = vmatpush1.bf16.msra.mxu0 %v1044
      %1062 = vmatprep.subr.bf16.mxu0 0
      %1063 = vmatpush1.bf16.msra.mxu0 %v1043
      %1064 = vmatprep.subr.bf16.mxu0 0
      %1065 = vmatpush1.bf16.msra.mxu0 %v1042
      %1066 = vmatprep.subr.bf16.mxu0 0
      %1067 = vmatpush1.bf16.msra.mxu0 %v1041
      %1068 = vmatprep.subr.bf16.mxu0 0
      %1069 = vmatpush2.bf16.msra.mxu0 0
      %1070 = vmatprep.subr.bf16.mxu0 0
      %1071 = vmatpush2.bf16.msra.mxu0 0
      %1072 = vmatprep.subr.bf16.mxu0 0
      %1073 = vmatpush2.bf16.msra.mxu0 0
      %1074 = vmatprep.subr.bf16.mxu0 0
      %1075 = vmatpush2.bf16.msra.mxu0 0
      %1076 = vmatprep.subr.bf16.mxu0 0
      %1077 = vmatpush2.bf16.msra.mxu0 0
      %1078 = vmatprep.subr.bf16.mxu0 0
      %1079 = vmatpush2.bf16.msra.mxu0 0
      %1080 = vmatprep.subr.bf16.mxu0 0
      %1081 = vmatpush2.bf16.msra.mxu0 0
      %1082 = vmatprep.subr.bf16.mxu0 0
      %1083 = vmatpush2.bf16.msra.mxu0 0
      %1084 = vmatprep.mubr.bf16.mxu0 0
      %1085 = vmatmul.mubr.bf16.gmra.mxu0 %v1050
      %v1086 = vpop.f32.mrf.mxu0
      %v1087 = vadd.f32 0.0, %v1086
      %v1088 = vpop.f32.mrf.mxu0
      %v1089 = vpop.f32.mrf.mxu0
      %v1090 = vpop.f32.mrf.mxu0
      %1091 = vdwg.mxu0
      %v1100 = vunpack.c.l.b16 %v397
      %v1101 = vunpack.c.l.b16 %v398
      %v1102 = vunpack.c.l.b16 %v399
      %v1103 = vunpack.c.l.b16 %v400
      %v1104 = vunpack.c.l.b16 %v401
      %v1105 = vunpack.c.l.b16 %v402
      %v1106 = vunpack.c.l.b16 %v403
      %v1107 = vunpack.c.l.b16 %v404
      %v1108 = vpack.c.b16 %v1101, %v1100
      %v1109 = vpack.c.b16 %v1103, %v1102
      %v1110 = vpack.c.b16 %v1105, %v1104
      %v1111 = vpack.c.b16 %v1107, %v1106
      %v1117 = vsel %vm981, %v311, 0
      %1119 = vmatprep.subr.bf16.mxu0 0
      %1120 = vmatpush1.bf16.msra.mxu0 0
      %1121 = vmatprep.subr.bf16.mxu0 0
      %1122 = vmatpush1.bf16.msra.mxu0 0
      %1123 = vmatprep.subr.bf16.mxu0 0
      %1124 = vmatpush1.bf16.msra.mxu0 0
      %1125 = vmatprep.subr.bf16.mxu0 0
      %1126 = vmatpush1.bf16.msra.mxu0 0
      %1127 = vmatprep.subr.bf16.mxu0 0
      %1128 = vmatpush1.bf16.msra.mxu0 %v1111
      %1129 = vmatprep.subr.bf16.mxu0 0
      %1130 = vmatpush1.bf16.msra.mxu0 %v1110
      %1131 = vmatprep.subr.bf16.mxu0 0
      %1132 = vmatpush1.bf16.msra.mxu0 %v1109
      %1133 = vmatprep.subr.bf16.mxu0 0
      %1134 = vmatpush1.bf16.msra.mxu0 %v1108
      %1135 = vmatprep.subr.bf16.mxu0 0
      %1136 = vmatpush2.bf16.msra.mxu0 0
      %1137 = vmatprep.subr.bf16.mxu0 0
      %1138 = vmatpush2.bf16.msra.mxu0 0
      %1139 = vmatprep.subr.bf16.mxu0 0
      %1140 = vmatpush2.bf16.msra.mxu0 0
      %1141 = vmatprep.subr.bf16.mxu0 0
      %1142 = vmatpush2.bf16.msra.mxu0 0
      %1143 = vmatprep.subr.bf16.mxu0 0
      %1144 = vmatpush2.bf16.msra.mxu0 0
      %1145 = vmatprep.subr.bf16.mxu0 0
      %1146 = vmatpush2.bf16.msra.mxu0 0
      %1147 = vmatprep.subr.bf16.mxu0 0
      %1148 = vmatpush2.bf16.msra.mxu0 0
      %1149 = vmatprep.subr.bf16.mxu0 0
      %1150 = vmatpush2.bf16.msra.mxu0 0
      %1151 = vmatprep.mubr.bf16.mxu0 0
      %1152 = vmatmul.mubr.bf16.gmra.mxu0 %v1117
      %v1153 = vpop.f32.mrf.mxu0
      %v1154 = vadd.f32 0.0, %v1153
      %v1155 = vpop.f32.mrf.mxu0
      %v1156 = vpop.f32.mrf.mxu0
      %v1157 = vpop.f32.mrf.mxu0
      %1158 = vdwg.mxu0
      %v1167 = vunpack.c.l.b16 %v405
      %v1168 = vunpack.c.l.b16 %v406
      %v1169 = vunpack.c.l.b16 %v407
      %v1170 = vunpack.c.l.b16 %v408
      %v1171 = vunpack.c.l.b16 %v409
      %v1172 = vunpack.c.l.b16 %v410
      %v1173 = vunpack.c.l.b16 %v411
      %v1174 = vunpack.c.l.b16 %v412
      %v1175 = vpack.c.b16 %v1168, %v1167
      %v1176 = vpack.c.b16 %v1170, %v1169
      %v1177 = vpack.c.b16 %v1172, %v1171
      %v1178 = vpack.c.b16 %v1174, %v1173
      %v1184 = vsel %vm981, %v312, 0
      %1186 = vmatprep.subr.bf16.mxu0 0
      %1187 = vmatpush1.bf16.msra.mxu0 0
      %1188 = vmatprep.subr.bf16.mxu0 0
      %1189 = vmatpush1.bf16.msra.mxu0 0
      %1190 = vmatprep.subr.bf16.mxu0 0
      %1191 = vmatpush1.bf16.msra.mxu0 0
      %1192 = vmatprep.subr.bf16.mxu0 0
      %1193 = vmatpush1.bf16.msra.mxu0 0
      %1194 = vmatprep.subr.bf16.mxu0 0
      %1195 = vmatpush1.bf16.msra.mxu0 %v1178
      %1196 = vmatprep.subr.bf16.mxu0 0
      %1197 = vmatpush1.bf16.msra.mxu0 %v1177
      %1198 = vmatprep.subr.bf16.mxu0 0
      %1199 = vmatpush1.bf16.msra.mxu0 %v1176
      %1200 = vmatprep.subr.bf16.mxu0 0
      %1201 = vmatpush1.bf16.msra.mxu0 %v1175
      %1202 = vmatprep.subr.bf16.mxu0 0
      %1203 = vmatpush2.bf16.msra.mxu0 0
      %1204 = vmatprep.subr.bf16.mxu0 0
      %1205 = vmatpush2.bf16.msra.mxu0 0
      %1206 = vmatprep.subr.bf16.mxu0 0
      %1207 = vmatpush2.bf16.msra.mxu0 0
      %1208 = vmatprep.subr.bf16.mxu0 0
      %1209 = vmatpush2.bf16.msra.mxu0 0
      %1210 = vmatprep.subr.bf16.mxu0 0
      %1211 = vmatpush2.bf16.msra.mxu0 0
      %1212 = vmatprep.subr.bf16.mxu0 0
      %1213 = vmatpush2.bf16.msra.mxu0 0
      %1214 = vmatprep.subr.bf16.mxu0 0
      %1215 = vmatpush2.bf16.msra.mxu0 0
      %1216 = vmatprep.subr.bf16.mxu0 0
      %1217 = vmatpush2.bf16.msra.mxu0 0
      %1218 = vmatprep.mubr.bf16.mxu0 0
      %1219 = vmatmul.mubr.bf16.gmra.mxu0 %v1184
      %v1220 = vpop.f32.mrf.mxu0
      %v1221 = vadd.f32 0.0, %v1220
      %v1222 = vpop.f32.mrf.mxu0
      %v1223 = vpop.f32.mrf.mxu0
      %v1224 = vpop.f32.mrf.mxu0
      %1225 = vdwg.mxu0
      %v1234 = vunpack.c.l.b16 %v413
      %v1235 = vunpack.c.l.b16 %v414
      %v1236 = vunpack.c.l.b16 %v415
      %v1237 = vunpack.c.l.b16 %v416
      %v1238 = vunpack.c.l.b16 %v417
      %v1239 = vunpack.c.l.b16 %v418
      %v1240 = vunpack.c.l.b16 %v419
      %v1241 = vunpack.c.l.b16 %v420
      %v1242 = vpack.c.b16 %v1235, %v1234
      %v1243 = vpack.c.b16 %v1237, %v1236
      %v1244 = vpack.c.b16 %v1239, %v1238
      %v1245 = vpack.c.b16 %v1241, %v1240
      %v1251 = vsel %vm981, %v313, 0
      %1253 = vmatprep.subr.bf16.mxu0 0
      %1254 = vmatpush1.bf16.msra.mxu0 0
      %1255 = vmatprep.subr.bf16.mxu0 0
      %1256 = vmatpush1.bf16.msra.mxu0 0
      %1257 = vmatprep.subr.bf16.mxu0 0
      %1258 = vmatpush1.bf16.msra.mxu0 0
      %1259 = vmatprep.subr.bf16.mxu0 0
      %1260 = vmatpush1.bf16.msra.mxu0 0
      %1261 = vmatprep.subr.bf16.mxu0 0
      %1262 = vmatpush1.bf16.msra.mxu0 %v1245
      %1263 = vmatprep.subr.bf16.mxu0 0
      %1264 = vmatpush1.bf16.msra.mxu0 %v1244
      %1265 = vmatprep.subr.bf16.mxu0 0
      %1266 = vmatpush1.bf16.msra.mxu0 %v1243
      %1267 = vmatprep.subr.bf16.mxu0 0
      %1268 = vmatpush1.bf16.msra.mxu0 %v1242
      %1269 = vmatprep.subr.bf16.mxu0 0
      %1270 = vmatpush2.bf16.msra.mxu0 0
      %1271 = vmatprep.subr.bf16.mxu0 0
      %1272 = vmatpush2.bf16.msra.mxu0 0
      %1273 = vmatprep.subr.bf16.mxu0 0
      %1274 = vmatpush2.bf16.msra.mxu0 0
      %1275 = vmatprep.subr.bf16.mxu0 0
      %1276 = vmatpush2.bf16.msra.mxu0 0
      %1277 = vmatprep.subr.bf16.mxu0 0
      %1278 = vmatpush2.bf16.msra.mxu0 0
      %1279 = vmatprep.subr.bf16.mxu0 0
      %1280 = vmatpush2.bf16.msra.mxu0 0
      %1281 = vmatprep.subr.bf16.mxu0 0
      %1282 = vmatpush2.bf16.msra.mxu0 0
      %1283 = vmatprep.subr.bf16.mxu0 0
      %1284 = vmatpush2.bf16.msra.mxu0 0
      %1285 = vmatprep.mubr.bf16.mxu0 0
      %1286 = vmatmul.mubr.bf16.gmra.mxu0 %v1251
      %v1287 = vpop.f32.mrf.mxu0
      %v1288 = vadd.f32 0.0, %v1287
      %v1289 = vpop.f32.mrf.mxu0
      %v1290 = vpop.f32.mrf.mxu0
      %v1291 = vpop.f32.mrf.mxu0
      %1292 = vdwg.mxu0
      %v1301 = vunpack.c.l.b16 %v421
      %v1302 = vunpack.c.l.b16 %v422
      %v1303 = vunpack.c.l.b16 %v423
      %v1304 = vunpack.c.l.b16 %v424
      %v1305 = vunpack.c.l.b16 %v425
      %v1306 = vunpack.c.l.b16 %v426
      %v1307 = vunpack.c.l.b16 %v427
      %v1308 = vunpack.c.l.b16 %v428
      %v1309 = vpack.c.b16 %v1302, %v1301
      %v1310 = vpack.c.b16 %v1304, %v1303
      %v1311 = vpack.c.b16 %v1306, %v1305
      %v1312 = vpack.c.b16 %v1308, %v1307
      %v1318 = vsel %vm981, %v314, 0
      %1320 = vmatprep.subr.bf16.mxu0 0
      %1321 = vmatpush1.bf16.msra.mxu0 0
      %1322 = vmatprep.subr.bf16.mxu0 0
      %1323 = vmatpush1.bf16.msra.mxu0 0
      %1324 = vmatprep.subr.bf16.mxu0 0
      %1325 = vmatpush1.bf16.msra.mxu0 0
      %1326 = vmatprep.subr.bf16.mxu0 0
      %1327 = vmatpush1.bf16.msra.mxu0 0
      %1328 = vmatprep.subr.bf16.mxu0 0
      %1329 = vmatpush1.bf16.msra.mxu0 %v1312
      %1330 = vmatprep.subr.bf16.mxu0 0
      %1331 = vmatpush1.bf16.msra.mxu0 %v1311
      %1332 = vmatprep.subr.bf16.mxu0 0
      %1333 = vmatpush1.bf16.msra.mxu0 %v1310
      %1334 = vmatprep.subr.bf16.mxu0 0
      %1335 = vmatpush1.bf16.msra.mxu0 %v1309
      %1336 = vmatprep.subr.bf16.mxu0 0
      %1337 = vmatpush2.bf16.msra.mxu0 0
      %1338 = vmatprep.subr.bf16.mxu0 0
      %1339 = vmatpush2.bf16.msra.mxu0 0
      %1340 = vmatprep.subr.bf16.mxu0 0
      %1341 = vmatpush2.bf16.msra.mxu0 0
      %1342 = vmatprep.subr.bf16.mxu0 0
      %1343 = vmatpush2.bf16.msra.mxu0 0
      %1344 = vmatprep.subr.bf16.mxu0 0
      %1345 = vmatpush2.bf16.msra.mxu0 0
      %1346 = vmatprep.subr.bf16.mxu0 0
      %1347 = vmatpush2.bf16.msra.mxu0 0
      %1348 = vmatprep.subr.bf16.mxu0 0
      %1349 = vmatpush2.bf16.msra.mxu0 0
      %1350 = vmatprep.subr.bf16.mxu0 0
      %1351 = vmatpush2.bf16.msra.mxu0 0
      %1352 = vmatprep.mubr.bf16.mxu0 0
      %1353 = vmatmul.mubr.bf16.gmra.mxu0 %v1318
      %v1354 = vpop.f32.mrf.mxu0
      %v1355 = vadd.f32 0.0, %v1354
      %v1356 = vpop.f32.mrf.mxu0
      %v1357 = vpop.f32.mrf.mxu0
      %v1358 = vpop.f32.mrf.mxu0
      %1359 = vdwg.mxu0
      %v1368 = vunpack.c.l.b16 %v429
      %v1369 = vunpack.c.l.b16 %v430
      %v1370 = vunpack.c.l.b16 %v431
      %v1371 = vunpack.c.l.b16 %v432
      %v1372 = vunpack.c.l.b16 %v433
      %v1373 = vunpack.c.l.b16 %v434
      %v1374 = vunpack.c.l.b16 %v435
      %v1375 = vunpack.c.l.b16 %v436
      %v1376 = vpack.c.b16 %v1369, %v1368
      %v1377 = vpack.c.b16 %v1371, %v1370
      %v1378 = vpack.c.b16 %v1373, %v1372
      %v1379 = vpack.c.b16 %v1375, %v1374
      %v1385 = vsel %vm981, %v315, 0
      %1387 = vmatprep.subr.bf16.mxu0 0
      %1388 = vmatpush1.bf16.msra.mxu0 0
      %1389 = vmatprep.subr.bf16.mxu0 0
      %1390 = vmatpush1.bf16.msra.mxu0 0
      %1391 = vmatprep.subr.bf16.mxu0 0
      %1392 = vmatpush1.bf16.msra.mxu0 0
      %1393 = vmatprep.subr.bf16.mxu0 0
      %1394 = vmatpush1.bf16.msra.mxu0 0
      %1395 = vmatprep.subr.bf16.mxu0 0
      %1396 = vmatpush1.bf16.msra.mxu0 %v1379
      %1397 = vmatprep.subr.bf16.mxu0 0
      %1398 = vmatpush1.bf16.msra.mxu0 %v1378
      %1399 = vmatprep.subr.bf16.mxu0 0
      %1400 = vmatpush1.bf16.msra.mxu0 %v1377
      %1401 = vmatprep.subr.bf16.mxu0 0
      %1402 = vmatpush1.bf16.msra.mxu0 %v1376
      %1403 = vmatprep.subr.bf16.mxu0 0
      %1404 = vmatpush2.bf16.msra.mxu0 0
      %1405 = vmatprep.subr.bf16.mxu0 0
      %1406 = vmatpush2.bf16.msra.mxu0 0
      %1407 = vmatprep.subr.bf16.mxu0 0
      %1408 = vmatpush2.bf16.msra.mxu0 0
      %1409 = vmatprep.subr.bf16.mxu0 0
      %1410 = vmatpush2.bf16.msra.mxu0 0
      %1411 = vmatprep.subr.bf16.mxu0 0
      %1412 = vmatpush2.bf16.msra.mxu0 0
      %1413 = vmatprep.subr.bf16.mxu0 0
      %1414 = vmatpush2.bf16.msra.mxu0 0
      %1415 = vmatprep.subr.bf16.mxu0 0
      %1416 = vmatpush2.bf16.msra.mxu0 0
      %1417 = vmatprep.subr.bf16.mxu0 0
      %1418 = vmatpush2.bf16.msra.mxu0 0
      %1419 = vmatprep.mubr.bf16.mxu0 0
      %1420 = vmatmul.mubr.bf16.gmra.mxu0 %v1385
      %v1421 = vpop.f32.mrf.mxu0
      %v1422 = vadd.f32 0.0, %v1421
      %v1423 = vpop.f32.mrf.mxu0
      %v1424 = vpop.f32.mrf.mxu0
      %v1425 = vpop.f32.mrf.mxu0
      %1426 = vdwg.mxu0
      %v1435 = vunpack.c.l.b16 %v437
      %v1436 = vunpack.c.l.b16 %v438
      %v1437 = vunpack.c.l.b16 %v439
      %v1438 = vunpack.c.l.b16 %v440
      %v1439 = vunpack.c.l.b16 %v441
      %v1440 = vunpack.c.l.b16 %v442
      %v1441 = vunpack.c.l.b16 %v443
      %v1442 = vunpack.c.l.b16 %v444
      %v1443 = vpack.c.b16 %v1436, %v1435
      %v1444 = vpack.c.b16 %v1438, %v1437
      %v1445 = vpack.c.b16 %v1440, %v1439
      %v1446 = vpack.c.b16 %v1442, %v1441
      %v1452 = vsel %vm981, %v316, 0
      %1454 = vmatprep.subr.bf16.mxu0 0
      %1455 = vmatpush1.bf16.msra.mxu0 0
      %1456 = vmatprep.subr.bf16.mxu0 0
      %1457 = vmatpush1.bf16.msra.mxu0 0
      %1458 = vmatprep.subr.bf16.mxu0 0
      %1459 = vmatpush1.bf16.msra.mxu0 0
      %1460 = vmatprep.subr.bf16.mxu0 0
      %1461 = vmatpush1.bf16.msra.mxu0 0
      %1462 = vmatprep.subr.bf16.mxu0 0
      %1463 = vmatpush1.bf16.msra.mxu0 %v1446
      %1464 = vmatprep.subr.bf16.mxu0 0
      %1465 = vmatpush1.bf16.msra.mxu0 %v1445
      %1466 = vmatprep.subr.bf16.mxu0 0
      %1467 = vmatpush1.bf16.msra.mxu0 %v1444
      %1468 = vmatprep.subr.bf16.mxu0 0
      %1469 = vmatpush1.bf16.msra.mxu0 %v1443
      %1470 = vmatprep.subr.bf16.mxu0 0
      %1471 = vmatpush2.bf16.msra.mxu0 0
      %1472 = vmatprep.subr.bf16.mxu0 0
      %1473 = vmatpush2.bf16.msra.mxu0 0
      %1474 = vmatprep.subr.bf16.mxu0 0
      %1475 = vmatpush2.bf16.msra.mxu0 0
      %1476 = vmatprep.subr.bf16.mxu0 0
      %1477 = vmatpush2.bf16.msra.mxu0 0
      %1478 = vmatprep.subr.bf16.mxu0 0
      %1479 = vmatpush2.bf16.msra.mxu0 0
      %1480 = vmatprep.subr.bf16.mxu0 0
      %1481 = vmatpush2.bf16.msra.mxu0 0
      %1482 = vmatprep.subr.bf16.mxu0 0
      %1483 = vmatpush2.bf16.msra.mxu0 0
      %1484 = vmatprep.subr.bf16.mxu0 0
      %1485 = vmatpush2.bf16.msra.mxu0 0
      %1486 = vmatprep.mubr.bf16.mxu0 0
      %1487 = vmatmul.mubr.bf16.gmra.mxu0 %v1452
      %v1488 = vpop.f32.mrf.mxu0
      %v1489 = vadd.f32 0.0, %v1488
      %v1490 = vpop.f32.mrf.mxu0
      %v1491 = vpop.f32.mrf.mxu0
      %v1492 = vpop.f32.mrf.mxu0
      %1493 = vdwg.mxu0
      %v1502 = vunpack.c.l.b16 %v445
      %v1503 = vunpack.c.l.b16 %v446
      %v1504 = vunpack.c.l.b16 %v447
      %v1505 = vunpack.c.l.b16 %v448
      %v1506 = vunpack.c.l.b16 %v449
      %v1507 = vunpack.c.l.b16 %v450
      %v1508 = vunpack.c.l.b16 %v451
      %v1509 = vunpack.c.l.b16 %v452
      %v1510 = vpack.c.b16 %v1503, %v1502
      %v1511 = vpack.c.b16 %v1505, %v1504
      %v1512 = vpack.c.b16 %v1507, %v1506
      %v1513 = vpack.c.b16 %v1509, %v1508
      %v1519 = vsel %vm981, %v317, 0
      %1521 = vmatprep.subr.bf16.mxu0 0
      %1522 = vmatpush1.bf16.msra.mxu0 0
      %1523 = vmatprep.subr.bf16.mxu0 0
      %1524 = vmatpush1.bf16.msra.mxu0 0
      %1525 = vmatprep.subr.bf16.mxu0 0
      %1526 = vmatpush1.bf16.msra.mxu0 0
      %1527 = vmatprep.subr.bf16.mxu0 0
      %1528 = vmatpush1.bf16.msra.mxu0 0
      %1529 = vmatprep.subr.bf16.mxu0 0
      %1530 = vmatpush1.bf16.msra.mxu0 %v1513
      %1531 = vmatprep.subr.bf16.mxu0 0
      %1532 = vmatpush1.bf16.msra.mxu0 %v1512
      %1533 = vmatprep.subr.bf16.mxu0 0
      %1534 = vmatpush1.bf16.msra.mxu0 %v1511
      %1535 = vmatprep.subr.bf16.mxu0 0
      %1536 = vmatpush1.bf16.msra.mxu0 %v1510
      %1537 = vmatprep.subr.bf16.mxu0 0
      %1538 = vmatpush2.bf16.msra.mxu0 0
      %1539 = vmatprep.subr.bf16.mxu0 0
      %1540 = vmatpush2.bf16.msra.mxu0 0
      %1541 = vmatprep.subr.bf16.mxu0 0
      %1542 = vmatpush2.bf16.msra.mxu0 0
      %1543 = vmatprep.subr.bf16.mxu0 0
      %1544 = vmatpush2.bf16.msra.mxu0 0
      %1545 = vmatprep.subr.bf16.mxu0 0
      %1546 = vmatpush2.bf16.msra.mxu0 0
      %1547 = vmatprep.subr.bf16.mxu0 0
      %1548 = vmatpush2.bf16.msra.mxu0 0
      %1549 = vmatprep.subr.bf16.mxu0 0
      %1550 = vmatpush2.bf16.msra.mxu0 0
      %1551 = vmatprep.subr.bf16.mxu0 0
      %1552 = vmatpush2.bf16.msra.mxu0 0
      %1553 = vmatprep.mubr.bf16.mxu0 0
      %1554 = vmatmul.mubr.bf16.gmra.mxu0 %v1519
      %v1555 = vpop.f32.mrf.mxu0
      %v1556 = vadd.f32 0.0, %v1555
      %v1557 = vpop.f32.mrf.mxu0
      %v1558 = vpop.f32.mrf.mxu0
      %v1559 = vpop.f32.mrf.mxu0
      %1560 = vdwg.mxu0
      %v1569 = vunpack.c.l.b16 %v453
      %v1570 = vunpack.c.l.b16 %v454
      %v1571 = vunpack.c.l.b16 %v455
      %v1572 = vunpack.c.l.b16 %v456
      %v1573 = vunpack.c.l.b16 %v457
      %v1574 = vunpack.c.l.b16 %v458
      %v1575 = vunpack.c.l.b16 %v459
      %v1576 = vunpack.c.l.b16 %v460
      %v1577 = vpack.c.b16 %v1570, %v1569
      %v1578 = vpack.c.b16 %v1572, %v1571
      %v1579 = vpack.c.b16 %v1574, %v1573
      %v1580 = vpack.c.b16 %v1576, %v1575
      %v1586 = vsel %vm981, %v318, 0
      %1588 = vmatprep.subr.bf16.mxu0 0
      %1589 = vmatpush1.bf16.msra.mxu0 0
      %1590 = vmatprep.subr.bf16.mxu0 0
      %1591 = vmatpush1.bf16.msra.mxu0 0
      %1592 = vmatprep.subr.bf16.mxu0 0
      %1593 = vmatpush1.bf16.msra.mxu0 0
      %1594 = vmatprep.subr.bf16.mxu0 0
      %1595 = vmatpush1.bf16.msra.mxu0 0
      %1596 = vmatprep.subr.bf16.mxu0 0
      %1597 = vmatpush1.bf16.msra.mxu0 %v1580
      %1598 = vmatprep.subr.bf16.mxu0 0
      %1599 = vmatpush1.bf16.msra.mxu0 %v1579
      %1600 = vmatprep.subr.bf16.mxu0 0
      %1601 = vmatpush1.bf16.msra.mxu0 %v1578
      %1602 = vmatprep.subr.bf16.mxu0 0
      %1603 = vmatpush1.bf16.msra.mxu0 %v1577
      %1604 = vmatprep.subr.bf16.mxu0 0
      %1605 = vmatpush2.bf16.msra.mxu0 0
      %1606 = vmatprep.subr.bf16.mxu0 0
      %1607 = vmatpush2.bf16.msra.mxu0 0
      %1608 = vmatprep.subr.bf16.mxu0 0
      %1609 = vmatpush2.bf16.msra.mxu0 0
      %1610 = vmatprep.subr.bf16.mxu0 0
      %1611 = vmatpush2.bf16.msra.mxu0 0
      %1612 = vmatprep.subr.bf16.mxu0 0
      %1613 = vmatpush2.bf16.msra.mxu0 0
      %1614 = vmatprep.subr.bf16.mxu0 0
      %1615 = vmatpush2.bf16.msra.mxu0 0
      %1616 = vmatprep.subr.bf16.mxu0 0
      %1617 = vmatpush2.bf16.msra.mxu0 0
      %1618 = vmatprep.subr.bf16.mxu0 0
      %1619 = vmatpush2.bf16.msra.mxu0 0
      %1620 = vmatprep.mubr.bf16.mxu0 0
      %1621 = vmatmul.mubr.bf16.gmra.mxu0 %v1586
      %v1622 = vpop.f32.mrf.mxu0
      %v1623 = vadd.f32 0.0, %v1622
      %v1624 = vpop.f32.mrf.mxu0
      %v1625 = vpop.f32.mrf.mxu0
      %v1626 = vpop.f32.mrf.mxu0
      %1627 = vdwg.mxu0
      %v1636 = vunpack.c.l.b16 %v461
      %v1637 = vunpack.c.l.b16 %v462
      %v1638 = vunpack.c.l.b16 %v463
      %v1639 = vunpack.c.l.b16 %v464
      %v1640 = vunpack.c.l.b16 %v465
      %v1641 = vunpack.c.l.b16 %v466
      %v1642 = vunpack.c.l.b16 %v467
      %v1643 = vunpack.c.l.b16 %v468
      %v1644 = vpack.c.b16 %v1637, %v1636
      %v1645 = vpack.c.b16 %v1639, %v1638
      %v1646 = vpack.c.b16 %v1641, %v1640
      %v1647 = vpack.c.b16 %v1643, %v1642
      %v1653 = vsel %vm981, %v319, 0
      %1655 = vmatprep.subr.bf16.mxu0 0
      %1656 = vmatpush1.bf16.msra.mxu0 0
      %1657 = vmatprep.subr.bf16.mxu0 0
      %1658 = vmatpush1.bf16.msra.mxu0 0
      %1659 = vmatprep.subr.bf16.mxu0 0
      %1660 = vmatpush1.bf16.msra.mxu0 0
      %1661 = vmatprep.subr.bf16.mxu0 0
      %1662 = vmatpush1.bf16.msra.mxu0 0
      %1663 = vmatprep.subr.bf16.mxu0 0
      %1664 = vmatpush1.bf16.msra.mxu0 %v1647
      %1665 = vmatprep.subr.bf16.mxu0 0
      %1666 = vmatpush1.bf16.msra.mxu0 %v1646
      %1667 = vmatprep.subr.bf16.mxu0 0
      %1668 = vmatpush1.bf16.msra.mxu0 %v1645
      %1669 = vmatprep.subr.bf16.mxu0 0
      %1670 = vmatpush1.bf16.msra.mxu0 %v1644
      %1671 = vmatprep.subr.bf16.mxu0 0
      %1672 = vmatpush2.bf16.msra.mxu0 0
      %1673 = vmatprep.subr.bf16.mxu0 0
      %1674 = vmatpush2.bf16.msra.mxu0 0
      %1675 = vmatprep.subr.bf16.mxu0 0
      %1676 = vmatpush2.bf16.msra.mxu0 0
      %1677 = vmatprep.subr.bf16.mxu0 0
      %1678 = vmatpush2.bf16.msra.mxu0 0
      %1679 = vmatprep.subr.bf16.mxu0 0
      %1680 = vmatpush2.bf16.msra.mxu0 0
      %1681 = vmatprep.subr.bf16.mxu0 0
      %1682 = vmatpush2.bf16.msra.mxu0 0
      %1683 = vmatprep.subr.bf16.mxu0 0
      %1684 = vmatpush2.bf16.msra.mxu0 0
      %1685 = vmatprep.subr.bf16.mxu0 0
      %1686 = vmatpush2.bf16.msra.mxu0 0
      %1687 = vmatprep.mubr.bf16.mxu0 0
      %1688 = vmatmul.mubr.bf16.gmra.mxu0 %v1653
      %v1689 = vpop.f32.mrf.mxu0
      %v1690 = vadd.f32 0.0, %v1689
      %v1691 = vpop.f32.mrf.mxu0
      %v1692 = vpop.f32.mrf.mxu0
      %v1693 = vpop.f32.mrf.mxu0
      %1694 = vdwg.mxu0
      %v1703 = vunpack.c.l.b16 %v469
      %v1704 = vunpack.c.l.b16 %v470
      %v1705 = vunpack.c.l.b16 %v471
      %v1706 = vunpack.c.l.b16 %v472
      %v1707 = vunpack.c.l.b16 %v473
      %v1708 = vunpack.c.l.b16 %v474
      %v1709 = vunpack.c.l.b16 %v475
      %v1710 = vunpack.c.l.b16 %v476
      %v1711 = vpack.c.b16 %v1704, %v1703
      %v1712 = vpack.c.b16 %v1706, %v1705
      %v1713 = vpack.c.b16 %v1708, %v1707
      %v1714 = vpack.c.b16 %v1710, %v1709
      %v1720 = vsel %vm981, %v320, 0
      %1722 = vmatprep.subr.bf16.mxu0 0
      %1723 = vmatpush1.bf16.msra.mxu0 0
      %1724 = vmatprep.subr.bf16.mxu0 0
      %1725 = vmatpush1.bf16.msra.mxu0 0
      %1726 = vmatprep.subr.bf16.mxu0 0
      %1727 = vmatpush1.bf16.msra.mxu0 0
      %1728 = vmatprep.subr.bf16.mxu0 0
      %1729 = vmatpush1.bf16.msra.mxu0 0
      %1730 = vmatprep.subr.bf16.mxu0 0
      %1731 = vmatpush1.bf16.msra.mxu0 %v1714
      %1732 = vmatprep.subr.bf16.mxu0 0
      %1733 = vmatpush1.bf16.msra.mxu0 %v1713
      %1734 = vmatprep.subr.bf16.mxu0 0
      %1735 = vmatpush1.bf16.msra.mxu0 %v1712
      %1736 = vmatprep.subr.bf16.mxu0 0
      %1737 = vmatpush1.bf16.msra.mxu0 %v1711
      %1738 = vmatprep.subr.bf16.mxu0 0
      %1739 = vmatpush2.bf16.msra.mxu0 0
      %1740 = vmatprep.subr.bf16.mxu0 0
      %1741 = vmatpush2.bf16.msra.mxu0 0
      %1742 = vmatprep.subr.bf16.mxu0 0
      %1743 = vmatpush2.bf16.msra.mxu0 0
      %1744 = vmatprep.subr.bf16.mxu0 0
      %1745 = vmatpush2.bf16.msra.mxu0 0
      %1746 = vmatprep.subr.bf16.mxu0 0
      %1747 = vmatpush2.bf16.msra.mxu0 0
      %1748 = vmatprep.subr.bf16.mxu0 0
      %1749 = vmatpush2.bf16.msra.mxu0 0
      %1750 = vmatprep.subr.bf16.mxu0 0
      %1751 = vmatpush2.bf16.msra.mxu0 0
      %1752 = vmatprep.subr.bf16.mxu0 0
      %1753 = vmatpush2.bf16.msra.mxu0 0
      %1754 = vmatprep.mubr.bf16.mxu0 0
      %1755 = vmatmul.mubr.bf16.gmra.mxu0 %v1720
      %v1756 = vpop.f32.mrf.mxu0
      %v1757 = vadd.f32 0.0, %v1756
      %v1758 = vpop.f32.mrf.mxu0
      %v1759 = vpop.f32.mrf.mxu0
      %v1760 = vpop.f32.mrf.mxu0
      %1761 = vdwg.mxu0
      %v1770 = vunpack.c.l.b16 %v477
      %v1771 = vunpack.c.l.b16 %v478
      %v1772 = vunpack.c.l.b16 %v479
      %v1773 = vunpack.c.l.b16 %v480
      %v1774 = vunpack.c.l.b16 %v481
      %v1775 = vunpack.c.l.b16 %v482
      %v1776 = vunpack.c.l.b16 %v483
      %v1777 = vunpack.c.l.b16 %v484
      %v1778 = vpack.c.b16 %v1771, %v1770
      %v1779 = vpack.c.b16 %v1773, %v1772
      %v1780 = vpack.c.b16 %v1775, %v1774
      %v1781 = vpack.c.b16 %v1777, %v1776
      %v1787 = vsel %vm981, %v321, 0
      %1789 = vmatprep.subr.bf16.mxu0 0
      %1790 = vmatpush1.bf16.msra.mxu0 0
      %1791 = vmatprep.subr.bf16.mxu0 0
      %1792 = vmatpush1.bf16.msra.mxu0 0
      %1793 = vmatprep.subr.bf16.mxu0 0
      %1794 = vmatpush1.bf16.msra.mxu0 0
      %1795 = vmatprep.subr.bf16.mxu0 0
      %1796 = vmatpush1.bf16.msra.mxu0 0
      %1797 = vmatprep.subr.bf16.mxu0 0
      %1798 = vmatpush1.bf16.msra.mxu0 %v1781
      %1799 = vmatprep.subr.bf16.mxu0 0
      %1800 = vmatpush1.bf16.msra.mxu0 %v1780
      %1801 = vmatprep.subr.bf16.mxu0 0
      %1802 = vmatpush1.bf16.msra.mxu0 %v1779
      %1803 = vmatprep.subr.bf16.mxu0 0
      %1804 = vmatpush1.bf16.msra.mxu0 %v1778
      %1805 = vmatprep.subr.bf16.mxu0 0
      %1806 = vmatpush2.bf16.msra.mxu0 0
      %1807 = vmatprep.subr.bf16.mxu0 0
      %1808 = vmatpush2.bf16.msra.mxu0 0
      %1809 = vmatprep.subr.bf16.mxu0 0
      %1810 = vmatpush2.bf16.msra.mxu0 0
      %1811 = vmatprep.subr.bf16.mxu0 0
      %1812 = vmatpush2.bf16.msra.mxu0 0
      %1813 = vmatprep.subr.bf16.mxu0 0
      %1814 = vmatpush2.bf16.msra.mxu0 0
      %1815 = vmatprep.subr.bf16.mxu0 0
      %1816 = vmatpush2.bf16.msra.mxu0 0
      %1817 = vmatprep.subr.bf16.mxu0 0
      %1818 = vmatpush2.bf16.msra.mxu0 0
      %1819 = vmatprep.subr.bf16.mxu0 0
      %1820 = vmatpush2.bf16.msra.mxu0 0
      %1821 = vmatprep.mubr.bf16.mxu0 0
      %1822 = vmatmul.mubr.bf16.gmra.mxu0 %v1787
      %v1823 = vpop.f32.mrf.mxu0
      %v1824 = vadd.f32 0.0, %v1823
      %v1825 = vpop.f32.mrf.mxu0
      %v1826 = vpop.f32.mrf.mxu0
      %v1827 = vpop.f32.mrf.mxu0
      %1828 = vdwg.mxu0
      %v1837 = vunpack.c.l.b16 %v485
      %v1838 = vunpack.c.l.b16 %v486
      %v1839 = vunpack.c.l.b16 %v487
      %v1840 = vunpack.c.l.b16 %v488
      %v1841 = vunpack.c.l.b16 %v489
      %v1842 = vunpack.c.l.b16 %v490
      %v1843 = vunpack.c.l.b16 %v491
      %v1844 = vunpack.c.l.b16 %v492
      %v1845 = vpack.c.b16 %v1838, %v1837
      %v1846 = vpack.c.b16 %v1840, %v1839
      %v1847 = vpack.c.b16 %v1842, %v1841
      %v1848 = vpack.c.b16 %v1844, %v1843
      %v1854 = vsel %vm981, %v322, 0
      %1856 = vmatprep.subr.bf16.mxu0 0
      %1857 = vmatpush1.bf16.msra.mxu0 0
      %1858 = vmatprep.subr.bf16.mxu0 0
      %1859 = vmatpush1.bf16.msra.mxu0 0
      %1860 = vmatprep.subr.bf16.mxu0 0
      %1861 = vmatpush1.bf16.msra.mxu0 0
      %1862 = vmatprep.subr.bf16.mxu0 0
      %1863 = vmatpush1.bf16.msra.mxu0 0
      %1864 = vmatprep.subr.bf16.mxu0 0
      %1865 = vmatpush1.bf16.msra.mxu0 %v1848
      %1866 = vmatprep.subr.bf16.mxu0 0
      %1867 = vmatpush1.bf16.msra.mxu0 %v1847
      %1868 = vmatprep.subr.bf16.mxu0 0
      %1869 = vmatpush1.bf16.msra.mxu0 %v1846
      %1870 = vmatprep.subr.bf16.mxu0 0
      %1871 = vmatpush1.bf16.msra.mxu0 %v1845
      %1872 = vmatprep.subr.bf16.mxu0 0
      %1873 = vmatpush2.bf16.msra.mxu0 0
      %1874 = vmatprep.subr.bf16.mxu0 0
      %1875 = vmatpush2.bf16.msra.mxu0 0
      %1876 = vmatprep.subr.bf16.mxu0 0
      %1877 = vmatpush2.bf16.msra.mxu0 0
      %1878 = vmatprep.subr.bf16.mxu0 0
      %1879 = vmatpush2.bf16.msra.mxu0 0
      %1880 = vmatprep.subr.bf16.mxu0 0
      %1881 = vmatpush2.bf16.msra.mxu0 0
      %1882 = vmatprep.subr.bf16.mxu0 0
      %1883 = vmatpush2.bf16.msra.mxu0 0
      %1884 = vmatprep.subr.bf16.mxu0 0
      %1885 = vmatpush2.bf16.msra.mxu0 0
      %1886 = vmatprep.subr.bf16.mxu0 0
      %1887 = vmatpush2.bf16.msra.mxu0 0
      %1888 = vmatprep.mubr.bf16.mxu0 0
      %1889 = vmatmul.mubr.bf16.gmra.mxu0 %v1854
      %v1890 = vpop.f32.mrf.mxu0
      %v1891 = vadd.f32 0.0, %v1890
      %v1892 = vpop.f32.mrf.mxu0
      %v1893 = vpop.f32.mrf.mxu0
      %v1894 = vpop.f32.mrf.mxu0
      %1895 = vdwg.mxu0
      %v1904 = vunpack.c.l.b16 %v493
      %v1905 = vunpack.c.l.b16 %v494
      %v1906 = vunpack.c.l.b16 %v495
      %v1907 = vunpack.c.l.b16 %v496
      %v1908 = vunpack.c.l.b16 %v497
      %v1909 = vunpack.c.l.b16 %v498
      %v1910 = vunpack.c.l.b16 %v499
      %v1911 = vunpack.c.l.b16 %v500
      %v1912 = vpack.c.b16 %v1905, %v1904
      %v1913 = vpack.c.b16 %v1907, %v1906
      %v1914 = vpack.c.b16 %v1909, %v1908
      %v1915 = vpack.c.b16 %v1911, %v1910
      %v1921 = vsel %vm981, %v323, 0
      %1923 = vmatprep.subr.bf16.mxu0 0
      %1924 = vmatpush1.bf16.msra.mxu0 0
      %1925 = vmatprep.subr.bf16.mxu0 0
      %1926 = vmatpush1.bf16.msra.mxu0 0
      %1927 = vmatprep.subr.bf16.mxu0 0
      %1928 = vmatpush1.bf16.msra.mxu0 0
      %1929 = vmatprep.subr.bf16.mxu0 0
      %1930 = vmatpush1.bf16.msra.mxu0 0
      %1931 = vmatprep.subr.bf16.mxu0 0
      %1932 = vmatpush1.bf16.msra.mxu0 %v1915
      %1933 = vmatprep.subr.bf16.mxu0 0
      %1934 = vmatpush1.bf16.msra.mxu0 %v1914
      %1935 = vmatprep.subr.bf16.mxu0 0
      %1936 = vmatpush1.bf16.msra.mxu0 %v1913
      %1937 = vmatprep.subr.bf16.mxu0 0
      %1938 = vmatpush1.bf16.msra.mxu0 %v1912
      %1939 = vmatprep.subr.bf16.mxu0 0
      %1940 = vmatpush2.bf16.msra.mxu0 0
      %1941 = vmatprep.subr.bf16.mxu0 0
      %1942 = vmatpush2.bf16.msra.mxu0 0
      %1943 = vmatprep.subr.bf16.mxu0 0
      %1944 = vmatpush2.bf16.msra.mxu0 0
      %1945 = vmatprep.subr.bf16.mxu0 0
      %1946 = vmatpush2.bf16.msra.mxu0 0
      %1947 = vmatprep.subr.bf16.mxu0 0
      %1948 = vmatpush2.bf16.msra.mxu0 0
      %1949 = vmatprep.subr.bf16.mxu0 0
      %1950 = vmatpush2.bf16.msra.mxu0 0
      %1951 = vmatprep.subr.bf16.mxu0 0
      %1952 = vmatpush2.bf16.msra.mxu0 0
      %1953 = vmatprep.subr.bf16.mxu0 0
      %1954 = vmatpush2.bf16.msra.mxu0 0
      %1955 = vmatprep.mubr.bf16.mxu0 0
      %1956 = vmatmul.mubr.bf16.gmra.mxu0 %v1921
      %v1957 = vpop.f32.mrf.mxu0
      %v1958 = vadd.f32 0.0, %v1957
      %v1959 = vpop.f32.mrf.mxu0
      %v1960 = vpop.f32.mrf.mxu0
      %v1961 = vpop.f32.mrf.mxu0
      %1962 = vdwg.mxu0
      %v1971 = vunpack.c.l.b16 %v501
      %v1972 = vunpack.c.l.b16 %v502
      %v1973 = vunpack.c.l.b16 %v503
      %v1974 = vunpack.c.l.b16 %v504
      %v1975 = vunpack.c.l.b16 %v505
      %v1976 = vunpack.c.l.b16 %v506
      %v1977 = vunpack.c.l.b16 %v507
      %v1978 = vunpack.c.l.b16 %v508
      %v1979 = vpack.c.b16 %v1972, %v1971
      %v1980 = vpack.c.b16 %v1974, %v1973
      %v1981 = vpack.c.b16 %v1976, %v1975
      %v1982 = vpack.c.b16 %v1978, %v1977
      %v1988 = vsel %vm981, %v324, 0
      %1990 = vmatprep.subr.bf16.mxu0 0
      %1991 = vmatpush1.bf16.msra.mxu0 0
      %1992 = vmatprep.subr.bf16.mxu0 0
      %1993 = vmatpush1.bf16.msra.mxu0 0
      %1994 = vmatprep.subr.bf16.mxu0 0
      %1995 = vmatpush1.bf16.msra.mxu0 0
      %1996 = vmatprep.subr.bf16.mxu0 0
      %1997 = vmatpush1.bf16.msra.mxu0 0
      %1998 = vmatprep.subr.bf16.mxu0 0
      %1999 = vmatpush1.bf16.msra.mxu0 %v1982
      %2000 = vmatprep.subr.bf16.mxu0 0
      %2001 = vmatpush1.bf16.msra.mxu0 %v1981
      %2002 = vmatprep.subr.bf16.mxu0 0
      %2003 = vmatpush1.bf16.msra.mxu0 %v1980
      %2004 = vmatprep.subr.bf16.mxu0 0
      %2005 = vmatpush1.bf16.msra.mxu0 %v1979
      %2006 = vmatprep.subr.bf16.mxu0 0
      %2007 = vmatpush2.bf16.msra.mxu0 0
      %2008 = vmatprep.subr.bf16.mxu0 0
      %2009 = vmatpush2.bf16.msra.mxu0 0
      %2010 = vmatprep.subr.bf16.mxu0 0
      %2011 = vmatpush2.bf16.msra.mxu0 0
      %2012 = vmatprep.subr.bf16.mxu0 0
      %2013 = vmatpush2.bf16.msra.mxu0 0
      %2014 = vmatprep.subr.bf16.mxu0 0
      %2015 = vmatpush2.bf16.msra.mxu0 0
      %2016 = vmatprep.subr.bf16.mxu0 0
      %2017 = vmatpush2.bf16.msra.mxu0 0
      %2018 = vmatprep.subr.bf16.mxu0 0
      %2019 = vmatpush2.bf16.msra.mxu0 0
      %2020 = vmatprep.subr.bf16.mxu0 0
      %2021 = vmatpush2.bf16.msra.mxu0 0
      %2022 = vmatprep.mubr.bf16.mxu0 0
      %2023 = vmatmul.mubr.bf16.gmra.mxu0 %v1988
      %v2024 = vpop.f32.mrf.mxu0
      %v2025 = vadd.f32 0.0, %v2024
      %v2026 = vpop.f32.mrf.mxu0
      %v2027 = vpop.f32.mrf.mxu0
      %v2028 = vpop.f32.mrf.mxu0
      %2029 = vdwg.mxu0
      %v2038 = vunpack.c.l.b16 %v509
      %v2039 = vunpack.c.l.b16 %v510
      %v2040 = vunpack.c.l.b16 %v511
      %v2041 = vunpack.c.l.b16 %v512
      %v2042 = vunpack.c.l.b16 %v513
      %v2043 = vunpack.c.l.b16 %v514
      %v2044 = vunpack.c.l.b16 %v515
      %v2045 = vunpack.c.l.b16 %v516
      %v2046 = vpack.c.b16 %v2039, %v2038
      %v2047 = vpack.c.b16 %v2041, %v2040
      %v2048 = vpack.c.b16 %v2043, %v2042
      %v2049 = vpack.c.b16 %v2045, %v2044
      %v2055 = vsel %vm981, %v325, 0
      %2057 = vmatprep.subr.bf16.mxu0 0
      %2058 = vmatpush1.bf16.msra.mxu0 0
      %2059 = vmatprep.subr.bf16.mxu0 0
      %2060 = vmatpush1.bf16.msra.mxu0 0
      %2061 = vmatprep.subr.bf16.mxu0 0
      %2062 = vmatpush1.bf16.msra.mxu0 0
      %2063 = vmatprep.subr.bf16.mxu0 0
      %2064 = vmatpush1.bf16.msra.mxu0 0
      %2065 = vmatprep.subr.bf16.mxu0 0
      %2066 = vmatpush1.bf16.msra.mxu0 %v2049
      %2067 = vmatprep.subr.bf16.mxu0 0
      %2068 = vmatpush1.bf16.msra.mxu0 %v2048
      %2069 = vmatprep.subr.bf16.mxu0 0
      %2070 = vmatpush1.bf16.msra.mxu0 %v2047
      %2071 = vmatprep.subr.bf16.mxu0 0
      %2072 = vmatpush1.bf16.msra.mxu0 %v2046
      %2073 = vmatprep.subr.bf16.mxu0 0
      %2074 = vmatpush2.bf16.msra.mxu0 0
      %2075 = vmatprep.subr.bf16.mxu0 0
      %2076 = vmatpush2.bf16.msra.mxu0 0
      %2077 = vmatprep.subr.bf16.mxu0 0
      %2078 = vmatpush2.bf16.msra.mxu0 0
      %2079 = vmatprep.subr.bf16.mxu0 0
      %2080 = vmatpush2.bf16.msra.mxu0 0
      %2081 = vmatprep.subr.bf16.mxu0 0
      %2082 = vmatpush2.bf16.msra.mxu0 0
      %2083 = vmatprep.subr.bf16.mxu0 0
      %2084 = vmatpush2.bf16.msra.mxu0 0
      %2085 = vmatprep.subr.bf16.mxu0 0
      %2086 = vmatpush2.bf16.msra.mxu0 0
      %2087 = vmatprep.subr.bf16.mxu0 0
      %2088 = vmatpush2.bf16.msra.mxu0 0
      %2089 = vmatprep.mubr.bf16.mxu0 0
      %2090 = vmatmul.mubr.bf16.gmra.mxu0 %v2055
      %v2091 = vpop.f32.mrf.mxu0
      %v2092 = vadd.f32 0.0, %v2091
      %v2093 = vpop.f32.mrf.mxu0
      %v2094 = vpop.f32.mrf.mxu0
      %v2095 = vpop.f32.mrf.mxu0
      %2096 = vdwg.mxu0
      %v2105 = vunpack.c.l.b16 %v517
      %v2106 = vunpack.c.l.b16 %v518
      %v2107 = vunpack.c.l.b16 %v519
      %v2108 = vunpack.c.l.b16 %v520
      %v2109 = vunpack.c.l.b16 %v521
      %v2110 = vunpack.c.l.b16 %v522
      %v2111 = vunpack.c.l.b16 %v523
      %v2112 = vunpack.c.l.b16 %v524
      %v2113 = vpack.c.b16 %v2106, %v2105
      %v2114 = vpack.c.b16 %v2108, %v2107
      %v2115 = vpack.c.b16 %v2110, %v2109
      %v2116 = vpack.c.b16 %v2112, %v2111
      %v2122 = vsel %vm981, %v326, 0
      %2124 = vmatprep.subr.bf16.mxu0 0
      %2125 = vmatpush1.bf16.msra.mxu0 0
      %2126 = vmatprep.subr.bf16.mxu0 0
      %2127 = vmatpush1.bf16.msra.mxu0 0
      %2128 = vmatprep.subr.bf16.mxu0 0
      %2129 = vmatpush1.bf16.msra.mxu0 0
      %2130 = vmatprep.subr.bf16.mxu0 0
      %2131 = vmatpush1.bf16.msra.mxu0 0
      %2132 = vmatprep.subr.bf16.mxu0 0
      %2133 = vmatpush1.bf16.msra.mxu0 %v2116
      %2134 = vmatprep.subr.bf16.mxu0 0
      %2135 = vmatpush1.bf16.msra.mxu0 %v2115
      %2136 = vmatprep.subr.bf16.mxu0 0
      %2137 = vmatpush1.bf16.msra.mxu0 %v2114
      %2138 = vmatprep.subr.bf16.mxu0 0
      %2139 = vmatpush1.bf16.msra.mxu0 %v2113
      %2140 = vmatprep.subr.bf16.mxu0 0
      %2141 = vmatpush2.bf16.msra.mxu0 0
      %2142 = vmatprep.subr.bf16.mxu0 0
      %2143 = vmatpush2.bf16.msra.mxu0 0
      %2144 = vmatprep.subr.bf16.mxu0 0
      %2145 = vmatpush2.bf16.msra.mxu0 0
      %2146 = vmatprep.subr.bf16.mxu0 0
      %2147 = vmatpush2.bf16.msra.mxu0 0
      %2148 = vmatprep.subr.bf16.mxu0 0
      %2149 = vmatpush2.bf16.msra.mxu0 0
      %2150 = vmatprep.subr.bf16.mxu0 0
      %2151 = vmatpush2.bf16.msra.mxu0 0
      %2152 = vmatprep.subr.bf16.mxu0 0
      %2153 = vmatpush2.bf16.msra.mxu0 0
      %2154 = vmatprep.subr.bf16.mxu0 0
      %2155 = vmatpush2.bf16.msra.mxu0 0
      %2156 = vmatprep.mubr.bf16.mxu0 0
      %2157 = vmatmul.mubr.bf16.gmra.mxu0 %v2122
      %v2158 = vpop.f32.mrf.mxu0
      %v2159 = vadd.f32 0.0, %v2158
      %v2160 = vpop.f32.mrf.mxu0
      %v2161 = vpop.f32.mrf.mxu0
      %v2162 = vpop.f32.mrf.mxu0
      %2163 = vdwg.mxu0
      %v2172 = vunpack.c.l.b16 %v525
      %v2173 = vunpack.c.l.b16 %v526
      %v2174 = vunpack.c.l.b16 %v527
      %v2175 = vunpack.c.l.b16 %v528
      %v2176 = vunpack.c.l.b16 %v529
      %v2177 = vunpack.c.l.b16 %v530
      %v2178 = vunpack.c.l.b16 %v531
      %v2179 = vunpack.c.l.b16 %v532
      %v2180 = vpack.c.b16 %v2173, %v2172
      %v2181 = vpack.c.b16 %v2175, %v2174
      %v2182 = vpack.c.b16 %v2177, %v2176
      %v2183 = vpack.c.b16 %v2179, %v2178
      %v2189 = vsel %vm981, %v327, 0
      %2191 = vmatprep.subr.bf16.mxu0 0
      %2192 = vmatpush1.bf16.msra.mxu0 0
      %2193 = vmatprep.subr.bf16.mxu0 0
      %2194 = vmatpush1.bf16.msra.mxu0 0
      %2195 = vmatprep.subr.bf16.mxu0 0
      %2196 = vmatpush1.bf16.msra.mxu0 0
      %2197 = vmatprep.subr.bf16.mxu0 0
      %2198 = vmatpush1.bf16.msra.mxu0 0
      %2199 = vmatprep.subr.bf16.mxu0 0
      %2200 = vmatpush1.bf16.msra.mxu0 %v2183
      %2201 = vmatprep.subr.bf16.mxu0 0
      %2202 = vmatpush1.bf16.msra.mxu0 %v2182
      %2203 = vmatprep.subr.bf16.mxu0 0
      %2204 = vmatpush1.bf16.msra.mxu0 %v2181
      %2205 = vmatprep.subr.bf16.mxu0 0
      %2206 = vmatpush1.bf16.msra.mxu0 %v2180
      %2207 = vmatprep.subr.bf16.mxu0 0
      %2208 = vmatpush2.bf16.msra.mxu0 0
      %2209 = vmatprep.subr.bf16.mxu0 0
      %2210 = vmatpush2.bf16.msra.mxu0 0
      %2211 = vmatprep.subr.bf16.mxu0 0
      %2212 = vmatpush2.bf16.msra.mxu0 0
      %2213 = vmatprep.subr.bf16.mxu0 0
      %2214 = vmatpush2.bf16.msra.mxu0 0
      %2215 = vmatprep.subr.bf16.mxu0 0
      %2216 = vmatpush2.bf16.msra.mxu0 0
      %2217 = vmatprep.subr.bf16.mxu0 0
      %2218 = vmatpush2.bf16.msra.mxu0 0
      %2219 = vmatprep.subr.bf16.mxu0 0
      %2220 = vmatpush2.bf16.msra.mxu0 0
      %2221 = vmatprep.subr.bf16.mxu0 0
      %2222 = vmatpush2.bf16.msra.mxu0 0
      %2223 = vmatprep.mubr.bf16.mxu0 0
      %2224 = vmatmul.mubr.bf16.gmra.mxu0 %v2189
      %v2225 = vpop.f32.mrf.mxu0
      %v2226 = vadd.f32 0.0, %v2225
      %v2227 = vpop.f32.mrf.mxu0
      %v2228 = vpop.f32.mrf.mxu0
      %v2229 = vpop.f32.mrf.mxu0
      %2230 = vdwg.mxu0
      %v2239 = vunpack.c.l.b16 %v533
      %v2240 = vunpack.c.l.b16 %v534
      %v2241 = vunpack.c.l.b16 %v535
      %v2242 = vunpack.c.l.b16 %v536
      %v2243 = vunpack.c.l.b16 %v537
      %v2244 = vunpack.c.l.b16 %v538
      %v2245 = vunpack.c.l.b16 %v539
      %v2246 = vunpack.c.l.b16 %v540
      %v2247 = vpack.c.b16 %v2240, %v2239
      %v2248 = vpack.c.b16 %v2242, %v2241
      %v2249 = vpack.c.b16 %v2244, %v2243
      %v2250 = vpack.c.b16 %v2246, %v2245
      %v2256 = vsel %vm981, %v328, 0
      %2258 = vmatprep.subr.bf16.mxu0 0
      %2259 = vmatpush1.bf16.msra.mxu0 0
      %2260 = vmatprep.subr.bf16.mxu0 0
      %2261 = vmatpush1.bf16.msra.mxu0 0
      %2262 = vmatprep.subr.bf16.mxu0 0
      %2263 = vmatpush1.bf16.msra.mxu0 0
      %2264 = vmatprep.subr.bf16.mxu0 0
      %2265 = vmatpush1.bf16.msra.mxu0 0
      %2266 = vmatprep.subr.bf16.mxu0 0
      %2267 = vmatpush1.bf16.msra.mxu0 %v2250
      %2268 = vmatprep.subr.bf16.mxu0 0
      %2269 = vmatpush1.bf16.msra.mxu0 %v2249
      %2270 = vmatprep.subr.bf16.mxu0 0
      %2271 = vmatpush1.bf16.msra.mxu0 %v2248
      %2272 = vmatprep.subr.bf16.mxu0 0
      %2273 = vmatpush1.bf16.msra.mxu0 %v2247
      %2274 = vmatprep.subr.bf16.mxu0 0
      %2275 = vmatpush2.bf16.msra.mxu0 0
      %2276 = vmatprep.subr.bf16.mxu0 0
      %2277 = vmatpush2.bf16.msra.mxu0 0
      %2278 = vmatprep.subr.bf16.mxu0 0
      %2279 = vmatpush2.bf16.msra.mxu0 0
      %2280 = vmatprep.subr.bf16.mxu0 0
      %2281 = vmatpush2.bf16.msra.mxu0 0
      %2282 = vmatprep.subr.bf16.mxu0 0
      %2283 = vmatpush2.bf16.msra.mxu0 0
      %2284 = vmatprep.subr.bf16.mxu0 0
      %2285 = vmatpush2.bf16.msra.mxu0 0
      %2286 = vmatprep.subr.bf16.mxu0 0
      %2287 = vmatpush2.bf16.msra.mxu0 0
      %2288 = vmatprep.subr.bf16.mxu0 0
      %2289 = vmatpush2.bf16.msra.mxu0 0
      %2290 = vmatprep.mubr.bf16.mxu0 0
      %2291 = vmatmul.mubr.bf16.gmra.mxu0 %v2256
      %v2292 = vpop.f32.mrf.mxu0
      %v2293 = vadd.f32 0.0, %v2292
      %v2294 = vpop.f32.mrf.mxu0
      %v2295 = vpop.f32.mrf.mxu0
      %v2296 = vpop.f32.mrf.mxu0
      %2297 = vdwg.mxu0
      %v2306 = vunpack.c.l.b16 %v541
      %v2307 = vunpack.c.l.b16 %v542
      %v2308 = vunpack.c.l.b16 %v543
      %v2309 = vunpack.c.l.b16 %v544
      %v2310 = vunpack.c.l.b16 %v545
      %v2311 = vunpack.c.l.b16 %v546
      %v2312 = vunpack.c.l.b16 %v547
      %v2313 = vunpack.c.l.b16 %v548
      %v2314 = vpack.c.b16 %v2307, %v2306
      %v2315 = vpack.c.b16 %v2309, %v2308
      %v2316 = vpack.c.b16 %v2311, %v2310
      %v2317 = vpack.c.b16 %v2313, %v2312
      %v2323 = vsel %vm981, %v329, 0
      %2325 = vmatprep.subr.bf16.mxu0 0
      %2326 = vmatpush1.bf16.msra.mxu0 0
      %2327 = vmatprep.subr.bf16.mxu0 0
      %2328 = vmatpush1.bf16.msra.mxu0 0
      %2329 = vmatprep.subr.bf16.mxu0 0
      %2330 = vmatpush1.bf16.msra.mxu0 0
      %2331 = vmatprep.subr.bf16.mxu0 0
      %2332 = vmatpush1.bf16.msra.mxu0 0
      %2333 = vmatprep.subr.bf16.mxu0 0
      %2334 = vmatpush1.bf16.msra.mxu0 %v2317
      %2335 = vmatprep.subr.bf16.mxu0 0
      %2336 = vmatpush1.bf16.msra.mxu0 %v2316
      %2337 = vmatprep.subr.bf16.mxu0 0
      %2338 = vmatpush1.bf16.msra.mxu0 %v2315
      %2339 = vmatprep.subr.bf16.mxu0 0
      %2340 = vmatpush1.bf16.msra.mxu0 %v2314
      %2341 = vmatprep.subr.bf16.mxu0 0
      %2342 = vmatpush2.bf16.msra.mxu0 0
      %2343 = vmatprep.subr.bf16.mxu0 0
      %2344 = vmatpush2.bf16.msra.mxu0 0
      %2345 = vmatprep.subr.bf16.mxu0 0
      %2346 = vmatpush2.bf16.msra.mxu0 0
      %2347 = vmatprep.subr.bf16.mxu0 0
      %2348 = vmatpush2.bf16.msra.mxu0 0
      %2349 = vmatprep.subr.bf16.mxu0 0
      %2350 = vmatpush2.bf16.msra.mxu0 0
      %2351 = vmatprep.subr.bf16.mxu0 0
      %2352 = vmatpush2.bf16.msra.mxu0 0
      %2353 = vmatprep.subr.bf16.mxu0 0
      %2354 = vmatpush2.bf16.msra.mxu0 0
      %2355 = vmatprep.subr.bf16.mxu0 0
      %2356 = vmatpush2.bf16.msra.mxu0 0
      %2357 = vmatprep.mubr.bf16.mxu0 0
      %2358 = vmatmul.mubr.bf16.gmra.mxu0 %v2323
      %v2359 = vpop.f32.mrf.mxu0
      %v2360 = vadd.f32 0.0, %v2359
      %v2361 = vpop.f32.mrf.mxu0
      %v2362 = vpop.f32.mrf.mxu0
      %v2363 = vpop.f32.mrf.mxu0
      %2364 = vdwg.mxu0
      %v2373 = vunpack.c.l.b16 %v549
      %v2374 = vunpack.c.l.b16 %v550
      %v2375 = vunpack.c.l.b16 %v551
      %v2376 = vunpack.c.l.b16 %v552
      %v2377 = vunpack.c.l.b16 %v553
      %v2378 = vunpack.c.l.b16 %v554
      %v2379 = vunpack.c.l.b16 %v555
      %v2380 = vunpack.c.l.b16 %v556
      %v2381 = vpack.c.b16 %v2374, %v2373
      %v2382 = vpack.c.b16 %v2376, %v2375
      %v2383 = vpack.c.b16 %v2378, %v2377
      %v2384 = vpack.c.b16 %v2380, %v2379
      %v2390 = vsel %vm981, %v330, 0
      %2392 = vmatprep.subr.bf16.mxu0 0
      %2393 = vmatpush1.bf16.msra.mxu0 0
      %2394 = vmatprep.subr.bf16.mxu0 0
      %2395 = vmatpush1.bf16.msra.mxu0 0
      %2396 = vmatprep.subr.bf16.mxu0 0
      %2397 = vmatpush1.bf16.msra.mxu0 0
      %2398 = vmatprep.subr.bf16.mxu0 0
      %2399 = vmatpush1.bf16.msra.mxu0 0
      %2400 = vmatprep.subr.bf16.mxu0 0
      %2401 = vmatpush1.bf16.msra.mxu0 %v2384
      %2402 = vmatprep.subr.bf16.mxu0 0
      %2403 = vmatpush1.bf16.msra.mxu0 %v2383
      %2404 = vmatprep.subr.bf16.mxu0 0
      %2405 = vmatpush1.bf16.msra.mxu0 %v2382
      %2406 = vmatprep.subr.bf16.mxu0 0
      %2407 = vmatpush1.bf16.msra.mxu0 %v2381
      %2408 = vmatprep.subr.bf16.mxu0 0
      %2409 = vmatpush2.bf16.msra.mxu0 0
      %2410 = vmatprep.subr.bf16.mxu0 0
      %2411 = vmatpush2.bf16.msra.mxu0 0
      %2412 = vmatprep.subr.bf16.mxu0 0
      %2413 = vmatpush2.bf16.msra.mxu0 0
      %2414 = vmatprep.subr.bf16.mxu0 0
      %2415 = vmatpush2.bf16.msra.mxu0 0
      %2416 = vmatprep.subr.bf16.mxu0 0
      %2417 = vmatpush2.bf16.msra.mxu0 0
      %2418 = vmatprep.subr.bf16.mxu0 0
      %2419 = vmatpush2.bf16.msra.mxu0 0
      %2420 = vmatprep.subr.bf16.mxu0 0
      %2421 = vmatpush2.bf16.msra.mxu0 0
      %2422 = vmatprep.subr.bf16.mxu0 0
      %2423 = vmatpush2.bf16.msra.mxu0 0
      %2424 = vmatprep.mubr.bf16.mxu0 0
      %2425 = vmatmul.mubr.bf16.gmra.mxu0 %v2390
      %v2426 = vpop.f32.mrf.mxu0
      %v2427 = vadd.f32 0.0, %v2426
      %v2428 = vpop.f32.mrf.mxu0
      %v2429 = vpop.f32.mrf.mxu0
      %v2430 = vpop.f32.mrf.mxu0
      %2431 = vdwg.mxu0
      %v2440 = vunpack.c.l.b16 %v557
      %v2441 = vunpack.c.l.b16 %v558
      %v2442 = vunpack.c.l.b16 %v559
      %v2443 = vunpack.c.l.b16 %v560
      %v2444 = vunpack.c.l.b16 %v561
      %v2445 = vunpack.c.l.b16 %v562
      %v2446 = vunpack.c.l.b16 %v563
      %v2447 = vunpack.c.l.b16 %v564
      %v2448 = vpack.c.b16 %v2441, %v2440
      %v2449 = vpack.c.b16 %v2443, %v2442
      %v2450 = vpack.c.b16 %v2445, %v2444
      %v2451 = vpack.c.b16 %v2447, %v2446
      %v2457 = vsel %vm981, %v331, 0
      %2459 = vmatprep.subr.bf16.mxu0 0
      %2460 = vmatpush1.bf16.msra.mxu0 0
      %2461 = vmatprep.subr.bf16.mxu0 0
      %2462 = vmatpush1.bf16.msra.mxu0 0
      %2463 = vmatprep.subr.bf16.mxu0 0
      %2464 = vmatpush1.bf16.msra.mxu0 0
      %2465 = vmatprep.subr.bf16.mxu0 0
      %2466 = vmatpush1.bf16.msra.mxu0 0
      %2467 = vmatprep.subr.bf16.mxu0 0
      %2468 = vmatpush1.bf16.msra.mxu0 %v2451
      %2469 = vmatprep.subr.bf16.mxu0 0
      %2470 = vmatpush1.bf16.msra.mxu0 %v2450
      %2471 = vmatprep.subr.bf16.mxu0 0
      %2472 = vmatpush1.bf16.msra.mxu0 %v2449
      %2473 = vmatprep.subr.bf16.mxu0 0
      %2474 = vmatpush1.bf16.msra.mxu0 %v2448
      %2475 = vmatprep.subr.bf16.mxu0 0
      %2476 = vmatpush2.bf16.msra.mxu0 0
      %2477 = vmatprep.subr.bf16.mxu0 0
      %2478 = vmatpush2.bf16.msra.mxu0 0
      %2479 = vmatprep.subr.bf16.mxu0 0
      %2480 = vmatpush2.bf16.msra.mxu0 0
      %2481 = vmatprep.subr.bf16.mxu0 0
      %2482 = vmatpush2.bf16.msra.mxu0 0
      %2483 = vmatprep.subr.bf16.mxu0 0
      %2484 = vmatpush2.bf16.msra.mxu0 0
      %2485 = vmatprep.subr.bf16.mxu0 0
      %2486 = vmatpush2.bf16.msra.mxu0 0
      %2487 = vmatprep.subr.bf16.mxu0 0
      %2488 = vmatpush2.bf16.msra.mxu0 0
      %2489 = vmatprep.subr.bf16.mxu0 0
      %2490 = vmatpush2.bf16.msra.mxu0 0
      %2491 = vmatprep.mubr.bf16.mxu0 0
      %2492 = vmatmul.mubr.bf16.gmra.mxu0 %v2457
      %v2493 = vpop.f32.mrf.mxu0
      %v2494 = vadd.f32 0.0, %v2493
      %v2495 = vpop.f32.mrf.mxu0
      %v2496 = vpop.f32.mrf.mxu0
      %v2497 = vpop.f32.mrf.mxu0
      %2498 = vdwg.mxu0
      %v2507 = vunpack.c.l.b16 %v565
      %v2508 = vunpack.c.l.b16 %v566
      %v2509 = vunpack.c.l.b16 %v567
      %v2510 = vunpack.c.l.b16 %v568
      %v2511 = vunpack.c.l.b16 %v569
      %v2512 = vunpack.c.l.b16 %v570
      %v2513 = vunpack.c.l.b16 %v571
      %v2514 = vunpack.c.l.b16 %v572
      %v2515 = vpack.c.b16 %v2508, %v2507
      %v2516 = vpack.c.b16 %v2510, %v2509
      %v2517 = vpack.c.b16 %v2512, %v2511
      %v2518 = vpack.c.b16 %v2514, %v2513
      %v2524 = vsel %vm981, %v332, 0
      %2526 = vmatprep.subr.bf16.mxu0 0
      %2527 = vmatpush1.bf16.msra.mxu0 0
      %2528 = vmatprep.subr.bf16.mxu0 0
      %2529 = vmatpush1.bf16.msra.mxu0 0
      %2530 = vmatprep.subr.bf16.mxu0 0
      %2531 = vmatpush1.bf16.msra.mxu0 0
      %2532 = vmatprep.subr.bf16.mxu0 0
      %2533 = vmatpush1.bf16.msra.mxu0 0
      %2534 = vmatprep.subr.bf16.mxu0 0
      %2535 = vmatpush1.bf16.msra.mxu0 %v2518
      %2536 = vmatprep.subr.bf16.mxu0 0
      %2537 = vmatpush1.bf16.msra.mxu0 %v2517
      %2538 = vmatprep.subr.bf16.mxu0 0
      %2539 = vmatpush1.bf16.msra.mxu0 %v2516
      %2540 = vmatprep.subr.bf16.mxu0 0
      %2541 = vmatpush1.bf16.msra.mxu0 %v2515
      %2542 = vmatprep.subr.bf16.mxu0 0
      %2543 = vmatpush2.bf16.msra.mxu0 0
      %2544 = vmatprep.subr.bf16.mxu0 0
      %2545 = vmatpush2.bf16.msra.mxu0 0
      %2546 = vmatprep.subr.bf16.mxu0 0
      %2547 = vmatpush2.bf16.msra.mxu0 0
      %2548 = vmatprep.subr.bf16.mxu0 0
      %2549 = vmatpush2.bf16.msra.mxu0 0
      %2550 = vmatprep.subr.bf16.mxu0 0
      %2551 = vmatpush2.bf16.msra.mxu0 0
      %2552 = vmatprep.subr.bf16.mxu0 0
      %2553 = vmatpush2.bf16.msra.mxu0 0
      %2554 = vmatprep.subr.bf16.mxu0 0
      %2555 = vmatpush2.bf16.msra.mxu0 0
      %2556 = vmatprep.subr.bf16.mxu0 0
      %2557 = vmatpush2.bf16.msra.mxu0 0
      %2558 = vmatprep.mubr.bf16.mxu0 0
      %2559 = vmatmul.mubr.bf16.gmra.mxu0 %v2524
      %v2560 = vpop.f32.mrf.mxu0
      %v2561 = vadd.f32 0.0, %v2560
      %v2562 = vpop.f32.mrf.mxu0
      %v2563 = vpop.f32.mrf.mxu0
      %v2564 = vpop.f32.mrf.mxu0
      %2565 = vdwg.mxu0
      %v2574 = vunpack.c.l.b16 %v573
      %v2575 = vunpack.c.l.b16 %v574
      %v2576 = vunpack.c.l.b16 %v575
      %v2577 = vunpack.c.l.b16 %v576
      %v2578 = vunpack.c.l.b16 %v577
      %v2579 = vunpack.c.l.b16 %v578
      %v2580 = vunpack.c.l.b16 %v579
      %v2581 = vunpack.c.l.b16 %v580
      %v2582 = vpack.c.b16 %v2575, %v2574
      %v2583 = vpack.c.b16 %v2577, %v2576
      %v2584 = vpack.c.b16 %v2579, %v2578
      %v2585 = vpack.c.b16 %v2581, %v2580
      %v2591 = vsel %vm981, %v333, 0
      %2593 = vmatprep.subr.bf16.mxu0 0
      %2594 = vmatpush1.bf16.msra.mxu0 0
      %2595 = vmatprep.subr.bf16.mxu0 0
      %2596 = vmatpush1.bf16.msra.mxu0 0
      %2597 = vmatprep.subr.bf16.mxu0 0
      %2598 = vmatpush1.bf16.msra.mxu0 0
      %2599 = vmatprep.subr.bf16.mxu0 0
      %2600 = vmatpush1.bf16.msra.mxu0 0
      %2601 = vmatprep.subr.bf16.mxu0 0
      %2602 = vmatpush1.bf16.msra.mxu0 %v2585
      %2603 = vmatprep.subr.bf16.mxu0 0
      %2604 = vmatpush1.bf16.msra.mxu0 %v2584
      %2605 = vmatprep.subr.bf16.mxu0 0
      %2606 = vmatpush1.bf16.msra.mxu0 %v2583
      %2607 = vmatprep.subr.bf16.mxu0 0
      %2608 = vmatpush1.bf16.msra.mxu0 %v2582
      %2609 = vmatprep.subr.bf16.mxu0 0
      %2610 = vmatpush2.bf16.msra.mxu0 0
      %2611 = vmatprep.subr.bf16.mxu0 0
      %2612 = vmatpush2.bf16.msra.mxu0 0
      %2613 = vmatprep.subr.bf16.mxu0 0
      %2614 = vmatpush2.bf16.msra.mxu0 0
      %2615 = vmatprep.subr.bf16.mxu0 0
      %2616 = vmatpush2.bf16.msra.mxu0 0
      %2617 = vmatprep.subr.bf16.mxu0 0
      %2618 = vmatpush2.bf16.msra.mxu0 0
      %2619 = vmatprep.subr.bf16.mxu0 0
      %2620 = vmatpush2.bf16.msra.mxu0 0
      %2621 = vmatprep.subr.bf16.mxu0 0
      %2622 = vmatpush2.bf16.msra.mxu0 0
      %2623 = vmatprep.subr.bf16.mxu0 0
      %2624 = vmatpush2.bf16.msra.mxu0 0
      %2625 = vmatprep.mubr.bf16.mxu0 0
      %2626 = vmatmul.mubr.bf16.gmra.mxu0 %v2591
      %v2627 = vpop.f32.mrf.mxu0
      %v2628 = vadd.f32 0.0, %v2627
      %v2629 = vpop.f32.mrf.mxu0
      %v2630 = vpop.f32.mrf.mxu0
      %v2631 = vpop.f32.mrf.mxu0
      %2632 = vdwg.mxu0
      %v2641 = vunpack.c.l.b16 %v581
      %v2642 = vunpack.c.l.b16 %v582
      %v2643 = vunpack.c.l.b16 %v583
      %v2644 = vunpack.c.l.b16 %v584
      %v2645 = vunpack.c.l.b16 %v585
      %v2646 = vunpack.c.l.b16 %v586
      %v2647 = vunpack.c.l.b16 %v587
      %v2648 = vunpack.c.l.b16 %v588
      %v2649 = vpack.c.b16 %v2642, %v2641
      %v2650 = vpack.c.b16 %v2644, %v2643
      %v2651 = vpack.c.b16 %v2646, %v2645
      %v2652 = vpack.c.b16 %v2648, %v2647
      %v2658 = vsel %vm981, %v334, 0
      %2660 = vmatprep.subr.bf16.mxu0 0
      %2661 = vmatpush1.bf16.msra.mxu0 0
      %2662 = vmatprep.subr.bf16.mxu0 0
      %2663 = vmatpush1.bf16.msra.mxu0 0
      %2664 = vmatprep.subr.bf16.mxu0 0
      %2665 = vmatpush1.bf16.msra.mxu0 0
      %2666 = vmatprep.subr.bf16.mxu0 0
      %2667 = vmatpush1.bf16.msra.mxu0 0
      %2668 = vmatprep.subr.bf16.mxu0 0
      %2669 = vmatpush1.bf16.msra.mxu0 %v2652
      %2670 = vmatprep.subr.bf16.mxu0 0
      %2671 = vmatpush1.bf16.msra.mxu0 %v2651
      %2672 = vmatprep.subr.bf16.mxu0 0
      %2673 = vmatpush1.bf16.msra.mxu0 %v2650
      %2674 = vmatprep.subr.bf16.mxu0 0
      %2675 = vmatpush1.bf16.msra.mxu0 %v2649
      %2676 = vmatprep.subr.bf16.mxu0 0
      %2677 = vmatpush2.bf16.msra.mxu0 0
      %2678 = vmatprep.subr.bf16.mxu0 0
      %2679 = vmatpush2.bf16.msra.mxu0 0
      %2680 = vmatprep.subr.bf16.mxu0 0
      %2681 = vmatpush2.bf16.msra.mxu0 0
      %2682 = vmatprep.subr.bf16.mxu0 0
      %2683 = vmatpush2.bf16.msra.mxu0 0
      %2684 = vmatprep.subr.bf16.mxu0 0
      %2685 = vmatpush2.bf16.msra.mxu0 0
      %2686 = vmatprep.subr.bf16.mxu0 0
      %2687 = vmatpush2.bf16.msra.mxu0 0
      %2688 = vmatprep.subr.bf16.mxu0 0
      %2689 = vmatpush2.bf16.msra.mxu0 0
      %2690 = vmatprep.subr.bf16.mxu0 0
      %2691 = vmatpush2.bf16.msra.mxu0 0
      %2692 = vmatprep.mubr.bf16.mxu0 0
      %2693 = vmatmul.mubr.bf16.gmra.mxu0 %v2658
      %v2694 = vpop.f32.mrf.mxu0
      %v2695 = vadd.f32 0.0, %v2694
      %v2696 = vpop.f32.mrf.mxu0
      %v2697 = vpop.f32.mrf.mxu0
      %v2698 = vpop.f32.mrf.mxu0
      %2699 = vdwg.mxu0
      %v2708 = vunpack.c.l.b16 %v589
      %v2709 = vunpack.c.l.b16 %v590
      %v2710 = vunpack.c.l.b16 %v591
      %v2711 = vunpack.c.l.b16 %v592
      %v2712 = vunpack.c.l.b16 %v593
      %v2713 = vunpack.c.l.b16 %v594
      %v2714 = vunpack.c.l.b16 %v595
      %v2715 = vunpack.c.l.b16 %v596
      %v2716 = vpack.c.b16 %v2709, %v2708
      %v2717 = vpack.c.b16 %v2711, %v2710
      %v2718 = vpack.c.b16 %v2713, %v2712
      %v2719 = vpack.c.b16 %v2715, %v2714
      %v2725 = vsel %vm981, %v335, 0
      %2727 = vmatprep.subr.bf16.mxu0 0
      %2728 = vmatpush1.bf16.msra.mxu0 0
      %2729 = vmatprep.subr.bf16.mxu0 0
      %2730 = vmatpush1.bf16.msra.mxu0 0
      %2731 = vmatprep.subr.bf16.mxu0 0
      %2732 = vmatpush1.bf16.msra.mxu0 0
      %2733 = vmatprep.subr.bf16.mxu0 0
      %2734 = vmatpush1.bf16.msra.mxu0 0
      %2735 = vmatprep.subr.bf16.mxu0 0
      %2736 = vmatpush1.bf16.msra.mxu0 %v2719
      %2737 = vmatprep.subr.bf16.mxu0 0
      %2738 = vmatpush1.bf16.msra.mxu0 %v2718
      %2739 = vmatprep.subr.bf16.mxu0 0
      %2740 = vmatpush1.bf16.msra.mxu0 %v2717
      %2741 = vmatprep.subr.bf16.mxu0 0
      %2742 = vmatpush1.bf16.msra.mxu0 %v2716
      %2743 = vmatprep.subr.bf16.mxu0 0
      %2744 = vmatpush2.bf16.msra.mxu0 0
      %2745 = vmatprep.subr.bf16.mxu0 0
      %2746 = vmatpush2.bf16.msra.mxu0 0
      %2747 = vmatprep.subr.bf16.mxu0 0
      %2748 = vmatpush2.bf16.msra.mxu0 0
      %2749 = vmatprep.subr.bf16.mxu0 0
      %2750 = vmatpush2.bf16.msra.mxu0 0
      %2751 = vmatprep.subr.bf16.mxu0 0
      %2752 = vmatpush2.bf16.msra.mxu0 0
      %2753 = vmatprep.subr.bf16.mxu0 0
      %2754 = vmatpush2.bf16.msra.mxu0 0
      %2755 = vmatprep.subr.bf16.mxu0 0
      %2756 = vmatpush2.bf16.msra.mxu0 0
      %2757 = vmatprep.subr.bf16.mxu0 0
      %2758 = vmatpush2.bf16.msra.mxu0 0
      %2759 = vmatprep.mubr.bf16.mxu0 0
      %2760 = vmatmul.mubr.bf16.gmra.mxu0 %v2725
      %v2761 = vpop.f32.mrf.mxu0
      %v2762 = vadd.f32 0.0, %v2761
      %v2763 = vpop.f32.mrf.mxu0
      %v2764 = vpop.f32.mrf.mxu0
      %v2765 = vpop.f32.mrf.mxu0
      %2766 = vdwg.mxu0
      %v2775 = vunpack.c.l.b16 %v597
      %v2776 = vunpack.c.l.b16 %v598
      %v2777 = vunpack.c.l.b16 %v599
      %v2778 = vunpack.c.l.b16 %v600
      %v2779 = vunpack.c.l.b16 %v601
      %v2780 = vunpack.c.l.b16 %v602
      %v2781 = vunpack.c.l.b16 %v603
      %v2782 = vunpack.c.l.b16 %v604
      %v2783 = vpack.c.b16 %v2776, %v2775
      %v2784 = vpack.c.b16 %v2778, %v2777
      %v2785 = vpack.c.b16 %v2780, %v2779
      %v2786 = vpack.c.b16 %v2782, %v2781
      %v2792 = vsel %vm981, %v336, 0
      %2794 = vmatprep.subr.bf16.mxu0 0
      %2795 = vmatpush1.bf16.msra.mxu0 0
      %2796 = vmatprep.subr.bf16.mxu0 0
      %2797 = vmatpush1.bf16.msra.mxu0 0
      %2798 = vmatprep.subr.bf16.mxu0 0
      %2799 = vmatpush1.bf16.msra.mxu0 0
      %2800 = vmatprep.subr.bf16.mxu0 0
      %2801 = vmatpush1.bf16.msra.mxu0 0
      %2802 = vmatprep.subr.bf16.mxu0 0
      %2803 = vmatpush1.bf16.msra.mxu0 %v2786
      %2804 = vmatprep.subr.bf16.mxu0 0
      %2805 = vmatpush1.bf16.msra.mxu0 %v2785
      %2806 = vmatprep.subr.bf16.mxu0 0
      %2807 = vmatpush1.bf16.msra.mxu0 %v2784
      %2808 = vmatprep.subr.bf16.mxu0 0
      %2809 = vmatpush1.bf16.msra.mxu0 %v2783
      %2810 = vmatprep.subr.bf16.mxu0 0
      %2811 = vmatpush2.bf16.msra.mxu0 0
      %2812 = vmatprep.subr.bf16.mxu0 0
      %2813 = vmatpush2.bf16.msra.mxu0 0
      %2814 = vmatprep.subr.bf16.mxu0 0
      %2815 = vmatpush2.bf16.msra.mxu0 0
      %2816 = vmatprep.subr.bf16.mxu0 0
      %2817 = vmatpush2.bf16.msra.mxu0 0
      %2818 = vmatprep.subr.bf16.mxu0 0
      %2819 = vmatpush2.bf16.msra.mxu0 0
      %2820 = vmatprep.subr.bf16.mxu0 0
      %2821 = vmatpush2.bf16.msra.mxu0 0
      %2822 = vmatprep.subr.bf16.mxu0 0
      %2823 = vmatpush2.bf16.msra.mxu0 0
      %2824 = vmatprep.subr.bf16.mxu0 0
      %2825 = vmatpush2.bf16.msra.mxu0 0
      %2826 = vmatprep.mubr.bf16.mxu0 0
      %2827 = vmatmul.mubr.bf16.gmra.mxu0 %v2792
      %v2828 = vpop.f32.mrf.mxu0
      %v2829 = vadd.f32 0.0, %v2828
      %v2830 = vpop.f32.mrf.mxu0
      %v2831 = vpop.f32.mrf.mxu0
      %v2832 = vpop.f32.mrf.mxu0
      %2833 = vdwg.mxu0
      %v2842 = vunpack.c.l.b16 %v605
      %v2843 = vunpack.c.l.b16 %v606
      %v2844 = vunpack.c.l.b16 %v607
      %v2845 = vunpack.c.l.b16 %v608
      %v2846 = vunpack.c.l.b16 %v609
      %v2847 = vunpack.c.l.b16 %v610
      %v2848 = vunpack.c.l.b16 %v611
      %v2849 = vunpack.c.l.b16 %v612
      %v2850 = vpack.c.b16 %v2843, %v2842
      %v2851 = vpack.c.b16 %v2845, %v2844
      %v2852 = vpack.c.b16 %v2847, %v2846
      %v2853 = vpack.c.b16 %v2849, %v2848
      %v2859 = vsel %vm981, %v337, 0
      %2861 = vmatprep.subr.bf16.mxu0 0
      %2862 = vmatpush1.bf16.msra.mxu0 0
      %2863 = vmatprep.subr.bf16.mxu0 0
      %2864 = vmatpush1.bf16.msra.mxu0 0
      %2865 = vmatprep.subr.bf16.mxu0 0
      %2866 = vmatpush1.bf16.msra.mxu0 0
      %2867 = vmatprep.subr.bf16.mxu0 0
      %2868 = vmatpush1.bf16.msra.mxu0 0
      %2869 = vmatprep.subr.bf16.mxu0 0
      %2870 = vmatpush1.bf16.msra.mxu0 %v2853
      %2871 = vmatprep.subr.bf16.mxu0 0
      %2872 = vmatpush1.bf16.msra.mxu0 %v2852
      %2873 = vmatprep.subr.bf16.mxu0 0
      %2874 = vmatpush1.bf16.msra.mxu0 %v2851
      %2875 = vmatprep.subr.bf16.mxu0 0
      %2876 = vmatpush1.bf16.msra.mxu0 %v2850
      %2877 = vmatprep.subr.bf16.mxu0 0
      %2878 = vmatpush2.bf16.msra.mxu0 0
      %2879 = vmatprep.subr.bf16.mxu0 0
      %2880 = vmatpush2.bf16.msra.mxu0 0
      %2881 = vmatprep.subr.bf16.mxu0 0
      %2882 = vmatpush2.bf16.msra.mxu0 0
      %2883 = vmatprep.subr.bf16.mxu0 0
      %2884 = vmatpush2.bf16.msra.mxu0 0
      %2885 = vmatprep.subr.bf16.mxu0 0
      %2886 = vmatpush2.bf16.msra.mxu0 0
      %2887 = vmatprep.subr.bf16.mxu0 0
      %2888 = vmatpush2.bf16.msra.mxu0 0
      %2889 = vmatprep.subr.bf16.mxu0 0
      %2890 = vmatpush2.bf16.msra.mxu0 0
      %2891 = vmatprep.subr.bf16.mxu0 0
      %2892 = vmatpush2.bf16.msra.mxu0 0
      %2893 = vmatprep.mubr.bf16.mxu0 0
      %2894 = vmatmul.mubr.bf16.gmra.mxu0 %v2859
      %v2895 = vpop.f32.mrf.mxu0
      %v2896 = vadd.f32 0.0, %v2895
      %v2897 = vpop.f32.mrf.mxu0
      %v2898 = vpop.f32.mrf.mxu0
      %v2899 = vpop.f32.mrf.mxu0
      %2900 = vdwg.mxu0
      %v2909 = vunpack.c.l.b16 %v613
      %v2910 = vunpack.c.l.b16 %v614
      %v2911 = vunpack.c.l.b16 %v615
      %v2912 = vunpack.c.l.b16 %v616
      %v2913 = vunpack.c.l.b16 %v617
      %v2914 = vunpack.c.l.b16 %v618
      %v2915 = vunpack.c.l.b16 %v619
      %v2916 = vunpack.c.l.b16 %v620
      %v2917 = vpack.c.b16 %v2910, %v2909
      %v2918 = vpack.c.b16 %v2912, %v2911
      %v2919 = vpack.c.b16 %v2914, %v2913
      %v2920 = vpack.c.b16 %v2916, %v2915
      %v2926 = vsel %vm981, %v338, 0
      %2928 = vmatprep.subr.bf16.mxu0 0
      %2929 = vmatpush1.bf16.msra.mxu0 0
      %2930 = vmatprep.subr.bf16.mxu0 0
      %2931 = vmatpush1.bf16.msra.mxu0 0
      %2932 = vmatprep.subr.bf16.mxu0 0
      %2933 = vmatpush1.bf16.msra.mxu0 0
      %2934 = vmatprep.subr.bf16.mxu0 0
      %2935 = vmatpush1.bf16.msra.mxu0 0
      %2936 = vmatprep.subr.bf16.mxu0 0
      %2937 = vmatpush1.bf16.msra.mxu0 %v2920
      %2938 = vmatprep.subr.bf16.mxu0 0
      %2939 = vmatpush1.bf16.msra.mxu0 %v2919
      %2940 = vmatprep.subr.bf16.mxu0 0
      %2941 = vmatpush1.bf16.msra.mxu0 %v2918
      %2942 = vmatprep.subr.bf16.mxu0 0
      %2943 = vmatpush1.bf16.msra.mxu0 %v2917
      %2944 = vmatprep.subr.bf16.mxu0 0
      %2945 = vmatpush2.bf16.msra.mxu0 0
      %2946 = vmatprep.subr.bf16.mxu0 0
      %2947 = vmatpush2.bf16.msra.mxu0 0
      %2948 = vmatprep.subr.bf16.mxu0 0
      %2949 = vmatpush2.bf16.msra.mxu0 0
      %2950 = vmatprep.subr.bf16.mxu0 0
      %2951 = vmatpush2.bf16.msra.mxu0 0
      %2952 = vmatprep.subr.bf16.mxu0 0
      %2953 = vmatpush2.bf16.msra.mxu0 0
      %2954 = vmatprep.subr.bf16.mxu0 0
      %2955 = vmatpush2.bf16.msra.mxu0 0
      %2956 = vmatprep.subr.bf16.mxu0 0
      %2957 = vmatpush2.bf16.msra.mxu0 0
      %2958 = vmatprep.subr.bf16.mxu0 0
      %2959 = vmatpush2.bf16.msra.mxu0 0
      %2960 = vmatprep.mubr.bf16.mxu0 0
      %2961 = vmatmul.mubr.bf16.gmra.mxu0 %v2926
      %v2962 = vpop.f32.mrf.mxu0
      %v2963 = vadd.f32 0.0, %v2962
      %v2964 = vpop.f32.mrf.mxu0
      %v2965 = vpop.f32.mrf.mxu0
      %v2966 = vpop.f32.mrf.mxu0
      %2967 = vdwg.mxu0
      %v2976 = vunpack.c.l.b16 %v621
      %v2977 = vunpack.c.l.b16 %v622
      %v2978 = vunpack.c.l.b16 %v623
      %v2979 = vunpack.c.l.b16 %v624
      %v2980 = vunpack.c.l.b16 %v625
      %v2981 = vunpack.c.l.b16 %v626
      %v2982 = vunpack.c.l.b16 %v627
      %v2983 = vunpack.c.l.b16 %v628
      %v2984 = vpack.c.b16 %v2977, %v2976
      %v2985 = vpack.c.b16 %v2979, %v2978
      %v2986 = vpack.c.b16 %v2981, %v2980
      %v2987 = vpack.c.b16 %v2983, %v2982
      %v2993 = vsel %vm981, %v339, 0
      %2995 = vmatprep.subr.bf16.mxu0 0
      %2996 = vmatpush1.bf16.msra.mxu0 0
      %2997 = vmatprep.subr.bf16.mxu0 0
      %2998 = vmatpush1.bf16.msra.mxu0 0
      %2999 = vmatprep.subr.bf16.mxu0 0
      %3000 = vmatpush1.bf16.msra.mxu0 0
      %3001 = vmatprep.subr.bf16.mxu0 0
      %3002 = vmatpush1.bf16.msra.mxu0 0
      %3003 = vmatprep.subr.bf16.mxu0 0
      %3004 = vmatpush1.bf16.msra.mxu0 %v2987
      %3005 = vmatprep.subr.bf16.mxu0 0
      %3006 = vmatpush1.bf16.msra.mxu0 %v2986
      %3007 = vmatprep.subr.bf16.mxu0 0
      %3008 = vmatpush1.bf16.msra.mxu0 %v2985
      %3009 = vmatprep.subr.bf16.mxu0 0
      %3010 = vmatpush1.bf16.msra.mxu0 %v2984
      %3011 = vmatprep.subr.bf16.mxu0 0
      %3012 = vmatpush2.bf16.msra.mxu0 0
      %3013 = vmatprep.subr.bf16.mxu0 0
      %3014 = vmatpush2.bf16.msra.mxu0 0
      %3015 = vmatprep.subr.bf16.mxu0 0
      %3016 = vmatpush2.bf16.msra.mxu0 0
      %3017 = vmatprep.subr.bf16.mxu0 0
      %3018 = vmatpush2.bf16.msra.mxu0 0
      %3019 = vmatprep.subr.bf16.mxu0 0
      %3020 = vmatpush2.bf16.msra.mxu0 0
      %3021 = vmatprep.subr.bf16.mxu0 0
      %3022 = vmatpush2.bf16.msra.mxu0 0
      %3023 = vmatprep.subr.bf16.mxu0 0
      %3024 = vmatpush2.bf16.msra.mxu0 0
      %3025 = vmatprep.subr.bf16.mxu0 0
      %3026 = vmatpush2.bf16.msra.mxu0 0
      %3027 = vmatprep.mubr.bf16.mxu0 0
      %3028 = vmatmul.mubr.bf16.gmra.mxu0 %v2993
      %v3029 = vpop.f32.mrf.mxu0
      %v3030 = vadd.f32 0.0, %v3029
      %v3031 = vpop.f32.mrf.mxu0
      %v3032 = vpop.f32.mrf.mxu0
      %v3033 = vpop.f32.mrf.mxu0
      %3034 = vdwg.mxu0
      %v3043 = vunpack.c.l.b16 %v629
      %v3044 = vunpack.c.l.b16 %v630
      %v3045 = vunpack.c.l.b16 %v631
      %v3046 = vunpack.c.l.b16 %v632
      %v3047 = vunpack.c.l.b16 %v633
      %v3048 = vunpack.c.l.b16 %v634
      %v3049 = vunpack.c.l.b16 %v635
      %v3050 = vunpack.c.l.b16 %v636
      %v3051 = vpack.c.b16 %v3044, %v3043
      %v3052 = vpack.c.b16 %v3046, %v3045
      %v3053 = vpack.c.b16 %v3048, %v3047
      %v3054 = vpack.c.b16 %v3050, %v3049
      %v3060 = vsel %vm981, %v340, 0
      %3062 = vmatprep.subr.bf16.mxu0 0
      %3063 = vmatpush1.bf16.msra.mxu0 0
      %3064 = vmatprep.subr.bf16.mxu0 0
      %3065 = vmatpush1.bf16.msra.mxu0 0
      %3066 = vmatprep.subr.bf16.mxu0 0
      %3067 = vmatpush1.bf16.msra.mxu0 0
      %3068 = vmatprep.subr.bf16.mxu0 0
      %3069 = vmatpush1.bf16.msra.mxu0 0
      %3070 = vmatprep.subr.bf16.mxu0 0
      %3071 = vmatpush1.bf16.msra.mxu0 %v3054
      %3072 = vmatprep.subr.bf16.mxu0 0
      %3073 = vmatpush1.bf16.msra.mxu0 %v3053
      %3074 = vmatprep.subr.bf16.mxu0 0
      %3075 = vmatpush1.bf16.msra.mxu0 %v3052
      %3076 = vmatprep.subr.bf16.mxu0 0
      %3077 = vmatpush1.bf16.msra.mxu0 %v3051
      %3078 = vmatprep.subr.bf16.mxu0 0
      %3079 = vmatpush2.bf16.msra.mxu0 0
      %3080 = vmatprep.subr.bf16.mxu0 0
      %3081 = vmatpush2.bf16.msra.mxu0 0
      %3082 = vmatprep.subr.bf16.mxu0 0
      %3083 = vmatpush2.bf16.msra.mxu0 0
      %3084 = vmatprep.subr.bf16.mxu0 0
      %3085 = vmatpush2.bf16.msra.mxu0 0
      %3086 = vmatprep.subr.bf16.mxu0 0
      %3087 = vmatpush2.bf16.msra.mxu0 0
      %3088 = vmatprep.subr.bf16.mxu0 0
      %3089 = vmatpush2.bf16.msra.mxu0 0
      %3090 = vmatprep.subr.bf16.mxu0 0
      %3091 = vmatpush2.bf16.msra.mxu0 0
      %3092 = vmatprep.subr.bf16.mxu0 0
      %3093 = vmatpush2.bf16.msra.mxu0 0
      %3094 = vmatprep.mubr.bf16.mxu0 0
      %3095 = vmatmul.mubr.bf16.gmra.mxu0 %v3060
      %v3096 = vpop.f32.mrf.mxu0
      %v3097 = vadd.f32 0.0, %v3096
      %v3098 = vpop.f32.mrf.mxu0
      %v3099 = vpop.f32.mrf.mxu0
      %v3100 = vpop.f32.mrf.mxu0
      %3101 = vdwg.mxu0
      %v3110 = vunpack.c.l.b16 %v637
      %v3111 = vunpack.c.l.b16 %v638
      %v3112 = vunpack.c.l.b16 %v639
      %v3113 = vunpack.c.l.b16 %v640
      %v3114 = vunpack.c.l.b16 %v641
      %v3115 = vunpack.c.l.b16 %v642
      %v3116 = vunpack.c.l.b16 %v643
      %v3117 = vunpack.c.l.b16 %v644
      %v3118 = vpack.c.b16 %v3111, %v3110
      %v3119 = vpack.c.b16 %v3113, %v3112
      %v3120 = vpack.c.b16 %v3115, %v3114
      %v3121 = vpack.c.b16 %v3117, %v3116
      %v3127 = vsel %vm981, %v341, 0
      %3129 = vmatprep.subr.bf16.mxu0 0
      %3130 = vmatpush1.bf16.msra.mxu0 0
      %3131 = vmatprep.subr.bf16.mxu0 0
      %3132 = vmatpush1.bf16.msra.mxu0 0
      %3133 = vmatprep.subr.bf16.mxu0 0
      %3134 = vmatpush1.bf16.msra.mxu0 0
      %3135 = vmatprep.subr.bf16.mxu0 0
      %3136 = vmatpush1.bf16.msra.mxu0 0
      %3137 = vmatprep.subr.bf16.mxu0 0
      %3138 = vmatpush1.bf16.msra.mxu0 %v3121
      %3139 = vmatprep.subr.bf16.mxu0 0
      %3140 = vmatpush1.bf16.msra.mxu0 %v3120
      %3141 = vmatprep.subr.bf16.mxu0 0
      %3142 = vmatpush1.bf16.msra.mxu0 %v3119
      %3143 = vmatprep.subr.bf16.mxu0 0
      %3144 = vmatpush1.bf16.msra.mxu0 %v3118
      %3145 = vmatprep.subr.bf16.mxu0 0
      %3146 = vmatpush2.bf16.msra.mxu0 0
      %3147 = vmatprep.subr.bf16.mxu0 0
      %3148 = vmatpush2.bf16.msra.mxu0 0
      %3149 = vmatprep.subr.bf16.mxu0 0
      %3150 = vmatpush2.bf16.msra.mxu0 0
      %3151 = vmatprep.subr.bf16.mxu0 0
      %3152 = vmatpush2.bf16.msra.mxu0 0
      %3153 = vmatprep.subr.bf16.mxu0 0
      %3154 = vmatpush2.bf16.msra.mxu0 0
      %3155 = vmatprep.subr.bf16.mxu0 0
      %3156 = vmatpush2.bf16.msra.mxu0 0
      %3157 = vmatprep.subr.bf16.mxu0 0
      %3158 = vmatpush2.bf16.msra.mxu0 0
      %3159 = vmatprep.subr.bf16.mxu0 0
      %3160 = vmatpush2.bf16.msra.mxu0 0
      %3161 = vmatprep.mubr.bf16.mxu0 0
      %3162 = vmatmul.mubr.bf16.gmra.mxu0 %v3127
      %v3163 = vpop.f32.mrf.mxu0
      %v3164 = vadd.f32 0.0, %v3163
      %v3165 = vpop.f32.mrf.mxu0
      %v3166 = vpop.f32.mrf.mxu0
      %v3167 = vpop.f32.mrf.mxu0
      %3168 = vdwg.mxu0
      %v3177 = vunpack.c.l.b16 %v645
      %v3178 = vunpack.c.l.b16 %v646
      %v3179 = vunpack.c.l.b16 %v647
      %v3180 = vunpack.c.l.b16 %v648
      %v3181 = vunpack.c.l.b16 %v649
      %v3182 = vunpack.c.l.b16 %v650
      %v3183 = vunpack.c.l.b16 %v651
      %v3184 = vunpack.c.l.b16 %v652
      %v3185 = vpack.c.b16 %v3178, %v3177
      %v3186 = vpack.c.b16 %v3180, %v3179
      %v3187 = vpack.c.b16 %v3182, %v3181
      %v3188 = vpack.c.b16 %v3184, %v3183
      %v3194 = vsel %vm981, %v342, 0
      %3196 = vmatprep.subr.bf16.mxu0 0
      %3197 = vmatpush1.bf16.msra.mxu0 0
      %3198 = vmatprep.subr.bf16.mxu0 0
      %3199 = vmatpush1.bf16.msra.mxu0 0
      %3200 = vmatprep.subr.bf16.mxu0 0
      %3201 = vmatpush1.bf16.msra.mxu0 0
      %3202 = vmatprep.subr.bf16.mxu0 0
      %3203 = vmatpush1.bf16.msra.mxu0 0
      %3204 = vmatprep.subr.bf16.mxu0 0
      %3205 = vmatpush1.bf16.msra.mxu0 %v3188
      %3206 = vmatprep.subr.bf16.mxu0 0
      %3207 = vmatpush1.bf16.msra.mxu0 %v3187
      %3208 = vmatprep.subr.bf16.mxu0 0
      %3209 = vmatpush1.bf16.msra.mxu0 %v3186
      %3210 = vmatprep.subr.bf16.mxu0 0
      %3211 = vmatpush1.bf16.msra.mxu0 %v3185
      %3212 = vmatprep.subr.bf16.mxu0 0
      %3213 = vmatpush2.bf16.msra.mxu0 0
      %3214 = vmatprep.subr.bf16.mxu0 0
      %3215 = vmatpush2.bf16.msra.mxu0 0
      %3216 = vmatprep.subr.bf16.mxu0 0
      %3217 = vmatpush2.bf16.msra.mxu0 0
      %3218 = vmatprep.subr.bf16.mxu0 0
      %3219 = vmatpush2.bf16.msra.mxu0 0
      %3220 = vmatprep.subr.bf16.mxu0 0
      %3221 = vmatpush2.bf16.msra.mxu0 0
      %3222 = vmatprep.subr.bf16.mxu0 0
      %3223 = vmatpush2.bf16.msra.mxu0 0
      %3224 = vmatprep.subr.bf16.mxu0 0
      %3225 = vmatpush2.bf16.msra.mxu0 0
      %3226 = vmatprep.subr.bf16.mxu0 0
      %3227 = vmatpush2.bf16.msra.mxu0 0
      %3228 = vmatprep.mubr.bf16.mxu0 0
      %3229 = vmatmul.mubr.bf16.gmra.mxu0 %v3194
      %v3230 = vpop.f32.mrf.mxu0
      %v3231 = vadd.f32 0.0, %v3230
      %v3232 = vpop.f32.mrf.mxu0
      %v3233 = vpop.f32.mrf.mxu0
      %v3234 = vpop.f32.mrf.mxu0
      %3235 = vdwg.mxu0
      %v3244 = vunpack.c.l.b16 %v653
      %v3245 = vunpack.c.l.b16 %v654
      %v3246 = vunpack.c.l.b16 %v655
      %v3247 = vunpack.c.l.b16 %v656
      %v3248 = vunpack.c.l.b16 %v657
      %v3249 = vunpack.c.l.b16 %v658
      %v3250 = vunpack.c.l.b16 %v659
      %v3251 = vunpack.c.l.b16 %v660
      %v3252 = vpack.c.b16 %v3245, %v3244
      %v3253 = vpack.c.b16 %v3247, %v3246
      %v3254 = vpack.c.b16 %v3249, %v3248
      %v3255 = vpack.c.b16 %v3251, %v3250
      %v3261 = vsel %vm981, %v343, 0
      %3263 = vmatprep.subr.bf16.mxu0 0
      %3264 = vmatpush1.bf16.msra.mxu0 0
      %3265 = vmatprep.subr.bf16.mxu0 0
      %3266 = vmatpush1.bf16.msra.mxu0 0
      %3267 = vmatprep.subr.bf16.mxu0 0
      %3268 = vmatpush1.bf16.msra.mxu0 0
      %3269 = vmatprep.subr.bf16.mxu0 0
      %3270 = vmatpush1.bf16.msra.mxu0 0
      %3271 = vmatprep.subr.bf16.mxu0 0
      %3272 = vmatpush1.bf16.msra.mxu0 %v3255
      %3273 = vmatprep.subr.bf16.mxu0 0
      %3274 = vmatpush1.bf16.msra.mxu0 %v3254
      %3275 = vmatprep.subr.bf16.mxu0 0
      %3276 = vmatpush1.bf16.msra.mxu0 %v3253
      %3277 = vmatprep.subr.bf16.mxu0 0
      %3278 = vmatpush1.bf16.msra.mxu0 %v3252
      %3279 = vmatprep.subr.bf16.mxu0 0
      %3280 = vmatpush2.bf16.msra.mxu0 0
      %3281 = vmatprep.subr.bf16.mxu0 0
      %3282 = vmatpush2.bf16.msra.mxu0 0
      %3283 = vmatprep.subr.bf16.mxu0 0
      %3284 = vmatpush2.bf16.msra.mxu0 0
      %3285 = vmatprep.subr.bf16.mxu0 0
      %3286 = vmatpush2.bf16.msra.mxu0 0
      %3287 = vmatprep.subr.bf16.mxu0 0
      %3288 = vmatpush2.bf16.msra.mxu0 0
      %3289 = vmatprep.subr.bf16.mxu0 0
      %3290 = vmatpush2.bf16.msra.mxu0 0
      %3291 = vmatprep.subr.bf16.mxu0 0
      %3292 = vmatpush2.bf16.msra.mxu0 0
      %3293 = vmatprep.subr.bf16.mxu0 0
      %3294 = vmatpush2.bf16.msra.mxu0 0
      %3295 = vmatprep.mubr.bf16.mxu0 0
      %3296 = vmatmul.mubr.bf16.gmra.mxu0 %v3261
      %v3297 = vpop.f32.mrf.mxu0
      %v3298 = vadd.f32 0.0, %v3297
      %v3299 = vpop.f32.mrf.mxu0
      %v3300 = vpop.f32.mrf.mxu0
      %v3301 = vpop.f32.mrf.mxu0
      %3302 = vdwg.mxu0
      %v3311 = vunpack.c.l.b16 %v661
      %v3312 = vunpack.c.l.b16 %v662
      %v3313 = vunpack.c.l.b16 %v663
      %v3314 = vunpack.c.l.b16 %v664
      %v3315 = vunpack.c.l.b16 %v665
      %v3316 = vunpack.c.l.b16 %v666
      %v3317 = vunpack.c.l.b16 %v667
      %v3318 = vunpack.c.l.b16 %v668
      %v3319 = vpack.c.b16 %v3312, %v3311
      %v3320 = vpack.c.b16 %v3314, %v3313
      %v3321 = vpack.c.b16 %v3316, %v3315
      %v3322 = vpack.c.b16 %v3318, %v3317
      %v3328 = vsel %vm981, %v344, 0
      %3330 = vmatprep.subr.bf16.mxu0 0
      %3331 = vmatpush1.bf16.msra.mxu0 0
      %3332 = vmatprep.subr.bf16.mxu0 0
      %3333 = vmatpush1.bf16.msra.mxu0 0
      %3334 = vmatprep.subr.bf16.mxu0 0
      %3335 = vmatpush1.bf16.msra.mxu0 0
      %3336 = vmatprep.subr.bf16.mxu0 0
      %3337 = vmatpush1.bf16.msra.mxu0 0
      %3338 = vmatprep.subr.bf16.mxu0 0
      %3339 = vmatpush1.bf16.msra.mxu0 %v3322
      %3340 = vmatprep.subr.bf16.mxu0 0
      %3341 = vmatpush1.bf16.msra.mxu0 %v3321
      %3342 = vmatprep.subr.bf16.mxu0 0
      %3343 = vmatpush1.bf16.msra.mxu0 %v3320
      %3344 = vmatprep.subr.bf16.mxu0 0
      %3345 = vmatpush1.bf16.msra.mxu0 %v3319
      %3346 = vmatprep.subr.bf16.mxu0 0
      %3347 = vmatpush2.bf16.msra.mxu0 0
      %3348 = vmatprep.subr.bf16.mxu0 0
      %3349 = vmatpush2.bf16.msra.mxu0 0
      %3350 = vmatprep.subr.bf16.mxu0 0
      %3351 = vmatpush2.bf16.msra.mxu0 0
      %3352 = vmatprep.subr.bf16.mxu0 0
      %3353 = vmatpush2.bf16.msra.mxu0 0
      %3354 = vmatprep.subr.bf16.mxu0 0
      %3355 = vmatpush2.bf16.msra.mxu0 0
      %3356 = vmatprep.subr.bf16.mxu0 0
      %3357 = vmatpush2.bf16.msra.mxu0 0
      %3358 = vmatprep.subr.bf16.mxu0 0
      %3359 = vmatpush2.bf16.msra.mxu0 0
      %3360 = vmatprep.subr.bf16.mxu0 0
      %3361 = vmatpush2.bf16.msra.mxu0 0
      %3362 = vmatprep.mubr.bf16.mxu0 0
      %3363 = vmatmul.mubr.bf16.gmra.mxu0 %v3328
      %v3364 = vpop.f32.mrf.mxu0
      %v3365 = vadd.f32 0.0, %v3364
      %v3366 = vpop.f32.mrf.mxu0
      %v3367 = vpop.f32.mrf.mxu0
      %v3368 = vpop.f32.mrf.mxu0
      %3369 = vdwg.mxu0
      %v3378 = vunpack.c.l.b16 %v669
      %v3379 = vunpack.c.l.b16 %v670
      %v3380 = vunpack.c.l.b16 %v671
      %v3381 = vunpack.c.l.b16 %v672
      %v3382 = vunpack.c.l.b16 %v673
      %v3383 = vunpack.c.l.b16 %v674
      %v3384 = vunpack.c.l.b16 %v675
      %v3385 = vunpack.c.l.b16 %v676
      %v3386 = vpack.c.b16 %v3379, %v3378
      %v3387 = vpack.c.b16 %v3381, %v3380
      %v3388 = vpack.c.b16 %v3383, %v3382
      %v3389 = vpack.c.b16 %v3385, %v3384
      %v3395 = vsel %vm981, %v345, 0
      %3397 = vmatprep.subr.bf16.mxu0 0
      %3398 = vmatpush1.bf16.msra.mxu0 0
      %3399 = vmatprep.subr.bf16.mxu0 0
      %3400 = vmatpush1.bf16.msra.mxu0 0
      %3401 = vmatprep.subr.bf16.mxu0 0
      %3402 = vmatpush1.bf16.msra.mxu0 0
      %3403 = vmatprep.subr.bf16.mxu0 0
      %3404 = vmatpush1.bf16.msra.mxu0 0
      %3405 = vmatprep.subr.bf16.mxu0 0
      %3406 = vmatpush1.bf16.msra.mxu0 %v3389
      %3407 = vmatprep.subr.bf16.mxu0 0
      %3408 = vmatpush1.bf16.msra.mxu0 %v3388
      %3409 = vmatprep.subr.bf16.mxu0 0
      %3410 = vmatpush1.bf16.msra.mxu0 %v3387
      %3411 = vmatprep.subr.bf16.mxu0 0
      %3412 = vmatpush1.bf16.msra.mxu0 %v3386
      %3413 = vmatprep.subr.bf16.mxu0 0
      %3414 = vmatpush2.bf16.msra.mxu0 0
      %3415 = vmatprep.subr.bf16.mxu0 0
      %3416 = vmatpush2.bf16.msra.mxu0 0
      %3417 = vmatprep.subr.bf16.mxu0 0
      %3418 = vmatpush2.bf16.msra.mxu0 0
      %3419 = vmatprep.subr.bf16.mxu0 0
      %3420 = vmatpush2.bf16.msra.mxu0 0
      %3421 = vmatprep.subr.bf16.mxu0 0
      %3422 = vmatpush2.bf16.msra.mxu0 0
      %3423 = vmatprep.subr.bf16.mxu0 0
      %3424 = vmatpush2.bf16.msra.mxu0 0
      %3425 = vmatprep.subr.bf16.mxu0 0
      %3426 = vmatpush2.bf16.msra.mxu0 0
      %3427 = vmatprep.subr.bf16.mxu0 0
      %3428 = vmatpush2.bf16.msra.mxu0 0
      %3429 = vmatprep.mubr.bf16.mxu0 0
      %3430 = vmatmul.mubr.bf16.gmra.mxu0 %v3395
      %v3431 = vpop.f32.mrf.mxu0
      %v3432 = vadd.f32 0.0, %v3431
      %v3433 = vpop.f32.mrf.mxu0
      %v3434 = vpop.f32.mrf.mxu0
      %v3435 = vpop.f32.mrf.mxu0
      %3436 = vdwg.mxu0
      %v3445 = vunpack.c.l.b16 %v677
      %v3446 = vunpack.c.l.b16 %v678
      %v3447 = vunpack.c.l.b16 %v679
      %v3448 = vunpack.c.l.b16 %v680
      %v3449 = vunpack.c.l.b16 %v681
      %v3450 = vunpack.c.l.b16 %v682
      %v3451 = vunpack.c.l.b16 %v683
      %v3452 = vunpack.c.l.b16 %v684
      %v3453 = vpack.c.b16 %v3446, %v3445
      %v3454 = vpack.c.b16 %v3448, %v3447
      %v3455 = vpack.c.b16 %v3450, %v3449
      %v3456 = vpack.c.b16 %v3452, %v3451
      %v3462 = vsel %vm981, %v346, 0
      %3464 = vmatprep.subr.bf16.mxu0 0
      %3465 = vmatpush1.bf16.msra.mxu0 0
      %3466 = vmatprep.subr.bf16.mxu0 0
      %3467 = vmatpush1.bf16.msra.mxu0 0
      %3468 = vmatprep.subr.bf16.mxu0 0
      %3469 = vmatpush1.bf16.msra.mxu0 0
      %3470 = vmatprep.subr.bf16.mxu0 0
      %3471 = vmatpush1.bf16.msra.mxu0 0
      %3472 = vmatprep.subr.bf16.mxu0 0
      %3473 = vmatpush1.bf16.msra.mxu0 %v3456
      %3474 = vmatprep.subr.bf16.mxu0 0
      %3475 = vmatpush1.bf16.msra.mxu0 %v3455
      %3476 = vmatprep.subr.bf16.mxu0 0
      %3477 = vmatpush1.bf16.msra.mxu0 %v3454
      %3478 = vmatprep.subr.bf16.mxu0 0
      %3479 = vmatpush1.bf16.msra.mxu0 %v3453
      %3480 = vmatprep.subr.bf16.mxu0 0
      %3481 = vmatpush2.bf16.msra.mxu0 0
      %3482 = vmatprep.subr.bf16.mxu0 0
      %3483 = vmatpush2.bf16.msra.mxu0 0
      %3484 = vmatprep.subr.bf16.mxu0 0
      %3485 = vmatpush2.bf16.msra.mxu0 0
      %3486 = vmatprep.subr.bf16.mxu0 0
      %3487 = vmatpush2.bf16.msra.mxu0 0
      %3488 = vmatprep.subr.bf16.mxu0 0
      %3489 = vmatpush2.bf16.msra.mxu0 0
      %3490 = vmatprep.subr.bf16.mxu0 0
      %3491 = vmatpush2.bf16.msra.mxu0 0
      %3492 = vmatprep.subr.bf16.mxu0 0
      %3493 = vmatpush2.bf16.msra.mxu0 0
      %3494 = vmatprep.subr.bf16.mxu0 0
      %3495 = vmatpush2.bf16.msra.mxu0 0
      %3496 = vmatprep.mubr.bf16.mxu0 0
      %3497 = vmatmul.mubr.bf16.gmra.mxu0 %v3462
      %v3498 = vpop.f32.mrf.mxu0
      %v3499 = vadd.f32 0.0, %v3498
      %v3500 = vpop.f32.mrf.mxu0
      %v3501 = vpop.f32.mrf.mxu0
      %v3502 = vpop.f32.mrf.mxu0
      %3503 = vdwg.mxu0
      %v3512 = vunpack.c.l.b16 %v685
      %v3513 = vunpack.c.l.b16 %v686
      %v3514 = vunpack.c.l.b16 %v687
      %v3515 = vunpack.c.l.b16 %v688
      %v3516 = vunpack.c.l.b16 %v689
      %v3517 = vunpack.c.l.b16 %v690
      %v3518 = vunpack.c.l.b16 %v691
      %v3519 = vunpack.c.l.b16 %v692
      %v3520 = vpack.c.b16 %v3513, %v3512
      %v3521 = vpack.c.b16 %v3515, %v3514
      %v3522 = vpack.c.b16 %v3517, %v3516
      %v3523 = vpack.c.b16 %v3519, %v3518
      %v3529 = vsel %vm981, %v347, 0
      %3531 = vmatprep.subr.bf16.mxu0 0
      %3532 = vmatpush1.bf16.msra.mxu0 0
      %3533 = vmatprep.subr.bf16.mxu0 0
      %3534 = vmatpush1.bf16.msra.mxu0 0
      %3535 = vmatprep.subr.bf16.mxu0 0
      %3536 = vmatpush1.bf16.msra.mxu0 0
      %3537 = vmatprep.subr.bf16.mxu0 0
      %3538 = vmatpush1.bf16.msra.mxu0 0
      %3539 = vmatprep.subr.bf16.mxu0 0
      %3540 = vmatpush1.bf16.msra.mxu0 %v3523
      %3541 = vmatprep.subr.bf16.mxu0 0
      %3542 = vmatpush1.bf16.msra.mxu0 %v3522
      %3543 = vmatprep.subr.bf16.mxu0 0
      %3544 = vmatpush1.bf16.msra.mxu0 %v3521
      %3545 = vmatprep.subr.bf16.mxu0 0
      %3546 = vmatpush1.bf16.msra.mxu0 %v3520
      %3547 = vmatprep.subr.bf16.mxu0 0
      %3548 = vmatpush2.bf16.msra.mxu0 0
      %3549 = vmatprep.subr.bf16.mxu0 0
      %3550 = vmatpush2.bf16.msra.mxu0 0
      %3551 = vmatprep.subr.bf16.mxu0 0
      %3552 = vmatpush2.bf16.msra.mxu0 0
      %3553 = vmatprep.subr.bf16.mxu0 0
      %3554 = vmatpush2.bf16.msra.mxu0 0
      %3555 = vmatprep.subr.bf16.mxu0 0
      %3556 = vmatpush2.bf16.msra.mxu0 0
      %3557 = vmatprep.subr.bf16.mxu0 0
      %3558 = vmatpush2.bf16.msra.mxu0 0
      %3559 = vmatprep.subr.bf16.mxu0 0
      %3560 = vmatpush2.bf16.msra.mxu0 0
      %3561 = vmatprep.subr.bf16.mxu0 0
      %3562 = vmatpush2.bf16.msra.mxu0 0
      %3563 = vmatprep.mubr.bf16.mxu0 0
      %3564 = vmatmul.mubr.bf16.gmra.mxu0 %v3529
      %v3565 = vpop.f32.mrf.mxu0
      %v3566 = vadd.f32 0.0, %v3565
      %v3567 = vpop.f32.mrf.mxu0
      %v3568 = vpop.f32.mrf.mxu0
      %v3569 = vpop.f32.mrf.mxu0
      %3570 = vdwg.mxu0
      %v3579 = vunpack.c.l.b16 %v693
      %v3580 = vunpack.c.l.b16 %v694
      %v3581 = vunpack.c.l.b16 %v695
      %v3582 = vunpack.c.l.b16 %v696
      %v3583 = vunpack.c.l.b16 %v697
      %v3584 = vunpack.c.l.b16 %v698
      %v3585 = vunpack.c.l.b16 %v699
      %v3586 = vunpack.c.l.b16 %v700
      %v3587 = vpack.c.b16 %v3580, %v3579
      %v3588 = vpack.c.b16 %v3582, %v3581
      %v3589 = vpack.c.b16 %v3584, %v3583
      %v3590 = vpack.c.b16 %v3586, %v3585
      %v3596 = vsel %vm981, %v348, 0
      %3598 = vmatprep.subr.bf16.mxu0 0
      %3599 = vmatpush1.bf16.msra.mxu0 0
      %3600 = vmatprep.subr.bf16.mxu0 0
      %3601 = vmatpush1.bf16.msra.mxu0 0
      %3602 = vmatprep.subr.bf16.mxu0 0
      %3603 = vmatpush1.bf16.msra.mxu0 0
      %3604 = vmatprep.subr.bf16.mxu0 0
      %3605 = vmatpush1.bf16.msra.mxu0 0
      %3606 = vmatprep.subr.bf16.mxu0 0
      %3607 = vmatpush1.bf16.msra.mxu0 %v3590
      %3608 = vmatprep.subr.bf16.mxu0 0
      %3609 = vmatpush1.bf16.msra.mxu0 %v3589
      %3610 = vmatprep.subr.bf16.mxu0 0
      %3611 = vmatpush1.bf16.msra.mxu0 %v3588
      %3612 = vmatprep.subr.bf16.mxu0 0
      %3613 = vmatpush1.bf16.msra.mxu0 %v3587
      %3614 = vmatprep.subr.bf16.mxu0 0
      %3615 = vmatpush2.bf16.msra.mxu0 0
      %3616 = vmatprep.subr.bf16.mxu0 0
      %3617 = vmatpush2.bf16.msra.mxu0 0
      %3618 = vmatprep.subr.bf16.mxu0 0
      %3619 = vmatpush2.bf16.msra.mxu0 0
      %3620 = vmatprep.subr.bf16.mxu0 0
      %3621 = vmatpush2.bf16.msra.mxu0 0
      %3622 = vmatprep.subr.bf16.mxu0 0
      %3623 = vmatpush2.bf16.msra.mxu0 0
      %3624 = vmatprep.subr.bf16.mxu0 0
      %3625 = vmatpush2.bf16.msra.mxu0 0
      %3626 = vmatprep.subr.bf16.mxu0 0
      %3627 = vmatpush2.bf16.msra.mxu0 0
      %3628 = vmatprep.subr.bf16.mxu0 0
      %3629 = vmatpush2.bf16.msra.mxu0 0
      %3630 = vmatprep.mubr.bf16.mxu0 0
      %3631 = vmatmul.mubr.bf16.gmra.mxu0 %v3596
      %v3632 = vpop.f32.mrf.mxu0
      %v3633 = vadd.f32 0.0, %v3632
      %v3634 = vpop.f32.mrf.mxu0
      %v3635 = vpop.f32.mrf.mxu0
      %v3636 = vpop.f32.mrf.mxu0
      %3637 = vdwg.mxu0
      %v3646 = vunpack.c.l.b16 %v701
      %v3647 = vunpack.c.l.b16 %v702
      %v3648 = vunpack.c.l.b16 %v703
      %v3649 = vunpack.c.l.b16 %v704
      %v3650 = vunpack.c.l.b16 %v705
      %v3651 = vunpack.c.l.b16 %v706
      %v3652 = vunpack.c.l.b16 %v707
      %v3653 = vunpack.c.l.b16 %v708
      %v3654 = vpack.c.b16 %v3647, %v3646
      %v3655 = vpack.c.b16 %v3649, %v3648
      %v3656 = vpack.c.b16 %v3651, %v3650
      %v3657 = vpack.c.b16 %v3653, %v3652
      %v3663 = vsel %vm981, %v349, 0
      %3665 = vmatprep.subr.bf16.mxu0 0
      %3666 = vmatpush1.bf16.msra.mxu0 0
      %3667 = vmatprep.subr.bf16.mxu0 0
      %3668 = vmatpush1.bf16.msra.mxu0 0
      %3669 = vmatprep.subr.bf16.mxu0 0
      %3670 = vmatpush1.bf16.msra.mxu0 0
      %3671 = vmatprep.subr.bf16.mxu0 0
      %3672 = vmatpush1.bf16.msra.mxu0 0
      %3673 = vmatprep.subr.bf16.mxu0 0
      %3674 = vmatpush1.bf16.msra.mxu0 %v3657
      %3675 = vmatprep.subr.bf16.mxu0 0
      %3676 = vmatpush1.bf16.msra.mxu0 %v3656
      %3677 = vmatprep.subr.bf16.mxu0 0
      %3678 = vmatpush1.bf16.msra.mxu0 %v3655
      %3679 = vmatprep.subr.bf16.mxu0 0
      %3680 = vmatpush1.bf16.msra.mxu0 %v3654
      %3681 = vmatprep.subr.bf16.mxu0 0
      %3682 = vmatpush2.bf16.msra.mxu0 0
      %3683 = vmatprep.subr.bf16.mxu0 0
      %3684 = vmatpush2.bf16.msra.mxu0 0
      %3685 = vmatprep.subr.bf16.mxu0 0
      %3686 = vmatpush2.bf16.msra.mxu0 0
      %3687 = vmatprep.subr.bf16.mxu0 0
      %3688 = vmatpush2.bf16.msra.mxu0 0
      %3689 = vmatprep.subr.bf16.mxu0 0
      %3690 = vmatpush2.bf16.msra.mxu0 0
      %3691 = vmatprep.subr.bf16.mxu0 0
      %3692 = vmatpush2.bf16.msra.mxu0 0
      %3693 = vmatprep.subr.bf16.mxu0 0
      %3694 = vmatpush2.bf16.msra.mxu0 0
      %3695 = vmatprep.subr.bf16.mxu0 0
      %3696 = vmatpush2.bf16.msra.mxu0 0
      %3697 = vmatprep.mubr.bf16.mxu0 0
      %3698 = vmatmul.mubr.bf16.gmra.mxu0 %v3663
      %v3699 = vpop.f32.mrf.mxu0
      %v3700 = vadd.f32 0.0, %v3699
      %v3701 = vpop.f32.mrf.mxu0
      %v3702 = vpop.f32.mrf.mxu0
      %v3703 = vpop.f32.mrf.mxu0
      %3704 = vdwg.mxu0
      %v3713 = vunpack.c.l.b16 %v709
      %v3714 = vunpack.c.l.b16 %v710
      %v3715 = vunpack.c.l.b16 %v711
      %v3716 = vunpack.c.l.b16 %v712
      %v3717 = vunpack.c.l.b16 %v713
      %v3718 = vunpack.c.l.b16 %v714
      %v3719 = vunpack.c.l.b16 %v715
      %v3720 = vunpack.c.l.b16 %v716
      %v3721 = vpack.c.b16 %v3714, %v3713
      %v3722 = vpack.c.b16 %v3716, %v3715
      %v3723 = vpack.c.b16 %v3718, %v3717
      %v3724 = vpack.c.b16 %v3720, %v3719
      %v3730 = vsel %vm981, %v350, 0
      %3732 = vmatprep.subr.bf16.mxu0 0
      %3733 = vmatpush1.bf16.msra.mxu0 0
      %3734 = vmatprep.subr.bf16.mxu0 0
      %3735 = vmatpush1.bf16.msra.mxu0 0
      %3736 = vmatprep.subr.bf16.mxu0 0
      %3737 = vmatpush1.bf16.msra.mxu0 0
      %3738 = vmatprep.subr.bf16.mxu0 0
      %3739 = vmatpush1.bf16.msra.mxu0 0
      %3740 = vmatprep.subr.bf16.mxu0 0
      %3741 = vmatpush1.bf16.msra.mxu0 %v3724
      %3742 = vmatprep.subr.bf16.mxu0 0
      %3743 = vmatpush1.bf16.msra.mxu0 %v3723
      %3744 = vmatprep.subr.bf16.mxu0 0
      %3745 = vmatpush1.bf16.msra.mxu0 %v3722
      %3746 = vmatprep.subr.bf16.mxu0 0
      %3747 = vmatpush1.bf16.msra.mxu0 %v3721
      %3748 = vmatprep.subr.bf16.mxu0 0
      %3749 = vmatpush2.bf16.msra.mxu0 0
      %3750 = vmatprep.subr.bf16.mxu0 0
      %3751 = vmatpush2.bf16.msra.mxu0 0
      %3752 = vmatprep.subr.bf16.mxu0 0
      %3753 = vmatpush2.bf16.msra.mxu0 0
      %3754 = vmatprep.subr.bf16.mxu0 0
      %3755 = vmatpush2.bf16.msra.mxu0 0
      %3756 = vmatprep.subr.bf16.mxu0 0
      %3757 = vmatpush2.bf16.msra.mxu0 0
      %3758 = vmatprep.subr.bf16.mxu0 0
      %3759 = vmatpush2.bf16.msra.mxu0 0
      %3760 = vmatprep.subr.bf16.mxu0 0
      %3761 = vmatpush2.bf16.msra.mxu0 0
      %3762 = vmatprep.subr.bf16.mxu0 0
      %3763 = vmatpush2.bf16.msra.mxu0 0
      %3764 = vmatprep.mubr.bf16.mxu0 0
      %3765 = vmatmul.mubr.bf16.gmra.mxu0 %v3730
      %v3766 = vpop.f32.mrf.mxu0
      %v3767 = vadd.f32 0.0, %v3766
      %v3768 = vpop.f32.mrf.mxu0
      %v3769 = vpop.f32.mrf.mxu0
      %v3770 = vpop.f32.mrf.mxu0
      %3771 = vdwg.mxu0
      %v3780 = vunpack.c.l.b16 %v717
      %v3781 = vunpack.c.l.b16 %v718
      %v3782 = vunpack.c.l.b16 %v719
      %v3783 = vunpack.c.l.b16 %v720
      %v3784 = vunpack.c.l.b16 %v721
      %v3785 = vunpack.c.l.b16 %v722
      %v3786 = vunpack.c.l.b16 %v723
      %v3787 = vunpack.c.l.b16 %v724
      %v3788 = vpack.c.b16 %v3781, %v3780
      %v3789 = vpack.c.b16 %v3783, %v3782
      %v3790 = vpack.c.b16 %v3785, %v3784
      %v3791 = vpack.c.b16 %v3787, %v3786
      %v3797 = vsel %vm981, %v351, 0
      %3799 = vmatprep.subr.bf16.mxu0 0
      %3800 = vmatpush1.bf16.msra.mxu0 0
      %3801 = vmatprep.subr.bf16.mxu0 0
      %3802 = vmatpush1.bf16.msra.mxu0 0
      %3803 = vmatprep.subr.bf16.mxu0 0
      %3804 = vmatpush1.bf16.msra.mxu0 0
      %3805 = vmatprep.subr.bf16.mxu0 0
      %3806 = vmatpush1.bf16.msra.mxu0 0
      %3807 = vmatprep.subr.bf16.mxu0 0
      %3808 = vmatpush1.bf16.msra.mxu0 %v3791
      %3809 = vmatprep.subr.bf16.mxu0 0
      %3810 = vmatpush1.bf16.msra.mxu0 %v3790
      %3811 = vmatprep.subr.bf16.mxu0 0
      %3812 = vmatpush1.bf16.msra.mxu0 %v3789
      %3813 = vmatprep.subr.bf16.mxu0 0
      %3814 = vmatpush1.bf16.msra.mxu0 %v3788
      %3815 = vmatprep.subr.bf16.mxu0 0
      %3816 = vmatpush2.bf16.msra.mxu0 0
      %3817 = vmatprep.subr.bf16.mxu0 0
      %3818 = vmatpush2.bf16.msra.mxu0 0
      %3819 = vmatprep.subr.bf16.mxu0 0
      %3820 = vmatpush2.bf16.msra.mxu0 0
      %3821 = vmatprep.subr.bf16.mxu0 0
      %3822 = vmatpush2.bf16.msra.mxu0 0
      %3823 = vmatprep.subr.bf16.mxu0 0
      %3824 = vmatpush2.bf16.msra.mxu0 0
      %3825 = vmatprep.subr.bf16.mxu0 0
      %3826 = vmatpush2.bf16.msra.mxu0 0
      %3827 = vmatprep.subr.bf16.mxu0 0
      %3828 = vmatpush2.bf16.msra.mxu0 0
      %3829 = vmatprep.subr.bf16.mxu0 0
      %3830 = vmatpush2.bf16.msra.mxu0 0
      %3831 = vmatprep.mubr.bf16.mxu0 0
      %3832 = vmatmul.mubr.bf16.gmra.mxu0 %v3797
      %v3833 = vpop.f32.mrf.mxu0
      %v3834 = vadd.f32 0.0, %v3833
      %v3835 = vpop.f32.mrf.mxu0
      %v3836 = vpop.f32.mrf.mxu0
      %v3837 = vpop.f32.mrf.mxu0
      %3838 = vdwg.mxu0
      %v3847 = vunpack.c.l.b16 %v725
      %v3848 = vunpack.c.l.b16 %v726
      %v3849 = vunpack.c.l.b16 %v727
      %v3850 = vunpack.c.l.b16 %v728
      %v3851 = vunpack.c.l.b16 %v729
      %v3852 = vunpack.c.l.b16 %v730
      %v3853 = vunpack.c.l.b16 %v731
      %v3854 = vunpack.c.l.b16 %v732
      %v3855 = vpack.c.b16 %v3848, %v3847
      %v3856 = vpack.c.b16 %v3850, %v3849
      %v3857 = vpack.c.b16 %v3852, %v3851
      %v3858 = vpack.c.b16 %v3854, %v3853
      %v3864 = vsel %vm981, %v352, 0
      %3866 = vmatprep.subr.bf16.mxu0 0
      %3867 = vmatpush1.bf16.msra.mxu0 0
      %3868 = vmatprep.subr.bf16.mxu0 0
      %3869 = vmatpush1.bf16.msra.mxu0 0
      %3870 = vmatprep.subr.bf16.mxu0 0
      %3871 = vmatpush1.bf16.msra.mxu0 0
      %3872 = vmatprep.subr.bf16.mxu0 0
      %3873 = vmatpush1.bf16.msra.mxu0 0
      %3874 = vmatprep.subr.bf16.mxu0 0
      %3875 = vmatpush1.bf16.msra.mxu0 %v3858
      %3876 = vmatprep.subr.bf16.mxu0 0
      %3877 = vmatpush1.bf16.msra.mxu0 %v3857
      %3878 = vmatprep.subr.bf16.mxu0 0
      %3879 = vmatpush1.bf16.msra.mxu0 %v3856
      %3880 = vmatprep.subr.bf16.mxu0 0
      %3881 = vmatpush1.bf16.msra.mxu0 %v3855
      %3882 = vmatprep.subr.bf16.mxu0 0
      %3883 = vmatpush2.bf16.msra.mxu0 0
      %3884 = vmatprep.subr.bf16.mxu0 0
      %3885 = vmatpush2.bf16.msra.mxu0 0
      %3886 = vmatprep.subr.bf16.mxu0 0
      %3887 = vmatpush2.bf16.msra.mxu0 0
      %3888 = vmatprep.subr.bf16.mxu0 0
      %3889 = vmatpush2.bf16.msra.mxu0 0
      %3890 = vmatprep.subr.bf16.mxu0 0
      %3891 = vmatpush2.bf16.msra.mxu0 0
      %3892 = vmatprep.subr.bf16.mxu0 0
      %3893 = vmatpush2.bf16.msra.mxu0 0
      %3894 = vmatprep.subr.bf16.mxu0 0
      %3895 = vmatpush2.bf16.msra.mxu0 0
      %3896 = vmatprep.subr.bf16.mxu0 0
      %3897 = vmatpush2.bf16.msra.mxu0 0
      %3898 = vmatprep.mubr.bf16.mxu0 0
      %3899 = vmatmul.mubr.bf16.gmra.mxu0 %v3864
      %v3900 = vpop.f32.mrf.mxu0
      %v3901 = vadd.f32 0.0, %v3900
      %v3902 = vpop.f32.mrf.mxu0
      %v3903 = vpop.f32.mrf.mxu0
      %v3904 = vpop.f32.mrf.mxu0
      %3905 = vdwg.mxu0
      %v3914 = vunpack.c.l.b16 %v733
      %v3915 = vunpack.c.l.b16 %v734
      %v3916 = vunpack.c.l.b16 %v735
      %v3917 = vunpack.c.l.b16 %v736
      %v3918 = vunpack.c.l.b16 %v737
      %v3919 = vunpack.c.l.b16 %v738
      %v3920 = vunpack.c.l.b16 %v739
      %v3921 = vunpack.c.l.b16 %v740
      %v3922 = vpack.c.b16 %v3915, %v3914
      %v3923 = vpack.c.b16 %v3917, %v3916
      %v3924 = vpack.c.b16 %v3919, %v3918
      %v3925 = vpack.c.b16 %v3921, %v3920
      %v3931 = vsel %vm981, %v353, 0
      %3933 = vmatprep.subr.bf16.mxu0 0
      %3934 = vmatpush1.bf16.msra.mxu0 0
      %3935 = vmatprep.subr.bf16.mxu0 0
      %3936 = vmatpush1.bf16.msra.mxu0 0
      %3937 = vmatprep.subr.bf16.mxu0 0
      %3938 = vmatpush1.bf16.msra.mxu0 0
      %3939 = vmatprep.subr.bf16.mxu0 0
      %3940 = vmatpush1.bf16.msra.mxu0 0
      %3941 = vmatprep.subr.bf16.mxu0 0
      %3942 = vmatpush1.bf16.msra.mxu0 %v3925
      %3943 = vmatprep.subr.bf16.mxu0 0
      %3944 = vmatpush1.bf16.msra.mxu0 %v3924
      %3945 = vmatprep.subr.bf16.mxu0 0
      %3946 = vmatpush1.bf16.msra.mxu0 %v3923
      %3947 = vmatprep.subr.bf16.mxu0 0
      %3948 = vmatpush1.bf16.msra.mxu0 %v3922
      %3949 = vmatprep.subr.bf16.mxu0 0
      %3950 = vmatpush2.bf16.msra.mxu0 0
      %3951 = vmatprep.subr.bf16.mxu0 0
      %3952 = vmatpush2.bf16.msra.mxu0 0
      %3953 = vmatprep.subr.bf16.mxu0 0
      %3954 = vmatpush2.bf16.msra.mxu0 0
      %3955 = vmatprep.subr.bf16.mxu0 0
      %3956 = vmatpush2.bf16.msra.mxu0 0
      %3957 = vmatprep.subr.bf16.mxu0 0
      %3958 = vmatpush2.bf16.msra.mxu0 0
      %3959 = vmatprep.subr.bf16.mxu0 0
      %3960 = vmatpush2.bf16.msra.mxu0 0
      %3961 = vmatprep.subr.bf16.mxu0 0
      %3962 = vmatpush2.bf16.msra.mxu0 0
      %3963 = vmatprep.subr.bf16.mxu0 0
      %3964 = vmatpush2.bf16.msra.mxu0 0
      %3965 = vmatprep.mubr.bf16.mxu0 0
      %3966 = vmatmul.mubr.bf16.gmra.mxu0 %v3931
      %v3967 = vpop.f32.mrf.mxu0
      %v3968 = vadd.f32 0.0, %v3967
      %v3969 = vpop.f32.mrf.mxu0
      %v3970 = vpop.f32.mrf.mxu0
      %v3971 = vpop.f32.mrf.mxu0
      %3972 = vdwg.mxu0
      %v3981 = vunpack.c.l.b16 %v741
      %v3982 = vunpack.c.l.b16 %v742
      %v3983 = vunpack.c.l.b16 %v743
      %v3984 = vunpack.c.l.b16 %v744
      %v3985 = vunpack.c.l.b16 %v745
      %v3986 = vunpack.c.l.b16 %v746
      %v3987 = vunpack.c.l.b16 %v747
      %v3988 = vunpack.c.l.b16 %v748
      %v3989 = vpack.c.b16 %v3982, %v3981
      %v3990 = vpack.c.b16 %v3984, %v3983
      %v3991 = vpack.c.b16 %v3986, %v3985
      %v3992 = vpack.c.b16 %v3988, %v3987
      %v3998 = vsel %vm981, %v354, 0
      %4000 = vmatprep.subr.bf16.mxu0 0
      %4001 = vmatpush1.bf16.msra.mxu0 0
      %4002 = vmatprep.subr.bf16.mxu0 0
      %4003 = vmatpush1.bf16.msra.mxu0 0
      %4004 = vmatprep.subr.bf16.mxu0 0
      %4005 = vmatpush1.bf16.msra.mxu0 0
      %4006 = vmatprep.subr.bf16.mxu0 0
      %4007 = vmatpush1.bf16.msra.mxu0 0
      %4008 = vmatprep.subr.bf16.mxu0 0
      %4009 = vmatpush1.bf16.msra.mxu0 %v3992
      %4010 = vmatprep.subr.bf16.mxu0 0
      %4011 = vmatpush1.bf16.msra.mxu0 %v3991
      %4012 = vmatprep.subr.bf16.mxu0 0
      %4013 = vmatpush1.bf16.msra.mxu0 %v3990
      %4014 = vmatprep.subr.bf16.mxu0 0
      %4015 = vmatpush1.bf16.msra.mxu0 %v3989
      %4016 = vmatprep.subr.bf16.mxu0 0
      %4017 = vmatpush2.bf16.msra.mxu0 0
      %4018 = vmatprep.subr.bf16.mxu0 0
      %4019 = vmatpush2.bf16.msra.mxu0 0
      %4020 = vmatprep.subr.bf16.mxu0 0
      %4021 = vmatpush2.bf16.msra.mxu0 0
      %4022 = vmatprep.subr.bf16.mxu0 0
      %4023 = vmatpush2.bf16.msra.mxu0 0
      %4024 = vmatprep.subr.bf16.mxu0 0
      %4025 = vmatpush2.bf16.msra.mxu0 0
      %4026 = vmatprep.subr.bf16.mxu0 0
      %4027 = vmatpush2.bf16.msra.mxu0 0
      %4028 = vmatprep.subr.bf16.mxu0 0
      %4029 = vmatpush2.bf16.msra.mxu0 0
      %4030 = vmatprep.subr.bf16.mxu0 0
      %4031 = vmatpush2.bf16.msra.mxu0 0
      %4032 = vmatprep.mubr.bf16.mxu0 0
      %4033 = vmatmul.mubr.bf16.gmra.mxu0 %v3998
      %v4034 = vpop.f32.mrf.mxu0
      %v4035 = vadd.f32 0.0, %v4034
      %v4036 = vpop.f32.mrf.mxu0
      %v4037 = vpop.f32.mrf.mxu0
      %v4038 = vpop.f32.mrf.mxu0
      %4039 = vdwg.mxu0
      %v4048 = vunpack.c.l.b16 %v749
      %v4049 = vunpack.c.l.b16 %v750
      %v4050 = vunpack.c.l.b16 %v751
      %v4051 = vunpack.c.l.b16 %v752
      %v4052 = vunpack.c.l.b16 %v753
      %v4053 = vunpack.c.l.b16 %v754
      %v4054 = vunpack.c.l.b16 %v755
      %v4055 = vunpack.c.l.b16 %v756
      %v4056 = vpack.c.b16 %v4049, %v4048
      %v4057 = vpack.c.b16 %v4051, %v4050
      %v4058 = vpack.c.b16 %v4053, %v4052
      %v4059 = vpack.c.b16 %v4055, %v4054
      %v4065 = vsel %vm981, %v355, 0
      %4067 = vmatprep.subr.bf16.mxu0 0
      %4068 = vmatpush1.bf16.msra.mxu0 0
      %4069 = vmatprep.subr.bf16.mxu0 0
      %4070 = vmatpush1.bf16.msra.mxu0 0
      %4071 = vmatprep.subr.bf16.mxu0 0
      %4072 = vmatpush1.bf16.msra.mxu0 0
      %4073 = vmatprep.subr.bf16.mxu0 0
      %4074 = vmatpush1.bf16.msra.mxu0 0
      %4075 = vmatprep.subr.bf16.mxu0 0
      %4076 = vmatpush1.bf16.msra.mxu0 %v4059
      %4077 = vmatprep.subr.bf16.mxu0 0
      %4078 = vmatpush1.bf16.msra.mxu0 %v4058
      %4079 = vmatprep.subr.bf16.mxu0 0
      %4080 = vmatpush1.bf16.msra.mxu0 %v4057
      %4081 = vmatprep.subr.bf16.mxu0 0
      %4082 = vmatpush1.bf16.msra.mxu0 %v4056
      %4083 = vmatprep.subr.bf16.mxu0 0
      %4084 = vmatpush2.bf16.msra.mxu0 0
      %4085 = vmatprep.subr.bf16.mxu0 0
      %4086 = vmatpush2.bf16.msra.mxu0 0
      %4087 = vmatprep.subr.bf16.mxu0 0
      %4088 = vmatpush2.bf16.msra.mxu0 0
      %4089 = vmatprep.subr.bf16.mxu0 0
      %4090 = vmatpush2.bf16.msra.mxu0 0
      %4091 = vmatprep.subr.bf16.mxu0 0
      %4092 = vmatpush2.bf16.msra.mxu0 0
      %4093 = vmatprep.subr.bf16.mxu0 0
      %4094 = vmatpush2.bf16.msra.mxu0 0
      %4095 = vmatprep.subr.bf16.mxu0 0
      %4096 = vmatpush2.bf16.msra.mxu0 0
      %4097 = vmatprep.subr.bf16.mxu0 0
      %4098 = vmatpush2.bf16.msra.mxu0 0
      %4099 = vmatprep.mubr.bf16.mxu0 0
      %4100 = vmatmul.mubr.bf16.gmra.mxu0 %v4065
      %v4101 = vpop.f32.mrf.mxu0
      %v4102 = vadd.f32 0.0, %v4101
      %v4103 = vpop.f32.mrf.mxu0
      %v4104 = vpop.f32.mrf.mxu0
      %v4105 = vpop.f32.mrf.mxu0
      %4106 = vdwg.mxu0
      %v4115 = vunpack.c.l.b16 %v757
      %v4116 = vunpack.c.l.b16 %v758
      %v4117 = vunpack.c.l.b16 %v759
      %v4118 = vunpack.c.l.b16 %v760
      %v4119 = vunpack.c.l.b16 %v761
      %v4120 = vunpack.c.l.b16 %v762
      %v4121 = vunpack.c.l.b16 %v763
      %v4122 = vunpack.c.l.b16 %v764
      %v4123 = vpack.c.b16 %v4116, %v4115
      %v4124 = vpack.c.b16 %v4118, %v4117
      %v4125 = vpack.c.b16 %v4120, %v4119
      %v4126 = vpack.c.b16 %v4122, %v4121
      %v4132 = vsel %vm981, %v356, 0
      %4134 = vmatprep.subr.bf16.mxu0 0
      %4135 = vmatpush1.bf16.msra.mxu0 0
      %4136 = vmatprep.subr.bf16.mxu0 0
      %4137 = vmatpush1.bf16.msra.mxu0 0
      %4138 = vmatprep.subr.bf16.mxu0 0
      %4139 = vmatpush1.bf16.msra.mxu0 0
      %4140 = vmatprep.subr.bf16.mxu0 0
      %4141 = vmatpush1.bf16.msra.mxu0 0
      %4142 = vmatprep.subr.bf16.mxu0 0
      %4143 = vmatpush1.bf16.msra.mxu0 %v4126
      %4144 = vmatprep.subr.bf16.mxu0 0
      %4145 = vmatpush1.bf16.msra.mxu0 %v4125
      %4146 = vmatprep.subr.bf16.mxu0 0
      %4147 = vmatpush1.bf16.msra.mxu0 %v4124
      %4148 = vmatprep.subr.bf16.mxu0 0
      %4149 = vmatpush1.bf16.msra.mxu0 %v4123
      %4150 = vmatprep.subr.bf16.mxu0 0
      %4151 = vmatpush2.bf16.msra.mxu0 0
      %4152 = vmatprep.subr.bf16.mxu0 0
      %4153 = vmatpush2.bf16.msra.mxu0 0
      %4154 = vmatprep.subr.bf16.mxu0 0
      %4155 = vmatpush2.bf16.msra.mxu0 0
      %4156 = vmatprep.subr.bf16.mxu0 0
      %4157 = vmatpush2.bf16.msra.mxu0 0
      %4158 = vmatprep.subr.bf16.mxu0 0
      %4159 = vmatpush2.bf16.msra.mxu0 0
      %4160 = vmatprep.subr.bf16.mxu0 0
      %4161 = vmatpush2.bf16.msra.mxu0 0
      %4162 = vmatprep.subr.bf16.mxu0 0
      %4163 = vmatpush2.bf16.msra.mxu0 0
      %4164 = vmatprep.subr.bf16.mxu0 0
      %4165 = vmatpush2.bf16.msra.mxu0 0
      %4166 = vmatprep.mubr.bf16.mxu0 0
      %4167 = vmatmul.mubr.bf16.gmra.mxu0 %v4132
      %v4168 = vpop.f32.mrf.mxu0
      %v4169 = vadd.f32 0.0, %v4168
      %v4170 = vpop.f32.mrf.mxu0
      %v4171 = vpop.f32.mrf.mxu0
      %v4172 = vpop.f32.mrf.mxu0
      %4173 = vdwg.mxu0
      %v4182 = vunpack.c.l.b16 %v765
      %v4183 = vunpack.c.l.b16 %v766
      %v4184 = vunpack.c.l.b16 %v767
      %v4185 = vunpack.c.l.b16 %v768
      %v4186 = vunpack.c.l.b16 %v769
      %v4187 = vunpack.c.l.b16 %v770
      %v4188 = vunpack.c.l.b16 %v771
      %v4189 = vunpack.c.l.b16 %v772
      %v4190 = vpack.c.b16 %v4183, %v4182
      %v4191 = vpack.c.b16 %v4185, %v4184
      %v4192 = vpack.c.b16 %v4187, %v4186
      %v4193 = vpack.c.b16 %v4189, %v4188
      %v4199 = vsel %vm981, %v357, 0
      %4201 = vmatprep.subr.bf16.mxu0 0
      %4202 = vmatpush1.bf16.msra.mxu0 0
      %4203 = vmatprep.subr.bf16.mxu0 0
      %4204 = vmatpush1.bf16.msra.mxu0 0
      %4205 = vmatprep.subr.bf16.mxu0 0
      %4206 = vmatpush1.bf16.msra.mxu0 0
      %4207 = vmatprep.subr.bf16.mxu0 0
      %4208 = vmatpush1.bf16.msra.mxu0 0
      %4209 = vmatprep.subr.bf16.mxu0 0
      %4210 = vmatpush1.bf16.msra.mxu0 %v4193
      %4211 = vmatprep.subr.bf16.mxu0 0
      %4212 = vmatpush1.bf16.msra.mxu0 %v4192
      %4213 = vmatprep.subr.bf16.mxu0 0
      %4214 = vmatpush1.bf16.msra.mxu0 %v4191
      %4215 = vmatprep.subr.bf16.mxu0 0
      %4216 = vmatpush1.bf16.msra.mxu0 %v4190
      %4217 = vmatprep.subr.bf16.mxu0 0
      %4218 = vmatpush2.bf16.msra.mxu0 0
      %4219 = vmatprep.subr.bf16.mxu0 0
      %4220 = vmatpush2.bf16.msra.mxu0 0
      %4221 = vmatprep.subr.bf16.mxu0 0
      %4222 = vmatpush2.bf16.msra.mxu0 0
      %4223 = vmatprep.subr.bf16.mxu0 0
      %4224 = vmatpush2.bf16.msra.mxu0 0
      %4225 = vmatprep.subr.bf16.mxu0 0
      %4226 = vmatpush2.bf16.msra.mxu0 0
      %4227 = vmatprep.subr.bf16.mxu0 0
      %4228 = vmatpush2.bf16.msra.mxu0 0
      %4229 = vmatprep.subr.bf16.mxu0 0
      %4230 = vmatpush2.bf16.msra.mxu0 0
      %4231 = vmatprep.subr.bf16.mxu0 0
      %4232 = vmatpush2.bf16.msra.mxu0 0
      %4233 = vmatprep.mubr.bf16.mxu0 0
      %4234 = vmatmul.mubr.bf16.gmra.mxu0 %v4199
      %v4235 = vpop.f32.mrf.mxu0
      %v4236 = vadd.f32 0.0, %v4235
      %v4237 = vpop.f32.mrf.mxu0
      %v4238 = vpop.f32.mrf.mxu0
      %v4239 = vpop.f32.mrf.mxu0
      %4240 = vdwg.mxu0
      %v4249 = vunpack.c.l.b16 %v773
      %v4250 = vunpack.c.l.b16 %v774
      %v4251 = vunpack.c.l.b16 %v775
      %v4252 = vunpack.c.l.b16 %v776
      %v4253 = vunpack.c.l.b16 %v777
      %v4254 = vunpack.c.l.b16 %v778
      %v4255 = vunpack.c.l.b16 %v779
      %v4256 = vunpack.c.l.b16 %v780
      %v4257 = vpack.c.b16 %v4250, %v4249
      %v4258 = vpack.c.b16 %v4252, %v4251
      %v4259 = vpack.c.b16 %v4254, %v4253
      %v4260 = vpack.c.b16 %v4256, %v4255
      %v4266 = vsel %vm981, %v358, 0
      %4268 = vmatprep.subr.bf16.mxu0 0
      %4269 = vmatpush1.bf16.msra.mxu0 0
      %4270 = vmatprep.subr.bf16.mxu0 0
      %4271 = vmatpush1.bf16.msra.mxu0 0
      %4272 = vmatprep.subr.bf16.mxu0 0
      %4273 = vmatpush1.bf16.msra.mxu0 0
      %4274 = vmatprep.subr.bf16.mxu0 0
      %4275 = vmatpush1.bf16.msra.mxu0 0
      %4276 = vmatprep.subr.bf16.mxu0 0
      %4277 = vmatpush1.bf16.msra.mxu0 %v4260
      %4278 = vmatprep.subr.bf16.mxu0 0
      %4279 = vmatpush1.bf16.msra.mxu0 %v4259
      %4280 = vmatprep.subr.bf16.mxu0 0
      %4281 = vmatpush1.bf16.msra.mxu0 %v4258
      %4282 = vmatprep.subr.bf16.mxu0 0
      %4283 = vmatpush1.bf16.msra.mxu0 %v4257
      %4284 = vmatprep.subr.bf16.mxu0 0
      %4285 = vmatpush2.bf16.msra.mxu0 0
      %4286 = vmatprep.subr.bf16.mxu0 0
      %4287 = vmatpush2.bf16.msra.mxu0 0
      %4288 = vmatprep.subr.bf16.mxu0 0
      %4289 = vmatpush2.bf16.msra.mxu0 0
      %4290 = vmatprep.subr.bf16.mxu0 0
      %4291 = vmatpush2.bf16.msra.mxu0 0
      %4292 = vmatprep.subr.bf16.mxu0 0
      %4293 = vmatpush2.bf16.msra.mxu0 0
      %4294 = vmatprep.subr.bf16.mxu0 0
      %4295 = vmatpush2.bf16.msra.mxu0 0
      %4296 = vmatprep.subr.bf16.mxu0 0
      %4297 = vmatpush2.bf16.msra.mxu0 0
      %4298 = vmatprep.subr.bf16.mxu0 0
      %4299 = vmatpush2.bf16.msra.mxu0 0
      %4300 = vmatprep.mubr.bf16.mxu0 0
      %4301 = vmatmul.mubr.bf16.gmra.mxu0 %v4266
      %v4302 = vpop.f32.mrf.mxu0
      %v4303 = vadd.f32 0.0, %v4302
      %v4304 = vpop.f32.mrf.mxu0
      %v4305 = vpop.f32.mrf.mxu0
      %v4306 = vpop.f32.mrf.mxu0
      %4307 = vdwg.mxu0
      %v4316 = vunpack.c.l.b16 %v781
      %v4317 = vunpack.c.l.b16 %v782
      %v4318 = vunpack.c.l.b16 %v783
      %v4319 = vunpack.c.l.b16 %v784
      %v4320 = vunpack.c.l.b16 %v785
      %v4321 = vunpack.c.l.b16 %v786
      %v4322 = vunpack.c.l.b16 %v787
      %v4323 = vunpack.c.l.b16 %v788
      %v4324 = vpack.c.b16 %v4317, %v4316
      %v4325 = vpack.c.b16 %v4319, %v4318
      %v4326 = vpack.c.b16 %v4321, %v4320
      %v4327 = vpack.c.b16 %v4323, %v4322
      %v4333 = vsel %vm981, %v359, 0
      %4335 = vmatprep.subr.bf16.mxu0 0
      %4336 = vmatpush1.bf16.msra.mxu0 0
      %4337 = vmatprep.subr.bf16.mxu0 0
      %4338 = vmatpush1.bf16.msra.mxu0 0
      %4339 = vmatprep.subr.bf16.mxu0 0
      %4340 = vmatpush1.bf16.msra.mxu0 0
      %4341 = vmatprep.subr.bf16.mxu0 0
      %4342 = vmatpush1.bf16.msra.mxu0 0
      %4343 = vmatprep.subr.bf16.mxu0 0
      %4344 = vmatpush1.bf16.msra.mxu0 %v4327
      %4345 = vmatprep.subr.bf16.mxu0 0
      %4346 = vmatpush1.bf16.msra.mxu0 %v4326
      %4347 = vmatprep.subr.bf16.mxu0 0
      %4348 = vmatpush1.bf16.msra.mxu0 %v4325
      %4349 = vmatprep.subr.bf16.mxu0 0
      %4350 = vmatpush1.bf16.msra.mxu0 %v4324
      %4351 = vmatprep.subr.bf16.mxu0 0
      %4352 = vmatpush2.bf16.msra.mxu0 0
      %4353 = vmatprep.subr.bf16.mxu0 0
      %4354 = vmatpush2.bf16.msra.mxu0 0
      %4355 = vmatprep.subr.bf16.mxu0 0
      %4356 = vmatpush2.bf16.msra.mxu0 0
      %4357 = vmatprep.subr.bf16.mxu0 0
      %4358 = vmatpush2.bf16.msra.mxu0 0
      %4359 = vmatprep.subr.bf16.mxu0 0
      %4360 = vmatpush2.bf16.msra.mxu0 0
      %4361 = vmatprep.subr.bf16.mxu0 0
      %4362 = vmatpush2.bf16.msra.mxu0 0
      %4363 = vmatprep.subr.bf16.mxu0 0
      %4364 = vmatpush2.bf16.msra.mxu0 0
      %4365 = vmatprep.subr.bf16.mxu0 0
      %4366 = vmatpush2.bf16.msra.mxu0 0
      %4367 = vmatprep.mubr.bf16.mxu0 0
      %4368 = vmatmul.mubr.bf16.gmra.mxu0 %v4333
      %v4369 = vpop.f32.mrf.mxu0
      %v4370 = vadd.f32 0.0, %v4369
      %v4371 = vpop.f32.mrf.mxu0
      %v4372 = vpop.f32.mrf.mxu0
      %v4373 = vpop.f32.mrf.mxu0
      %4374 = vdwg.mxu0
      %v4383 = vunpack.c.l.b16 %v789
      %v4384 = vunpack.c.l.b16 %v790
      %v4385 = vunpack.c.l.b16 %v791
      %v4386 = vunpack.c.l.b16 %v792
      %v4387 = vunpack.c.l.b16 %v793
      %v4388 = vunpack.c.l.b16 %v794
      %v4389 = vunpack.c.l.b16 %v795
      %v4390 = vunpack.c.l.b16 %v796
      %v4391 = vpack.c.b16 %v4384, %v4383
      %v4392 = vpack.c.b16 %v4386, %v4385
      %v4393 = vpack.c.b16 %v4388, %v4387
      %v4394 = vpack.c.b16 %v4390, %v4389
      %v4400 = vsel %vm981, %v360, 0
      %4402 = vmatprep.subr.bf16.mxu0 0
      %4403 = vmatpush1.bf16.msra.mxu0 0
      %4404 = vmatprep.subr.bf16.mxu0 0
      %4405 = vmatpush1.bf16.msra.mxu0 0
      %4406 = vmatprep.subr.bf16.mxu0 0
      %4407 = vmatpush1.bf16.msra.mxu0 0
      %4408 = vmatprep.subr.bf16.mxu0 0
      %4409 = vmatpush1.bf16.msra.mxu0 0
      %4410 = vmatprep.subr.bf16.mxu0 0
      %4411 = vmatpush1.bf16.msra.mxu0 %v4394
      %4412 = vmatprep.subr.bf16.mxu0 0
      %4413 = vmatpush1.bf16.msra.mxu0 %v4393
      %4414 = vmatprep.subr.bf16.mxu0 0
      %4415 = vmatpush1.bf16.msra.mxu0 %v4392
      %4416 = vmatprep.subr.bf16.mxu0 0
      %4417 = vmatpush1.bf16.msra.mxu0 %v4391
      %4418 = vmatprep.subr.bf16.mxu0 0
      %4419 = vmatpush2.bf16.msra.mxu0 0
      %4420 = vmatprep.subr.bf16.mxu0 0
      %4421 = vmatpush2.bf16.msra.mxu0 0
      %4422 = vmatprep.subr.bf16.mxu0 0
      %4423 = vmatpush2.bf16.msra.mxu0 0
      %4424 = vmatprep.subr.bf16.mxu0 0
      %4425 = vmatpush2.bf16.msra.mxu0 0
      %4426 = vmatprep.subr.bf16.mxu0 0
      %4427 = vmatpush2.bf16.msra.mxu0 0
      %4428 = vmatprep.subr.bf16.mxu0 0
      %4429 = vmatpush2.bf16.msra.mxu0 0
      %4430 = vmatprep.subr.bf16.mxu0 0
      %4431 = vmatpush2.bf16.msra.mxu0 0
      %4432 = vmatprep.subr.bf16.mxu0 0
      %4433 = vmatpush2.bf16.msra.mxu0 0
      %4434 = vmatprep.mubr.bf16.mxu0 0
      %4435 = vmatmul.mubr.bf16.gmra.mxu0 %v4400
      %v4436 = vpop.f32.mrf.mxu0
      %v4437 = vadd.f32 0.0, %v4436
      %v4438 = vpop.f32.mrf.mxu0
      %v4439 = vpop.f32.mrf.mxu0
      %v4440 = vpop.f32.mrf.mxu0
      %4441 = vdwg.mxu0
      %v4450 = vunpack.c.l.b16 %v797
      %v4451 = vunpack.c.l.b16 %v798
      %v4452 = vunpack.c.l.b16 %v799
      %v4453 = vunpack.c.l.b16 %v800
      %v4454 = vunpack.c.l.b16 %v801
      %v4455 = vunpack.c.l.b16 %v802
      %v4456 = vunpack.c.l.b16 %v803
      %v4457 = vunpack.c.l.b16 %v804
      %v4458 = vpack.c.b16 %v4451, %v4450
      %v4459 = vpack.c.b16 %v4453, %v4452
      %v4460 = vpack.c.b16 %v4455, %v4454
      %v4461 = vpack.c.b16 %v4457, %v4456
      %v4467 = vsel %vm981, %v361, 0
      %4469 = vmatprep.subr.bf16.mxu0 0
      %4470 = vmatpush1.bf16.msra.mxu0 0
      %4471 = vmatprep.subr.bf16.mxu0 0
      %4472 = vmatpush1.bf16.msra.mxu0 0
      %4473 = vmatprep.subr.bf16.mxu0 0
      %4474 = vmatpush1.bf16.msra.mxu0 0
      %4475 = vmatprep.subr.bf16.mxu0 0
      %4476 = vmatpush1.bf16.msra.mxu0 0
      %4477 = vmatprep.subr.bf16.mxu0 0
      %4478 = vmatpush1.bf16.msra.mxu0 %v4461
      %4479 = vmatprep.subr.bf16.mxu0 0
      %4480 = vmatpush1.bf16.msra.mxu0 %v4460
      %4481 = vmatprep.subr.bf16.mxu0 0
      %4482 = vmatpush1.bf16.msra.mxu0 %v4459
      %4483 = vmatprep.subr.bf16.mxu0 0
      %4484 = vmatpush1.bf16.msra.mxu0 %v4458
      %4485 = vmatprep.subr.bf16.mxu0 0
      %4486 = vmatpush2.bf16.msra.mxu0 0
      %4487 = vmatprep.subr.bf16.mxu0 0
      %4488 = vmatpush2.bf16.msra.mxu0 0
      %4489 = vmatprep.subr.bf16.mxu0 0
      %4490 = vmatpush2.bf16.msra.mxu0 0
      %4491 = vmatprep.subr.bf16.mxu0 0
      %4492 = vmatpush2.bf16.msra.mxu0 0
      %4493 = vmatprep.subr.bf16.mxu0 0
      %4494 = vmatpush2.bf16.msra.mxu0 0
      %4495 = vmatprep.subr.bf16.mxu0 0
      %4496 = vmatpush2.bf16.msra.mxu0 0
      %4497 = vmatprep.subr.bf16.mxu0 0
      %4498 = vmatpush2.bf16.msra.mxu0 0
      %4499 = vmatprep.subr.bf16.mxu0 0
      %4500 = vmatpush2.bf16.msra.mxu0 0
      %4501 = vmatprep.mubr.bf16.mxu0 0
      %4502 = vmatmul.mubr.bf16.gmra.mxu0 %v4467
      %v4503 = vpop.f32.mrf.mxu0
      %v4504 = vadd.f32 0.0, %v4503
      %v4505 = vpop.f32.mrf.mxu0
      %v4506 = vpop.f32.mrf.mxu0
      %v4507 = vpop.f32.mrf.mxu0
      %4508 = vdwg.mxu0
      %v4517 = vunpack.c.l.b16 %v805
      %v4518 = vunpack.c.l.b16 %v806
      %v4519 = vunpack.c.l.b16 %v807
      %v4520 = vunpack.c.l.b16 %v808
      %v4521 = vunpack.c.l.b16 %v809
      %v4522 = vunpack.c.l.b16 %v810
      %v4523 = vunpack.c.l.b16 %v811
      %v4524 = vunpack.c.l.b16 %v812
      %v4525 = vpack.c.b16 %v4518, %v4517
      %v4526 = vpack.c.b16 %v4520, %v4519
      %v4527 = vpack.c.b16 %v4522, %v4521
      %v4528 = vpack.c.b16 %v4524, %v4523
      %v4534 = vsel %vm981, %v362, 0
      %4536 = vmatprep.subr.bf16.mxu0 0
      %4537 = vmatpush1.bf16.msra.mxu0 0
      %4538 = vmatprep.subr.bf16.mxu0 0
      %4539 = vmatpush1.bf16.msra.mxu0 0
      %4540 = vmatprep.subr.bf16.mxu0 0
      %4541 = vmatpush1.bf16.msra.mxu0 0
      %4542 = vmatprep.subr.bf16.mxu0 0
      %4543 = vmatpush1.bf16.msra.mxu0 0
      %4544 = vmatprep.subr.bf16.mxu0 0
      %4545 = vmatpush1.bf16.msra.mxu0 %v4528
      %4546 = vmatprep.subr.bf16.mxu0 0
      %4547 = vmatpush1.bf16.msra.mxu0 %v4527
      %4548 = vmatprep.subr.bf16.mxu0 0
      %4549 = vmatpush1.bf16.msra.mxu0 %v4526
      %4550 = vmatprep.subr.bf16.mxu0 0
      %4551 = vmatpush1.bf16.msra.mxu0 %v4525
      %4552 = vmatprep.subr.bf16.mxu0 0
      %4553 = vmatpush2.bf16.msra.mxu0 0
      %4554 = vmatprep.subr.bf16.mxu0 0
      %4555 = vmatpush2.bf16.msra.mxu0 0
      %4556 = vmatprep.subr.bf16.mxu0 0
      %4557 = vmatpush2.bf16.msra.mxu0 0
      %4558 = vmatprep.subr.bf16.mxu0 0
      %4559 = vmatpush2.bf16.msra.mxu0 0
      %4560 = vmatprep.subr.bf16.mxu0 0
      %4561 = vmatpush2.bf16.msra.mxu0 0
      %4562 = vmatprep.subr.bf16.mxu0 0
      %4563 = vmatpush2.bf16.msra.mxu0 0
      %4564 = vmatprep.subr.bf16.mxu0 0
      %4565 = vmatpush2.bf16.msra.mxu0 0
      %4566 = vmatprep.subr.bf16.mxu0 0
      %4567 = vmatpush2.bf16.msra.mxu0 0
      %4568 = vmatprep.mubr.bf16.mxu0 0
      %4569 = vmatmul.mubr.bf16.gmra.mxu0 %v4534
      %v4570 = vpop.f32.mrf.mxu0
      %v4571 = vadd.f32 0.0, %v4570
      %v4572 = vpop.f32.mrf.mxu0
      %v4573 = vpop.f32.mrf.mxu0
      %v4574 = vpop.f32.mrf.mxu0
      %4575 = vdwg.mxu0
      %v4584 = vunpack.c.l.b16 %v813
      %v4585 = vunpack.c.l.b16 %v814
      %v4586 = vunpack.c.l.b16 %v815
      %v4587 = vunpack.c.l.b16 %v816
      %v4588 = vunpack.c.l.b16 %v817
      %v4589 = vunpack.c.l.b16 %v818
      %v4590 = vunpack.c.l.b16 %v819
      %v4591 = vunpack.c.l.b16 %v820
      %v4592 = vpack.c.b16 %v4585, %v4584
      %v4593 = vpack.c.b16 %v4587, %v4586
      %v4594 = vpack.c.b16 %v4589, %v4588
      %v4595 = vpack.c.b16 %v4591, %v4590
      %v4601 = vsel %vm981, %v363, 0
      %4603 = vmatprep.subr.bf16.mxu0 0
      %4604 = vmatpush1.bf16.msra.mxu0 0
      %4605 = vmatprep.subr.bf16.mxu0 0
      %4606 = vmatpush1.bf16.msra.mxu0 0
      %4607 = vmatprep.subr.bf16.mxu0 0
      %4608 = vmatpush1.bf16.msra.mxu0 0
      %4609 = vmatprep.subr.bf16.mxu0 0
      %4610 = vmatpush1.bf16.msra.mxu0 0
      %4611 = vmatprep.subr.bf16.mxu0 0
      %4612 = vmatpush1.bf16.msra.mxu0 %v4595
      %4613 = vmatprep.subr.bf16.mxu0 0
      %4614 = vmatpush1.bf16.msra.mxu0 %v4594
      %4615 = vmatprep.subr.bf16.mxu0 0
      %4616 = vmatpush1.bf16.msra.mxu0 %v4593
      %4617 = vmatprep.subr.bf16.mxu0 0
      %4618 = vmatpush1.bf16.msra.mxu0 %v4592
      %4619 = vmatprep.subr.bf16.mxu0 0
      %4620 = vmatpush2.bf16.msra.mxu0 0
      %4621 = vmatprep.subr.bf16.mxu0 0
      %4622 = vmatpush2.bf16.msra.mxu0 0
      %4623 = vmatprep.subr.bf16.mxu0 0
      %4624 = vmatpush2.bf16.msra.mxu0 0
      %4625 = vmatprep.subr.bf16.mxu0 0
      %4626 = vmatpush2.bf16.msra.mxu0 0
      %4627 = vmatprep.subr.bf16.mxu0 0
      %4628 = vmatpush2.bf16.msra.mxu0 0
      %4629 = vmatprep.subr.bf16.mxu0 0
      %4630 = vmatpush2.bf16.msra.mxu0 0
      %4631 = vmatprep.subr.bf16.mxu0 0
      %4632 = vmatpush2.bf16.msra.mxu0 0
      %4633 = vmatprep.subr.bf16.mxu0 0
      %4634 = vmatpush2.bf16.msra.mxu0 0
      %4635 = vmatprep.mubr.bf16.mxu0 0
      %4636 = vmatmul.mubr.bf16.gmra.mxu0 %v4601
      %v4637 = vpop.f32.mrf.mxu0
      %v4638 = vadd.f32 0.0, %v4637
      %v4639 = vpop.f32.mrf.mxu0
      %v4640 = vpop.f32.mrf.mxu0
      %v4641 = vpop.f32.mrf.mxu0
      %4642 = vdwg.mxu0
      %v4651 = vunpack.c.l.b16 %v821
      %v4652 = vunpack.c.l.b16 %v822
      %v4653 = vunpack.c.l.b16 %v823
      %v4654 = vunpack.c.l.b16 %v824
      %v4655 = vunpack.c.l.b16 %v825
      %v4656 = vunpack.c.l.b16 %v826
      %v4657 = vunpack.c.l.b16 %v827
      %v4658 = vunpack.c.l.b16 %v828
      %v4659 = vpack.c.b16 %v4652, %v4651
      %v4660 = vpack.c.b16 %v4654, %v4653
      %v4661 = vpack.c.b16 %v4656, %v4655
      %v4662 = vpack.c.b16 %v4658, %v4657
      %v4668 = vsel %vm981, %v364, 0
      %4670 = vmatprep.subr.bf16.mxu0 0
      %4671 = vmatpush1.bf16.msra.mxu0 0
      %4672 = vmatprep.subr.bf16.mxu0 0
      %4673 = vmatpush1.bf16.msra.mxu0 0
      %4674 = vmatprep.subr.bf16.mxu0 0
      %4675 = vmatpush1.bf16.msra.mxu0 0
      %4676 = vmatprep.subr.bf16.mxu0 0
      %4677 = vmatpush1.bf16.msra.mxu0 0
      %4678 = vmatprep.subr.bf16.mxu0 0
      %4679 = vmatpush1.bf16.msra.mxu0 %v4662
      %4680 = vmatprep.subr.bf16.mxu0 0
      %4681 = vmatpush1.bf16.msra.mxu0 %v4661
      %4682 = vmatprep.subr.bf16.mxu0 0
      %4683 = vmatpush1.bf16.msra.mxu0 %v4660
      %4684 = vmatprep.subr.bf16.mxu0 0
      %4685 = vmatpush1.bf16.msra.mxu0 %v4659
      %4686 = vmatprep.subr.bf16.mxu0 0
      %4687 = vmatpush2.bf16.msra.mxu0 0
      %4688 = vmatprep.subr.bf16.mxu0 0
      %4689 = vmatpush2.bf16.msra.mxu0 0
      %4690 = vmatprep.subr.bf16.mxu0 0
      %4691 = vmatpush2.bf16.msra.mxu0 0
      %4692 = vmatprep.subr.bf16.mxu0 0
      %4693 = vmatpush2.bf16.msra.mxu0 0
      %4694 = vmatprep.subr.bf16.mxu0 0
      %4695 = vmatpush2.bf16.msra.mxu0 0
      %4696 = vmatprep.subr.bf16.mxu0 0
      %4697 = vmatpush2.bf16.msra.mxu0 0
      %4698 = vmatprep.subr.bf16.mxu0 0
      %4699 = vmatpush2.bf16.msra.mxu0 0
      %4700 = vmatprep.subr.bf16.mxu0 0
      %4701 = vmatpush2.bf16.msra.mxu0 0
      %4702 = vmatprep.mubr.bf16.mxu0 0
      %4703 = vmatmul.mubr.bf16.gmra.mxu0 %v4668
      %v4704 = vpop.f32.mrf.mxu0
      %v4705 = vadd.f32 0.0, %v4704
      %v4706 = vpop.f32.mrf.mxu0
      %v4707 = vpop.f32.mrf.mxu0
      %v4708 = vpop.f32.mrf.mxu0
      %4709 = vdwg.mxu0
      %v4718 = vunpack.c.l.b16 %v829
      %v4719 = vunpack.c.l.b16 %v830
      %v4720 = vunpack.c.l.b16 %v831
      %v4721 = vunpack.c.l.b16 %v832
      %v4722 = vunpack.c.l.b16 %v833
      %v4723 = vunpack.c.l.b16 %v834
      %v4724 = vunpack.c.l.b16 %v835
      %v4725 = vunpack.c.l.b16 %v836
      %v4726 = vpack.c.b16 %v4719, %v4718
      %v4727 = vpack.c.b16 %v4721, %v4720
      %v4728 = vpack.c.b16 %v4723, %v4722
      %v4729 = vpack.c.b16 %v4725, %v4724
      %v4735 = vsel %vm981, %v365, 0
      %4737 = vmatprep.subr.bf16.mxu0 0
      %4738 = vmatpush1.bf16.msra.mxu0 0
      %4739 = vmatprep.subr.bf16.mxu0 0
      %4740 = vmatpush1.bf16.msra.mxu0 0
      %4741 = vmatprep.subr.bf16.mxu0 0
      %4742 = vmatpush1.bf16.msra.mxu0 0
      %4743 = vmatprep.subr.bf16.mxu0 0
      %4744 = vmatpush1.bf16.msra.mxu0 0
      %4745 = vmatprep.subr.bf16.mxu0 0
      %4746 = vmatpush1.bf16.msra.mxu0 %v4729
      %4747 = vmatprep.subr.bf16.mxu0 0
      %4748 = vmatpush1.bf16.msra.mxu0 %v4728
      %4749 = vmatprep.subr.bf16.mxu0 0
      %4750 = vmatpush1.bf16.msra.mxu0 %v4727
      %4751 = vmatprep.subr.bf16.mxu0 0
      %4752 = vmatpush1.bf16.msra.mxu0 %v4726
      %4753 = vmatprep.subr.bf16.mxu0 0
      %4754 = vmatpush2.bf16.msra.mxu0 0
      %4755 = vmatprep.subr.bf16.mxu0 0
      %4756 = vmatpush2.bf16.msra.mxu0 0
      %4757 = vmatprep.subr.bf16.mxu0 0
      %4758 = vmatpush2.bf16.msra.mxu0 0
      %4759 = vmatprep.subr.bf16.mxu0 0
      %4760 = vmatpush2.bf16.msra.mxu0 0
      %4761 = vmatprep.subr.bf16.mxu0 0
      %4762 = vmatpush2.bf16.msra.mxu0 0
      %4763 = vmatprep.subr.bf16.mxu0 0
      %4764 = vmatpush2.bf16.msra.mxu0 0
      %4765 = vmatprep.subr.bf16.mxu0 0
      %4766 = vmatpush2.bf16.msra.mxu0 0
      %4767 = vmatprep.subr.bf16.mxu0 0
      %4768 = vmatpush2.bf16.msra.mxu0 0
      %4769 = vmatprep.mubr.bf16.mxu0 0
      %4770 = vmatmul.mubr.bf16.gmra.mxu0 %v4735
      %v4771 = vpop.f32.mrf.mxu0
      %v4772 = vadd.f32 0.0, %v4771
      %v4773 = vpop.f32.mrf.mxu0
      %v4774 = vpop.f32.mrf.mxu0
      %v4775 = vpop.f32.mrf.mxu0
      %4776 = vdwg.mxu0
      %v4785 = vunpack.c.l.b16 %v837
      %v4786 = vunpack.c.l.b16 %v838
      %v4787 = vunpack.c.l.b16 %v839
      %v4788 = vunpack.c.l.b16 %v840
      %v4789 = vunpack.c.l.b16 %v841
      %v4790 = vunpack.c.l.b16 %v842
      %v4791 = vunpack.c.l.b16 %v843
      %v4792 = vunpack.c.l.b16 %v844
      %v4793 = vpack.c.b16 %v4786, %v4785
      %v4794 = vpack.c.b16 %v4788, %v4787
      %v4795 = vpack.c.b16 %v4790, %v4789
      %v4796 = vpack.c.b16 %v4792, %v4791
      %v4802 = vsel %vm981, %v366, 0
      %4804 = vmatprep.subr.bf16.mxu0 0
      %4805 = vmatpush1.bf16.msra.mxu0 0
      %4806 = vmatprep.subr.bf16.mxu0 0
      %4807 = vmatpush1.bf16.msra.mxu0 0
      %4808 = vmatprep.subr.bf16.mxu0 0
      %4809 = vmatpush1.bf16.msra.mxu0 0
      %4810 = vmatprep.subr.bf16.mxu0 0
      %4811 = vmatpush1.bf16.msra.mxu0 0
      %4812 = vmatprep.subr.bf16.mxu0 0
      %4813 = vmatpush1.bf16.msra.mxu0 %v4796
      %4814 = vmatprep.subr.bf16.mxu0 0
      %4815 = vmatpush1.bf16.msra.mxu0 %v4795
      %4816 = vmatprep.subr.bf16.mxu0 0
      %4817 = vmatpush1.bf16.msra.mxu0 %v4794
      %4818 = vmatprep.subr.bf16.mxu0 0
      %4819 = vmatpush1.bf16.msra.mxu0 %v4793
      %4820 = vmatprep.subr.bf16.mxu0 0
      %4821 = vmatpush2.bf16.msra.mxu0 0
      %4822 = vmatprep.subr.bf16.mxu0 0
      %4823 = vmatpush2.bf16.msra.mxu0 0
      %4824 = vmatprep.subr.bf16.mxu0 0
      %4825 = vmatpush2.bf16.msra.mxu0 0
      %4826 = vmatprep.subr.bf16.mxu0 0
      %4827 = vmatpush2.bf16.msra.mxu0 0
      %4828 = vmatprep.subr.bf16.mxu0 0
      %4829 = vmatpush2.bf16.msra.mxu0 0
      %4830 = vmatprep.subr.bf16.mxu0 0
      %4831 = vmatpush2.bf16.msra.mxu0 0
      %4832 = vmatprep.subr.bf16.mxu0 0
      %4833 = vmatpush2.bf16.msra.mxu0 0
      %4834 = vmatprep.subr.bf16.mxu0 0
      %4835 = vmatpush2.bf16.msra.mxu0 0
      %4836 = vmatprep.mubr.bf16.mxu0 0
      %4837 = vmatmul.mubr.bf16.gmra.mxu0 %v4802
      %v4838 = vpop.f32.mrf.mxu0
      %v4839 = vadd.f32 0.0, %v4838
      %v4840 = vpop.f32.mrf.mxu0
      %v4841 = vpop.f32.mrf.mxu0
      %v4842 = vpop.f32.mrf.mxu0
      %4843 = vdwg.mxu0
      %v4852 = vunpack.c.l.b16 %v845
      %v4853 = vunpack.c.l.b16 %v846
      %v4854 = vunpack.c.l.b16 %v847
      %v4855 = vunpack.c.l.b16 %v848
      %v4856 = vunpack.c.l.b16 %v849
      %v4857 = vunpack.c.l.b16 %v850
      %v4858 = vunpack.c.l.b16 %v851
      %v4859 = vunpack.c.l.b16 %v852
      %v4860 = vpack.c.b16 %v4853, %v4852
      %v4861 = vpack.c.b16 %v4855, %v4854
      %v4862 = vpack.c.b16 %v4857, %v4856
      %v4863 = vpack.c.b16 %v4859, %v4858
      %v4869 = vsel %vm981, %v367, 0
      %4871 = vmatprep.subr.bf16.mxu0 0
      %4872 = vmatpush1.bf16.msra.mxu0 0
      %4873 = vmatprep.subr.bf16.mxu0 0
      %4874 = vmatpush1.bf16.msra.mxu0 0
      %4875 = vmatprep.subr.bf16.mxu0 0
      %4876 = vmatpush1.bf16.msra.mxu0 0
      %4877 = vmatprep.subr.bf16.mxu0 0
      %4878 = vmatpush1.bf16.msra.mxu0 0
      %4879 = vmatprep.subr.bf16.mxu0 0
      %4880 = vmatpush1.bf16.msra.mxu0 %v4863
      %4881 = vmatprep.subr.bf16.mxu0 0
      %4882 = vmatpush1.bf16.msra.mxu0 %v4862
      %4883 = vmatprep.subr.bf16.mxu0 0
      %4884 = vmatpush1.bf16.msra.mxu0 %v4861
      %4885 = vmatprep.subr.bf16.mxu0 0
      %4886 = vmatpush1.bf16.msra.mxu0 %v4860
      %4887 = vmatprep.subr.bf16.mxu0 0
      %4888 = vmatpush2.bf16.msra.mxu0 0
      %4889 = vmatprep.subr.bf16.mxu0 0
      %4890 = vmatpush2.bf16.msra.mxu0 0
      %4891 = vmatprep.subr.bf16.mxu0 0
      %4892 = vmatpush2.bf16.msra.mxu0 0
      %4893 = vmatprep.subr.bf16.mxu0 0
      %4894 = vmatpush2.bf16.msra.mxu0 0
      %4895 = vmatprep.subr.bf16.mxu0 0
      %4896 = vmatpush2.bf16.msra.mxu0 0
      %4897 = vmatprep.subr.bf16.mxu0 0
      %4898 = vmatpush2.bf16.msra.mxu0 0
      %4899 = vmatprep.subr.bf16.mxu0 0
      %4900 = vmatpush2.bf16.msra.mxu0 0
      %4901 = vmatprep.subr.bf16.mxu0 0
      %4902 = vmatpush2.bf16.msra.mxu0 0
      %4903 = vmatprep.mubr.bf16.mxu0 0
      %4904 = vmatmul.mubr.bf16.gmra.mxu0 %v4869
      %v4905 = vpop.f32.mrf.mxu0
      %v4906 = vadd.f32 0.0, %v4905
      %v4907 = vpop.f32.mrf.mxu0
      %v4908 = vpop.f32.mrf.mxu0
      %v4909 = vpop.f32.mrf.mxu0
      %4910 = vdwg.mxu0
      %v4919 = vunpack.c.l.b16 %v853
      %v4920 = vunpack.c.l.b16 %v854
      %v4921 = vunpack.c.l.b16 %v855
      %v4922 = vunpack.c.l.b16 %v856
      %v4923 = vunpack.c.l.b16 %v857
      %v4924 = vunpack.c.l.b16 %v858
      %v4925 = vunpack.c.l.b16 %v859
      %v4926 = vunpack.c.l.b16 %v860
      %v4927 = vpack.c.b16 %v4920, %v4919
      %v4928 = vpack.c.b16 %v4922, %v4921
      %v4929 = vpack.c.b16 %v4924, %v4923
      %v4930 = vpack.c.b16 %v4926, %v4925
      %v4936 = vsel %vm981, %v368, 0
      %4938 = vmatprep.subr.bf16.mxu0 0
      %4939 = vmatpush1.bf16.msra.mxu0 0
      %4940 = vmatprep.subr.bf16.mxu0 0
      %4941 = vmatpush1.bf16.msra.mxu0 0
      %4942 = vmatprep.subr.bf16.mxu0 0
      %4943 = vmatpush1.bf16.msra.mxu0 0
      %4944 = vmatprep.subr.bf16.mxu0 0
      %4945 = vmatpush1.bf16.msra.mxu0 0
      %4946 = vmatprep.subr.bf16.mxu0 0
      %4947 = vmatpush1.bf16.msra.mxu0 %v4930
      %4948 = vmatprep.subr.bf16.mxu0 0
      %4949 = vmatpush1.bf16.msra.mxu0 %v4929
      %4950 = vmatprep.subr.bf16.mxu0 0
      %4951 = vmatpush1.bf16.msra.mxu0 %v4928
      %4952 = vmatprep.subr.bf16.mxu0 0
      %4953 = vmatpush1.bf16.msra.mxu0 %v4927
      %4954 = vmatprep.subr.bf16.mxu0 0
      %4955 = vmatpush2.bf16.msra.mxu0 0
      %4956 = vmatprep.subr.bf16.mxu0 0
      %4957 = vmatpush2.bf16.msra.mxu0 0
      %4958 = vmatprep.subr.bf16.mxu0 0
      %4959 = vmatpush2.bf16.msra.mxu0 0
      %4960 = vmatprep.subr.bf16.mxu0 0
      %4961 = vmatpush2.bf16.msra.mxu0 0
      %4962 = vmatprep.subr.bf16.mxu0 0
      %4963 = vmatpush2.bf16.msra.mxu0 0
      %4964 = vmatprep.subr.bf16.mxu0 0
      %4965 = vmatpush2.bf16.msra.mxu0 0
      %4966 = vmatprep.subr.bf16.mxu0 0
      %4967 = vmatpush2.bf16.msra.mxu0 0
      %4968 = vmatprep.subr.bf16.mxu0 0
      %4969 = vmatpush2.bf16.msra.mxu0 0
      %4970 = vmatprep.mubr.bf16.mxu0 0
      %4971 = vmatmul.mubr.bf16.gmra.mxu0 %v4936
      %v4972 = vpop.f32.mrf.mxu0
      %v4973 = vadd.f32 0.0, %v4972
      %v4974 = vpop.f32.mrf.mxu0
      %v4975 = vpop.f32.mrf.mxu0
      %v4976 = vpop.f32.mrf.mxu0
      %4977 = vdwg.mxu0
      %v4986 = vunpack.c.l.b16 %v861
      %v4987 = vunpack.c.l.b16 %v862
      %v4988 = vunpack.c.l.b16 %v863
      %v4989 = vunpack.c.l.b16 %v864
      %v4990 = vunpack.c.l.b16 %v865
      %v4991 = vunpack.c.l.b16 %v866
      %v4992 = vunpack.c.l.b16 %v867
      %v4993 = vunpack.c.l.b16 %v868
      %v4994 = vpack.c.b16 %v4987, %v4986
      %v4995 = vpack.c.b16 %v4989, %v4988
      %v4996 = vpack.c.b16 %v4991, %v4990
      %v4997 = vpack.c.b16 %v4993, %v4992
      %v5003 = vsel %vm981, %v369, 0
      %5005 = vmatprep.subr.bf16.mxu0 0
      %5006 = vmatpush1.bf16.msra.mxu0 0
      %5007 = vmatprep.subr.bf16.mxu0 0
      %5008 = vmatpush1.bf16.msra.mxu0 0
      %5009 = vmatprep.subr.bf16.mxu0 0
      %5010 = vmatpush1.bf16.msra.mxu0 0
      %5011 = vmatprep.subr.bf16.mxu0 0
      %5012 = vmatpush1.bf16.msra.mxu0 0
      %5013 = vmatprep.subr.bf16.mxu0 0
      %5014 = vmatpush1.bf16.msra.mxu0 %v4997
      %5015 = vmatprep.subr.bf16.mxu0 0
      %5016 = vmatpush1.bf16.msra.mxu0 %v4996
      %5017 = vmatprep.subr.bf16.mxu0 0
      %5018 = vmatpush1.bf16.msra.mxu0 %v4995
      %5019 = vmatprep.subr.bf16.mxu0 0
      %5020 = vmatpush1.bf16.msra.mxu0 %v4994
      %5021 = vmatprep.subr.bf16.mxu0 0
      %5022 = vmatpush2.bf16.msra.mxu0 0
      %5023 = vmatprep.subr.bf16.mxu0 0
      %5024 = vmatpush2.bf16.msra.mxu0 0
      %5025 = vmatprep.subr.bf16.mxu0 0
      %5026 = vmatpush2.bf16.msra.mxu0 0
      %5027 = vmatprep.subr.bf16.mxu0 0
      %5028 = vmatpush2.bf16.msra.mxu0 0
      %5029 = vmatprep.subr.bf16.mxu0 0
      %5030 = vmatpush2.bf16.msra.mxu0 0
      %5031 = vmatprep.subr.bf16.mxu0 0
      %5032 = vmatpush2.bf16.msra.mxu0 0
      %5033 = vmatprep.subr.bf16.mxu0 0
      %5034 = vmatpush2.bf16.msra.mxu0 0
      %5035 = vmatprep.subr.bf16.mxu0 0
      %5036 = vmatpush2.bf16.msra.mxu0 0
      %5037 = vmatprep.mubr.bf16.mxu0 0
      %5038 = vmatmul.mubr.bf16.gmra.mxu0 %v5003
      %v5039 = vpop.f32.mrf.mxu0
      %v5040 = vadd.f32 0.0, %v5039
      %v5041 = vpop.f32.mrf.mxu0
      %v5042 = vpop.f32.mrf.mxu0
      %v5043 = vpop.f32.mrf.mxu0
      %5044 = vdwg.mxu0
      %v5053 = vunpack.c.l.b16 %v869
      %v5054 = vunpack.c.l.b16 %v870
      %v5055 = vunpack.c.l.b16 %v871
      %v5056 = vunpack.c.l.b16 %v872
      %v5057 = vunpack.c.l.b16 %v873
      %v5058 = vunpack.c.l.b16 %v874
      %v5059 = vunpack.c.l.b16 %v875
      %v5060 = vunpack.c.l.b16 %v876
      %v5061 = vpack.c.b16 %v5054, %v5053
      %v5062 = vpack.c.b16 %v5056, %v5055
      %v5063 = vpack.c.b16 %v5058, %v5057
      %v5064 = vpack.c.b16 %v5060, %v5059
      %v5070 = vsel %vm981, %v370, 0
      %5072 = vmatprep.subr.bf16.mxu0 0
      %5073 = vmatpush1.bf16.msra.mxu0 0
      %5074 = vmatprep.subr.bf16.mxu0 0
      %5075 = vmatpush1.bf16.msra.mxu0 0
      %5076 = vmatprep.subr.bf16.mxu0 0
      %5077 = vmatpush1.bf16.msra.mxu0 0
      %5078 = vmatprep.subr.bf16.mxu0 0
      %5079 = vmatpush1.bf16.msra.mxu0 0
      %5080 = vmatprep.subr.bf16.mxu0 0
      %5081 = vmatpush1.bf16.msra.mxu0 %v5064
      %5082 = vmatprep.subr.bf16.mxu0 0
      %5083 = vmatpush1.bf16.msra.mxu0 %v5063
      %5084 = vmatprep.subr.bf16.mxu0 0
      %5085 = vmatpush1.bf16.msra.mxu0 %v5062
      %5086 = vmatprep.subr.bf16.mxu0 0
      %5087 = vmatpush1.bf16.msra.mxu0 %v5061
      %5088 = vmatprep.subr.bf16.mxu0 0
      %5089 = vmatpush2.bf16.msra.mxu0 0
      %5090 = vmatprep.subr.bf16.mxu0 0
      %5091 = vmatpush2.bf16.msra.mxu0 0
      %5092 = vmatprep.subr.bf16.mxu0 0
      %5093 = vmatpush2.bf16.msra.mxu0 0
      %5094 = vmatprep.subr.bf16.mxu0 0
      %5095 = vmatpush2.bf16.msra.mxu0 0
      %5096 = vmatprep.subr.bf16.mxu0 0
      %5097 = vmatpush2.bf16.msra.mxu0 0
      %5098 = vmatprep.subr.bf16.mxu0 0
      %5099 = vmatpush2.bf16.msra.mxu0 0
      %5100 = vmatprep.subr.bf16.mxu0 0
      %5101 = vmatpush2.bf16.msra.mxu0 0
      %5102 = vmatprep.subr.bf16.mxu0 0
      %5103 = vmatpush2.bf16.msra.mxu0 0
      %5104 = vmatprep.mubr.bf16.mxu0 0
      %5105 = vmatmul.mubr.bf16.gmra.mxu0 %v5070
      %v5106 = vpop.f32.mrf.mxu0
      %v5107 = vadd.f32 0.0, %v5106
      %v5108 = vpop.f32.mrf.mxu0
      %v5109 = vpop.f32.mrf.mxu0
      %v5110 = vpop.f32.mrf.mxu0
      %5111 = vdwg.mxu0
      %v5120 = vunpack.c.l.b16 %v877
      %v5121 = vunpack.c.l.b16 %v878
      %v5122 = vunpack.c.l.b16 %v879
      %v5123 = vunpack.c.l.b16 %v880
      %v5124 = vunpack.c.l.b16 %v881
      %v5125 = vunpack.c.l.b16 %v882
      %v5126 = vunpack.c.l.b16 %v883
      %v5127 = vunpack.c.l.b16 %v884
      %v5128 = vpack.c.b16 %v5121, %v5120
      %v5129 = vpack.c.b16 %v5123, %v5122
      %v5130 = vpack.c.b16 %v5125, %v5124
      %v5131 = vpack.c.b16 %v5127, %v5126
      %v5137 = vsel %vm981, %v371, 0
      %5139 = vmatprep.subr.bf16.mxu0 0
      %5140 = vmatpush1.bf16.msra.mxu0 0
      %5141 = vmatprep.subr.bf16.mxu0 0
      %5142 = vmatpush1.bf16.msra.mxu0 0
      %5143 = vmatprep.subr.bf16.mxu0 0
      %5144 = vmatpush1.bf16.msra.mxu0 0
      %5145 = vmatprep.subr.bf16.mxu0 0
      %5146 = vmatpush1.bf16.msra.mxu0 0
      %5147 = vmatprep.subr.bf16.mxu0 0
      %5148 = vmatpush1.bf16.msra.mxu0 %v5131
      %5149 = vmatprep.subr.bf16.mxu0 0
      %5150 = vmatpush1.bf16.msra.mxu0 %v5130
      %5151 = vmatprep.subr.bf16.mxu0 0
      %5152 = vmatpush1.bf16.msra.mxu0 %v5129
      %5153 = vmatprep.subr.bf16.mxu0 0
      %5154 = vmatpush1.bf16.msra.mxu0 %v5128
      %5155 = vmatprep.subr.bf16.mxu0 0
      %5156 = vmatpush2.bf16.msra.mxu0 0
      %5157 = vmatprep.subr.bf16.mxu0 0
      %5158 = vmatpush2.bf16.msra.mxu0 0
      %5159 = vmatprep.subr.bf16.mxu0 0
      %5160 = vmatpush2.bf16.msra.mxu0 0
      %5161 = vmatprep.subr.bf16.mxu0 0
      %5162 = vmatpush2.bf16.msra.mxu0 0
      %5163 = vmatprep.subr.bf16.mxu0 0
      %5164 = vmatpush2.bf16.msra.mxu0 0
      %5165 = vmatprep.subr.bf16.mxu0 0
      %5166 = vmatpush2.bf16.msra.mxu0 0
      %5167 = vmatprep.subr.bf16.mxu0 0
      %5168 = vmatpush2.bf16.msra.mxu0 0
      %5169 = vmatprep.subr.bf16.mxu0 0
      %5170 = vmatpush2.bf16.msra.mxu0 0
      %5171 = vmatprep.mubr.bf16.mxu0 0
      %5172 = vmatmul.mubr.bf16.gmra.mxu0 %v5137
      %v5173 = vpop.f32.mrf.mxu0
      %v5174 = vadd.f32 0.0, %v5173
      %v5175 = vpop.f32.mrf.mxu0
      %v5176 = vpop.f32.mrf.mxu0
      %v5177 = vpop.f32.mrf.mxu0
      %5178 = vdwg.mxu0
      %v5187 = vunpack.c.l.b16 %v885
      %v5188 = vunpack.c.l.b16 %v886
      %v5189 = vunpack.c.l.b16 %v887
      %v5190 = vunpack.c.l.b16 %v888
      %v5191 = vunpack.c.l.b16 %v889
      %v5192 = vunpack.c.l.b16 %v890
      %v5193 = vunpack.c.l.b16 %v891
      %v5194 = vunpack.c.l.b16 %v892
      %v5195 = vpack.c.b16 %v5188, %v5187
      %v5196 = vpack.c.b16 %v5190, %v5189
      %v5197 = vpack.c.b16 %v5192, %v5191
      %v5198 = vpack.c.b16 %v5194, %v5193
      %v5204 = vsel %vm981, %v372, 0
      %5206 = vmatprep.subr.bf16.mxu0 0
      %5207 = vmatpush1.bf16.msra.mxu0 0
      %5208 = vmatprep.subr.bf16.mxu0 0
      %5209 = vmatpush1.bf16.msra.mxu0 0
      %5210 = vmatprep.subr.bf16.mxu0 0
      %5211 = vmatpush1.bf16.msra.mxu0 0
      %5212 = vmatprep.subr.bf16.mxu0 0
      %5213 = vmatpush1.bf16.msra.mxu0 0
      %5214 = vmatprep.subr.bf16.mxu0 0
      %5215 = vmatpush1.bf16.msra.mxu0 %v5198
      %5216 = vmatprep.subr.bf16.mxu0 0
      %5217 = vmatpush1.bf16.msra.mxu0 %v5197
      %5218 = vmatprep.subr.bf16.mxu0 0
      %5219 = vmatpush1.bf16.msra.mxu0 %v5196
      %5220 = vmatprep.subr.bf16.mxu0 0
      %5221 = vmatpush1.bf16.msra.mxu0 %v5195
      %5222 = vmatprep.subr.bf16.mxu0 0
      %5223 = vmatpush2.bf16.msra.mxu0 0
      %5224 = vmatprep.subr.bf16.mxu0 0
      %5225 = vmatpush2.bf16.msra.mxu0 0
      %5226 = vmatprep.subr.bf16.mxu0 0
      %5227 = vmatpush2.bf16.msra.mxu0 0
      %5228 = vmatprep.subr.bf16.mxu0 0
      %5229 = vmatpush2.bf16.msra.mxu0 0
      %5230 = vmatprep.subr.bf16.mxu0 0
      %5231 = vmatpush2.bf16.msra.mxu0 0
      %5232 = vmatprep.subr.bf16.mxu0 0
      %5233 = vmatpush2.bf16.msra.mxu0 0
      %5234 = vmatprep.subr.bf16.mxu0 0
      %5235 = vmatpush2.bf16.msra.mxu0 0
      %5236 = vmatprep.subr.bf16.mxu0 0
      %5237 = vmatpush2.bf16.msra.mxu0 0
      %5238 = vmatprep.mubr.bf16.mxu0 0
      %5239 = vmatmul.mubr.bf16.gmra.mxu0 %v5204
      %v5240 = vpop.f32.mrf.mxu0
      %v5241 = vadd.f32 0.0, %v5240
      %v5242 = vpop.f32.mrf.mxu0
      %v5243 = vpop.f32.mrf.mxu0
      %v5244 = vpop.f32.mrf.mxu0
      %5245 = vdwg.mxu0
      %v5254 = vunpack.c.l.b16 %v893
      %v5255 = vunpack.c.l.b16 %v894
      %v5256 = vunpack.c.l.b16 %v895
      %v5257 = vunpack.c.l.b16 %v896
      %v5258 = vunpack.c.l.b16 %v897
      %v5259 = vunpack.c.l.b16 %v898
      %v5260 = vunpack.c.l.b16 %v899
      %v5261 = vunpack.c.l.b16 %v900
      %v5262 = vpack.c.b16 %v5255, %v5254
      %v5263 = vpack.c.b16 %v5257, %v5256
      %v5264 = vpack.c.b16 %v5259, %v5258
      %v5265 = vpack.c.b16 %v5261, %v5260
      %v5271 = vsel %vm981, %v373, 0
      %5273 = vmatprep.subr.bf16.mxu0 0
      %5274 = vmatpush1.bf16.msra.mxu0 0
      %5275 = vmatprep.subr.bf16.mxu0 0
      %5276 = vmatpush1.bf16.msra.mxu0 0
      %5277 = vmatprep.subr.bf16.mxu0 0
      %5278 = vmatpush1.bf16.msra.mxu0 0
      %5279 = vmatprep.subr.bf16.mxu0 0
      %5280 = vmatpush1.bf16.msra.mxu0 0
      %5281 = vmatprep.subr.bf16.mxu0 0
      %5282 = vmatpush1.bf16.msra.mxu0 %v5265
      %5283 = vmatprep.subr.bf16.mxu0 0
      %5284 = vmatpush1.bf16.msra.mxu0 %v5264
      %5285 = vmatprep.subr.bf16.mxu0 0
      %5286 = vmatpush1.bf16.msra.mxu0 %v5263
      %5287 = vmatprep.subr.bf16.mxu0 0
      %5288 = vmatpush1.bf16.msra.mxu0 %v5262
      %5289 = vmatprep.subr.bf16.mxu0 0
      %5290 = vmatpush2.bf16.msra.mxu0 0
      %5291 = vmatprep.subr.bf16.mxu0 0
      %5292 = vmatpush2.bf16.msra.mxu0 0
      %5293 = vmatprep.subr.bf16.mxu0 0
      %5294 = vmatpush2.bf16.msra.mxu0 0
      %5295 = vmatprep.subr.bf16.mxu0 0
      %5296 = vmatpush2.bf16.msra.mxu0 0
      %5297 = vmatprep.subr.bf16.mxu0 0
      %5298 = vmatpush2.bf16.msra.mxu0 0
      %5299 = vmatprep.subr.bf16.mxu0 0
      %5300 = vmatpush2.bf16.msra.mxu0 0
      %5301 = vmatprep.subr.bf16.mxu0 0
      %5302 = vmatpush2.bf16.msra.mxu0 0
      %5303 = vmatprep.subr.bf16.mxu0 0
      %5304 = vmatpush2.bf16.msra.mxu0 0
      %5305 = vmatprep.mubr.bf16.mxu0 0
      %5306 = vmatmul.mubr.bf16.gmra.mxu0 %v5271
      %v5307 = vpop.f32.mrf.mxu0
      %v5308 = vadd.f32 0.0, %v5307
      %v5309 = vpop.f32.mrf.mxu0
      %v5310 = vpop.f32.mrf.mxu0
      %v5311 = vpop.f32.mrf.mxu0
      %5312 = vdwg.mxu0
      %v5321 = vunpack.c.l.b16 %v901
      %v5322 = vunpack.c.l.b16 %v902
      %v5323 = vunpack.c.l.b16 %v903
      %v5324 = vunpack.c.l.b16 %v904
      %v5325 = vunpack.c.l.b16 %v905
      %v5326 = vunpack.c.l.b16 %v906
      %v5327 = vunpack.c.l.b16 %v907
      %v5328 = vunpack.c.l.b16 %v908
      %v5329 = vpack.c.b16 %v5322, %v5321
      %v5330 = vpack.c.b16 %v5324, %v5323
      %v5331 = vpack.c.b16 %v5326, %v5325
      %v5332 = vpack.c.b16 %v5328, %v5327
      %v5338 = vsel %vm981, %v374, 0
      %5340 = vmatprep.subr.bf16.mxu0 0
      %5341 = vmatpush1.bf16.msra.mxu0 0
      %5342 = vmatprep.subr.bf16.mxu0 0
      %5343 = vmatpush1.bf16.msra.mxu0 0
      %5344 = vmatprep.subr.bf16.mxu0 0
      %5345 = vmatpush1.bf16.msra.mxu0 0
      %5346 = vmatprep.subr.bf16.mxu0 0
      %5347 = vmatpush1.bf16.msra.mxu0 0
      %5348 = vmatprep.subr.bf16.mxu0 0
      %5349 = vmatpush1.bf16.msra.mxu0 %v5332
      %5350 = vmatprep.subr.bf16.mxu0 0
      %5351 = vmatpush1.bf16.msra.mxu0 %v5331
      %5352 = vmatprep.subr.bf16.mxu0 0
      %5353 = vmatpush1.bf16.msra.mxu0 %v5330
      %5354 = vmatprep.subr.bf16.mxu0 0
      %5355 = vmatpush1.bf16.msra.mxu0 %v5329
      %5356 = vmatprep.subr.bf16.mxu0 0
      %5357 = vmatpush2.bf16.msra.mxu0 0
      %5358 = vmatprep.subr.bf16.mxu0 0
      %5359 = vmatpush2.bf16.msra.mxu0 0
      %5360 = vmatprep.subr.bf16.mxu0 0
      %5361 = vmatpush2.bf16.msra.mxu0 0
      %5362 = vmatprep.subr.bf16.mxu0 0
      %5363 = vmatpush2.bf16.msra.mxu0 0
      %5364 = vmatprep.subr.bf16.mxu0 0
      %5365 = vmatpush2.bf16.msra.mxu0 0
      %5366 = vmatprep.subr.bf16.mxu0 0
      %5367 = vmatpush2.bf16.msra.mxu0 0
      %5368 = vmatprep.subr.bf16.mxu0 0
      %5369 = vmatpush2.bf16.msra.mxu0 0
      %5370 = vmatprep.subr.bf16.mxu0 0
      %5371 = vmatpush2.bf16.msra.mxu0 0
      %5372 = vmatprep.mubr.bf16.mxu0 0
      %5373 = vmatmul.mubr.bf16.gmra.mxu0 %v5338
      %v5374 = vpop.f32.mrf.mxu0
      %v5375 = vadd.f32 0.0, %v5374
      %v5376 = vpop.f32.mrf.mxu0
      %v5377 = vpop.f32.mrf.mxu0
      %v5378 = vpop.f32.mrf.mxu0
      %5379 = vdwg.mxu0
      %v5388 = vunpack.c.l.b16 %v909
      %v5389 = vunpack.c.l.b16 %v910
      %v5390 = vunpack.c.l.b16 %v911
      %v5391 = vunpack.c.l.b16 %v912
      %v5392 = vunpack.c.l.b16 %v913
      %v5393 = vunpack.c.l.b16 %v914
      %v5394 = vunpack.c.l.b16 %v915
      %v5395 = vunpack.c.l.b16 %v916
      %v5396 = vpack.c.b16 %v5389, %v5388
      %v5397 = vpack.c.b16 %v5391, %v5390
      %v5398 = vpack.c.b16 %v5393, %v5392
      %v5399 = vpack.c.b16 %v5395, %v5394
      %v5405 = vsel %vm981, %v375, 0
      %5407 = vmatprep.subr.bf16.mxu0 0
      %5408 = vmatpush1.bf16.msra.mxu0 0
      %5409 = vmatprep.subr.bf16.mxu0 0
      %5410 = vmatpush1.bf16.msra.mxu0 0
      %5411 = vmatprep.subr.bf16.mxu0 0
      %5412 = vmatpush1.bf16.msra.mxu0 0
      %5413 = vmatprep.subr.bf16.mxu0 0
      %5414 = vmatpush1.bf16.msra.mxu0 0
      %5415 = vmatprep.subr.bf16.mxu0 0
      %5416 = vmatpush1.bf16.msra.mxu0 %v5399
      %5417 = vmatprep.subr.bf16.mxu0 0
      %5418 = vmatpush1.bf16.msra.mxu0 %v5398
      %5419 = vmatprep.subr.bf16.mxu0 0
      %5420 = vmatpush1.bf16.msra.mxu0 %v5397
      %5421 = vmatprep.subr.bf16.mxu0 0
      %5422 = vmatpush1.bf16.msra.mxu0 %v5396
      %5423 = vmatprep.subr.bf16.mxu0 0
      %5424 = vmatpush2.bf16.msra.mxu0 0
      %5425 = vmatprep.subr.bf16.mxu0 0
      %5426 = vmatpush2.bf16.msra.mxu0 0
      %5427 = vmatprep.subr.bf16.mxu0 0
      %5428 = vmatpush2.bf16.msra.mxu0 0
      %5429 = vmatprep.subr.bf16.mxu0 0
      %5430 = vmatpush2.bf16.msra.mxu0 0
      %5431 = vmatprep.subr.bf16.mxu0 0
      %5432 = vmatpush2.bf16.msra.mxu0 0
      %5433 = vmatprep.subr.bf16.mxu0 0
      %5434 = vmatpush2.bf16.msra.mxu0 0
      %5435 = vmatprep.subr.bf16.mxu0 0
      %5436 = vmatpush2.bf16.msra.mxu0 0
      %5437 = vmatprep.subr.bf16.mxu0 0
      %5438 = vmatpush2.bf16.msra.mxu0 0
      %5439 = vmatprep.mubr.bf16.mxu0 0
      %5440 = vmatmul.mubr.bf16.gmra.mxu0 %v5405
      %v5441 = vpop.f32.mrf.mxu0
      %v5442 = vadd.f32 0.0, %v5441
      %v5443 = vpop.f32.mrf.mxu0
      %v5444 = vpop.f32.mrf.mxu0
      %v5445 = vpop.f32.mrf.mxu0
      %5446 = vdwg.mxu0
      %v5455 = vunpack.c.l.b16 %v917
      %v5456 = vunpack.c.l.b16 %v918
      %v5457 = vunpack.c.l.b16 %v919
      %v5458 = vunpack.c.l.b16 %v920
      %v5459 = vunpack.c.l.b16 %v921
      %v5460 = vunpack.c.l.b16 %v922
      %v5461 = vunpack.c.l.b16 %v923
      %v5462 = vunpack.c.l.b16 %v924
      %v5463 = vpack.c.b16 %v5456, %v5455
      %v5464 = vpack.c.b16 %v5458, %v5457
      %v5465 = vpack.c.b16 %v5460, %v5459
      %v5466 = vpack.c.b16 %v5462, %v5461
      %v5472 = vsel %vm981, %v376, 0
      %5474 = vmatprep.subr.bf16.mxu0 0
      %5475 = vmatpush1.bf16.msra.mxu0 0
      %5476 = vmatprep.subr.bf16.mxu0 0
      %5477 = vmatpush1.bf16.msra.mxu0 0
      %5478 = vmatprep.subr.bf16.mxu0 0
      %5479 = vmatpush1.bf16.msra.mxu0 0
      %5480 = vmatprep.subr.bf16.mxu0 0
      %5481 = vmatpush1.bf16.msra.mxu0 0
      %5482 = vmatprep.subr.bf16.mxu0 0
      %5483 = vmatpush1.bf16.msra.mxu0 %v5466
      %5484 = vmatprep.subr.bf16.mxu0 0
      %5485 = vmatpush1.bf16.msra.mxu0 %v5465
      %5486 = vmatprep.subr.bf16.mxu0 0
      %5487 = vmatpush1.bf16.msra.mxu0 %v5464
      %5488 = vmatprep.subr.bf16.mxu0 0
      %5489 = vmatpush1.bf16.msra.mxu0 %v5463
      %5490 = vmatprep.subr.bf16.mxu0 0
      %5491 = vmatpush2.bf16.msra.mxu0 0
      %5492 = vmatprep.subr.bf16.mxu0 0
      %5493 = vmatpush2.bf16.msra.mxu0 0
      %5494 = vmatprep.subr.bf16.mxu0 0
      %5495 = vmatpush2.bf16.msra.mxu0 0
      %5496 = vmatprep.subr.bf16.mxu0 0
      %5497 = vmatpush2.bf16.msra.mxu0 0
      %5498 = vmatprep.subr.bf16.mxu0 0
      %5499 = vmatpush2.bf16.msra.mxu0 0
      %5500 = vmatprep.subr.bf16.mxu0 0
      %5501 = vmatpush2.bf16.msra.mxu0 0
      %5502 = vmatprep.subr.bf16.mxu0 0
      %5503 = vmatpush2.bf16.msra.mxu0 0
      %5504 = vmatprep.subr.bf16.mxu0 0
      %5505 = vmatpush2.bf16.msra.mxu0 0
      %5506 = vmatprep.mubr.bf16.mxu0 0
      %5507 = vmatmul.mubr.bf16.gmra.mxu0 %v5472
      %v5508 = vpop.f32.mrf.mxu0
      %v5509 = vadd.f32 0.0, %v5508
      %v5510 = vpop.f32.mrf.mxu0
      %v5511 = vpop.f32.mrf.mxu0
      %v5512 = vpop.f32.mrf.mxu0
      %5513 = vdwg.mxu0
      %v5522 = vunpack.c.l.b16 %v925
      %v5523 = vunpack.c.l.b16 %v926
      %v5524 = vunpack.c.l.b16 %v927
      %v5525 = vunpack.c.l.b16 %v928
      %v5526 = vunpack.c.l.b16 %v929
      %v5527 = vunpack.c.l.b16 %v930
      %v5528 = vunpack.c.l.b16 %v931
      %v5529 = vunpack.c.l.b16 %v932
      %v5530 = vpack.c.b16 %v5523, %v5522
      %v5531 = vpack.c.b16 %v5525, %v5524
      %v5532 = vpack.c.b16 %v5527, %v5526
      %v5533 = vpack.c.b16 %v5529, %v5528
      %v5539 = vsel %vm981, %v377, 0
      %5541 = vmatprep.subr.bf16.mxu0 0
      %5542 = vmatpush1.bf16.msra.mxu0 0
      %5543 = vmatprep.subr.bf16.mxu0 0
      %5544 = vmatpush1.bf16.msra.mxu0 0
      %5545 = vmatprep.subr.bf16.mxu0 0
      %5546 = vmatpush1.bf16.msra.mxu0 0
      %5547 = vmatprep.subr.bf16.mxu0 0
      %5548 = vmatpush1.bf16.msra.mxu0 0
      %5549 = vmatprep.subr.bf16.mxu0 0
      %5550 = vmatpush1.bf16.msra.mxu0 %v5533
      %5551 = vmatprep.subr.bf16.mxu0 0
      %5552 = vmatpush1.bf16.msra.mxu0 %v5532
      %5553 = vmatprep.subr.bf16.mxu0 0
      %5554 = vmatpush1.bf16.msra.mxu0 %v5531
      %5555 = vmatprep.subr.bf16.mxu0 0
      %5556 = vmatpush1.bf16.msra.mxu0 %v5530
      %5557 = vmatprep.subr.bf16.mxu0 0
      %5558 = vmatpush2.bf16.msra.mxu0 0
      %5559 = vmatprep.subr.bf16.mxu0 0
      %5560 = vmatpush2.bf16.msra.mxu0 0
      %5561 = vmatprep.subr.bf16.mxu0 0
      %5562 = vmatpush2.bf16.msra.mxu0 0
      %5563 = vmatprep.subr.bf16.mxu0 0
      %5564 = vmatpush2.bf16.msra.mxu0 0
      %5565 = vmatprep.subr.bf16.mxu0 0
      %5566 = vmatpush2.bf16.msra.mxu0 0
      %5567 = vmatprep.subr.bf16.mxu0 0
      %5568 = vmatpush2.bf16.msra.mxu0 0
      %5569 = vmatprep.subr.bf16.mxu0 0
      %5570 = vmatpush2.bf16.msra.mxu0 0
      %5571 = vmatprep.subr.bf16.mxu0 0
      %5572 = vmatpush2.bf16.msra.mxu0 0
      %5573 = vmatprep.mubr.bf16.mxu0 0
      %5574 = vmatmul.mubr.bf16.gmra.mxu0 %v5539
      %v5575 = vpop.f32.mrf.mxu0
      %v5576 = vadd.f32 0.0, %v5575
      %v5577 = vpop.f32.mrf.mxu0
      %v5578 = vpop.f32.mrf.mxu0
      %v5579 = vpop.f32.mrf.mxu0
      %5580 = vdwg.mxu0
      %v5589 = vunpack.c.l.b16 %v933
      %v5590 = vunpack.c.l.b16 %v934
      %v5591 = vunpack.c.l.b16 %v935
      %v5592 = vunpack.c.l.b16 %v936
      %v5593 = vunpack.c.l.b16 %v937
      %v5594 = vunpack.c.l.b16 %v938
      %v5595 = vunpack.c.l.b16 %v939
      %v5596 = vunpack.c.l.b16 %v940
      %v5597 = vpack.c.b16 %v5590, %v5589
      %v5598 = vpack.c.b16 %v5592, %v5591
      %v5599 = vpack.c.b16 %v5594, %v5593
      %v5600 = vpack.c.b16 %v5596, %v5595
      %v5606 = vsel %vm981, %v378, 0
      %5608 = vmatprep.subr.bf16.mxu0 0
      %5609 = vmatpush1.bf16.msra.mxu0 0
      %5610 = vmatprep.subr.bf16.mxu0 0
      %5611 = vmatpush1.bf16.msra.mxu0 0
      %5612 = vmatprep.subr.bf16.mxu0 0
      %5613 = vmatpush1.bf16.msra.mxu0 0
      %5614 = vmatprep.subr.bf16.mxu0 0
      %5615 = vmatpush1.bf16.msra.mxu0 0
      %5616 = vmatprep.subr.bf16.mxu0 0
      %5617 = vmatpush1.bf16.msra.mxu0 %v5600
      %5618 = vmatprep.subr.bf16.mxu0 0
      %5619 = vmatpush1.bf16.msra.mxu0 %v5599
      %5620 = vmatprep.subr.bf16.mxu0 0
      %5621 = vmatpush1.bf16.msra.mxu0 %v5598
      %5622 = vmatprep.subr.bf16.mxu0 0
      %5623 = vmatpush1.bf16.msra.mxu0 %v5597
      %5624 = vmatprep.subr.bf16.mxu0 0
      %5625 = vmatpush2.bf16.msra.mxu0 0
      %5626 = vmatprep.subr.bf16.mxu0 0
      %5627 = vmatpush2.bf16.msra.mxu0 0
      %5628 = vmatprep.subr.bf16.mxu0 0
      %5629 = vmatpush2.bf16.msra.mxu0 0
      %5630 = vmatprep.subr.bf16.mxu0 0
      %5631 = vmatpush2.bf16.msra.mxu0 0
      %5632 = vmatprep.subr.bf16.mxu0 0
      %5633 = vmatpush2.bf16.msra.mxu0 0
      %5634 = vmatprep.subr.bf16.mxu0 0
      %5635 = vmatpush2.bf16.msra.mxu0 0
      %5636 = vmatprep.subr.bf16.mxu0 0
      %5637 = vmatpush2.bf16.msra.mxu0 0
      %5638 = vmatprep.subr.bf16.mxu0 0
      %5639 = vmatpush2.bf16.msra.mxu0 0
      %5640 = vmatprep.mubr.bf16.mxu0 0
      %5641 = vmatmul.mubr.bf16.gmra.mxu0 %v5606
      %v5642 = vpop.f32.mrf.mxu0
      %v5643 = vadd.f32 0.0, %v5642
      %v5644 = vpop.f32.mrf.mxu0
      %v5645 = vpop.f32.mrf.mxu0
      %v5646 = vpop.f32.mrf.mxu0
      %5647 = vdwg.mxu0
      %v5656 = vunpack.c.l.b16 %v941
      %v5657 = vunpack.c.l.b16 %v942
      %v5658 = vunpack.c.l.b16 %v943
      %v5659 = vunpack.c.l.b16 %v944
      %v5660 = vunpack.c.l.b16 %v945
      %v5661 = vunpack.c.l.b16 %v946
      %v5662 = vunpack.c.l.b16 %v947
      %v5663 = vunpack.c.l.b16 %v948
      %v5664 = vpack.c.b16 %v5657, %v5656
      %v5665 = vpack.c.b16 %v5659, %v5658
      %v5666 = vpack.c.b16 %v5661, %v5660
      %v5667 = vpack.c.b16 %v5663, %v5662
      %v5673 = vsel %vm981, %v379, 0
      %5675 = vmatprep.subr.bf16.mxu0 0
      %5676 = vmatpush1.bf16.msra.mxu0 0
      %5677 = vmatprep.subr.bf16.mxu0 0
      %5678 = vmatpush1.bf16.msra.mxu0 0
      %5679 = vmatprep.subr.bf16.mxu0 0
      %5680 = vmatpush1.bf16.msra.mxu0 0
      %5681 = vmatprep.subr.bf16.mxu0 0
      %5682 = vmatpush1.bf16.msra.mxu0 0
      %5683 = vmatprep.subr.bf16.mxu0 0
      %5684 = vmatpush1.bf16.msra.mxu0 %v5667
      %5685 = vmatprep.subr.bf16.mxu0 0
      %5686 = vmatpush1.bf16.msra.mxu0 %v5666
      %5687 = vmatprep.subr.bf16.mxu0 0
      %5688 = vmatpush1.bf16.msra.mxu0 %v5665
      %5689 = vmatprep.subr.bf16.mxu0 0
      %5690 = vmatpush1.bf16.msra.mxu0 %v5664
      %5691 = vmatprep.subr.bf16.mxu0 0
      %5692 = vmatpush2.bf16.msra.mxu0 0
      %5693 = vmatprep.subr.bf16.mxu0 0
      %5694 = vmatpush2.bf16.msra.mxu0 0
      %5695 = vmatprep.subr.bf16.mxu0 0
      %5696 = vmatpush2.bf16.msra.mxu0 0
      %5697 = vmatprep.subr.bf16.mxu0 0
      %5698 = vmatpush2.bf16.msra.mxu0 0
      %5699 = vmatprep.subr.bf16.mxu0 0
      %5700 = vmatpush2.bf16.msra.mxu0 0
      %5701 = vmatprep.subr.bf16.mxu0 0
      %5702 = vmatpush2.bf16.msra.mxu0 0
      %5703 = vmatprep.subr.bf16.mxu0 0
      %5704 = vmatpush2.bf16.msra.mxu0 0
      %5705 = vmatprep.subr.bf16.mxu0 0
      %5706 = vmatpush2.bf16.msra.mxu0 0
      %5707 = vmatprep.mubr.bf16.mxu0 0
      %5708 = vmatmul.mubr.bf16.gmra.mxu0 %v5673
      %v5709 = vpop.f32.mrf.mxu0
      %v5710 = vadd.f32 0.0, %v5709
      %v5711 = vpop.f32.mrf.mxu0
      %v5712 = vpop.f32.mrf.mxu0
      %v5713 = vpop.f32.mrf.mxu0
      %5714 = vdwg.mxu0
      %v5723 = vunpack.c.l.b16 %v949
      %v5724 = vunpack.c.l.b16 %v950
      %v5725 = vunpack.c.l.b16 %v951
      %v5726 = vunpack.c.l.b16 %v952
      %v5727 = vunpack.c.l.b16 %v953
      %v5728 = vunpack.c.l.b16 %v954
      %v5729 = vunpack.c.l.b16 %v955
      %v5730 = vunpack.c.l.b16 %v956
      %v5731 = vpack.c.b16 %v5724, %v5723
      %v5732 = vpack.c.b16 %v5726, %v5725
      %v5733 = vpack.c.b16 %v5728, %v5727
      %v5734 = vpack.c.b16 %v5730, %v5729
      %v5740 = vsel %vm981, %v380, 0
      %5742 = vmatprep.subr.bf16.mxu0 0
      %5743 = vmatpush1.bf16.msra.mxu0 0
      %5744 = vmatprep.subr.bf16.mxu0 0
      %5745 = vmatpush1.bf16.msra.mxu0 0
      %5746 = vmatprep.subr.bf16.mxu0 0
      %5747 = vmatpush1.bf16.msra.mxu0 0
      %5748 = vmatprep.subr.bf16.mxu0 0
      %5749 = vmatpush1.bf16.msra.mxu0 0
      %5750 = vmatprep.subr.bf16.mxu0 0
      %5751 = vmatpush1.bf16.msra.mxu0 %v5734
      %5752 = vmatprep.subr.bf16.mxu0 0
      %5753 = vmatpush1.bf16.msra.mxu0 %v5733
      %5754 = vmatprep.subr.bf16.mxu0 0
      %5755 = vmatpush1.bf16.msra.mxu0 %v5732
      %5756 = vmatprep.subr.bf16.mxu0 0
      %5757 = vmatpush1.bf16.msra.mxu0 %v5731
      %5758 = vmatprep.subr.bf16.mxu0 0
      %5759 = vmatpush2.bf16.msra.mxu0 0
      %5760 = vmatprep.subr.bf16.mxu0 0
      %5761 = vmatpush2.bf16.msra.mxu0 0
      %5762 = vmatprep.subr.bf16.mxu0 0
      %5763 = vmatpush2.bf16.msra.mxu0 0
      %5764 = vmatprep.subr.bf16.mxu0 0
      %5765 = vmatpush2.bf16.msra.mxu0 0
      %5766 = vmatprep.subr.bf16.mxu0 0
      %5767 = vmatpush2.bf16.msra.mxu0 0
      %5768 = vmatprep.subr.bf16.mxu0 0
      %5769 = vmatpush2.bf16.msra.mxu0 0
      %5770 = vmatprep.subr.bf16.mxu0 0
      %5771 = vmatpush2.bf16.msra.mxu0 0
      %5772 = vmatprep.subr.bf16.mxu0 0
      %5773 = vmatpush2.bf16.msra.mxu0 0
      %5774 = vmatprep.mubr.bf16.mxu0 0
      %5775 = vmatmul.mubr.bf16.gmra.mxu0 %v5740
      %v5776 = vpop.f32.mrf.mxu0
      %v5777 = vadd.f32 0.0, %v5776
      %v5778 = vpop.f32.mrf.mxu0
      %v5779 = vpop.f32.mrf.mxu0
      %v5780 = vpop.f32.mrf.mxu0
      %5781 = vdwg.mxu0
      %5782 = vmatprep.subr.bf16.mxu0 0
      %5783 = vmatpush1.bf16.msra.mxu0 0
      %5784 = vmatprep.subr.bf16.mxu0 0
      %5785 = vmatpush1.bf16.msra.mxu0 0
      %5786 = vmatprep.subr.bf16.mxu0 0
      %5787 = vmatpush1.bf16.msra.mxu0 0
      %5788 = vmatprep.subr.bf16.mxu0 0
      %5789 = vmatpush1.bf16.msra.mxu0 0
      %5790 = vmatprep.subr.bf16.mxu0 0
      %5791 = vmatpush1.bf16.msra.mxu0 %v976
      %5792 = vmatprep.subr.bf16.mxu0 0
      %5793 = vmatpush1.bf16.msra.mxu0 %v975
      %5794 = vmatprep.subr.bf16.mxu0 0
      %5795 = vmatpush1.bf16.msra.mxu0 %v974
      %5796 = vmatprep.subr.bf16.mxu0 0
      %5797 = vmatpush1.bf16.msra.mxu0 %v973
      %5798 = vmatprep.subr.bf16.mxu0 0
      %5799 = vmatpush2.bf16.msra.mxu0 0
      %5800 = vmatprep.subr.bf16.mxu0 0
      %5801 = vmatpush2.bf16.msra.mxu0 0
      %5802 = vmatprep.subr.bf16.mxu0 0
      %5803 = vmatpush2.bf16.msra.mxu0 0
      %5804 = vmatprep.subr.bf16.mxu0 0
      %5805 = vmatpush2.bf16.msra.mxu0 0
      %5806 = vmatprep.subr.bf16.mxu0 0
      %5807 = vmatpush2.bf16.msra.mxu0 0
      %5808 = vmatprep.subr.bf16.mxu0 0
      %5809 = vmatpush2.bf16.msra.mxu0 0
      %5810 = vmatprep.subr.bf16.mxu0 0
      %5811 = vmatpush2.bf16.msra.mxu0 0
      %5812 = vmatprep.subr.bf16.mxu0 0
      %5813 = vmatpush2.bf16.msra.mxu0 0
      %5814 = vmatprep.mubr.bf16.mxu0 0
      %5815 = vmatmul.mubr.bf16.gmra.mxu0 %v3395
      %v5816 = vpop.f32.mrf.mxu0
      %v5817 = vadd.f32 0.0, %v5816
      %v5818 = vpop.f32.mrf.mxu0
      %v5819 = vpop.f32.mrf.mxu0
      %v5820 = vpop.f32.mrf.mxu0
      %5821 = vdwg.mxu0
      %5822 = vmatprep.subr.bf16.mxu0 0
      %5823 = vmatpush1.bf16.msra.mxu0 0
      %5824 = vmatprep.subr.bf16.mxu0 0
      %5825 = vmatpush1.bf16.msra.mxu0 0
      %5826 = vmatprep.subr.bf16.mxu0 0
      %5827 = vmatpush1.bf16.msra.mxu0 0
      %5828 = vmatprep.subr.bf16.mxu0 0
      %5829 = vmatpush1.bf16.msra.mxu0 0
      %5830 = vmatprep.subr.bf16.mxu0 0
      %5831 = vmatpush1.bf16.msra.mxu0 %v1044
      %5832 = vmatprep.subr.bf16.mxu0 0
      %5833 = vmatpush1.bf16.msra.mxu0 %v1043
      %5834 = vmatprep.subr.bf16.mxu0 0
      %5835 = vmatpush1.bf16.msra.mxu0 %v1042
      %5836 = vmatprep.subr.bf16.mxu0 0
      %5837 = vmatpush1.bf16.msra.mxu0 %v1041
      %5838 = vmatprep.subr.bf16.mxu0 0
      %5839 = vmatpush2.bf16.msra.mxu0 0
      %5840 = vmatprep.subr.bf16.mxu0 0
      %5841 = vmatpush2.bf16.msra.mxu0 0
      %5842 = vmatprep.subr.bf16.mxu0 0
      %5843 = vmatpush2.bf16.msra.mxu0 0
      %5844 = vmatprep.subr.bf16.mxu0 0
      %5845 = vmatpush2.bf16.msra.mxu0 0
      %5846 = vmatprep.subr.bf16.mxu0 0
      %5847 = vmatpush2.bf16.msra.mxu0 0
      %5848 = vmatprep.subr.bf16.mxu0 0
      %5849 = vmatpush2.bf16.msra.mxu0 0
      %5850 = vmatprep.subr.bf16.mxu0 0
      %5851 = vmatpush2.bf16.msra.mxu0 0
      %5852 = vmatprep.subr.bf16.mxu0 0
      %5853 = vmatpush2.bf16.msra.mxu0 0
      %5854 = vmatprep.mubr.bf16.mxu0 0
      %5855 = vmatmul.mubr.bf16.gmra.mxu0 %v3462
      %v5856 = vpop.f32.mrf.mxu0
      %v5857 = vadd.f32 0.0, %v5856
      %v5858 = vpop.f32.mrf.mxu0
      %v5859 = vpop.f32.mrf.mxu0
      %v5860 = vpop.f32.mrf.mxu0
      %5861 = vdwg.mxu0
      %5862 = vmatprep.subr.bf16.mxu0 0
      %5863 = vmatpush1.bf16.msra.mxu0 0
      %5864 = vmatprep.subr.bf16.mxu0 0
      %5865 = vmatpush1.bf16.msra.mxu0 0
      %5866 = vmatprep.subr.bf16.mxu0 0
      %5867 = vmatpush1.bf16.msra.mxu0 0
      %5868 = vmatprep.subr.bf16.mxu0 0
      %5869 = vmatpush1.bf16.msra.mxu0 0
      %5870 = vmatprep.subr.bf16.mxu0 0
      %5871 = vmatpush1.bf16.msra.mxu0 %v1111
      %5872 = vmatprep.subr.bf16.mxu0 0
      %5873 = vmatpush1.bf16.msra.mxu0 %v1110
      %5874 = vmatprep.subr.bf16.mxu0 0
      %5875 = vmatpush1.bf16.msra.mxu0 %v1109
      %5876 = vmatprep.subr.bf16.mxu0 0
      %5877 = vmatpush1.bf16.msra.mxu0 %v1108
      %5878 = vmatprep.subr.bf16.mxu0 0
      %5879 = vmatpush2.bf16.msra.mxu0 0
      %5880 = vmatprep.subr.bf16.mxu0 0
      %5881 = vmatpush2.bf16.msra.mxu0 0
      %5882 = vmatprep.subr.bf16.mxu0 0
      %5883 = vmatpush2.bf16.msra.mxu0 0
      %5884 = vmatprep.subr.bf16.mxu0 0
      %5885 = vmatpush2.bf16.msra.mxu0 0
      %5886 = vmatprep.subr.bf16.mxu0 0
      %5887 = vmatpush2.bf16.msra.mxu0 0
      %5888 = vmatprep.subr.bf16.mxu0 0
      %5889 = vmatpush2.bf16.msra.mxu0 0
      %5890 = vmatprep.subr.bf16.mxu0 0
      %5891 = vmatpush2.bf16.msra.mxu0 0
      %5892 = vmatprep.subr.bf16.mxu0 0
      %5893 = vmatpush2.bf16.msra.mxu0 0
      %5894 = vmatprep.mubr.bf16.mxu0 0
      %5895 = vmatmul.mubr.bf16.gmra.mxu0 %v3529
      %v5896 = vpop.f32.mrf.mxu0
      %v5897 = vadd.f32 0.0, %v5896
      %v5898 = vpop.f32.mrf.mxu0
      %v5899 = vpop.f32.mrf.mxu0
      %v5900 = vpop.f32.mrf.mxu0
      %5901 = vdwg.mxu0
      %5902 = vmatprep.subr.bf16.mxu0 0
      %5903 = vmatpush1.bf16.msra.mxu0 0
      %5904 = vmatprep.subr.bf16.mxu0 0
      %5905 = vmatpush1.bf16.msra.mxu0 0
      %5906 = vmatprep.subr.bf16.mxu0 0
      %5907 = vmatpush1.bf16.msra.mxu0 0
      %5908 = vmatprep.subr.bf16.mxu0 0
      %5909 = vmatpush1.bf16.msra.mxu0 0
      %5910 = vmatprep.subr.bf16.mxu0 0
      %5911 = vmatpush1.bf16.msra.mxu0 %v1178
      %5912 = vmatprep.subr.bf16.mxu0 0
      %5913 = vmatpush1.bf16.msra.mxu0 %v1177
      %5914 = vmatprep.subr.bf16.mxu0 0
      %5915 = vmatpush1.bf16.msra.mxu0 %v1176
      %5916 = vmatprep.subr.bf16.mxu0 0
      %5917 = vmatpush1.bf16.msra.mxu0 %v1175
      %5918 = vmatprep.subr.bf16.mxu0 0
      %5919 = vmatpush2.bf16.msra.mxu0 0
      %5920 = vmatprep.subr.bf16.mxu0 0
      %5921 = vmatpush2.bf16.msra.mxu0 0
      %5922 = vmatprep.subr.bf16.mxu0 0
      %5923 = vmatpush2.bf16.msra.mxu0 0
      %5924 = vmatprep.subr.bf16.mxu0 0
      %5925 = vmatpush2.bf16.msra.mxu0 0
      %5926 = vmatprep.subr.bf16.mxu0 0
      %5927 = vmatpush2.bf16.msra.mxu0 0
      %5928 = vmatprep.subr.bf16.mxu0 0
      %5929 = vmatpush2.bf16.msra.mxu0 0
      %5930 = vmatprep.subr.bf16.mxu0 0
      %5931 = vmatpush2.bf16.msra.mxu0 0
      %5932 = vmatprep.subr.bf16.mxu0 0
      %5933 = vmatpush2.bf16.msra.mxu0 0
      %5934 = vmatprep.mubr.bf16.mxu0 0
      %5935 = vmatmul.mubr.bf16.gmra.mxu0 %v3596
      %v5936 = vpop.f32.mrf.mxu0
      %v5937 = vadd.f32 0.0, %v5936
      %v5938 = vpop.f32.mrf.mxu0
      %v5939 = vpop.f32.mrf.mxu0
      %v5940 = vpop.f32.mrf.mxu0
      %5941 = vdwg.mxu0
      %5942 = vmatprep.subr.bf16.mxu0 0
      %5943 = vmatpush1.bf16.msra.mxu0 0
      %5944 = vmatprep.subr.bf16.mxu0 0
      %5945 = vmatpush1.bf16.msra.mxu0 0
      %5946 = vmatprep.subr.bf16.mxu0 0
      %5947 = vmatpush1.bf16.msra.mxu0 0
      %5948 = vmatprep.subr.bf16.mxu0 0
      %5949 = vmatpush1.bf16.msra.mxu0 0
      %5950 = vmatprep.subr.bf16.mxu0 0
      %5951 = vmatpush1.bf16.msra.mxu0 %v1245
      %5952 = vmatprep.subr.bf16.mxu0 0
      %5953 = vmatpush1.bf16.msra.mxu0 %v1244
      %5954 = vmatprep.subr.bf16.mxu0 0
      %5955 = vmatpush1.bf16.msra.mxu0 %v1243
      %5956 = vmatprep.subr.bf16.mxu0 0
      %5957 = vmatpush1.bf16.msra.mxu0 %v1242
      %5958 = vmatprep.subr.bf16.mxu0 0
      %5959 = vmatpush2.bf16.msra.mxu0 0
      %5960 = vmatprep.subr.bf16.mxu0 0
      %5961 = vmatpush2.bf16.msra.mxu0 0
      %5962 = vmatprep.subr.bf16.mxu0 0
      %5963 = vmatpush2.bf16.msra.mxu0 0
      %5964 = vmatprep.subr.bf16.mxu0 0
      %5965 = vmatpush2.bf16.msra.mxu0 0
      %5966 = vmatprep.subr.bf16.mxu0 0
      %5967 = vmatpush2.bf16.msra.mxu0 0
      %5968 = vmatprep.subr.bf16.mxu0 0
      %5969 = vmatpush2.bf16.msra.mxu0 0
      %5970 = vmatprep.subr.bf16.mxu0 0
      %5971 = vmatpush2.bf16.msra.mxu0 0
      %5972 = vmatprep.subr.bf16.mxu0 0
      %5973 = vmatpush2.bf16.msra.mxu0 0
      %5974 = vmatprep.mubr.bf16.mxu0 0
      %5975 = vmatmul.mubr.bf16.gmra.mxu0 %v3663
      %v5976 = vpop.f32.mrf.mxu0
      %v5977 = vadd.f32 0.0, %v5976
      %v5978 = vpop.f32.mrf.mxu0
      %v5979 = vpop.f32.mrf.mxu0
      %v5980 = vpop.f32.mrf.mxu0
      %5981 = vdwg.mxu0
      %5982 = vmatprep.subr.bf16.mxu0 0
      %5983 = vmatpush1.bf16.msra.mxu0 0
      %5984 = vmatprep.subr.bf16.mxu0 0
      %5985 = vmatpush1.bf16.msra.mxu0 0
      %5986 = vmatprep.subr.bf16.mxu0 0
      %5987 = vmatpush1.bf16.msra.mxu0 0
      %5988 = vmatprep.subr.bf16.mxu0 0
      %5989 = vmatpush1.bf16.msra.mxu0 0
      %5990 = vmatprep.subr.bf16.mxu0 0
      %5991 = vmatpush1.bf16.msra.mxu0 %v1312
      %5992 = vmatprep.subr.bf16.mxu0 0
      %5993 = vmatpush1.bf16.msra.mxu0 %v1311
      %5994 = vmatprep.subr.bf16.mxu0 0
      %5995 = vmatpush1.bf16.msra.mxu0 %v1310
      %5996 = vmatprep.subr.bf16.mxu0 0
      %5997 = vmatpush1.bf16.msra.mxu0 %v1309
      %5998 = vmatprep.subr.bf16.mxu0 0
      %5999 = vmatpush2.bf16.msra.mxu0 0
      %6000 = vmatprep.subr.bf16.mxu0 0
      %6001 = vmatpush2.bf16.msra.mxu0 0
      %6002 = vmatprep.subr.bf16.mxu0 0
      %6003 = vmatpush2.bf16.msra.mxu0 0
      %6004 = vmatprep.subr.bf16.mxu0 0
      %6005 = vmatpush2.bf16.msra.mxu0 0
      %6006 = vmatprep.subr.bf16.mxu0 0
      %6007 = vmatpush2.bf16.msra.mxu0 0
      %6008 = vmatprep.subr.bf16.mxu0 0
      %6009 = vmatpush2.bf16.msra.mxu0 0
      %6010 = vmatprep.subr.bf16.mxu0 0
      %6011 = vmatpush2.bf16.msra.mxu0 0
      %6012 = vmatprep.subr.bf16.mxu0 0
      %6013 = vmatpush2.bf16.msra.mxu0 0
      %6014 = vmatprep.mubr.bf16.mxu0 0
      %6015 = vmatmul.mubr.bf16.gmra.mxu0 %v3730
      %v6016 = vpop.f32.mrf.mxu0
      %v6017 = vadd.f32 0.0, %v6016
      %v6018 = vpop.f32.mrf.mxu0
      %v6019 = vpop.f32.mrf.mxu0
      %v6020 = vpop.f32.mrf.mxu0
      %6021 = vdwg.mxu0
      %6022 = vmatprep.subr.bf16.mxu0 0
      %6023 = vmatpush1.bf16.msra.mxu0 0
      %6024 = vmatprep.subr.bf16.mxu0 0
      %6025 = vmatpush1.bf16.msra.mxu0 0
      %6026 = vmatprep.subr.bf16.mxu0 0
      %6027 = vmatpush1.bf16.msra.mxu0 0
      %6028 = vmatprep.subr.bf16.mxu0 0
      %6029 = vmatpush1.bf16.msra.mxu0 0
      %6030 = vmatprep.subr.bf16.mxu0 0
      %6031 = vmatpush1.bf16.msra.mxu0 %v1379
      %6032 = vmatprep.subr.bf16.mxu0 0
      %6033 = vmatpush1.bf16.msra.mxu0 %v1378
      %6034 = vmatprep.subr.bf16.mxu0 0
      %6035 = vmatpush1.bf16.msra.mxu0 %v1377
      %6036 = vmatprep.subr.bf16.mxu0 0
      %6037 = vmatpush1.bf16.msra.mxu0 %v1376
      %6038 = vmatprep.subr.bf16.mxu0 0
      %6039 = vmatpush2.bf16.msra.mxu0 0
      %6040 = vmatprep.subr.bf16.mxu0 0
      %6041 = vmatpush2.bf16.msra.mxu0 0
      %6042 = vmatprep.subr.bf16.mxu0 0
      %6043 = vmatpush2.bf16.msra.mxu0 0
      %6044 = vmatprep.subr.bf16.mxu0 0
      %6045 = vmatpush2.bf16.msra.mxu0 0
      %6046 = vmatprep.subr.bf16.mxu0 0
      %6047 = vmatpush2.bf16.msra.mxu0 0
      %6048 = vmatprep.subr.bf16.mxu0 0
      %6049 = vmatpush2.bf16.msra.mxu0 0
      %6050 = vmatprep.subr.bf16.mxu0 0
      %6051 = vmatpush2.bf16.msra.mxu0 0
      %6052 = vmatprep.subr.bf16.mxu0 0
      %6053 = vmatpush2.bf16.msra.mxu0 0
      %6054 = vmatprep.mubr.bf16.mxu0 0
      %6055 = vmatmul.mubr.bf16.gmra.mxu0 %v3797
      %v6056 = vpop.f32.mrf.mxu0
      %v6057 = vadd.f32 0.0, %v6056
      %v6058 = vpop.f32.mrf.mxu0
      %v6059 = vpop.f32.mrf.mxu0
      %v6060 = vpop.f32.mrf.mxu0
      %6061 = vdwg.mxu0
      %6062 = vmatprep.subr.bf16.mxu0 0
      %6063 = vmatpush1.bf16.msra.mxu0 0
      %6064 = vmatprep.subr.bf16.mxu0 0
      %6065 = vmatpush1.bf16.msra.mxu0 0
      %6066 = vmatprep.subr.bf16.mxu0 0
      %6067 = vmatpush1.bf16.msra.mxu0 0
      %6068 = vmatprep.subr.bf16.mxu0 0
      %6069 = vmatpush1.bf16.msra.mxu0 0
      %6070 = vmatprep.subr.bf16.mxu0 0
      %6071 = vmatpush1.bf16.msra.mxu0 %v1446
      %6072 = vmatprep.subr.bf16.mxu0 0
      %6073 = vmatpush1.bf16.msra.mxu0 %v1445
      %6074 = vmatprep.subr.bf16.mxu0 0
      %6075 = vmatpush1.bf16.msra.mxu0 %v1444
      %6076 = vmatprep.subr.bf16.mxu0 0
      %6077 = vmatpush1.bf16.msra.mxu0 %v1443
      %6078 = vmatprep.subr.bf16.mxu0 0
      %6079 = vmatpush2.bf16.msra.mxu0 0
      %6080 = vmatprep.subr.bf16.mxu0 0
      %6081 = vmatpush2.bf16.msra.mxu0 0
      %6082 = vmatprep.subr.bf16.mxu0 0
      %6083 = vmatpush2.bf16.msra.mxu0 0
      %6084 = vmatprep.subr.bf16.mxu0 0
      %6085 = vmatpush2.bf16.msra.mxu0 0
      %6086 = vmatprep.subr.bf16.mxu0 0
      %6087 = vmatpush2.bf16.msra.mxu0 0
      %6088 = vmatprep.subr.bf16.mxu0 0
      %6089 = vmatpush2.bf16.msra.mxu0 0
      %6090 = vmatprep.subr.bf16.mxu0 0
      %6091 = vmatpush2.bf16.msra.mxu0 0
      %6092 = vmatprep.subr.bf16.mxu0 0
      %6093 = vmatpush2.bf16.msra.mxu0 0
      %6094 = vmatprep.mubr.bf16.mxu0 0
      %6095 = vmatmul.mubr.bf16.gmra.mxu0 %v3864
      %v6096 = vpop.f32.mrf.mxu0
      %v6097 = vadd.f32 0.0, %v6096
      %v6098 = vpop.f32.mrf.mxu0
      %v6099 = vpop.f32.mrf.mxu0
      %v6100 = vpop.f32.mrf.mxu0
      %6101 = vdwg.mxu0
      %6102 = vmatprep.subr.bf16.mxu0 0
      %6103 = vmatpush1.bf16.msra.mxu0 0
      %6104 = vmatprep.subr.bf16.mxu0 0
      %6105 = vmatpush1.bf16.msra.mxu0 0
      %6106 = vmatprep.subr.bf16.mxu0 0
      %6107 = vmatpush1.bf16.msra.mxu0 0
      %6108 = vmatprep.subr.bf16.mxu0 0
      %6109 = vmatpush1.bf16.msra.mxu0 0
      %6110 = vmatprep.subr.bf16.mxu0 0
      %6111 = vmatpush1.bf16.msra.mxu0 %v1513
      %6112 = vmatprep.subr.bf16.mxu0 0
      %6113 = vmatpush1.bf16.msra.mxu0 %v1512
      %6114 = vmatprep.subr.bf16.mxu0 0
      %6115 = vmatpush1.bf16.msra.mxu0 %v1511
      %6116 = vmatprep.subr.bf16.mxu0 0
      %6117 = vmatpush1.bf16.msra.mxu0 %v1510
      %6118 = vmatprep.subr.bf16.mxu0 0
      %6119 = vmatpush2.bf16.msra.mxu0 0
      %6120 = vmatprep.subr.bf16.mxu0 0
      %6121 = vmatpush2.bf16.msra.mxu0 0
      %6122 = vmatprep.subr.bf16.mxu0 0
      %6123 = vmatpush2.bf16.msra.mxu0 0
      %6124 = vmatprep.subr.bf16.mxu0 0
      %6125 = vmatpush2.bf16.msra.mxu0 0
      %6126 = vmatprep.subr.bf16.mxu0 0
      %6127 = vmatpush2.bf16.msra.mxu0 0
      %6128 = vmatprep.subr.bf16.mxu0 0
      %6129 = vmatpush2.bf16.msra.mxu0 0
      %6130 = vmatprep.subr.bf16.mxu0 0
      %6131 = vmatpush2.bf16.msra.mxu0 0
      %6132 = vmatprep.subr.bf16.mxu0 0
      %6133 = vmatpush2.bf16.msra.mxu0 0
      %6134 = vmatprep.mubr.bf16.mxu0 0
      %6135 = vmatmul.mubr.bf16.gmra.mxu0 %v3931
      %v6136 = vpop.f32.mrf.mxu0
      %v6137 = vadd.f32 0.0, %v6136
      %v6138 = vpop.f32.mrf.mxu0
      %v6139 = vpop.f32.mrf.mxu0
      %v6140 = vpop.f32.mrf.mxu0
      %6141 = vdwg.mxu0
      %6142 = vmatprep.subr.bf16.mxu0 0
      %6143 = vmatpush1.bf16.msra.mxu0 0
      %6144 = vmatprep.subr.bf16.mxu0 0
      %6145 = vmatpush1.bf16.msra.mxu0 0
      %6146 = vmatprep.subr.bf16.mxu0 0
      %6147 = vmatpush1.bf16.msra.mxu0 0
      %6148 = vmatprep.subr.bf16.mxu0 0
      %6149 = vmatpush1.bf16.msra.mxu0 0
      %6150 = vmatprep.subr.bf16.mxu0 0
      %6151 = vmatpush1.bf16.msra.mxu0 %v1580
      %6152 = vmatprep.subr.bf16.mxu0 0
      %6153 = vmatpush1.bf16.msra.mxu0 %v1579
      %6154 = vmatprep.subr.bf16.mxu0 0
      %6155 = vmatpush1.bf16.msra.mxu0 %v1578
      %6156 = vmatprep.subr.bf16.mxu0 0
      %6157 = vmatpush1.bf16.msra.mxu0 %v1577
      %6158 = vmatprep.subr.bf16.mxu0 0
      %6159 = vmatpush2.bf16.msra.mxu0 0
      %6160 = vmatprep.subr.bf16.mxu0 0
      %6161 = vmatpush2.bf16.msra.mxu0 0
      %6162 = vmatprep.subr.bf16.mxu0 0
      %6163 = vmatpush2.bf16.msra.mxu0 0
      %6164 = vmatprep.subr.bf16.mxu0 0
      %6165 = vmatpush2.bf16.msra.mxu0 0
      %6166 = vmatprep.subr.bf16.mxu0 0
      %6167 = vmatpush2.bf16.msra.mxu0 0
      %6168 = vmatprep.subr.bf16.mxu0 0
      %6169 = vmatpush2.bf16.msra.mxu0 0
      %6170 = vmatprep.subr.bf16.mxu0 0
      %6171 = vmatpush2.bf16.msra.mxu0 0
      %6172 = vmatprep.subr.bf16.mxu0 0
      %6173 = vmatpush2.bf16.msra.mxu0 0
      %6174 = vmatprep.mubr.bf16.mxu0 0
      %6175 = vmatmul.mubr.bf16.gmra.mxu0 %v3998
      %v6176 = vpop.f32.mrf.mxu0
      %v6177 = vadd.f32 0.0, %v6176
      %v6178 = vpop.f32.mrf.mxu0
      %v6179 = vpop.f32.mrf.mxu0
      %v6180 = vpop.f32.mrf.mxu0
      %6181 = vdwg.mxu0
      %6182 = vmatprep.subr.bf16.mxu0 0
      %6183 = vmatpush1.bf16.msra.mxu0 0
      %6184 = vmatprep.subr.bf16.mxu0 0
      %6185 = vmatpush1.bf16.msra.mxu0 0
      %6186 = vmatprep.subr.bf16.mxu0 0
      %6187 = vmatpush1.bf16.msra.mxu0 0
      %6188 = vmatprep.subr.bf16.mxu0 0
      %6189 = vmatpush1.bf16.msra.mxu0 0
      %6190 = vmatprep.subr.bf16.mxu0 0
      %6191 = vmatpush1.bf16.msra.mxu0 %v1647
      %6192 = vmatprep.subr.bf16.mxu0 0
      %6193 = vmatpush1.bf16.msra.mxu0 %v1646
      %6194 = vmatprep.subr.bf16.mxu0 0
      %6195 = vmatpush1.bf16.msra.mxu0 %v1645
      %6196 = vmatprep.subr.bf16.mxu0 0
      %6197 = vmatpush1.bf16.msra.mxu0 %v1644
      %6198 = vmatprep.subr.bf16.mxu0 0
      %6199 = vmatpush2.bf16.msra.mxu0 0
      %6200 = vmatprep.subr.bf16.mxu0 0
      %6201 = vmatpush2.bf16.msra.mxu0 0
      %6202 = vmatprep.subr.bf16.mxu0 0
      %6203 = vmatpush2.bf16.msra.mxu0 0
      %6204 = vmatprep.subr.bf16.mxu0 0
      %6205 = vmatpush2.bf16.msra.mxu0 0
      %6206 = vmatprep.subr.bf16.mxu0 0
      %6207 = vmatpush2.bf16.msra.mxu0 0
      %6208 = vmatprep.subr.bf16.mxu0 0
      %6209 = vmatpush2.bf16.msra.mxu0 0
      %6210 = vmatprep.subr.bf16.mxu0 0
      %6211 = vmatpush2.bf16.msra.mxu0 0
      %6212 = vmatprep.subr.bf16.mxu0 0
      %6213 = vmatpush2.bf16.msra.mxu0 0
      %6214 = vmatprep.mubr.bf16.mxu0 0
      %6215 = vmatmul.mubr.bf16.gmra.mxu0 %v4065
      %v6216 = vpop.f32.mrf.mxu0
      %v6217 = vadd.f32 0.0, %v6216
      %v6218 = vpop.f32.mrf.mxu0
      %v6219 = vpop.f32.mrf.mxu0
      %v6220 = vpop.f32.mrf.mxu0
      %6221 = vdwg.mxu0
      %6222 = vmatprep.subr.bf16.mxu0 0
      %6223 = vmatpush1.bf16.msra.mxu0 0
      %6224 = vmatprep.subr.bf16.mxu0 0
      %6225 = vmatpush1.bf16.msra.mxu0 0
      %6226 = vmatprep.subr.bf16.mxu0 0
      %6227 = vmatpush1.bf16.msra.mxu0 0
      %6228 = vmatprep.subr.bf16.mxu0 0
      %6229 = vmatpush1.bf16.msra.mxu0 0
      %6230 = vmatprep.subr.bf16.mxu0 0
      %6231 = vmatpush1.bf16.msra.mxu0 %v1714
      %6232 = vmatprep.subr.bf16.mxu0 0
      %6233 = vmatpush1.bf16.msra.mxu0 %v1713
      %6234 = vmatprep.subr.bf16.mxu0 0
      %6235 = vmatpush1.bf16.msra.mxu0 %v1712
      %6236 = vmatprep.subr.bf16.mxu0 0
      %6237 = vmatpush1.bf16.msra.mxu0 %v1711
      %6238 = vmatprep.subr.bf16.mxu0 0
      %6239 = vmatpush2.bf16.msra.mxu0 0
      %6240 = vmatprep.subr.bf16.mxu0 0
      %6241 = vmatpush2.bf16.msra.mxu0 0
      %6242 = vmatprep.subr.bf16.mxu0 0
      %6243 = vmatpush2.bf16.msra.mxu0 0
      %6244 = vmatprep.subr.bf16.mxu0 0
      %6245 = vmatpush2.bf16.msra.mxu0 0
      %6246 = vmatprep.subr.bf16.mxu0 0
      %6247 = vmatpush2.bf16.msra.mxu0 0
      %6248 = vmatprep.subr.bf16.mxu0 0
      %6249 = vmatpush2.bf16.msra.mxu0 0
      %6250 = vmatprep.subr.bf16.mxu0 0
      %6251 = vmatpush2.bf16.msra.mxu0 0
      %6252 = vmatprep.subr.bf16.mxu0 0
      %6253 = vmatpush2.bf16.msra.mxu0 0
      %6254 = vmatprep.mubr.bf16.mxu0 0
      %6255 = vmatmul.mubr.bf16.gmra.mxu0 %v4132
      %v6256 = vpop.f32.mrf.mxu0
      %v6257 = vadd.f32 0.0, %v6256
      %v6258 = vpop.f32.mrf.mxu0
      %v6259 = vpop.f32.mrf.mxu0
      %v6260 = vpop.f32.mrf.mxu0
      %6261 = vdwg.mxu0
      %6262 = vmatprep.subr.bf16.mxu0 0
      %6263 = vmatpush1.bf16.msra.mxu0 0
      %6264 = vmatprep.subr.bf16.mxu0 0
      %6265 = vmatpush1.bf16.msra.mxu0 0
      %6266 = vmatprep.subr.bf16.mxu0 0
      %6267 = vmatpush1.bf16.msra.mxu0 0
      %6268 = vmatprep.subr.bf16.mxu0 0
      %6269 = vmatpush1.bf16.msra.mxu0 0
      %6270 = vmatprep.subr.bf16.mxu0 0
      %6271 = vmatpush1.bf16.msra.mxu0 %v1781
      %6272 = vmatprep.subr.bf16.mxu0 0
      %6273 = vmatpush1.bf16.msra.mxu0 %v1780
      %6274 = vmatprep.subr.bf16.mxu0 0
      %6275 = vmatpush1.bf16.msra.mxu0 %v1779
      %6276 = vmatprep.subr.bf16.mxu0 0
      %6277 = vmatpush1.bf16.msra.mxu0 %v1778
      %6278 = vmatprep.subr.bf16.mxu0 0
      %6279 = vmatpush2.bf16.msra.mxu0 0
      %6280 = vmatprep.subr.bf16.mxu0 0
      %6281 = vmatpush2.bf16.msra.mxu0 0
      %6282 = vmatprep.subr.bf16.mxu0 0
      %6283 = vmatpush2.bf16.msra.mxu0 0
      %6284 = vmatprep.subr.bf16.mxu0 0
      %6285 = vmatpush2.bf16.msra.mxu0 0
      %6286 = vmatprep.subr.bf16.mxu0 0
      %6287 = vmatpush2.bf16.msra.mxu0 0
      %6288 = vmatprep.subr.bf16.mxu0 0
      %6289 = vmatpush2.bf16.msra.mxu0 0
      %6290 = vmatprep.subr.bf16.mxu0 0
      %6291 = vmatpush2.bf16.msra.mxu0 0
      %6292 = vmatprep.subr.bf16.mxu0 0
      %6293 = vmatpush2.bf16.msra.mxu0 0
      %6294 = vmatprep.mubr.bf16.mxu0 0
      %6295 = vmatmul.mubr.bf16.gmra.mxu0 %v4199
      %v6296 = vpop.f32.mrf.mxu0
      %v6297 = vadd.f32 0.0, %v6296
      %v6298 = vpop.f32.mrf.mxu0
      %v6299 = vpop.f32.mrf.mxu0
      %v6300 = vpop.f32.mrf.mxu0
      %6301 = vdwg.mxu0
      %6302 = vmatprep.subr.bf16.mxu0 0
      %6303 = vmatpush1.bf16.msra.mxu0 0
      %6304 = vmatprep.subr.bf16.mxu0 0
      %6305 = vmatpush1.bf16.msra.mxu0 0
      %6306 = vmatprep.subr.bf16.mxu0 0
      %6307 = vmatpush1.bf16.msra.mxu0 0
      %6308 = vmatprep.subr.bf16.mxu0 0
      %6309 = vmatpush1.bf16.msra.mxu0 0
      %6310 = vmatprep.subr.bf16.mxu0 0
      %6311 = vmatpush1.bf16.msra.mxu0 %v1848
      %6312 = vmatprep.subr.bf16.mxu0 0
      %6313 = vmatpush1.bf16.msra.mxu0 %v1847
      %6314 = vmatprep.subr.bf16.mxu0 0
      %6315 = vmatpush1.bf16.msra.mxu0 %v1846
      %6316 = vmatprep.subr.bf16.mxu0 0
      %6317 = vmatpush1.bf16.msra.mxu0 %v1845
      %6318 = vmatprep.subr.bf16.mxu0 0
      %6319 = vmatpush2.bf16.msra.mxu0 0
      %6320 = vmatprep.subr.bf16.mxu0 0
      %6321 = vmatpush2.bf16.msra.mxu0 0
      %6322 = vmatprep.subr.bf16.mxu0 0
      %6323 = vmatpush2.bf16.msra.mxu0 0
      %6324 = vmatprep.subr.bf16.mxu0 0
      %6325 = vmatpush2.bf16.msra.mxu0 0
      %6326 = vmatprep.subr.bf16.mxu0 0
      %6327 = vmatpush2.bf16.msra.mxu0 0
      %6328 = vmatprep.subr.bf16.mxu0 0
      %6329 = vmatpush2.bf16.msra.mxu0 0
      %6330 = vmatprep.subr.bf16.mxu0 0
      %6331 = vmatpush2.bf16.msra.mxu0 0
      %6332 = vmatprep.subr.bf16.mxu0 0
      %6333 = vmatpush2.bf16.msra.mxu0 0
      %6334 = vmatprep.mubr.bf16.mxu0 0
      %6335 = vmatmul.mubr.bf16.gmra.mxu0 %v4266
      %v6336 = vpop.f32.mrf.mxu0
      %v6337 = vadd.f32 0.0, %v6336
      %v6338 = vpop.f32.mrf.mxu0
      %v6339 = vpop.f32.mrf.mxu0
      %v6340 = vpop.f32.mrf.mxu0
      %6341 = vdwg.mxu0
      %6342 = vmatprep.subr.bf16.mxu0 0
      %6343 = vmatpush1.bf16.msra.mxu0 0
      %6344 = vmatprep.subr.bf16.mxu0 0
      %6345 = vmatpush1.bf16.msra.mxu0 0
      %6346 = vmatprep.subr.bf16.mxu0 0
      %6347 = vmatpush1.bf16.msra.mxu0 0
      %6348 = vmatprep.subr.bf16.mxu0 0
      %6349 = vmatpush1.bf16.msra.mxu0 0
      %6350 = vmatprep.subr.bf16.mxu0 0
      %6351 = vmatpush1.bf16.msra.mxu0 %v1915
      %6352 = vmatprep.subr.bf16.mxu0 0
      %6353 = vmatpush1.bf16.msra.mxu0 %v1914
      %6354 = vmatprep.subr.bf16.mxu0 0
      %6355 = vmatpush1.bf16.msra.mxu0 %v1913
      %6356 = vmatprep.subr.bf16.mxu0 0
      %6357 = vmatpush1.bf16.msra.mxu0 %v1912
      %6358 = vmatprep.subr.bf16.mxu0 0
      %6359 = vmatpush2.bf16.msra.mxu0 0
      %6360 = vmatprep.subr.bf16.mxu0 0
      %6361 = vmatpush2.bf16.msra.mxu0 0
      %6362 = vmatprep.subr.bf16.mxu0 0
      %6363 = vmatpush2.bf16.msra.mxu0 0
      %6364 = vmatprep.subr.bf16.mxu0 0
      %6365 = vmatpush2.bf16.msra.mxu0 0
      %6366 = vmatprep.subr.bf16.mxu0 0
      %6367 = vmatpush2.bf16.msra.mxu0 0
      %6368 = vmatprep.subr.bf16.mxu0 0
      %6369 = vmatpush2.bf16.msra.mxu0 0
      %6370 = vmatprep.subr.bf16.mxu0 0
      %6371 = vmatpush2.bf16.msra.mxu0 0
      %6372 = vmatprep.subr.bf16.mxu0 0
      %6373 = vmatpush2.bf16.msra.mxu0 0
      %6374 = vmatprep.mubr.bf16.mxu0 0
      %6375 = vmatmul.mubr.bf16.gmra.mxu0 %v4333
      %v6376 = vpop.f32.mrf.mxu0
      %v6377 = vadd.f32 0.0, %v6376
      %v6378 = vpop.f32.mrf.mxu0
      %v6379 = vpop.f32.mrf.mxu0
      %v6380 = vpop.f32.mrf.mxu0
      %6381 = vdwg.mxu0
      %6382 = vmatprep.subr.bf16.mxu0 0
      %6383 = vmatpush1.bf16.msra.mxu0 0
      %6384 = vmatprep.subr.bf16.mxu0 0
      %6385 = vmatpush1.bf16.msra.mxu0 0
      %6386 = vmatprep.subr.bf16.mxu0 0
      %6387 = vmatpush1.bf16.msra.mxu0 0
      %6388 = vmatprep.subr.bf16.mxu0 0
      %6389 = vmatpush1.bf16.msra.mxu0 0
      %6390 = vmatprep.subr.bf16.mxu0 0
      %6391 = vmatpush1.bf16.msra.mxu0 %v1982
      %6392 = vmatprep.subr.bf16.mxu0 0
      %6393 = vmatpush1.bf16.msra.mxu0 %v1981
      %6394 = vmatprep.subr.bf16.mxu0 0
      %6395 = vmatpush1.bf16.msra.mxu0 %v1980
      %6396 = vmatprep.subr.bf16.mxu0 0
      %6397 = vmatpush1.bf16.msra.mxu0 %v1979
      %6398 = vmatprep.subr.bf16.mxu0 0
      %6399 = vmatpush2.bf16.msra.mxu0 0
      %6400 = vmatprep.subr.bf16.mxu0 0
      %6401 = vmatpush2.bf16.msra.mxu0 0
      %6402 = vmatprep.subr.bf16.mxu0 0
      %6403 = vmatpush2.bf16.msra.mxu0 0
      %6404 = vmatprep.subr.bf16.mxu0 0
      %6405 = vmatpush2.bf16.msra.mxu0 0
      %6406 = vmatprep.subr.bf16.mxu0 0
      %6407 = vmatpush2.bf16.msra.mxu0 0
      %6408 = vmatprep.subr.bf16.mxu0 0
      %6409 = vmatpush2.bf16.msra.mxu0 0
      %6410 = vmatprep.subr.bf16.mxu0 0
      %6411 = vmatpush2.bf16.msra.mxu0 0
      %6412 = vmatprep.subr.bf16.mxu0 0
      %6413 = vmatpush2.bf16.msra.mxu0 0
      %6414 = vmatprep.mubr.bf16.mxu0 0
      %6415 = vmatmul.mubr.bf16.gmra.mxu0 %v4400
      %v6416 = vpop.f32.mrf.mxu0
      %v6417 = vadd.f32 0.0, %v6416
      %v6418 = vpop.f32.mrf.mxu0
      %v6419 = vpop.f32.mrf.mxu0
      %v6420 = vpop.f32.mrf.mxu0
      %6421 = vdwg.mxu0
      %6422 = vmatprep.subr.bf16.mxu0 0
      %6423 = vmatpush1.bf16.msra.mxu0 0
      %6424 = vmatprep.subr.bf16.mxu0 0
      %6425 = vmatpush1.bf16.msra.mxu0 0
      %6426 = vmatprep.subr.bf16.mxu0 0
      %6427 = vmatpush1.bf16.msra.mxu0 0
      %6428 = vmatprep.subr.bf16.mxu0 0
      %6429 = vmatpush1.bf16.msra.mxu0 0
      %6430 = vmatprep.subr.bf16.mxu0 0
      %6431 = vmatpush1.bf16.msra.mxu0 %v2049
      %6432 = vmatprep.subr.bf16.mxu0 0
      %6433 = vmatpush1.bf16.msra.mxu0 %v2048
      %6434 = vmatprep.subr.bf16.mxu0 0
      %6435 = vmatpush1.bf16.msra.mxu0 %v2047
      %6436 = vmatprep.subr.bf16.mxu0 0
      %6437 = vmatpush1.bf16.msra.mxu0 %v2046
      %6438 = vmatprep.subr.bf16.mxu0 0
      %6439 = vmatpush2.bf16.msra.mxu0 0
      %6440 = vmatprep.subr.bf16.mxu0 0
      %6441 = vmatpush2.bf16.msra.mxu0 0
      %6442 = vmatprep.subr.bf16.mxu0 0
      %6443 = vmatpush2.bf16.msra.mxu0 0
      %6444 = vmatprep.subr.bf16.mxu0 0
      %6445 = vmatpush2.bf16.msra.mxu0 0
      %6446 = vmatprep.subr.bf16.mxu0 0
      %6447 = vmatpush2.bf16.msra.mxu0 0
      %6448 = vmatprep.subr.bf16.mxu0 0
      %6449 = vmatpush2.bf16.msra.mxu0 0
      %6450 = vmatprep.subr.bf16.mxu0 0
      %6451 = vmatpush2.bf16.msra.mxu0 0
      %6452 = vmatprep.subr.bf16.mxu0 0
      %6453 = vmatpush2.bf16.msra.mxu0 0
      %6454 = vmatprep.mubr.bf16.mxu0 0
      %6455 = vmatmul.mubr.bf16.gmra.mxu0 %v4467
      %v6456 = vpop.f32.mrf.mxu0
      %v6457 = vadd.f32 0.0, %v6456
      %v6458 = vpop.f32.mrf.mxu0
      %v6459 = vpop.f32.mrf.mxu0
      %v6460 = vpop.f32.mrf.mxu0
      %6461 = vdwg.mxu0
      %6462 = vmatprep.subr.bf16.mxu0 0
      %6463 = vmatpush1.bf16.msra.mxu0 0
      %6464 = vmatprep.subr.bf16.mxu0 0
      %6465 = vmatpush1.bf16.msra.mxu0 0
      %6466 = vmatprep.subr.bf16.mxu0 0
      %6467 = vmatpush1.bf16.msra.mxu0 0
      %6468 = vmatprep.subr.bf16.mxu0 0
      %6469 = vmatpush1.bf16.msra.mxu0 0
      %6470 = vmatprep.subr.bf16.mxu0 0
      %6471 = vmatpush1.bf16.msra.mxu0 %v2116
      %6472 = vmatprep.subr.bf16.mxu0 0
      %6473 = vmatpush1.bf16.msra.mxu0 %v2115
      %6474 = vmatprep.subr.bf16.mxu0 0
      %6475 = vmatpush1.bf16.msra.mxu0 %v2114
      %6476 = vmatprep.subr.bf16.mxu0 0
      %6477 = vmatpush1.bf16.msra.mxu0 %v2113
      %6478 = vmatprep.subr.bf16.mxu0 0
      %6479 = vmatpush2.bf16.msra.mxu0 0
      %6480 = vmatprep.subr.bf16.mxu0 0
      %6481 = vmatpush2.bf16.msra.mxu0 0
      %6482 = vmatprep.subr.bf16.mxu0 0
      %6483 = vmatpush2.bf16.msra.mxu0 0
      %6484 = vmatprep.subr.bf16.mxu0 0
      %6485 = vmatpush2.bf16.msra.mxu0 0
      %6486 = vmatprep.subr.bf16.mxu0 0
      %6487 = vmatpush2.bf16.msra.mxu0 0
      %6488 = vmatprep.subr.bf16.mxu0 0
      %6489 = vmatpush2.bf16.msra.mxu0 0
      %6490 = vmatprep.subr.bf16.mxu0 0
      %6491 = vmatpush2.bf16.msra.mxu0 0
      %6492 = vmatprep.subr.bf16.mxu0 0
      %6493 = vmatpush2.bf16.msra.mxu0 0
      %6494 = vmatprep.mubr.bf16.mxu0 0
      %6495 = vmatmul.mubr.bf16.gmra.mxu0 %v4534
      %v6496 = vpop.f32.mrf.mxu0
      %v6497 = vadd.f32 0.0, %v6496
      %v6498 = vpop.f32.mrf.mxu0
      %v6499 = vpop.f32.mrf.mxu0
      %v6500 = vpop.f32.mrf.mxu0
      %6501 = vdwg.mxu0
      %6502 = vmatprep.subr.bf16.mxu0 0
      %6503 = vmatpush1.bf16.msra.mxu0 0
      %6504 = vmatprep.subr.bf16.mxu0 0
      %6505 = vmatpush1.bf16.msra.mxu0 0
      %6506 = vmatprep.subr.bf16.mxu0 0
      %6507 = vmatpush1.bf16.msra.mxu0 0
      %6508 = vmatprep.subr.bf16.mxu0 0
      %6509 = vmatpush1.bf16.msra.mxu0 0
      %6510 = vmatprep.subr.bf16.mxu0 0
      %6511 = vmatpush1.bf16.msra.mxu0 %v2183
      %6512 = vmatprep.subr.bf16.mxu0 0
      %6513 = vmatpush1.bf16.msra.mxu0 %v2182
      %6514 = vmatprep.subr.bf16.mxu0 0
      %6515 = vmatpush1.bf16.msra.mxu0 %v2181
      %6516 = vmatprep.subr.bf16.mxu0 0
      %6517 = vmatpush1.bf16.msra.mxu0 %v2180
      %6518 = vmatprep.subr.bf16.mxu0 0
      %6519 = vmatpush2.bf16.msra.mxu0 0
      %6520 = vmatprep.subr.bf16.mxu0 0
      %6521 = vmatpush2.bf16.msra.mxu0 0
      %6522 = vmatprep.subr.bf16.mxu0 0
      %6523 = vmatpush2.bf16.msra.mxu0 0
      %6524 = vmatprep.subr.bf16.mxu0 0
      %6525 = vmatpush2.bf16.msra.mxu0 0
      %6526 = vmatprep.subr.bf16.mxu0 0
      %6527 = vmatpush2.bf16.msra.mxu0 0
      %6528 = vmatprep.subr.bf16.mxu0 0
      %6529 = vmatpush2.bf16.msra.mxu0 0
      %6530 = vmatprep.subr.bf16.mxu0 0
      %6531 = vmatpush2.bf16.msra.mxu0 0
      %6532 = vmatprep.subr.bf16.mxu0 0
      %6533 = vmatpush2.bf16.msra.mxu0 0
      %6534 = vmatprep.mubr.bf16.mxu0 0
      %6535 = vmatmul.mubr.bf16.gmra.mxu0 %v4601
      %v6536 = vpop.f32.mrf.mxu0
      %v6537 = vadd.f32 0.0, %v6536
      %v6538 = vpop.f32.mrf.mxu0
      %v6539 = vpop.f32.mrf.mxu0
      %v6540 = vpop.f32.mrf.mxu0
      %6541 = vdwg.mxu0
      %6542 = vmatprep.subr.bf16.mxu0 0
      %6543 = vmatpush1.bf16.msra.mxu0 0
      %6544 = vmatprep.subr.bf16.mxu0 0
      %6545 = vmatpush1.bf16.msra.mxu0 0
      %6546 = vmatprep.subr.bf16.mxu0 0
      %6547 = vmatpush1.bf16.msra.mxu0 0
      %6548 = vmatprep.subr.bf16.mxu0 0
      %6549 = vmatpush1.bf16.msra.mxu0 0
      %6550 = vmatprep.subr.bf16.mxu0 0
      %6551 = vmatpush1.bf16.msra.mxu0 %v2250
      %6552 = vmatprep.subr.bf16.mxu0 0
      %6553 = vmatpush1.bf16.msra.mxu0 %v2249
      %6554 = vmatprep.subr.bf16.mxu0 0
      %6555 = vmatpush1.bf16.msra.mxu0 %v2248
      %6556 = vmatprep.subr.bf16.mxu0 0
      %6557 = vmatpush1.bf16.msra.mxu0 %v2247
      %6558 = vmatprep.subr.bf16.mxu0 0
      %6559 = vmatpush2.bf16.msra.mxu0 0
      %6560 = vmatprep.subr.bf16.mxu0 0
      %6561 = vmatpush2.bf16.msra.mxu0 0
      %6562 = vmatprep.subr.bf16.mxu0 0
      %6563 = vmatpush2.bf16.msra.mxu0 0
      %6564 = vmatprep.subr.bf16.mxu0 0
      %6565 = vmatpush2.bf16.msra.mxu0 0
      %6566 = vmatprep.subr.bf16.mxu0 0
      %6567 = vmatpush2.bf16.msra.mxu0 0
      %6568 = vmatprep.subr.bf16.mxu0 0
      %6569 = vmatpush2.bf16.msra.mxu0 0
      %6570 = vmatprep.subr.bf16.mxu0 0
      %6571 = vmatpush2.bf16.msra.mxu0 0
      %6572 = vmatprep.subr.bf16.mxu0 0
      %6573 = vmatpush2.bf16.msra.mxu0 0
      %6574 = vmatprep.mubr.bf16.mxu0 0
      %6575 = vmatmul.mubr.bf16.gmra.mxu0 %v4668
      %v6576 = vpop.f32.mrf.mxu0
      %v6577 = vadd.f32 0.0, %v6576
      %v6578 = vpop.f32.mrf.mxu0
      %v6579 = vpop.f32.mrf.mxu0
      %v6580 = vpop.f32.mrf.mxu0
      %6581 = vdwg.mxu0
      %6582 = vmatprep.subr.bf16.mxu0 0
      %6583 = vmatpush1.bf16.msra.mxu0 0
      %6584 = vmatprep.subr.bf16.mxu0 0
      %6585 = vmatpush1.bf16.msra.mxu0 0
      %6586 = vmatprep.subr.bf16.mxu0 0
      %6587 = vmatpush1.bf16.msra.mxu0 0
      %6588 = vmatprep.subr.bf16.mxu0 0
      %6589 = vmatpush1.bf16.msra.mxu0 0
      %6590 = vmatprep.subr.bf16.mxu0 0
      %6591 = vmatpush1.bf16.msra.mxu0 %v2317
      %6592 = vmatprep.subr.bf16.mxu0 0
      %6593 = vmatpush1.bf16.msra.mxu0 %v2316
      %6594 = vmatprep.subr.bf16.mxu0 0
      %6595 = vmatpush1.bf16.msra.mxu0 %v2315
      %6596 = vmatprep.subr.bf16.mxu0 0
      %6597 = vmatpush1.bf16.msra.mxu0 %v2314
      %6598 = vmatprep.subr.bf16.mxu0 0
      %6599 = vmatpush2.bf16.msra.mxu0 0
      %6600 = vmatprep.subr.bf16.mxu0 0
      %6601 = vmatpush2.bf16.msra.mxu0 0
      %6602 = vmatprep.subr.bf16.mxu0 0
      %6603 = vmatpush2.bf16.msra.mxu0 0
      %6604 = vmatprep.subr.bf16.mxu0 0
      %6605 = vmatpush2.bf16.msra.mxu0 0
      %6606 = vmatprep.subr.bf16.mxu0 0
      %6607 = vmatpush2.bf16.msra.mxu0 0
      %6608 = vmatprep.subr.bf16.mxu0 0
      %6609 = vmatpush2.bf16.msra.mxu0 0
      %6610 = vmatprep.subr.bf16.mxu0 0
      %6611 = vmatpush2.bf16.msra.mxu0 0
      %6612 = vmatprep.subr.bf16.mxu0 0
      %6613 = vmatpush2.bf16.msra.mxu0 0
      %6614 = vmatprep.mubr.bf16.mxu0 0
      %6615 = vmatmul.mubr.bf16.gmra.mxu0 %v4735
      %v6616 = vpop.f32.mrf.mxu0
      %v6617 = vadd.f32 0.0, %v6616
      %v6618 = vpop.f32.mrf.mxu0
      %v6619 = vpop.f32.mrf.mxu0
      %v6620 = vpop.f32.mrf.mxu0
      %6621 = vdwg.mxu0
      %6622 = vmatprep.subr.bf16.mxu0 0
      %6623 = vmatpush1.bf16.msra.mxu0 0
      %6624 = vmatprep.subr.bf16.mxu0 0
      %6625 = vmatpush1.bf16.msra.mxu0 0
      %6626 = vmatprep.subr.bf16.mxu0 0
      %6627 = vmatpush1.bf16.msra.mxu0 0
      %6628 = vmatprep.subr.bf16.mxu0 0
      %6629 = vmatpush1.bf16.msra.mxu0 0
      %6630 = vmatprep.subr.bf16.mxu0 0
      %6631 = vmatpush1.bf16.msra.mxu0 %v2384
      %6632 = vmatprep.subr.bf16.mxu0 0
      %6633 = vmatpush1.bf16.msra.mxu0 %v2383
      %6634 = vmatprep.subr.bf16.mxu0 0
      %6635 = vmatpush1.bf16.msra.mxu0 %v2382
      %6636 = vmatprep.subr.bf16.mxu0 0
      %6637 = vmatpush1.bf16.msra.mxu0 %v2381
      %6638 = vmatprep.subr.bf16.mxu0 0
      %6639 = vmatpush2.bf16.msra.mxu0 0
      %6640 = vmatprep.subr.bf16.mxu0 0
      %6641 = vmatpush2.bf16.msra.mxu0 0
      %6642 = vmatprep.subr.bf16.mxu0 0
      %6643 = vmatpush2.bf16.msra.mxu0 0
      %6644 = vmatprep.subr.bf16.mxu0 0
      %6645 = vmatpush2.bf16.msra.mxu0 0
      %6646 = vmatprep.subr.bf16.mxu0 0
      %6647 = vmatpush2.bf16.msra.mxu0 0
      %6648 = vmatprep.subr.bf16.mxu0 0
      %6649 = vmatpush2.bf16.msra.mxu0 0
      %6650 = vmatprep.subr.bf16.mxu0 0
      %6651 = vmatpush2.bf16.msra.mxu0 0
      %6652 = vmatprep.subr.bf16.mxu0 0
      %6653 = vmatpush2.bf16.msra.mxu0 0
      %6654 = vmatprep.mubr.bf16.mxu0 0
      %6655 = vmatmul.mubr.bf16.gmra.mxu0 %v4802
      %v6656 = vpop.f32.mrf.mxu0
      %v6657 = vadd.f32 0.0, %v6656
      %v6658 = vpop.f32.mrf.mxu0
      %v6659 = vpop.f32.mrf.mxu0
      %v6660 = vpop.f32.mrf.mxu0
      %6661 = vdwg.mxu0
      %6662 = vmatprep.subr.bf16.mxu0 0
      %6663 = vmatpush1.bf16.msra.mxu0 0
      %6664 = vmatprep.subr.bf16.mxu0 0
      %6665 = vmatpush1.bf16.msra.mxu0 0
      %6666 = vmatprep.subr.bf16.mxu0 0
      %6667 = vmatpush1.bf16.msra.mxu0 0
      %6668 = vmatprep.subr.bf16.mxu0 0
      %6669 = vmatpush1.bf16.msra.mxu0 0
      %6670 = vmatprep.subr.bf16.mxu0 0
      %6671 = vmatpush1.bf16.msra.mxu0 %v2451
      %6672 = vmatprep.subr.bf16.mxu0 0
      %6673 = vmatpush1.bf16.msra.mxu0 %v2450
      %6674 = vmatprep.subr.bf16.mxu0 0
      %6675 = vmatpush1.bf16.msra.mxu0 %v2449
      %6676 = vmatprep.subr.bf16.mxu0 0
      %6677 = vmatpush1.bf16.msra.mxu0 %v2448
      %6678 = vmatprep.subr.bf16.mxu0 0
      %6679 = vmatpush2.bf16.msra.mxu0 0
      %6680 = vmatprep.subr.bf16.mxu0 0
      %6681 = vmatpush2.bf16.msra.mxu0 0
      %6682 = vmatprep.subr.bf16.mxu0 0
      %6683 = vmatpush2.bf16.msra.mxu0 0
      %6684 = vmatprep.subr.bf16.mxu0 0
      %6685 = vmatpush2.bf16.msra.mxu0 0
      %6686 = vmatprep.subr.bf16.mxu0 0
      %6687 = vmatpush2.bf16.msra.mxu0 0
      %6688 = vmatprep.subr.bf16.mxu0 0
      %6689 = vmatpush2.bf16.msra.mxu0 0
      %6690 = vmatprep.subr.bf16.mxu0 0
      %6691 = vmatpush2.bf16.msra.mxu0 0
      %6692 = vmatprep.subr.bf16.mxu0 0
      %6693 = vmatpush2.bf16.msra.mxu0 0
      %6694 = vmatprep.mubr.bf16.mxu0 0
      %6695 = vmatmul.mubr.bf16.gmra.mxu0 %v4869
      %v6696 = vpop.f32.mrf.mxu0
      %v6697 = vadd.f32 0.0, %v6696
      %v6698 = vpop.f32.mrf.mxu0
      %v6699 = vpop.f32.mrf.mxu0
      %v6700 = vpop.f32.mrf.mxu0
      %6701 = vdwg.mxu0
      %6702 = vmatprep.subr.bf16.mxu0 0
      %6703 = vmatpush1.bf16.msra.mxu0 0
      %6704 = vmatprep.subr.bf16.mxu0 0
      %6705 = vmatpush1.bf16.msra.mxu0 0
      %6706 = vmatprep.subr.bf16.mxu0 0
      %6707 = vmatpush1.bf16.msra.mxu0 0
      %6708 = vmatprep.subr.bf16.mxu0 0
      %6709 = vmatpush1.bf16.msra.mxu0 0
      %6710 = vmatprep.subr.bf16.mxu0 0
      %6711 = vmatpush1.bf16.msra.mxu0 %v2518
      %6712 = vmatprep.subr.bf16.mxu0 0
      %6713 = vmatpush1.bf16.msra.mxu0 %v2517
      %6714 = vmatprep.subr.bf16.mxu0 0
      %6715 = vmatpush1.bf16.msra.mxu0 %v2516
      %6716 = vmatprep.subr.bf16.mxu0 0
      %6717 = vmatpush1.bf16.msra.mxu0 %v2515
      %6718 = vmatprep.subr.bf16.mxu0 0
      %6719 = vmatpush2.bf16.msra.mxu0 0
      %6720 = vmatprep.subr.bf16.mxu0 0
      %6721 = vmatpush2.bf16.msra.mxu0 0
      %6722 = vmatprep.subr.bf16.mxu0 0
      %6723 = vmatpush2.bf16.msra.mxu0 0
      %6724 = vmatprep.subr.bf16.mxu0 0
      %6725 = vmatpush2.bf16.msra.mxu0 0
      %6726 = vmatprep.subr.bf16.mxu0 0
      %6727 = vmatpush2.bf16.msra.mxu0 0
      %6728 = vmatprep.subr.bf16.mxu0 0
      %6729 = vmatpush2.bf16.msra.mxu0 0
      %6730 = vmatprep.subr.bf16.mxu0 0
      %6731 = vmatpush2.bf16.msra.mxu0 0
      %6732 = vmatprep.subr.bf16.mxu0 0
      %6733 = vmatpush2.bf16.msra.mxu0 0
      %6734 = vmatprep.mubr.bf16.mxu0 0
      %6735 = vmatmul.mubr.bf16.gmra.mxu0 %v4936
      %v6736 = vpop.f32.mrf.mxu0
      %v6737 = vadd.f32 0.0, %v6736
      %v6738 = vpop.f32.mrf.mxu0
      %v6739 = vpop.f32.mrf.mxu0
      %v6740 = vpop.f32.mrf.mxu0
      %6741 = vdwg.mxu0
      %6742 = vmatprep.subr.bf16.mxu0 0
      %6743 = vmatpush1.bf16.msra.mxu0 0
      %6744 = vmatprep.subr.bf16.mxu0 0
      %6745 = vmatpush1.bf16.msra.mxu0 0
      %6746 = vmatprep.subr.bf16.mxu0 0
      %6747 = vmatpush1.bf16.msra.mxu0 0
      %6748 = vmatprep.subr.bf16.mxu0 0
      %6749 = vmatpush1.bf16.msra.mxu0 0
      %6750 = vmatprep.subr.bf16.mxu0 0
      %6751 = vmatpush1.bf16.msra.mxu0 %v2585
      %6752 = vmatprep.subr.bf16.mxu0 0
      %6753 = vmatpush1.bf16.msra.mxu0 %v2584
      %6754 = vmatprep.subr.bf16.mxu0 0
      %6755 = vmatpush1.bf16.msra.mxu0 %v2583
      %6756 = vmatprep.subr.bf16.mxu0 0
      %6757 = vmatpush1.bf16.msra.mxu0 %v2582
      %6758 = vmatprep.subr.bf16.mxu0 0
      %6759 = vmatpush2.bf16.msra.mxu0 0
      %6760 = vmatprep.subr.bf16.mxu0 0
      %6761 = vmatpush2.bf16.msra.mxu0 0
      %6762 = vmatprep.subr.bf16.mxu0 0
      %6763 = vmatpush2.bf16.msra.mxu0 0
      %6764 = vmatprep.subr.bf16.mxu0 0
      %6765 = vmatpush2.bf16.msra.mxu0 0
      %6766 = vmatprep.subr.bf16.mxu0 0
      %6767 = vmatpush2.bf16.msra.mxu0 0
      %6768 = vmatprep.subr.bf16.mxu0 0
      %6769 = vmatpush2.bf16.msra.mxu0 0
      %6770 = vmatprep.subr.bf16.mxu0 0
      %6771 = vmatpush2.bf16.msra.mxu0 0
      %6772 = vmatprep.subr.bf16.mxu0 0
      %6773 = vmatpush2.bf16.msra.mxu0 0
      %6774 = vmatprep.mubr.bf16.mxu0 0
      %6775 = vmatmul.mubr.bf16.gmra.mxu0 %v5003
      %v6776 = vpop.f32.mrf.mxu0
      %v6777 = vadd.f32 0.0, %v6776
      %v6778 = vpop.f32.mrf.mxu0
      %v6779 = vpop.f32.mrf.mxu0
      %v6780 = vpop.f32.mrf.mxu0
      %6781 = vdwg.mxu0
      %6782 = vmatprep.subr.bf16.mxu0 0
      %6783 = vmatpush1.bf16.msra.mxu0 0
      %6784 = vmatprep.subr.bf16.mxu0 0
      %6785 = vmatpush1.bf16.msra.mxu0 0
      %6786 = vmatprep.subr.bf16.mxu0 0
      %6787 = vmatpush1.bf16.msra.mxu0 0
      %6788 = vmatprep.subr.bf16.mxu0 0
      %6789 = vmatpush1.bf16.msra.mxu0 0
      %6790 = vmatprep.subr.bf16.mxu0 0
      %6791 = vmatpush1.bf16.msra.mxu0 %v2652
      %6792 = vmatprep.subr.bf16.mxu0 0
      %6793 = vmatpush1.bf16.msra.mxu0 %v2651
      %6794 = vmatprep.subr.bf16.mxu0 0
      %6795 = vmatpush1.bf16.msra.mxu0 %v2650
      %6796 = vmatprep.subr.bf16.mxu0 0
      %6797 = vmatpush1.bf16.msra.mxu0 %v2649
      %6798 = vmatprep.subr.bf16.mxu0 0
      %6799 = vmatpush2.bf16.msra.mxu0 0
      %6800 = vmatprep.subr.bf16.mxu0 0
      %6801 = vmatpush2.bf16.msra.mxu0 0
      %6802 = vmatprep.subr.bf16.mxu0 0
      %6803 = vmatpush2.bf16.msra.mxu0 0
      %6804 = vmatprep.subr.bf16.mxu0 0
      %6805 = vmatpush2.bf16.msra.mxu0 0
      %6806 = vmatprep.subr.bf16.mxu0 0
      %6807 = vmatpush2.bf16.msra.mxu0 0
      %6808 = vmatprep.subr.bf16.mxu0 0
      %6809 = vmatpush2.bf16.msra.mxu0 0
      %6810 = vmatprep.subr.bf16.mxu0 0
      %6811 = vmatpush2.bf16.msra.mxu0 0
      %6812 = vmatprep.subr.bf16.mxu0 0
      %6813 = vmatpush2.bf16.msra.mxu0 0
      %6814 = vmatprep.mubr.bf16.mxu0 0
      %6815 = vmatmul.mubr.bf16.gmra.mxu0 %v5070
      %v6816 = vpop.f32.mrf.mxu0
      %v6817 = vadd.f32 0.0, %v6816
      %v6818 = vpop.f32.mrf.mxu0
      %v6819 = vpop.f32.mrf.mxu0
      %v6820 = vpop.f32.mrf.mxu0
      %6821 = vdwg.mxu0
      %6822 = vmatprep.subr.bf16.mxu0 0
      %6823 = vmatpush1.bf16.msra.mxu0 0
      %6824 = vmatprep.subr.bf16.mxu0 0
      %6825 = vmatpush1.bf16.msra.mxu0 0
      %6826 = vmatprep.subr.bf16.mxu0 0
      %6827 = vmatpush1.bf16.msra.mxu0 0
      %6828 = vmatprep.subr.bf16.mxu0 0
      %6829 = vmatpush1.bf16.msra.mxu0 0
      %6830 = vmatprep.subr.bf16.mxu0 0
      %6831 = vmatpush1.bf16.msra.mxu0 %v2719
      %6832 = vmatprep.subr.bf16.mxu0 0
      %6833 = vmatpush1.bf16.msra.mxu0 %v2718
      %6834 = vmatprep.subr.bf16.mxu0 0
      %6835 = vmatpush1.bf16.msra.mxu0 %v2717
      %6836 = vmatprep.subr.bf16.mxu0 0
      %6837 = vmatpush1.bf16.msra.mxu0 %v2716
      %6838 = vmatprep.subr.bf16.mxu0 0
      %6839 = vmatpush2.bf16.msra.mxu0 0
      %6840 = vmatprep.subr.bf16.mxu0 0
      %6841 = vmatpush2.bf16.msra.mxu0 0
      %6842 = vmatprep.subr.bf16.mxu0 0
      %6843 = vmatpush2.bf16.msra.mxu0 0
      %6844 = vmatprep.subr.bf16.mxu0 0
      %6845 = vmatpush2.bf16.msra.mxu0 0
      %6846 = vmatprep.subr.bf16.mxu0 0
      %6847 = vmatpush2.bf16.msra.mxu0 0
      %6848 = vmatprep.subr.bf16.mxu0 0
      %6849 = vmatpush2.bf16.msra.mxu0 0
      %6850 = vmatprep.subr.bf16.mxu0 0
      %6851 = vmatpush2.bf16.msra.mxu0 0
      %6852 = vmatprep.subr.bf16.mxu0 0
      %6853 = vmatpush2.bf16.msra.mxu0 0
      %6854 = vmatprep.mubr.bf16.mxu0 0
      %6855 = vmatmul.mubr.bf16.gmra.mxu0 %v5137
      %v6856 = vpop.f32.mrf.mxu0
      %v6857 = vadd.f32 0.0, %v6856
      %v6858 = vpop.f32.mrf.mxu0
      %v6859 = vpop.f32.mrf.mxu0
      %v6860 = vpop.f32.mrf.mxu0
      %6861 = vdwg.mxu0
      %6862 = vmatprep.subr.bf16.mxu0 0
      %6863 = vmatpush1.bf16.msra.mxu0 0
      %6864 = vmatprep.subr.bf16.mxu0 0
      %6865 = vmatpush1.bf16.msra.mxu0 0
      %6866 = vmatprep.subr.bf16.mxu0 0
      %6867 = vmatpush1.bf16.msra.mxu0 0
      %6868 = vmatprep.subr.bf16.mxu0 0
      %6869 = vmatpush1.bf16.msra.mxu0 0
      %6870 = vmatprep.subr.bf16.mxu0 0
      %6871 = vmatpush1.bf16.msra.mxu0 %v2786
      %6872 = vmatprep.subr.bf16.mxu0 0
      %6873 = vmatpush1.bf16.msra.mxu0 %v2785
      %6874 = vmatprep.subr.bf16.mxu0 0
      %6875 = vmatpush1.bf16.msra.mxu0 %v2784
      %6876 = vmatprep.subr.bf16.mxu0 0
      %6877 = vmatpush1.bf16.msra.mxu0 %v2783
      %6878 = vmatprep.subr.bf16.mxu0 0
      %6879 = vmatpush2.bf16.msra.mxu0 0
      %6880 = vmatprep.subr.bf16.mxu0 0
      %6881 = vmatpush2.bf16.msra.mxu0 0
      %6882 = vmatprep.subr.bf16.mxu0 0
      %6883 = vmatpush2.bf16.msra.mxu0 0
      %6884 = vmatprep.subr.bf16.mxu0 0
      %6885 = vmatpush2.bf16.msra.mxu0 0
      %6886 = vmatprep.subr.bf16.mxu0 0
      %6887 = vmatpush2.bf16.msra.mxu0 0
      %6888 = vmatprep.subr.bf16.mxu0 0
      %6889 = vmatpush2.bf16.msra.mxu0 0
      %6890 = vmatprep.subr.bf16.mxu0 0
      %6891 = vmatpush2.bf16.msra.mxu0 0
      %6892 = vmatprep.subr.bf16.mxu0 0
      %6893 = vmatpush2.bf16.msra.mxu0 0
      %6894 = vmatprep.mubr.bf16.mxu0 0
      %6895 = vmatmul.mubr.bf16.gmra.mxu0 %v5204
      %v6896 = vpop.f32.mrf.mxu0
      %v6897 = vadd.f32 0.0, %v6896
      %v6898 = vpop.f32.mrf.mxu0
      %v6899 = vpop.f32.mrf.mxu0
      %v6900 = vpop.f32.mrf.mxu0
      %6901 = vdwg.mxu0
      %6902 = vmatprep.subr.bf16.mxu0 0
      %6903 = vmatpush1.bf16.msra.mxu0 0
      %6904 = vmatprep.subr.bf16.mxu0 0
      %6905 = vmatpush1.bf16.msra.mxu0 0
      %6906 = vmatprep.subr.bf16.mxu0 0
      %6907 = vmatpush1.bf16.msra.mxu0 0
      %6908 = vmatprep.subr.bf16.mxu0 0
      %6909 = vmatpush1.bf16.msra.mxu0 0
      %6910 = vmatprep.subr.bf16.mxu0 0
      %6911 = vmatpush1.bf16.msra.mxu0 %v2853
      %6912 = vmatprep.subr.bf16.mxu0 0
      %6913 = vmatpush1.bf16.msra.mxu0 %v2852
      %6914 = vmatprep.subr.bf16.mxu0 0
      %6915 = vmatpush1.bf16.msra.mxu0 %v2851
      %6916 = vmatprep.subr.bf16.mxu0 0
      %6917 = vmatpush1.bf16.msra.mxu0 %v2850
      %6918 = vmatprep.subr.bf16.mxu0 0
      %6919 = vmatpush2.bf16.msra.mxu0 0
      %6920 = vmatprep.subr.bf16.mxu0 0
      %6921 = vmatpush2.bf16.msra.mxu0 0
      %6922 = vmatprep.subr.bf16.mxu0 0
      %6923 = vmatpush2.bf16.msra.mxu0 0
      %6924 = vmatprep.subr.bf16.mxu0 0
      %6925 = vmatpush2.bf16.msra.mxu0 0
      %6926 = vmatprep.subr.bf16.mxu0 0
      %6927 = vmatpush2.bf16.msra.mxu0 0
      %6928 = vmatprep.subr.bf16.mxu0 0
      %6929 = vmatpush2.bf16.msra.mxu0 0
      %6930 = vmatprep.subr.bf16.mxu0 0
      %6931 = vmatpush2.bf16.msra.mxu0 0
      %6932 = vmatprep.subr.bf16.mxu0 0
      %6933 = vmatpush2.bf16.msra.mxu0 0
      %6934 = vmatprep.mubr.bf16.mxu0 0
      %6935 = vmatmul.mubr.bf16.gmra.mxu0 %v5271
      %v6936 = vpop.f32.mrf.mxu0
      %v6937 = vadd.f32 0.0, %v6936
      %v6938 = vpop.f32.mrf.mxu0
      %v6939 = vpop.f32.mrf.mxu0
      %v6940 = vpop.f32.mrf.mxu0
      %6941 = vdwg.mxu0
      %6942 = vmatprep.subr.bf16.mxu0 0
      %6943 = vmatpush1.bf16.msra.mxu0 0
      %6944 = vmatprep.subr.bf16.mxu0 0
      %6945 = vmatpush1.bf16.msra.mxu0 0
      %6946 = vmatprep.subr.bf16.mxu0 0
      %6947 = vmatpush1.bf16.msra.mxu0 0
      %6948 = vmatprep.subr.bf16.mxu0 0
      %6949 = vmatpush1.bf16.msra.mxu0 0
      %6950 = vmatprep.subr.bf16.mxu0 0
      %6951 = vmatpush1.bf16.msra.mxu0 %v2920
      %6952 = vmatprep.subr.bf16.mxu0 0
      %6953 = vmatpush1.bf16.msra.mxu0 %v2919
      %6954 = vmatprep.subr.bf16.mxu0 0
      %6955 = vmatpush1.bf16.msra.mxu0 %v2918
      %6956 = vmatprep.subr.bf16.mxu0 0
      %6957 = vmatpush1.bf16.msra.mxu0 %v2917
      %6958 = vmatprep.subr.bf16.mxu0 0
      %6959 = vmatpush2.bf16.msra.mxu0 0
      %6960 = vmatprep.subr.bf16.mxu0 0
      %6961 = vmatpush2.bf16.msra.mxu0 0
      %6962 = vmatprep.subr.bf16.mxu0 0
      %6963 = vmatpush2.bf16.msra.mxu0 0
      %6964 = vmatprep.subr.bf16.mxu0 0
      %6965 = vmatpush2.bf16.msra.mxu0 0
      %6966 = vmatprep.subr.bf16.mxu0 0
      %6967 = vmatpush2.bf16.msra.mxu0 0
      %6968 = vmatprep.subr.bf16.mxu0 0
      %6969 = vmatpush2.bf16.msra.mxu0 0
      %6970 = vmatprep.subr.bf16.mxu0 0
      %6971 = vmatpush2.bf16.msra.mxu0 0
      %6972 = vmatprep.subr.bf16.mxu0 0
      %6973 = vmatpush2.bf16.msra.mxu0 0
      %6974 = vmatprep.mubr.bf16.mxu0 0
      %6975 = vmatmul.mubr.bf16.gmra.mxu0 %v5338
      %v6976 = vpop.f32.mrf.mxu0
      %v6977 = vadd.f32 0.0, %v6976
      %v6978 = vpop.f32.mrf.mxu0
      %v6979 = vpop.f32.mrf.mxu0
      %v6980 = vpop.f32.mrf.mxu0
      %6981 = vdwg.mxu0
      %6982 = vmatprep.subr.bf16.mxu0 0
      %6983 = vmatpush1.bf16.msra.mxu0 0
      %6984 = vmatprep.subr.bf16.mxu0 0
      %6985 = vmatpush1.bf16.msra.mxu0 0
      %6986 = vmatprep.subr.bf16.mxu0 0
      %6987 = vmatpush1.bf16.msra.mxu0 0
      %6988 = vmatprep.subr.bf16.mxu0 0
      %6989 = vmatpush1.bf16.msra.mxu0 0
      %6990 = vmatprep.subr.bf16.mxu0 0
      %6991 = vmatpush1.bf16.msra.mxu0 %v2987
      %6992 = vmatprep.subr.bf16.mxu0 0
      %6993 = vmatpush1.bf16.msra.mxu0 %v2986
      %6994 = vmatprep.subr.bf16.mxu0 0
      %6995 = vmatpush1.bf16.msra.mxu0 %v2985
      %6996 = vmatprep.subr.bf16.mxu0 0
      %6997 = vmatpush1.bf16.msra.mxu0 %v2984
      %6998 = vmatprep.subr.bf16.mxu0 0
      %6999 = vmatpush2.bf16.msra.mxu0 0
      %7000 = vmatprep.subr.bf16.mxu0 0
      %7001 = vmatpush2.bf16.msra.mxu0 0
      %7002 = vmatprep.subr.bf16.mxu0 0
      %7003 = vmatpush2.bf16.msra.mxu0 0
      %7004 = vmatprep.subr.bf16.mxu0 0
      %7005 = vmatpush2.bf16.msra.mxu0 0
      %7006 = vmatprep.subr.bf16.mxu0 0
      %7007 = vmatpush2.bf16.msra.mxu0 0
      %7008 = vmatprep.subr.bf16.mxu0 0
      %7009 = vmatpush2.bf16.msra.mxu0 0
      %7010 = vmatprep.subr.bf16.mxu0 0
      %7011 = vmatpush2.bf16.msra.mxu0 0
      %7012 = vmatprep.subr.bf16.mxu0 0
      %7013 = vmatpush2.bf16.msra.mxu0 0
      %7014 = vmatprep.mubr.bf16.mxu0 0
      %7015 = vmatmul.mubr.bf16.gmra.mxu0 %v5405
      %v7016 = vpop.f32.mrf.mxu0
      %v7017 = vadd.f32 0.0, %v7016
      %v7018 = vpop.f32.mrf.mxu0
      %v7019 = vpop.f32.mrf.mxu0
      %v7020 = vpop.f32.mrf.mxu0
      %7021 = vdwg.mxu0
      %7022 = vmatprep.subr.bf16.mxu0 0
      %7023 = vmatpush1.bf16.msra.mxu0 0
      %7024 = vmatprep.subr.bf16.mxu0 0
      %7025 = vmatpush1.bf16.msra.mxu0 0
      %7026 = vmatprep.subr.bf16.mxu0 0
      %7027 = vmatpush1.bf16.msra.mxu0 0
      %7028 = vmatprep.subr.bf16.mxu0 0
      %7029 = vmatpush1.bf16.msra.mxu0 0
      %7030 = vmatprep.subr.bf16.mxu0 0
      %7031 = vmatpush1.bf16.msra.mxu0 %v3054
      %7032 = vmatprep.subr.bf16.mxu0 0
      %7033 = vmatpush1.bf16.msra.mxu0 %v3053
      %7034 = vmatprep.subr.bf16.mxu0 0
      %7035 = vmatpush1.bf16.msra.mxu0 %v3052
      %7036 = vmatprep.subr.bf16.mxu0 0
      %7037 = vmatpush1.bf16.msra.mxu0 %v3051
      %7038 = vmatprep.subr.bf16.mxu0 0
      %7039 = vmatpush2.bf16.msra.mxu0 0
      %7040 = vmatprep.subr.bf16.mxu0 0
      %7041 = vmatpush2.bf16.msra.mxu0 0
      %7042 = vmatprep.subr.bf16.mxu0 0
      %7043 = vmatpush2.bf16.msra.mxu0 0
      %7044 = vmatprep.subr.bf16.mxu0 0
      %7045 = vmatpush2.bf16.msra.mxu0 0
      %7046 = vmatprep.subr.bf16.mxu0 0
      %7047 = vmatpush2.bf16.msra.mxu0 0
      %7048 = vmatprep.subr.bf16.mxu0 0
      %7049 = vmatpush2.bf16.msra.mxu0 0
      %7050 = vmatprep.subr.bf16.mxu0 0
      %7051 = vmatpush2.bf16.msra.mxu0 0
      %7052 = vmatprep.subr.bf16.mxu0 0
      %7053 = vmatpush2.bf16.msra.mxu0 0
      %7054 = vmatprep.mubr.bf16.mxu0 0
      %7055 = vmatmul.mubr.bf16.gmra.mxu0 %v5472
      %v7056 = vpop.f32.mrf.mxu0
      %v7057 = vadd.f32 0.0, %v7056
      %v7058 = vpop.f32.mrf.mxu0
      %v7059 = vpop.f32.mrf.mxu0
      %v7060 = vpop.f32.mrf.mxu0
      %7061 = vdwg.mxu0
      %7062 = vmatprep.subr.bf16.mxu0 0
      %7063 = vmatpush1.bf16.msra.mxu0 0
      %7064 = vmatprep.subr.bf16.mxu0 0
      %7065 = vmatpush1.bf16.msra.mxu0 0
      %7066 = vmatprep.subr.bf16.mxu0 0
      %7067 = vmatpush1.bf16.msra.mxu0 0
      %7068 = vmatprep.subr.bf16.mxu0 0
      %7069 = vmatpush1.bf16.msra.mxu0 0
      %7070 = vmatprep.subr.bf16.mxu0 0
      %7071 = vmatpush1.bf16.msra.mxu0 %v3121
      %7072 = vmatprep.subr.bf16.mxu0 0
      %7073 = vmatpush1.bf16.msra.mxu0 %v3120
      %7074 = vmatprep.subr.bf16.mxu0 0
      %7075 = vmatpush1.bf16.msra.mxu0 %v3119
      %7076 = vmatprep.subr.bf16.mxu0 0
      %7077 = vmatpush1.bf16.msra.mxu0 %v3118
      %7078 = vmatprep.subr.bf16.mxu0 0
      %7079 = vmatpush2.bf16.msra.mxu0 0
      %7080 = vmatprep.subr.bf16.mxu0 0
      %7081 = vmatpush2.bf16.msra.mxu0 0
      %7082 = vmatprep.subr.bf16.mxu0 0
      %7083 = vmatpush2.bf16.msra.mxu0 0
      %7084 = vmatprep.subr.bf16.mxu0 0
      %7085 = vmatpush2.bf16.msra.mxu0 0
      %7086 = vmatprep.subr.bf16.mxu0 0
      %7087 = vmatpush2.bf16.msra.mxu0 0
      %7088 = vmatprep.subr.bf16.mxu0 0
      %7089 = vmatpush2.bf16.msra.mxu0 0
      %7090 = vmatprep.subr.bf16.mxu0 0
      %7091 = vmatpush2.bf16.msra.mxu0 0
      %7092 = vmatprep.subr.bf16.mxu0 0
      %7093 = vmatpush2.bf16.msra.mxu0 0
      %7094 = vmatprep.mubr.bf16.mxu0 0
      %7095 = vmatmul.mubr.bf16.gmra.mxu0 %v5539
      %v7096 = vpop.f32.mrf.mxu0
      %v7097 = vadd.f32 0.0, %v7096
      %v7098 = vpop.f32.mrf.mxu0
      %v7099 = vpop.f32.mrf.mxu0
      %v7100 = vpop.f32.mrf.mxu0
      %7101 = vdwg.mxu0
      %7102 = vmatprep.subr.bf16.mxu0 0
      %7103 = vmatpush1.bf16.msra.mxu0 0
      %7104 = vmatprep.subr.bf16.mxu0 0
      %7105 = vmatpush1.bf16.msra.mxu0 0
      %7106 = vmatprep.subr.bf16.mxu0 0
      %7107 = vmatpush1.bf16.msra.mxu0 0
      %7108 = vmatprep.subr.bf16.mxu0 0
      %7109 = vmatpush1.bf16.msra.mxu0 0
      %7110 = vmatprep.subr.bf16.mxu0 0
      %7111 = vmatpush1.bf16.msra.mxu0 %v3188
      %7112 = vmatprep.subr.bf16.mxu0 0
      %7113 = vmatpush1.bf16.msra.mxu0 %v3187
      %7114 = vmatprep.subr.bf16.mxu0 0
      %7115 = vmatpush1.bf16.msra.mxu0 %v3186
      %7116 = vmatprep.subr.bf16.mxu0 0
      %7117 = vmatpush1.bf16.msra.mxu0 %v3185
      %7118 = vmatprep.subr.bf16.mxu0 0
      %7119 = vmatpush2.bf16.msra.mxu0 0
      %7120 = vmatprep.subr.bf16.mxu0 0
      %7121 = vmatpush2.bf16.msra.mxu0 0
      %7122 = vmatprep.subr.bf16.mxu0 0
      %7123 = vmatpush2.bf16.msra.mxu0 0
      %7124 = vmatprep.subr.bf16.mxu0 0
      %7125 = vmatpush2.bf16.msra.mxu0 0
      %7126 = vmatprep.subr.bf16.mxu0 0
      %7127 = vmatpush2.bf16.msra.mxu0 0
      %7128 = vmatprep.subr.bf16.mxu0 0
      %7129 = vmatpush2.bf16.msra.mxu0 0
      %7130 = vmatprep.subr.bf16.mxu0 0
      %7131 = vmatpush2.bf16.msra.mxu0 0
      %7132 = vmatprep.subr.bf16.mxu0 0
      %7133 = vmatpush2.bf16.msra.mxu0 0
      %7134 = vmatprep.mubr.bf16.mxu0 0
      %7135 = vmatmul.mubr.bf16.gmra.mxu0 %v5606
      %v7136 = vpop.f32.mrf.mxu0
      %v7137 = vadd.f32 0.0, %v7136
      %v7138 = vpop.f32.mrf.mxu0
      %v7139 = vpop.f32.mrf.mxu0
      %v7140 = vpop.f32.mrf.mxu0
      %7141 = vdwg.mxu0
      %7142 = vmatprep.subr.bf16.mxu0 0
      %7143 = vmatpush1.bf16.msra.mxu0 0
      %7144 = vmatprep.subr.bf16.mxu0 0
      %7145 = vmatpush1.bf16.msra.mxu0 0
      %7146 = vmatprep.subr.bf16.mxu0 0
      %7147 = vmatpush1.bf16.msra.mxu0 0
      %7148 = vmatprep.subr.bf16.mxu0 0
      %7149 = vmatpush1.bf16.msra.mxu0 0
      %7150 = vmatprep.subr.bf16.mxu0 0
      %7151 = vmatpush1.bf16.msra.mxu0 %v3255
      %7152 = vmatprep.subr.bf16.mxu0 0
      %7153 = vmatpush1.bf16.msra.mxu0 %v3254
      %7154 = vmatprep.subr.bf16.mxu0 0
      %7155 = vmatpush1.bf16.msra.mxu0 %v3253
      %7156 = vmatprep.subr.bf16.mxu0 0
      %7157 = vmatpush1.bf16.msra.mxu0 %v3252
      %7158 = vmatprep.subr.bf16.mxu0 0
      %7159 = vmatpush2.bf16.msra.mxu0 0
      %7160 = vmatprep.subr.bf16.mxu0 0
      %7161 = vmatpush2.bf16.msra.mxu0 0
      %7162 = vmatprep.subr.bf16.mxu0 0
      %7163 = vmatpush2.bf16.msra.mxu0 0
      %7164 = vmatprep.subr.bf16.mxu0 0
      %7165 = vmatpush2.bf16.msra.mxu0 0
      %7166 = vmatprep.subr.bf16.mxu0 0
      %7167 = vmatpush2.bf16.msra.mxu0 0
      %7168 = vmatprep.subr.bf16.mxu0 0
      %7169 = vmatpush2.bf16.msra.mxu0 0
      %7170 = vmatprep.subr.bf16.mxu0 0
      %7171 = vmatpush2.bf16.msra.mxu0 0
      %7172 = vmatprep.subr.bf16.mxu0 0
      %7173 = vmatpush2.bf16.msra.mxu0 0
      %7174 = vmatprep.mubr.bf16.mxu0 0
      %7175 = vmatmul.mubr.bf16.gmra.mxu0 %v5673
      %v7176 = vpop.f32.mrf.mxu0
      %v7177 = vadd.f32 0.0, %v7176
      %v7178 = vpop.f32.mrf.mxu0
      %v7179 = vpop.f32.mrf.mxu0
      %v7180 = vpop.f32.mrf.mxu0
      %7181 = vdwg.mxu0
      %7182 = vmatprep.subr.bf16.mxu0 0
      %7183 = vmatpush1.bf16.msra.mxu0 0
      %7184 = vmatprep.subr.bf16.mxu0 0
      %7185 = vmatpush1.bf16.msra.mxu0 0
      %7186 = vmatprep.subr.bf16.mxu0 0
      %7187 = vmatpush1.bf16.msra.mxu0 0
      %7188 = vmatprep.subr.bf16.mxu0 0
      %7189 = vmatpush1.bf16.msra.mxu0 0
      %7190 = vmatprep.subr.bf16.mxu0 0
      %7191 = vmatpush1.bf16.msra.mxu0 %v3322
      %7192 = vmatprep.subr.bf16.mxu0 0
      %7193 = vmatpush1.bf16.msra.mxu0 %v3321
      %7194 = vmatprep.subr.bf16.mxu0 0
      %7195 = vmatpush1.bf16.msra.mxu0 %v3320
      %7196 = vmatprep.subr.bf16.mxu0 0
      %7197 = vmatpush1.bf16.msra.mxu0 %v3319
      %7198 = vmatprep.subr.bf16.mxu0 0
      %7199 = vmatpush2.bf16.msra.mxu0 0
      %7200 = vmatprep.subr.bf16.mxu0 0
      %7201 = vmatpush2.bf16.msra.mxu0 0
      %7202 = vmatprep.subr.bf16.mxu0 0
      %7203 = vmatpush2.bf16.msra.mxu0 0
      %7204 = vmatprep.subr.bf16.mxu0 0
      %7205 = vmatpush2.bf16.msra.mxu0 0
      %7206 = vmatprep.subr.bf16.mxu0 0
      %7207 = vmatpush2.bf16.msra.mxu0 0
      %7208 = vmatprep.subr.bf16.mxu0 0
      %7209 = vmatpush2.bf16.msra.mxu0 0
      %7210 = vmatprep.subr.bf16.mxu0 0
      %7211 = vmatpush2.bf16.msra.mxu0 0
      %7212 = vmatprep.subr.bf16.mxu0 0
      %7213 = vmatpush2.bf16.msra.mxu0 0
      %7214 = vmatprep.mubr.bf16.mxu0 0
      %7215 = vmatmul.mubr.bf16.gmra.mxu0 %v5740
      %v7216 = vpop.f32.mrf.mxu0
      %v7217 = vadd.f32 0.0, %v7216
      %v7218 = vpop.f32.mrf.mxu0
      %v7219 = vpop.f32.mrf.mxu0
      %v7220 = vpop.f32.mrf.mxu0
      %7221 = vdwg.mxu0
      %v7222 = vsub.f32 %v1020, %v3432
      %v7223 = vsub.f32 %v1087, %v3499
      %v7224 = vsub.f32 %v1154, %v3566
      %v7225 = vsub.f32 %v1221, %v3633
      %v7226 = vsub.f32 %v1288, %v3700
      %v7227 = vsub.f32 %v1355, %v3767
      %v7228 = vsub.f32 %v1422, %v3834
      %v7229 = vsub.f32 %v1489, %v3901
      %v7230 = vsub.f32 %v1556, %v3968
      %v7231 = vsub.f32 %v1623, %v4035
      %v7232 = vsub.f32 %v1690, %v4102
      %v7233 = vsub.f32 %v1757, %v4169
      %v7234 = vsub.f32 %v1824, %v4236
      %v7235 = vsub.f32 %v1891, %v4303
      %v7236 = vsub.f32 %v1958, %v4370
      %v7237 = vsub.f32 %v2025, %v4437
      %v7238 = vsub.f32 %v2092, %v4504
      %v7239 = vsub.f32 %v2159, %v4571
      %v7240 = vsub.f32 %v2226, %v4638
      %v7241 = vsub.f32 %v2293, %v4705
      %v7242 = vsub.f32 %v2360, %v4772
      %v7243 = vsub.f32 %v2427, %v4839
      %v7244 = vsub.f32 %v2494, %v4906
      %v7245 = vsub.f32 %v2561, %v4973
      %v7246 = vsub.f32 %v2628, %v5040
      %v7247 = vsub.f32 %v2695, %v5107
      %v7248 = vsub.f32 %v2762, %v5174
      %v7249 = vsub.f32 %v2829, %v5241
      %v7250 = vsub.f32 %v2896, %v5308
      %v7251 = vsub.f32 %v2963, %v5375
      %v7252 = vsub.f32 %v3030, %v5442
      %v7253 = vsub.f32 %v3097, %v5509
      %v7254 = vsub.f32 %v3164, %v5576
      %v7255 = vsub.f32 %v3231, %v5643
      %v7256 = vsub.f32 %v3298, %v5710
      %v7257 = vsub.f32 %v3365, %v5777
      %vm7258 = vcmask 517120
      %7259 = vst.msk [vmem:[%s300] sm:$0x3] %vm7258, %v7222
      %7260 = vst.msk [vmem:[%s300 + $0x2] sm:$0x3] %vm7258, %v7223
      %7261 = vst.msk [vmem:[%s300 + $0x4] sm:$0x3] %vm7258, %v7224
      %7262 = vst.msk [vmem:[%s300 + $0x6] sm:$0x3] %vm7258, %v7225
      %7263 = vst.msk [vmem:[%s300 + $0x8] sm:$0x3] %vm7258, %v7226
      %7264 = vst.msk [vmem:[%s300 + $0xa] sm:$0x3] %vm7258, %v7227
      %7265 = vst.msk [vmem:[%s300 + $0xc] sm:$0x3] %vm7258, %v7228
      %7266 = vst.msk [vmem:[%s300 + $0xe] sm:$0x3] %vm7258, %v7229
      %7267 = vst.msk [vmem:[%s300 + $0x10] sm:$0x3] %vm7258, %v7230
      %7268 = vst.msk [vmem:[%s300 + $0x12] sm:$0x3] %vm7258, %v7231
      %7269 = vst.msk [vmem:[%s300 + $0x14] sm:$0x3] %vm7258, %v7232
      %7270 = vst.msk [vmem:[%s300 + $0x16] sm:$0x3] %vm7258, %v7233
      %7271 = vst.msk [vmem:[%s300 + $0x18] sm:$0x3] %vm7258, %v7234
      %7272 = vst.msk [vmem:[%s300 + $0x1a] sm:$0x3] %vm7258, %v7235
      %7273 = vst.msk [vmem:[%s300 + $0x1c] sm:$0x3] %vm7258, %v7236
      %7274 = vst.msk [vmem:[%s300 + $0x1e] sm:$0x3] %vm7258, %v7237
      %7275 = vst.msk [vmem:[%s300 + $0x20] sm:$0x3] %vm7258, %v7238
      %7276 = vst.msk [vmem:[%s300 + $0x22] sm:$0x3] %vm7258, %v7239
      %7277 = vst.msk [vmem:[%s300 + $0x24] sm:$0x3] %vm7258, %v7240
      %7278 = vst.msk [vmem:[%s300 + $0x26] sm:$0x3] %vm7258, %v7241
      %7279 = vst.msk [vmem:[%s300 + $0x28] sm:$0x3] %vm7258, %v7242
      %7280 = vst.msk [vmem:[%s300 + $0x2a] sm:$0x3] %vm7258, %v7243
      %7281 = vst.msk [vmem:[%s300 + $0x2c] sm:$0x3] %vm7258, %v7244
      %7282 = vst.msk [vmem:[%s300 + $0x2e] sm:$0x3] %vm7258, %v7245
      %7283 = vst.msk [vmem:[%s300 + $0x30] sm:$0x3] %vm7258, %v7246
      %7284 = vst.msk [vmem:[%s300 + $0x32] sm:$0x3] %vm7258, %v7247
      %7285 = vst.msk [vmem:[%s300 + $0x34] sm:$0x3] %vm7258, %v7248
      %7286 = vst.msk [vmem:[%s300 + $0x36] sm:$0x3] %vm7258, %v7249
      %7287 = vst.msk [vmem:[%s300 + $0x38] sm:$0x3] %vm7258, %v7250
      %7288 = vst.msk [vmem:[%s300 + $0x3a] sm:$0x3] %vm7258, %v7251
      %7289 = vst.msk [vmem:[%s300 + $0x3c] sm:$0x3] %vm7258, %v7252
      %7290 = vst.msk [vmem:[%s300 + $0x3e] sm:$0x3] %vm7258, %v7253
      %7291 = vst.msk [vmem:[%s300 + $0x40] sm:$0x3] %vm7258, %v7254
      %7292 = vst.msk [vmem:[%s300 + $0x42] sm:$0x3] %vm7258, %v7255
      %7293 = vst.msk [vmem:[%s300 + $0x44] sm:$0x3] %vm7258, %v7256
      %7294 = vst.msk [vmem:[%s300 + $0x46] sm:$0x3] %vm7258, %v7257
      %7295 = vmatprep.subr.bf16.mxu0 0
      %7296 = vmatpush1.bf16.msra.mxu0 0
      %7297 = vmatprep.subr.bf16.mxu0 0
      %7298 = vmatpush1.bf16.msra.mxu0 0
      %7299 = vmatprep.subr.bf16.mxu0 0
      %7300 = vmatpush1.bf16.msra.mxu0 0
      %7301 = vmatprep.subr.bf16.mxu0 0
      %7302 = vmatpush1.bf16.msra.mxu0 0
      %7303 = vmatprep.subr.bf16.mxu0 0
      %7304 = vmatpush1.bf16.msra.mxu0 %v3389
      %7305 = vmatprep.subr.bf16.mxu0 0
      %7306 = vmatpush1.bf16.msra.mxu0 %v3388
      %7307 = vmatprep.subr.bf16.mxu0 0
      %7308 = vmatpush1.bf16.msra.mxu0 %v3387
      %7309 = vmatprep.subr.bf16.mxu0 0
      %7310 = vmatpush1.bf16.msra.mxu0 %v3386
      %7311 = vmatprep.subr.bf16.mxu0 0
      %7312 = vmatpush2.bf16.msra.mxu0 0
      %7313 = vmatprep.subr.bf16.mxu0 0
      %7314 = vmatpush2.bf16.msra.mxu0 0
      %7315 = vmatprep.subr.bf16.mxu0 0
      %7316 = vmatpush2.bf16.msra.mxu0 0
      %7317 = vmatprep.subr.bf16.mxu0 0
      %7318 = vmatpush2.bf16.msra.mxu0 0
      %7319 = vmatprep.subr.bf16.mxu0 0
      %7320 = vmatpush2.bf16.msra.mxu0 0
      %7321 = vmatprep.subr.bf16.mxu0 0
      %7322 = vmatpush2.bf16.msra.mxu0 0
      %7323 = vmatprep.subr.bf16.mxu0 0
      %7324 = vmatpush2.bf16.msra.mxu0 0
      %7325 = vmatprep.subr.bf16.mxu0 0
      %7326 = vmatpush2.bf16.msra.mxu0 0
      %7327 = vmatprep.mubr.bf16.mxu0 0
      %7328 = vmatmul.mubr.bf16.gmra.mxu0 %v983
      %v7329 = vpop.f32.mrf.mxu0
      %v7330 = vadd.f32 %v5817, %v7329
      %v7331 = vpop.f32.mrf.mxu0
      %v7332 = vpop.f32.mrf.mxu0
      %v7333 = vpop.f32.mrf.mxu0
      %7334 = vdwg.mxu0
      %7335 = vmatprep.subr.bf16.mxu0 0
      %7336 = vmatpush1.bf16.msra.mxu0 0
      %7337 = vmatprep.subr.bf16.mxu0 0
      %7338 = vmatpush1.bf16.msra.mxu0 0
      %7339 = vmatprep.subr.bf16.mxu0 0
      %7340 = vmatpush1.bf16.msra.mxu0 0
      %7341 = vmatprep.subr.bf16.mxu0 0
      %7342 = vmatpush1.bf16.msra.mxu0 0
      %7343 = vmatprep.subr.bf16.mxu0 0
      %7344 = vmatpush1.bf16.msra.mxu0 %v3456
      %7345 = vmatprep.subr.bf16.mxu0 0
      %7346 = vmatpush1.bf16.msra.mxu0 %v3455
      %7347 = vmatprep.subr.bf16.mxu0 0
      %7348 = vmatpush1.bf16.msra.mxu0 %v3454
      %7349 = vmatprep.subr.bf16.mxu0 0
      %7350 = vmatpush1.bf16.msra.mxu0 %v3453
      %7351 = vmatprep.subr.bf16.mxu0 0
      %7352 = vmatpush2.bf16.msra.mxu0 0
      %7353 = vmatprep.subr.bf16.mxu0 0
      %7354 = vmatpush2.bf16.msra.mxu0 0
      %7355 = vmatprep.subr.bf16.mxu0 0
      %7356 = vmatpush2.bf16.msra.mxu0 0
      %7357 = vmatprep.subr.bf16.mxu0 0
      %7358 = vmatpush2.bf16.msra.mxu0 0
      %7359 = vmatprep.subr.bf16.mxu0 0
      %7360 = vmatpush2.bf16.msra.mxu0 0
      %7361 = vmatprep.subr.bf16.mxu0 0
      %7362 = vmatpush2.bf16.msra.mxu0 0
      %7363 = vmatprep.subr.bf16.mxu0 0
      %7364 = vmatpush2.bf16.msra.mxu0 0
      %7365 = vmatprep.subr.bf16.mxu0 0
      %7366 = vmatpush2.bf16.msra.mxu0 0
      %7367 = vmatprep.mubr.bf16.mxu0 0
      %7368 = vmatmul.mubr.bf16.gmra.mxu0 %v1050
      %v7369 = vpop.f32.mrf.mxu0
      %v7370 = vadd.f32 %v5857, %v7369
      %v7371 = vpop.f32.mrf.mxu0
      %v7372 = vpop.f32.mrf.mxu0
      %v7373 = vpop.f32.mrf.mxu0
      %7374 = vdwg.mxu0
      %7375 = vmatprep.subr.bf16.mxu0 0
      %7376 = vmatpush1.bf16.msra.mxu0 0
      %7377 = vmatprep.subr.bf16.mxu0 0
      %7378 = vmatpush1.bf16.msra.mxu0 0
      %7379 = vmatprep.subr.bf16.mxu0 0
      %7380 = vmatpush1.bf16.msra.mxu0 0
      %7381 = vmatprep.subr.bf16.mxu0 0
      %7382 = vmatpush1.bf16.msra.mxu0 0
      %7383 = vmatprep.subr.bf16.mxu0 0
      %7384 = vmatpush1.bf16.msra.mxu0 %v3523
      %7385 = vmatprep.subr.bf16.mxu0 0
      %7386 = vmatpush1.bf16.msra.mxu0 %v3522
      %7387 = vmatprep.subr.bf16.mxu0 0
      %7388 = vmatpush1.bf16.msra.mxu0 %v3521
      %7389 = vmatprep.subr.bf16.mxu0 0
      %7390 = vmatpush1.bf16.msra.mxu0 %v3520
      %7391 = vmatprep.subr.bf16.mxu0 0
      %7392 = vmatpush2.bf16.msra.mxu0 0
      %7393 = vmatprep.subr.bf16.mxu0 0
      %7394 = vmatpush2.bf16.msra.mxu0 0
      %7395 = vmatprep.subr.bf16.mxu0 0
      %7396 = vmatpush2.bf16.msra.mxu0 0
      %7397 = vmatprep.subr.bf16.mxu0 0
      %7398 = vmatpush2.bf16.msra.mxu0 0
      %7399 = vmatprep.subr.bf16.mxu0 0
      %7400 = vmatpush2.bf16.msra.mxu0 0
      %7401 = vmatprep.subr.bf16.mxu0 0
      %7402 = vmatpush2.bf16.msra.mxu0 0
      %7403 = vmatprep.subr.bf16.mxu0 0
      %7404 = vmatpush2.bf16.msra.mxu0 0
      %7405 = vmatprep.subr.bf16.mxu0 0
      %7406 = vmatpush2.bf16.msra.mxu0 0
      %7407 = vmatprep.mubr.bf16.mxu0 0
      %7408 = vmatmul.mubr.bf16.gmra.mxu0 %v1117
      %v7409 = vpop.f32.mrf.mxu0
      %v7410 = vadd.f32 %v5897, %v7409
      %v7411 = vpop.f32.mrf.mxu0
      %v7412 = vpop.f32.mrf.mxu0
      %v7413 = vpop.f32.mrf.mxu0
      %7414 = vdwg.mxu0
      %7415 = vmatprep.subr.bf16.mxu0 0
      %7416 = vmatpush1.bf16.msra.mxu0 0
      %7417 = vmatprep.subr.bf16.mxu0 0
      %7418 = vmatpush1.bf16.msra.mxu0 0
      %7419 = vmatprep.subr.bf16.mxu0 0
      %7420 = vmatpush1.bf16.msra.mxu0 0
      %7421 = vmatprep.subr.bf16.mxu0 0
      %7422 = vmatpush1.bf16.msra.mxu0 0
      %7423 = vmatprep.subr.bf16.mxu0 0
      %7424 = vmatpush1.bf16.msra.mxu0 %v3590
      %7425 = vmatprep.subr.bf16.mxu0 0
      %7426 = vmatpush1.bf16.msra.mxu0 %v3589
      %7427 = vmatprep.subr.bf16.mxu0 0
      %7428 = vmatpush1.bf16.msra.mxu0 %v3588
      %7429 = vmatprep.subr.bf16.mxu0 0
      %7430 = vmatpush1.bf16.msra.mxu0 %v3587
      %7431 = vmatprep.subr.bf16.mxu0 0
      %7432 = vmatpush2.bf16.msra.mxu0 0
      %7433 = vmatprep.subr.bf16.mxu0 0
      %7434 = vmatpush2.bf16.msra.mxu0 0
      %7435 = vmatprep.subr.bf16.mxu0 0
      %7436 = vmatpush2.bf16.msra.mxu0 0
      %7437 = vmatprep.subr.bf16.mxu0 0
      %7438 = vmatpush2.bf16.msra.mxu0 0
      %7439 = vmatprep.subr.bf16.mxu0 0
      %7440 = vmatpush2.bf16.msra.mxu0 0
      %7441 = vmatprep.subr.bf16.mxu0 0
      %7442 = vmatpush2.bf16.msra.mxu0 0
      %7443 = vmatprep.subr.bf16.mxu0 0
      %7444 = vmatpush2.bf16.msra.mxu0 0
      %7445 = vmatprep.subr.bf16.mxu0 0
      %7446 = vmatpush2.bf16.msra.mxu0 0
      %7447 = vmatprep.mubr.bf16.mxu0 0
      %7448 = vmatmul.mubr.bf16.gmra.mxu0 %v1184
      %v7449 = vpop.f32.mrf.mxu0
      %v7450 = vadd.f32 %v5937, %v7449
      %v7451 = vpop.f32.mrf.mxu0
      %v7452 = vpop.f32.mrf.mxu0
      %v7453 = vpop.f32.mrf.mxu0
      %7454 = vdwg.mxu0
      %7455 = vmatprep.subr.bf16.mxu0 0
      %7456 = vmatpush1.bf16.msra.mxu0 0
      %7457 = vmatprep.subr.bf16.mxu0 0
      %7458 = vmatpush1.bf16.msra.mxu0 0
      %7459 = vmatprep.subr.bf16.mxu0 0
      %7460 = vmatpush1.bf16.msra.mxu0 0
      %7461 = vmatprep.subr.bf16.mxu0 0
      %7462 = vmatpush1.bf16.msra.mxu0 0
      %7463 = vmatprep.subr.bf16.mxu0 0
      %7464 = vmatpush1.bf16.msra.mxu0 %v3657
      %7465 = vmatprep.subr.bf16.mxu0 0
      %7466 = vmatpush1.bf16.msra.mxu0 %v3656
      %7467 = vmatprep.subr.bf16.mxu0 0
      %7468 = vmatpush1.bf16.msra.mxu0 %v3655
      %7469 = vmatprep.subr.bf16.mxu0 0
      %7470 = vmatpush1.bf16.msra.mxu0 %v3654
      %7471 = vmatprep.subr.bf16.mxu0 0
      %7472 = vmatpush2.bf16.msra.mxu0 0
      %7473 = vmatprep.subr.bf16.mxu0 0
      %7474 = vmatpush2.bf16.msra.mxu0 0
      %7475 = vmatprep.subr.bf16.mxu0 0
      %7476 = vmatpush2.bf16.msra.mxu0 0
      %7477 = vmatprep.subr.bf16.mxu0 0
      %7478 = vmatpush2.bf16.msra.mxu0 0
      %7479 = vmatprep.subr.bf16.mxu0 0
      %7480 = vmatpush2.bf16.msra.mxu0 0
      %7481 = vmatprep.subr.bf16.mxu0 0
      %7482 = vmatpush2.bf16.msra.mxu0 0
      %7483 = vmatprep.subr.bf16.mxu0 0
      %7484 = vmatpush2.bf16.msra.mxu0 0
      %7485 = vmatprep.subr.bf16.mxu0 0
      %7486 = vmatpush2.bf16.msra.mxu0 0
      %7487 = vmatprep.mubr.bf16.mxu0 0
      %7488 = vmatmul.mubr.bf16.gmra.mxu0 %v1251
      %v7489 = vpop.f32.mrf.mxu0
      %v7490 = vadd.f32 %v5977, %v7489
      %v7491 = vpop.f32.mrf.mxu0
      %v7492 = vpop.f32.mrf.mxu0
      %v7493 = vpop.f32.mrf.mxu0
      %7494 = vdwg.mxu0
      %7495 = vmatprep.subr.bf16.mxu0 0
      %7496 = vmatpush1.bf16.msra.mxu0 0
      %7497 = vmatprep.subr.bf16.mxu0 0
      %7498 = vmatpush1.bf16.msra.mxu0 0
      %7499 = vmatprep.subr.bf16.mxu0 0
      %7500 = vmatpush1.bf16.msra.mxu0 0
      %7501 = vmatprep.subr.bf16.mxu0 0
      %7502 = vmatpush1.bf16.msra.mxu0 0
      %7503 = vmatprep.subr.bf16.mxu0 0
      %7504 = vmatpush1.bf16.msra.mxu0 %v3724
      %7505 = vmatprep.subr.bf16.mxu0 0
      %7506 = vmatpush1.bf16.msra.mxu0 %v3723
      %7507 = vmatprep.subr.bf16.mxu0 0
      %7508 = vmatpush1.bf16.msra.mxu0 %v3722
      %7509 = vmatprep.subr.bf16.mxu0 0
      %7510 = vmatpush1.bf16.msra.mxu0 %v3721
      %7511 = vmatprep.subr.bf16.mxu0 0
      %7512 = vmatpush2.bf16.msra.mxu0 0
      %7513 = vmatprep.subr.bf16.mxu0 0
      %7514 = vmatpush2.bf16.msra.mxu0 0
      %7515 = vmatprep.subr.bf16.mxu0 0
      %7516 = vmatpush2.bf16.msra.mxu0 0
      %7517 = vmatprep.subr.bf16.mxu0 0
      %7518 = vmatpush2.bf16.msra.mxu0 0
      %7519 = vmatprep.subr.bf16.mxu0 0
      %7520 = vmatpush2.bf16.msra.mxu0 0
      %7521 = vmatprep.subr.bf16.mxu0 0
      %7522 = vmatpush2.bf16.msra.mxu0 0
      %7523 = vmatprep.subr.bf16.mxu0 0
      %7524 = vmatpush2.bf16.msra.mxu0 0
      %7525 = vmatprep.subr.bf16.mxu0 0
      %7526 = vmatpush2.bf16.msra.mxu0 0
      %7527 = vmatprep.mubr.bf16.mxu0 0
      %7528 = vmatmul.mubr.bf16.gmra.mxu0 %v1318
      %v7529 = vpop.f32.mrf.mxu0
      %v7530 = vadd.f32 %v6017, %v7529
      %v7531 = vpop.f32.mrf.mxu0
      %v7532 = vpop.f32.mrf.mxu0
      %v7533 = vpop.f32.mrf.mxu0
      %7534 = vdwg.mxu0
      %7535 = vmatprep.subr.bf16.mxu0 0
      %7536 = vmatpush1.bf16.msra.mxu0 0
      %7537 = vmatprep.subr.bf16.mxu0 0
      %7538 = vmatpush1.bf16.msra.mxu0 0
      %7539 = vmatprep.subr.bf16.mxu0 0
      %7540 = vmatpush1.bf16.msra.mxu0 0
      %7541 = vmatprep.subr.bf16.mxu0 0
      %7542 = vmatpush1.bf16.msra.mxu0 0
      %7543 = vmatprep.subr.bf16.mxu0 0
      %7544 = vmatpush1.bf16.msra.mxu0 %v3791
      %7545 = vmatprep.subr.bf16.mxu0 0
      %7546 = vmatpush1.bf16.msra.mxu0 %v3790
      %7547 = vmatprep.subr.bf16.mxu0 0
      %7548 = vmatpush1.bf16.msra.mxu0 %v3789
      %7549 = vmatprep.subr.bf16.mxu0 0
      %7550 = vmatpush1.bf16.msra.mxu0 %v3788
      %7551 = vmatprep.subr.bf16.mxu0 0
      %7552 = vmatpush2.bf16.msra.mxu0 0
      %7553 = vmatprep.subr.bf16.mxu0 0
      %7554 = vmatpush2.bf16.msra.mxu0 0
      %7555 = vmatprep.subr.bf16.mxu0 0
      %7556 = vmatpush2.bf16.msra.mxu0 0
      %7557 = vmatprep.subr.bf16.mxu0 0
      %7558 = vmatpush2.bf16.msra.mxu0 0
      %7559 = vmatprep.subr.bf16.mxu0 0
      %7560 = vmatpush2.bf16.msra.mxu0 0
      %7561 = vmatprep.subr.bf16.mxu0 0
      %7562 = vmatpush2.bf16.msra.mxu0 0
      %7563 = vmatprep.subr.bf16.mxu0 0
      %7564 = vmatpush2.bf16.msra.mxu0 0
      %7565 = vmatprep.subr.bf16.mxu0 0
      %7566 = vmatpush2.bf16.msra.mxu0 0
      %7567 = vmatprep.mubr.bf16.mxu0 0
      %7568 = vmatmul.mubr.bf16.gmra.mxu0 %v1385
      %v7569 = vpop.f32.mrf.mxu0
      %v7570 = vadd.f32 %v6057, %v7569
      %v7571 = vpop.f32.mrf.mxu0
      %v7572 = vpop.f32.mrf.mxu0
      %v7573 = vpop.f32.mrf.mxu0
      %7574 = vdwg.mxu0
      %7575 = vmatprep.subr.bf16.mxu0 0
      %7576 = vmatpush1.bf16.msra.mxu0 0
      %7577 = vmatprep.subr.bf16.mxu0 0
      %7578 = vmatpush1.bf16.msra.mxu0 0
      %7579 = vmatprep.subr.bf16.mxu0 0
      %7580 = vmatpush1.bf16.msra.mxu0 0
      %7581 = vmatprep.subr.bf16.mxu0 0
      %7582 = vmatpush1.bf16.msra.mxu0 0
      %7583 = vmatprep.subr.bf16.mxu0 0
      %7584 = vmatpush1.bf16.msra.mxu0 %v3858
      %7585 = vmatprep.subr.bf16.mxu0 0
      %7586 = vmatpush1.bf16.msra.mxu0 %v3857
      %7587 = vmatprep.subr.bf16.mxu0 0
      %7588 = vmatpush1.bf16.msra.mxu0 %v3856
      %7589 = vmatprep.subr.bf16.mxu0 0
      %7590 = vmatpush1.bf16.msra.mxu0 %v3855
      %7591 = vmatprep.subr.bf16.mxu0 0
      %7592 = vmatpush2.bf16.msra.mxu0 0
      %7593 = vmatprep.subr.bf16.mxu0 0
      %7594 = vmatpush2.bf16.msra.mxu0 0
      %7595 = vmatprep.subr.bf16.mxu0 0
      %7596 = vmatpush2.bf16.msra.mxu0 0
      %7597 = vmatprep.subr.bf16.mxu0 0
      %7598 = vmatpush2.bf16.msra.mxu0 0
      %7599 = vmatprep.subr.bf16.mxu0 0
      %7600 = vmatpush2.bf16.msra.mxu0 0
      %7601 = vmatprep.subr.bf16.mxu0 0
      %7602 = vmatpush2.bf16.msra.mxu0 0
      %7603 = vmatprep.subr.bf16.mxu0 0
      %7604 = vmatpush2.bf16.msra.mxu0 0
      %7605 = vmatprep.subr.bf16.mxu0 0
      %7606 = vmatpush2.bf16.msra.mxu0 0
      %7607 = vmatprep.mubr.bf16.mxu0 0
      %7608 = vmatmul.mubr.bf16.gmra.mxu0 %v1452
      %v7609 = vpop.f32.mrf.mxu0
      %v7610 = vadd.f32 %v6097, %v7609
      %v7611 = vpop.f32.mrf.mxu0
      %v7612 = vpop.f32.mrf.mxu0
      %v7613 = vpop.f32.mrf.mxu0
      %7614 = vdwg.mxu0
      %7615 = vmatprep.subr.bf16.mxu0 0
      %7616 = vmatpush1.bf16.msra.mxu0 0
      %7617 = vmatprep.subr.bf16.mxu0 0
      %7618 = vmatpush1.bf16.msra.mxu0 0
      %7619 = vmatprep.subr.bf16.mxu0 0
      %7620 = vmatpush1.bf16.msra.mxu0 0
      %7621 = vmatprep.subr.bf16.mxu0 0
      %7622 = vmatpush1.bf16.msra.mxu0 0
      %7623 = vmatprep.subr.bf16.mxu0 0
      %7624 = vmatpush1.bf16.msra.mxu0 %v3925
      %7625 = vmatprep.subr.bf16.mxu0 0
      %7626 = vmatpush1.bf16.msra.mxu0 %v3924
      %7627 = vmatprep.subr.bf16.mxu0 0
      %7628 = vmatpush1.bf16.msra.mxu0 %v3923
      %7629 = vmatprep.subr.bf16.mxu0 0
      %7630 = vmatpush1.bf16.msra.mxu0 %v3922
      %7631 = vmatprep.subr.bf16.mxu0 0
      %7632 = vmatpush2.bf16.msra.mxu0 0
      %7633 = vmatprep.subr.bf16.mxu0 0
      %7634 = vmatpush2.bf16.msra.mxu0 0
      %7635 = vmatprep.subr.bf16.mxu0 0
      %7636 = vmatpush2.bf16.msra.mxu0 0
      %7637 = vmatprep.subr.bf16.mxu0 0
      %7638 = vmatpush2.bf16.msra.mxu0 0
      %7639 = vmatprep.subr.bf16.mxu0 0
      %7640 = vmatpush2.bf16.msra.mxu0 0
      %7641 = vmatprep.subr.bf16.mxu0 0
      %7642 = vmatpush2.bf16.msra.mxu0 0
      %7643 = vmatprep.subr.bf16.mxu0 0
      %7644 = vmatpush2.bf16.msra.mxu0 0
      %7645 = vmatprep.subr.bf16.mxu0 0
      %7646 = vmatpush2.bf16.msra.mxu0 0
      %7647 = vmatprep.mubr.bf16.mxu0 0
      %7648 = vmatmul.mubr.bf16.gmra.mxu0 %v1519
      %v7649 = vpop.f32.mrf.mxu0
      %v7650 = vadd.f32 %v6137, %v7649
      %v7651 = vpop.f32.mrf.mxu0
      %v7652 = vpop.f32.mrf.mxu0
      %v7653 = vpop.f32.mrf.mxu0
      %7654 = vdwg.mxu0
      %7655 = vmatprep.subr.bf16.mxu0 0
      %7656 = vmatpush1.bf16.msra.mxu0 0
      %7657 = vmatprep.subr.bf16.mxu0 0
      %7658 = vmatpush1.bf16.msra.mxu0 0
      %7659 = vmatprep.subr.bf16.mxu0 0
      %7660 = vmatpush1.bf16.msra.mxu0 0
      %7661 = vmatprep.subr.bf16.mxu0 0
      %7662 = vmatpush1.bf16.msra.mxu0 0
      %7663 = vmatprep.subr.bf16.mxu0 0
      %7664 = vmatpush1.bf16.msra.mxu0 %v3992
      %7665 = vmatprep.subr.bf16.mxu0 0
      %7666 = vmatpush1.bf16.msra.mxu0 %v3991
      %7667 = vmatprep.subr.bf16.mxu0 0
      %7668 = vmatpush1.bf16.msra.mxu0 %v3990
      %7669 = vmatprep.subr.bf16.mxu0 0
      %7670 = vmatpush1.bf16.msra.mxu0 %v3989
      %7671 = vmatprep.subr.bf16.mxu0 0
      %7672 = vmatpush2.bf16.msra.mxu0 0
      %7673 = vmatprep.subr.bf16.mxu0 0
      %7674 = vmatpush2.bf16.msra.mxu0 0
      %7675 = vmatprep.subr.bf16.mxu0 0
      %7676 = vmatpush2.bf16.msra.mxu0 0
      %7677 = vmatprep.subr.bf16.mxu0 0
      %7678 = vmatpush2.bf16.msra.mxu0 0
      %7679 = vmatprep.subr.bf16.mxu0 0
      %7680 = vmatpush2.bf16.msra.mxu0 0
      %7681 = vmatprep.subr.bf16.mxu0 0
      %7682 = vmatpush2.bf16.msra.mxu0 0
      %7683 = vmatprep.subr.bf16.mxu0 0
      %7684 = vmatpush2.bf16.msra.mxu0 0
      %7685 = vmatprep.subr.bf16.mxu0 0
      %7686 = vmatpush2.bf16.msra.mxu0 0
      %7687 = vmatprep.mubr.bf16.mxu0 0
      %7688 = vmatmul.mubr.bf16.gmra.mxu0 %v1586
      %v7689 = vpop.f32.mrf.mxu0
      %v7690 = vadd.f32 %v6177, %v7689
      %v7691 = vpop.f32.mrf.mxu0
      %v7692 = vpop.f32.mrf.mxu0
      %v7693 = vpop.f32.mrf.mxu0
      %7694 = vdwg.mxu0
      %7695 = vmatprep.subr.bf16.mxu0 0
      %7696 = vmatpush1.bf16.msra.mxu0 0
      %7697 = vmatprep.subr.bf16.mxu0 0
      %7698 = vmatpush1.bf16.msra.mxu0 0
      %7699 = vmatprep.subr.bf16.mxu0 0
      %7700 = vmatpush1.bf16.msra.mxu0 0
      %7701 = vmatprep.subr.bf16.mxu0 0
      %7702 = vmatpush1.bf16.msra.mxu0 0
      %7703 = vmatprep.subr.bf16.mxu0 0
      %7704 = vmatpush1.bf16.msra.mxu0 %v4059
      %7705 = vmatprep.subr.bf16.mxu0 0
      %7706 = vmatpush1.bf16.msra.mxu0 %v4058
      %7707 = vmatprep.subr.bf16.mxu0 0
      %7708 = vmatpush1.bf16.msra.mxu0 %v4057
      %7709 = vmatprep.subr.bf16.mxu0 0
      %7710 = vmatpush1.bf16.msra.mxu0 %v4056
      %7711 = vmatprep.subr.bf16.mxu0 0
      %7712 = vmatpush2.bf16.msra.mxu0 0
      %7713 = vmatprep.subr.bf16.mxu0 0
      %7714 = vmatpush2.bf16.msra.mxu0 0
      %7715 = vmatprep.subr.bf16.mxu0 0
      %7716 = vmatpush2.bf16.msra.mxu0 0
      %7717 = vmatprep.subr.bf16.mxu0 0
      %7718 = vmatpush2.bf16.msra.mxu0 0
      %7719 = vmatprep.subr.bf16.mxu0 0
      %7720 = vmatpush2.bf16.msra.mxu0 0
      %7721 = vmatprep.subr.bf16.mxu0 0
      %7722 = vmatpush2.bf16.msra.mxu0 0
      %7723 = vmatprep.subr.bf16.mxu0 0
      %7724 = vmatpush2.bf16.msra.mxu0 0
      %7725 = vmatprep.subr.bf16.mxu0 0
      %7726 = vmatpush2.bf16.msra.mxu0 0
      %7727 = vmatprep.mubr.bf16.mxu0 0
      %7728 = vmatmul.mubr.bf16.gmra.mxu0 %v1653
      %v7729 = vpop.f32.mrf.mxu0
      %v7730 = vadd.f32 %v6217, %v7729
      %v7731 = vpop.f32.mrf.mxu0
      %v7732 = vpop.f32.mrf.mxu0
      %v7733 = vpop.f32.mrf.mxu0
      %7734 = vdwg.mxu0
      %7735 = vmatprep.subr.bf16.mxu0 0
      %7736 = vmatpush1.bf16.msra.mxu0 0
      %7737 = vmatprep.subr.bf16.mxu0 0
      %7738 = vmatpush1.bf16.msra.mxu0 0
      %7739 = vmatprep.subr.bf16.mxu0 0
      %7740 = vmatpush1.bf16.msra.mxu0 0
      %7741 = vmatprep.subr.bf16.mxu0 0
      %7742 = vmatpush1.bf16.msra.mxu0 0
      %7743 = vmatprep.subr.bf16.mxu0 0
      %7744 = vmatpush1.bf16.msra.mxu0 %v4126
      %7745 = vmatprep.subr.bf16.mxu0 0
      %7746 = vmatpush1.bf16.msra.mxu0 %v4125
      %7747 = vmatprep.subr.bf16.mxu0 0
      %7748 = vmatpush1.bf16.msra.mxu0 %v4124
      %7749 = vmatprep.subr.bf16.mxu0 0
      %7750 = vmatpush1.bf16.msra.mxu0 %v4123
      %7751 = vmatprep.subr.bf16.mxu0 0
      %7752 = vmatpush2.bf16.msra.mxu0 0
      %7753 = vmatprep.subr.bf16.mxu0 0
      %7754 = vmatpush2.bf16.msra.mxu0 0
      %7755 = vmatprep.subr.bf16.mxu0 0
      %7756 = vmatpush2.bf16.msra.mxu0 0
      %7757 = vmatprep.subr.bf16.mxu0 0
      %7758 = vmatpush2.bf16.msra.mxu0 0
      %7759 = vmatprep.subr.bf16.mxu0 0
      %7760 = vmatpush2.bf16.msra.mxu0 0
      %7761 = vmatprep.subr.bf16.mxu0 0
      %7762 = vmatpush2.bf16.msra.mxu0 0
      %7763 = vmatprep.subr.bf16.mxu0 0
      %7764 = vmatpush2.bf16.msra.mxu0 0
      %7765 = vmatprep.subr.bf16.mxu0 0
      %7766 = vmatpush2.bf16.msra.mxu0 0
      %7767 = vmatprep.mubr.bf16.mxu0 0
      %7768 = vmatmul.mubr.bf16.gmra.mxu0 %v1720
      %v7769 = vpop.f32.mrf.mxu0
      %v7770 = vadd.f32 %v6257, %v7769
      %v7771 = vpop.f32.mrf.mxu0
      %v7772 = vpop.f32.mrf.mxu0
      %v7773 = vpop.f32.mrf.mxu0
      %7774 = vdwg.mxu0
      %7775 = vmatprep.subr.bf16.mxu0 0
      %7776 = vmatpush1.bf16.msra.mxu0 0
      %7777 = vmatprep.subr.bf16.mxu0 0
      %7778 = vmatpush1.bf16.msra.mxu0 0
      %7779 = vmatprep.subr.bf16.mxu0 0
      %7780 = vmatpush1.bf16.msra.mxu0 0
      %7781 = vmatprep.subr.bf16.mxu0 0
      %7782 = vmatpush1.bf16.msra.mxu0 0
      %7783 = vmatprep.subr.bf16.mxu0 0
      %7784 = vmatpush1.bf16.msra.mxu0 %v4193
      %7785 = vmatprep.subr.bf16.mxu0 0
      %7786 = vmatpush1.bf16.msra.mxu0 %v4192
      %7787 = vmatprep.subr.bf16.mxu0 0
      %7788 = vmatpush1.bf16.msra.mxu0 %v4191
      %7789 = vmatprep.subr.bf16.mxu0 0
      %7790 = vmatpush1.bf16.msra.mxu0 %v4190
      %7791 = vmatprep.subr.bf16.mxu0 0
      %7792 = vmatpush2.bf16.msra.mxu0 0
      %7793 = vmatprep.subr.bf16.mxu0 0
      %7794 = vmatpush2.bf16.msra.mxu0 0
      %7795 = vmatprep.subr.bf16.mxu0 0
      %7796 = vmatpush2.bf16.msra.mxu0 0
      %7797 = vmatprep.subr.bf16.mxu0 0
      %7798 = vmatpush2.bf16.msra.mxu0 0
      %7799 = vmatprep.subr.bf16.mxu0 0
      %7800 = vmatpush2.bf16.msra.mxu0 0
      %7801 = vmatprep.subr.bf16.mxu0 0
      %7802 = vmatpush2.bf16.msra.mxu0 0
      %7803 = vmatprep.subr.bf16.mxu0 0
      %7804 = vmatpush2.bf16.msra.mxu0 0
      %7805 = vmatprep.subr.bf16.mxu0 0
      %7806 = vmatpush2.bf16.msra.mxu0 0
      %7807 = vmatprep.mubr.bf16.mxu0 0
      %7808 = vmatmul.mubr.bf16.gmra.mxu0 %v1787
      %v7809 = vpop.f32.mrf.mxu0
      %v7810 = vadd.f32 %v6297, %v7809
      %v7811 = vpop.f32.mrf.mxu0
      %v7812 = vpop.f32.mrf.mxu0
      %v7813 = vpop.f32.mrf.mxu0
      %7814 = vdwg.mxu0
      %7815 = vmatprep.subr.bf16.mxu0 0
      %7816 = vmatpush1.bf16.msra.mxu0 0
      %7817 = vmatprep.subr.bf16.mxu0 0
      %7818 = vmatpush1.bf16.msra.mxu0 0
      %7819 = vmatprep.subr.bf16.mxu0 0
      %7820 = vmatpush1.bf16.msra.mxu0 0
      %7821 = vmatprep.subr.bf16.mxu0 0
      %7822 = vmatpush1.bf16.msra.mxu0 0
      %7823 = vmatprep.subr.bf16.mxu0 0
      %7824 = vmatpush1.bf16.msra.mxu0 %v4260
      %7825 = vmatprep.subr.bf16.mxu0 0
      %7826 = vmatpush1.bf16.msra.mxu0 %v4259
      %7827 = vmatprep.subr.bf16.mxu0 0
      %7828 = vmatpush1.bf16.msra.mxu0 %v4258
      %7829 = vmatprep.subr.bf16.mxu0 0
      %7830 = vmatpush1.bf16.msra.mxu0 %v4257
      %7831 = vmatprep.subr.bf16.mxu0 0
      %7832 = vmatpush2.bf16.msra.mxu0 0
      %7833 = vmatprep.subr.bf16.mxu0 0
      %7834 = vmatpush2.bf16.msra.mxu0 0
      %7835 = vmatprep.subr.bf16.mxu0 0
      %7836 = vmatpush2.bf16.msra.mxu0 0
      %7837 = vmatprep.subr.bf16.mxu0 0
      %7838 = vmatpush2.bf16.msra.mxu0 0
      %7839 = vmatprep.subr.bf16.mxu0 0
      %7840 = vmatpush2.bf16.msra.mxu0 0
      %7841 = vmatprep.subr.bf16.mxu0 0
      %7842 = vmatpush2.bf16.msra.mxu0 0
      %7843 = vmatprep.subr.bf16.mxu0 0
      %7844 = vmatpush2.bf16.msra.mxu0 0
      %7845 = vmatprep.subr.bf16.mxu0 0
      %7846 = vmatpush2.bf16.msra.mxu0 0
      %7847 = vmatprep.mubr.bf16.mxu0 0
      %7848 = vmatmul.mubr.bf16.gmra.mxu0 %v1854
      %v7849 = vpop.f32.mrf.mxu0
      %v7850 = vadd.f32 %v6337, %v7849
      %v7851 = vpop.f32.mrf.mxu0
      %v7852 = vpop.f32.mrf.mxu0
      %v7853 = vpop.f32.mrf.mxu0
      %7854 = vdwg.mxu0
      %7855 = vmatprep.subr.bf16.mxu0 0
      %7856 = vmatpush1.bf16.msra.mxu0 0
      %7857 = vmatprep.subr.bf16.mxu0 0
      %7858 = vmatpush1.bf16.msra.mxu0 0
      %7859 = vmatprep.subr.bf16.mxu0 0
      %7860 = vmatpush1.bf16.msra.mxu0 0
      %7861 = vmatprep.subr.bf16.mxu0 0
      %7862 = vmatpush1.bf16.msra.mxu0 0
      %7863 = vmatprep.subr.bf16.mxu0 0
      %7864 = vmatpush1.bf16.msra.mxu0 %v4327
      %7865 = vmatprep.subr.bf16.mxu0 0
      %7866 = vmatpush1.bf16.msra.mxu0 %v4326
      %7867 = vmatprep.subr.bf16.mxu0 0
      %7868 = vmatpush1.bf16.msra.mxu0 %v4325
      %7869 = vmatprep.subr.bf16.mxu0 0
      %7870 = vmatpush1.bf16.msra.mxu0 %v4324
      %7871 = vmatprep.subr.bf16.mxu0 0
      %7872 = vmatpush2.bf16.msra.mxu0 0
      %7873 = vmatprep.subr.bf16.mxu0 0
      %7874 = vmatpush2.bf16.msra.mxu0 0
      %7875 = vmatprep.subr.bf16.mxu0 0
      %7876 = vmatpush2.bf16.msra.mxu0 0
      %7877 = vmatprep.subr.bf16.mxu0 0
      %7878 = vmatpush2.bf16.msra.mxu0 0
      %7879 = vmatprep.subr.bf16.mxu0 0
      %7880 = vmatpush2.bf16.msra.mxu0 0
      %7881 = vmatprep.subr.bf16.mxu0 0
      %7882 = vmatpush2.bf16.msra.mxu0 0
      %7883 = vmatprep.subr.bf16.mxu0 0
      %7884 = vmatpush2.bf16.msra.mxu0 0
      %7885 = vmatprep.subr.bf16.mxu0 0
      %7886 = vmatpush2.bf16.msra.mxu0 0
      %7887 = vmatprep.mubr.bf16.mxu0 0
      %7888 = vmatmul.mubr.bf16.gmra.mxu0 %v1921
      %v7889 = vpop.f32.mrf.mxu0
      %v7890 = vadd.f32 %v6377, %v7889
      %v7891 = vpop.f32.mrf.mxu0
      %v7892 = vpop.f32.mrf.mxu0
      %v7893 = vpop.f32.mrf.mxu0
      %7894 = vdwg.mxu0
      %7895 = vmatprep.subr.bf16.mxu0 0
      %7896 = vmatpush1.bf16.msra.mxu0 0
      %7897 = vmatprep.subr.bf16.mxu0 0
      %7898 = vmatpush1.bf16.msra.mxu0 0
      %7899 = vmatprep.subr.bf16.mxu0 0
      %7900 = vmatpush1.bf16.msra.mxu0 0
      %7901 = vmatprep.subr.bf16.mxu0 0
      %7902 = vmatpush1.bf16.msra.mxu0 0
      %7903 = vmatprep.subr.bf16.mxu0 0
      %7904 = vmatpush1.bf16.msra.mxu0 %v4394
      %7905 = vmatprep.subr.bf16.mxu0 0
      %7906 = vmatpush1.bf16.msra.mxu0 %v4393
      %7907 = vmatprep.subr.bf16.mxu0 0
      %7908 = vmatpush1.bf16.msra.mxu0 %v4392
      %7909 = vmatprep.subr.bf16.mxu0 0
      %7910 = vmatpush1.bf16.msra.mxu0 %v4391
      %7911 = vmatprep.subr.bf16.mxu0 0
      %7912 = vmatpush2.bf16.msra.mxu0 0
      %7913 = vmatprep.subr.bf16.mxu0 0
      %7914 = vmatpush2.bf16.msra.mxu0 0
      %7915 = vmatprep.subr.bf16.mxu0 0
      %7916 = vmatpush2.bf16.msra.mxu0 0
      %7917 = vmatprep.subr.bf16.mxu0 0
      %7918 = vmatpush2.bf16.msra.mxu0 0
      %7919 = vmatprep.subr.bf16.mxu0 0
      %7920 = vmatpush2.bf16.msra.mxu0 0
      %7921 = vmatprep.subr.bf16.mxu0 0
      %7922 = vmatpush2.bf16.msra.mxu0 0
      %7923 = vmatprep.subr.bf16.mxu0 0
      %7924 = vmatpush2.bf16.msra.mxu0 0
      %7925 = vmatprep.subr.bf16.mxu0 0
      %7926 = vmatpush2.bf16.msra.mxu0 0
      %7927 = vmatprep.mubr.bf16.mxu0 0
      %7928 = vmatmul.mubr.bf16.gmra.mxu0 %v1988
      %v7929 = vpop.f32.mrf.mxu0
      %v7930 = vadd.f32 %v6417, %v7929
      %v7931 = vpop.f32.mrf.mxu0
      %v7932 = vpop.f32.mrf.mxu0
      %v7933 = vpop.f32.mrf.mxu0
      %7934 = vdwg.mxu0
      %7935 = vmatprep.subr.bf16.mxu0 0
      %7936 = vmatpush1.bf16.msra.mxu0 0
      %7937 = vmatprep.subr.bf16.mxu0 0
      %7938 = vmatpush1.bf16.msra.mxu0 0
      %7939 = vmatprep.subr.bf16.mxu0 0
      %7940 = vmatpush1.bf16.msra.mxu0 0
      %7941 = vmatprep.subr.bf16.mxu0 0
      %7942 = vmatpush1.bf16.msra.mxu0 0
      %7943 = vmatprep.subr.bf16.mxu0 0
      %7944 = vmatpush1.bf16.msra.mxu0 %v4461
      %7945 = vmatprep.subr.bf16.mxu0 0
      %7946 = vmatpush1.bf16.msra.mxu0 %v4460
      %7947 = vmatprep.subr.bf16.mxu0 0
      %7948 = vmatpush1.bf16.msra.mxu0 %v4459
      %7949 = vmatprep.subr.bf16.mxu0 0
      %7950 = vmatpush1.bf16.msra.mxu0 %v4458
      %7951 = vmatprep.subr.bf16.mxu0 0
      %7952 = vmatpush2.bf16.msra.mxu0 0
      %7953 = vmatprep.subr.bf16.mxu0 0
      %7954 = vmatpush2.bf16.msra.mxu0 0
      %7955 = vmatprep.subr.bf16.mxu0 0
      %7956 = vmatpush2.bf16.msra.mxu0 0
      %7957 = vmatprep.subr.bf16.mxu0 0
      %7958 = vmatpush2.bf16.msra.mxu0 0
      %7959 = vmatprep.subr.bf16.mxu0 0
      %7960 = vmatpush2.bf16.msra.mxu0 0
      %7961 = vmatprep.subr.bf16.mxu0 0
      %7962 = vmatpush2.bf16.msra.mxu0 0
      %7963 = vmatprep.subr.bf16.mxu0 0
      %7964 = vmatpush2.bf16.msra.mxu0 0
      %7965 = vmatprep.subr.bf16.mxu0 0
      %7966 = vmatpush2.bf16.msra.mxu0 0
      %7967 = vmatprep.mubr.bf16.mxu0 0
      %7968 = vmatmul.mubr.bf16.gmra.mxu0 %v2055
      %v7969 = vpop.f32.mrf.mxu0
      %v7970 = vadd.f32 %v6457, %v7969
      %v7971 = vpop.f32.mrf.mxu0
      %v7972 = vpop.f32.mrf.mxu0
      %v7973 = vpop.f32.mrf.mxu0
      %7974 = vdwg.mxu0
      %7975 = vmatprep.subr.bf16.mxu0 0
      %7976 = vmatpush1.bf16.msra.mxu0 0
      %7977 = vmatprep.subr.bf16.mxu0 0
      %7978 = vmatpush1.bf16.msra.mxu0 0
      %7979 = vmatprep.subr.bf16.mxu0 0
      %7980 = vmatpush1.bf16.msra.mxu0 0
      %7981 = vmatprep.subr.bf16.mxu0 0
      %7982 = vmatpush1.bf16.msra.mxu0 0
      %7983 = vmatprep.subr.bf16.mxu0 0
      %7984 = vmatpush1.bf16.msra.mxu0 %v4528
      %7985 = vmatprep.subr.bf16.mxu0 0
      %7986 = vmatpush1.bf16.msra.mxu0 %v4527
      %7987 = vmatprep.subr.bf16.mxu0 0
      %7988 = vmatpush1.bf16.msra.mxu0 %v4526
      %7989 = vmatprep.subr.bf16.mxu0 0
      %7990 = vmatpush1.bf16.msra.mxu0 %v4525
      %7991 = vmatprep.subr.bf16.mxu0 0
      %7992 = vmatpush2.bf16.msra.mxu0 0
      %7993 = vmatprep.subr.bf16.mxu0 0
      %7994 = vmatpush2.bf16.msra.mxu0 0
      %7995 = vmatprep.subr.bf16.mxu0 0
      %7996 = vmatpush2.bf16.msra.mxu0 0
      %7997 = vmatprep.subr.bf16.mxu0 0
      %7998 = vmatpush2.bf16.msra.mxu0 0
      %7999 = vmatprep.subr.bf16.mxu0 0
      %8000 = vmatpush2.bf16.msra.mxu0 0
      %8001 = vmatprep.subr.bf16.mxu0 0
      %8002 = vmatpush2.bf16.msra.mxu0 0
      %8003 = vmatprep.subr.bf16.mxu0 0
      %8004 = vmatpush2.bf16.msra.mxu0 0
      %8005 = vmatprep.subr.bf16.mxu0 0
      %8006 = vmatpush2.bf16.msra.mxu0 0
      %8007 = vmatprep.mubr.bf16.mxu0 0
      %8008 = vmatmul.mubr.bf16.gmra.mxu0 %v2122
      %v8009 = vpop.f32.mrf.mxu0
      %v8010 = vadd.f32 %v6497, %v8009
      %v8011 = vpop.f32.mrf.mxu0
      %v8012 = vpop.f32.mrf.mxu0
      %v8013 = vpop.f32.mrf.mxu0
      %8014 = vdwg.mxu0
      %8015 = vmatprep.subr.bf16.mxu0 0
      %8016 = vmatpush1.bf16.msra.mxu0 0
      %8017 = vmatprep.subr.bf16.mxu0 0
      %8018 = vmatpush1.bf16.msra.mxu0 0
      %8019 = vmatprep.subr.bf16.mxu0 0
      %8020 = vmatpush1.bf16.msra.mxu0 0
      %8021 = vmatprep.subr.bf16.mxu0 0
      %8022 = vmatpush1.bf16.msra.mxu0 0
      %8023 = vmatprep.subr.bf16.mxu0 0
      %8024 = vmatpush1.bf16.msra.mxu0 %v4595
      %8025 = vmatprep.subr.bf16.mxu0 0
      %8026 = vmatpush1.bf16.msra.mxu0 %v4594
      %8027 = vmatprep.subr.bf16.mxu0 0
      %8028 = vmatpush1.bf16.msra.mxu0 %v4593
      %8029 = vmatprep.subr.bf16.mxu0 0
      %8030 = vmatpush1.bf16.msra.mxu0 %v4592
      %8031 = vmatprep.subr.bf16.mxu0 0
      %8032 = vmatpush2.bf16.msra.mxu0 0
      %8033 = vmatprep.subr.bf16.mxu0 0
      %8034 = vmatpush2.bf16.msra.mxu0 0
      %8035 = vmatprep.subr.bf16.mxu0 0
      %8036 = vmatpush2.bf16.msra.mxu0 0
      %8037 = vmatprep.subr.bf16.mxu0 0
      %8038 = vmatpush2.bf16.msra.mxu0 0
      %8039 = vmatprep.subr.bf16.mxu0 0
      %8040 = vmatpush2.bf16.msra.mxu0 0
      %8041 = vmatprep.subr.bf16.mxu0 0
      %8042 = vmatpush2.bf16.msra.mxu0 0
      %8043 = vmatprep.subr.bf16.mxu0 0
      %8044 = vmatpush2.bf16.msra.mxu0 0
      %8045 = vmatprep.subr.bf16.mxu0 0
      %8046 = vmatpush2.bf16.msra.mxu0 0
      %8047 = vmatprep.mubr.bf16.mxu0 0
      %8048 = vmatmul.mubr.bf16.gmra.mxu0 %v2189
      %v8049 = vpop.f32.mrf.mxu0
      %v8050 = vadd.f32 %v6537, %v8049
      %v8051 = vpop.f32.mrf.mxu0
      %v8052 = vpop.f32.mrf.mxu0
      %v8053 = vpop.f32.mrf.mxu0
      %8054 = vdwg.mxu0
      %8055 = vmatprep.subr.bf16.mxu0 0
      %8056 = vmatpush1.bf16.msra.mxu0 0
      %8057 = vmatprep.subr.bf16.mxu0 0
      %8058 = vmatpush1.bf16.msra.mxu0 0
      %8059 = vmatprep.subr.bf16.mxu0 0
      %8060 = vmatpush1.bf16.msra.mxu0 0
      %8061 = vmatprep.subr.bf16.mxu0 0
      %8062 = vmatpush1.bf16.msra.mxu0 0
      %8063 = vmatprep.subr.bf16.mxu0 0
      %8064 = vmatpush1.bf16.msra.mxu0 %v4662
      %8065 = vmatprep.subr.bf16.mxu0 0
      %8066 = vmatpush1.bf16.msra.mxu0 %v4661
      %8067 = vmatprep.subr.bf16.mxu0 0
      %8068 = vmatpush1.bf16.msra.mxu0 %v4660
      %8069 = vmatprep.subr.bf16.mxu0 0
      %8070 = vmatpush1.bf16.msra.mxu0 %v4659
      %8071 = vmatprep.subr.bf16.mxu0 0
      %8072 = vmatpush2.bf16.msra.mxu0 0
      %8073 = vmatprep.subr.bf16.mxu0 0
      %8074 = vmatpush2.bf16.msra.mxu0 0
      %8075 = vmatprep.subr.bf16.mxu0 0
      %8076 = vmatpush2.bf16.msra.mxu0 0
      %8077 = vmatprep.subr.bf16.mxu0 0
      %8078 = vmatpush2.bf16.msra.mxu0 0
      %8079 = vmatprep.subr.bf16.mxu0 0
      %8080 = vmatpush2.bf16.msra.mxu0 0
      %8081 = vmatprep.subr.bf16.mxu0 0
      %8082 = vmatpush2.bf16.msra.mxu0 0
      %8083 = vmatprep.subr.bf16.mxu0 0
      %8084 = vmatpush2.bf16.msra.mxu0 0
      %8085 = vmatprep.subr.bf16.mxu0 0
      %8086 = vmatpush2.bf16.msra.mxu0 0
      %8087 = vmatprep.mubr.bf16.mxu0 0
      %8088 = vmatmul.mubr.bf16.gmra.mxu0 %v2256
      %v8089 = vpop.f32.mrf.mxu0
      %v8090 = vadd.f32 %v6577, %v8089
      %v8091 = vpop.f32.mrf.mxu0
      %v8092 = vpop.f32.mrf.mxu0
      %v8093 = vpop.f32.mrf.mxu0
      %8094 = vdwg.mxu0
      %8095 = vmatprep.subr.bf16.mxu0 0
      %8096 = vmatpush1.bf16.msra.mxu0 0
      %8097 = vmatprep.subr.bf16.mxu0 0
      %8098 = vmatpush1.bf16.msra.mxu0 0
      %8099 = vmatprep.subr.bf16.mxu0 0
      %8100 = vmatpush1.bf16.msra.mxu0 0
      %8101 = vmatprep.subr.bf16.mxu0 0
      %8102 = vmatpush1.bf16.msra.mxu0 0
      %8103 = vmatprep.subr.bf16.mxu0 0
      %8104 = vmatpush1.bf16.msra.mxu0 %v4729
      %8105 = vmatprep.subr.bf16.mxu0 0
      %8106 = vmatpush1.bf16.msra.mxu0 %v4728
      %8107 = vmatprep.subr.bf16.mxu0 0
      %8108 = vmatpush1.bf16.msra.mxu0 %v4727
      %8109 = vmatprep.subr.bf16.mxu0 0
      %8110 = vmatpush1.bf16.msra.mxu0 %v4726
      %8111 = vmatprep.subr.bf16.mxu0 0
      %8112 = vmatpush2.bf16.msra.mxu0 0
      %8113 = vmatprep.subr.bf16.mxu0 0
      %8114 = vmatpush2.bf16.msra.mxu0 0
      %8115 = vmatprep.subr.bf16.mxu0 0
      %8116 = vmatpush2.bf16.msra.mxu0 0
      %8117 = vmatprep.subr.bf16.mxu0 0
      %8118 = vmatpush2.bf16.msra.mxu0 0
      %8119 = vmatprep.subr.bf16.mxu0 0
      %8120 = vmatpush2.bf16.msra.mxu0 0
      %8121 = vmatprep.subr.bf16.mxu0 0
      %8122 = vmatpush2.bf16.msra.mxu0 0
      %8123 = vmatprep.subr.bf16.mxu0 0
      %8124 = vmatpush2.bf16.msra.mxu0 0
      %8125 = vmatprep.subr.bf16.mxu0 0
      %8126 = vmatpush2.bf16.msra.mxu0 0
      %8127 = vmatprep.mubr.bf16.mxu0 0
      %8128 = vmatmul.mubr.bf16.gmra.mxu0 %v2323
      %v8129 = vpop.f32.mrf.mxu0
      %v8130 = vadd.f32 %v6617, %v8129
      %v8131 = vpop.f32.mrf.mxu0
      %v8132 = vpop.f32.mrf.mxu0
      %v8133 = vpop.f32.mrf.mxu0
      %8134 = vdwg.mxu0
      %8135 = vmatprep.subr.bf16.mxu0 0
      %8136 = vmatpush1.bf16.msra.mxu0 0
      %8137 = vmatprep.subr.bf16.mxu0 0
      %8138 = vmatpush1.bf16.msra.mxu0 0
      %8139 = vmatprep.subr.bf16.mxu0 0
      %8140 = vmatpush1.bf16.msra.mxu0 0
      %8141 = vmatprep.subr.bf16.mxu0 0
      %8142 = vmatpush1.bf16.msra.mxu0 0
      %8143 = vmatprep.subr.bf16.mxu0 0
      %8144 = vmatpush1.bf16.msra.mxu0 %v4796
      %8145 = vmatprep.subr.bf16.mxu0 0
      %8146 = vmatpush1.bf16.msra.mxu0 %v4795
      %8147 = vmatprep.subr.bf16.mxu0 0
      %8148 = vmatpush1.bf16.msra.mxu0 %v4794
      %8149 = vmatprep.subr.bf16.mxu0 0
      %8150 = vmatpush1.bf16.msra.mxu0 %v4793
      %8151 = vmatprep.subr.bf16.mxu0 0
      %8152 = vmatpush2.bf16.msra.mxu0 0
      %8153 = vmatprep.subr.bf16.mxu0 0
      %8154 = vmatpush2.bf16.msra.mxu0 0
      %8155 = vmatprep.subr.bf16.mxu0 0
      %8156 = vmatpush2.bf16.msra.mxu0 0
      %8157 = vmatprep.subr.bf16.mxu0 0
      %8158 = vmatpush2.bf16.msra.mxu0 0
      %8159 = vmatprep.subr.bf16.mxu0 0
      %8160 = vmatpush2.bf16.msra.mxu0 0
      %8161 = vmatprep.subr.bf16.mxu0 0
      %8162 = vmatpush2.bf16.msra.mxu0 0
      %8163 = vmatprep.subr.bf16.mxu0 0
      %8164 = vmatpush2.bf16.msra.mxu0 0
      %8165 = vmatprep.subr.bf16.mxu0 0
      %8166 = vmatpush2.bf16.msra.mxu0 0
      %8167 = vmatprep.mubr.bf16.mxu0 0
      %8168 = vmatmul.mubr.bf16.gmra.mxu0 %v2390
      %v8169 = vpop.f32.mrf.mxu0
      %v8170 = vadd.f32 %v6657, %v8169
      %v8171 = vpop.f32.mrf.mxu0
      %v8172 = vpop.f32.mrf.mxu0
      %v8173 = vpop.f32.mrf.mxu0
      %8174 = vdwg.mxu0
      %8175 = vmatprep.subr.bf16.mxu0 0
      %8176 = vmatpush1.bf16.msra.mxu0 0
      %8177 = vmatprep.subr.bf16.mxu0 0
      %8178 = vmatpush1.bf16.msra.mxu0 0
      %8179 = vmatprep.subr.bf16.mxu0 0
      %8180 = vmatpush1.bf16.msra.mxu0 0
      %8181 = vmatprep.subr.bf16.mxu0 0
      %8182 = vmatpush1.bf16.msra.mxu0 0
      %8183 = vmatprep.subr.bf16.mxu0 0
      %8184 = vmatpush1.bf16.msra.mxu0 %v4863
      %8185 = vmatprep.subr.bf16.mxu0 0
      %8186 = vmatpush1.bf16.msra.mxu0 %v4862
      %8187 = vmatprep.subr.bf16.mxu0 0
      %8188 = vmatpush1.bf16.msra.mxu0 %v4861
      %8189 = vmatprep.subr.bf16.mxu0 0
      %8190 = vmatpush1.bf16.msra.mxu0 %v4860
      %8191 = vmatprep.subr.bf16.mxu0 0
      %8192 = vmatpush2.bf16.msra.mxu0 0
      %8193 = vmatprep.subr.bf16.mxu0 0
      %8194 = vmatpush2.bf16.msra.mxu0 0
      %8195 = vmatprep.subr.bf16.mxu0 0
      %8196 = vmatpush2.bf16.msra.mxu0 0
      %8197 = vmatprep.subr.bf16.mxu0 0
      %8198 = vmatpush2.bf16.msra.mxu0 0
      %8199 = vmatprep.subr.bf16.mxu0 0
      %8200 = vmatpush2.bf16.msra.mxu0 0
      %8201 = vmatprep.subr.bf16.mxu0 0
      %8202 = vmatpush2.bf16.msra.mxu0 0
      %8203 = vmatprep.subr.bf16.mxu0 0
      %8204 = vmatpush2.bf16.msra.mxu0 0
      %8205 = vmatprep.subr.bf16.mxu0 0
      %8206 = vmatpush2.bf16.msra.mxu0 0
      %8207 = vmatprep.mubr.bf16.mxu0 0
      %8208 = vmatmul.mubr.bf16.gmra.mxu0 %v2457
      %v8209 = vpop.f32.mrf.mxu0
      %v8210 = vadd.f32 %v6697, %v8209
      %v8211 = vpop.f32.mrf.mxu0
      %v8212 = vpop.f32.mrf.mxu0
      %v8213 = vpop.f32.mrf.mxu0
      %8214 = vdwg.mxu0
      %8215 = vmatprep.subr.bf16.mxu0 0
      %8216 = vmatpush1.bf16.msra.mxu0 0
      %8217 = vmatprep.subr.bf16.mxu0 0
      %8218 = vmatpush1.bf16.msra.mxu0 0
      %8219 = vmatprep.subr.bf16.mxu0 0
      %8220 = vmatpush1.bf16.msra.mxu0 0
      %8221 = vmatprep.subr.bf16.mxu0 0
      %8222 = vmatpush1.bf16.msra.mxu0 0
      %8223 = vmatprep.subr.bf16.mxu0 0
      %8224 = vmatpush1.bf16.msra.mxu0 %v4930
      %8225 = vmatprep.subr.bf16.mxu0 0
      %8226 = vmatpush1.bf16.msra.mxu0 %v4929
      %8227 = vmatprep.subr.bf16.mxu0 0
      %8228 = vmatpush1.bf16.msra.mxu0 %v4928
      %8229 = vmatprep.subr.bf16.mxu0 0
      %8230 = vmatpush1.bf16.msra.mxu0 %v4927
      %8231 = vmatprep.subr.bf16.mxu0 0
      %8232 = vmatpush2.bf16.msra.mxu0 0
      %8233 = vmatprep.subr.bf16.mxu0 0
      %8234 = vmatpush2.bf16.msra.mxu0 0
      %8235 = vmatprep.subr.bf16.mxu0 0
      %8236 = vmatpush2.bf16.msra.mxu0 0
      %8237 = vmatprep.subr.bf16.mxu0 0
      %8238 = vmatpush2.bf16.msra.mxu0 0
      %8239 = vmatprep.subr.bf16.mxu0 0
      %8240 = vmatpush2.bf16.msra.mxu0 0
      %8241 = vmatprep.subr.bf16.mxu0 0
      %8242 = vmatpush2.bf16.msra.mxu0 0
      %8243 = vmatprep.subr.bf16.mxu0 0
      %8244 = vmatpush2.bf16.msra.mxu0 0
      %8245 = vmatprep.subr.bf16.mxu0 0
      %8246 = vmatpush2.bf16.msra.mxu0 0
      %8247 = vmatprep.mubr.bf16.mxu0 0
      %8248 = vmatmul.mubr.bf16.gmra.mxu0 %v2524
      %v8249 = vpop.f32.mrf.mxu0
      %v8250 = vadd.f32 %v6737, %v8249
      %v8251 = vpop.f32.mrf.mxu0
      %v8252 = vpop.f32.mrf.mxu0
      %v8253 = vpop.f32.mrf.mxu0
      %8254 = vdwg.mxu0
      %8255 = vmatprep.subr.bf16.mxu0 0
      %8256 = vmatpush1.bf16.msra.mxu0 0
      %8257 = vmatprep.subr.bf16.mxu0 0
      %8258 = vmatpush1.bf16.msra.mxu0 0
      %8259 = vmatprep.subr.bf16.mxu0 0
      %8260 = vmatpush1.bf16.msra.mxu0 0
      %8261 = vmatprep.subr.bf16.mxu0 0
      %8262 = vmatpush1.bf16.msra.mxu0 0
      %8263 = vmatprep.subr.bf16.mxu0 0
      %8264 = vmatpush1.bf16.msra.mxu0 %v4997
      %8265 = vmatprep.subr.bf16.mxu0 0
      %8266 = vmatpush1.bf16.msra.mxu0 %v4996
      %8267 = vmatprep.subr.bf16.mxu0 0
      %8268 = vmatpush1.bf16.msra.mxu0 %v4995
      %8269 = vmatprep.subr.bf16.mxu0 0
      %8270 = vmatpush1.bf16.msra.mxu0 %v4994
      %8271 = vmatprep.subr.bf16.mxu0 0
      %8272 = vmatpush2.bf16.msra.mxu0 0
      %8273 = vmatprep.subr.bf16.mxu0 0
      %8274 = vmatpush2.bf16.msra.mxu0 0
      %8275 = vmatprep.subr.bf16.mxu0 0
      %8276 = vmatpush2.bf16.msra.mxu0 0
      %8277 = vmatprep.subr.bf16.mxu0 0
      %8278 = vmatpush2.bf16.msra.mxu0 0
      %8279 = vmatprep.subr.bf16.mxu0 0
      %8280 = vmatpush2.bf16.msra.mxu0 0
      %8281 = vmatprep.subr.bf16.mxu0 0
      %8282 = vmatpush2.bf16.msra.mxu0 0
      %8283 = vmatprep.subr.bf16.mxu0 0
      %8284 = vmatpush2.bf16.msra.mxu0 0
      %8285 = vmatprep.subr.bf16.mxu0 0
      %8286 = vmatpush2.bf16.msra.mxu0 0
      %8287 = vmatprep.mubr.bf16.mxu0 0
      %8288 = vmatmul.mubr.bf16.gmra.mxu0 %v2591
      %v8289 = vpop.f32.mrf.mxu0
      %v8290 = vadd.f32 %v6777, %v8289
      %v8291 = vpop.f32.mrf.mxu0
      %v8292 = vpop.f32.mrf.mxu0
      %v8293 = vpop.f32.mrf.mxu0
      %8294 = vdwg.mxu0
      %8295 = vmatprep.subr.bf16.mxu0 0
      %8296 = vmatpush1.bf16.msra.mxu0 0
      %8297 = vmatprep.subr.bf16.mxu0 0
      %8298 = vmatpush1.bf16.msra.mxu0 0
      %8299 = vmatprep.subr.bf16.mxu0 0
      %8300 = vmatpush1.bf16.msra.mxu0 0
      %8301 = vmatprep.subr.bf16.mxu0 0
      %8302 = vmatpush1.bf16.msra.mxu0 0
      %8303 = vmatprep.subr.bf16.mxu0 0
      %8304 = vmatpush1.bf16.msra.mxu0 %v5064
      %8305 = vmatprep.subr.bf16.mxu0 0
      %8306 = vmatpush1.bf16.msra.mxu0 %v5063
      %8307 = vmatprep.subr.bf16.mxu0 0
      %8308 = vmatpush1.bf16.msra.mxu0 %v5062
      %8309 = vmatprep.subr.bf16.mxu0 0
      %8310 = vmatpush1.bf16.msra.mxu0 %v5061
      %8311 = vmatprep.subr.bf16.mxu0 0
      %8312 = vmatpush2.bf16.msra.mxu0 0
      %8313 = vmatprep.subr.bf16.mxu0 0
      %8314 = vmatpush2.bf16.msra.mxu0 0
      %8315 = vmatprep.subr.bf16.mxu0 0
      %8316 = vmatpush2.bf16.msra.mxu0 0
      %8317 = vmatprep.subr.bf16.mxu0 0
      %8318 = vmatpush2.bf16.msra.mxu0 0
      %8319 = vmatprep.subr.bf16.mxu0 0
      %8320 = vmatpush2.bf16.msra.mxu0 0
      %8321 = vmatprep.subr.bf16.mxu0 0
      %8322 = vmatpush2.bf16.msra.mxu0 0
      %8323 = vmatprep.subr.bf16.mxu0 0
      %8324 = vmatpush2.bf16.msra.mxu0 0
      %8325 = vmatprep.subr.bf16.mxu0 0
      %8326 = vmatpush2.bf16.msra.mxu0 0
      %8327 = vmatprep.mubr.bf16.mxu0 0
      %8328 = vmatmul.mubr.bf16.gmra.mxu0 %v2658
      %v8329 = vpop.f32.mrf.mxu0
      %v8330 = vadd.f32 %v6817, %v8329
      %v8331 = vpop.f32.mrf.mxu0
      %v8332 = vpop.f32.mrf.mxu0
      %v8333 = vpop.f32.mrf.mxu0
      %8334 = vdwg.mxu0
      %8335 = vmatprep.subr.bf16.mxu0 0
      %8336 = vmatpush1.bf16.msra.mxu0 0
      %8337 = vmatprep.subr.bf16.mxu0 0
      %8338 = vmatpush1.bf16.msra.mxu0 0
      %8339 = vmatprep.subr.bf16.mxu0 0
      %8340 = vmatpush1.bf16.msra.mxu0 0
      %8341 = vmatprep.subr.bf16.mxu0 0
      %8342 = vmatpush1.bf16.msra.mxu0 0
      %8343 = vmatprep.subr.bf16.mxu0 0
      %8344 = vmatpush1.bf16.msra.mxu0 %v5131
      %8345 = vmatprep.subr.bf16.mxu0 0
      %8346 = vmatpush1.bf16.msra.mxu0 %v5130
      %8347 = vmatprep.subr.bf16.mxu0 0
      %8348 = vmatpush1.bf16.msra.mxu0 %v5129
      %8349 = vmatprep.subr.bf16.mxu0 0
      %8350 = vmatpush1.bf16.msra.mxu0 %v5128
      %8351 = vmatprep.subr.bf16.mxu0 0
      %8352 = vmatpush2.bf16.msra.mxu0 0
      %8353 = vmatprep.subr.bf16.mxu0 0
      %8354 = vmatpush2.bf16.msra.mxu0 0
      %8355 = vmatprep.subr.bf16.mxu0 0
      %8356 = vmatpush2.bf16.msra.mxu0 0
      %8357 = vmatprep.subr.bf16.mxu0 0
      %8358 = vmatpush2.bf16.msra.mxu0 0
      %8359 = vmatprep.subr.bf16.mxu0 0
      %8360 = vmatpush2.bf16.msra.mxu0 0
      %8361 = vmatprep.subr.bf16.mxu0 0
      %8362 = vmatpush2.bf16.msra.mxu0 0
      %8363 = vmatprep.subr.bf16.mxu0 0
      %8364 = vmatpush2.bf16.msra.mxu0 0
      %8365 = vmatprep.subr.bf16.mxu0 0
      %8366 = vmatpush2.bf16.msra.mxu0 0
      %8367 = vmatprep.mubr.bf16.mxu0 0
      %8368 = vmatmul.mubr.bf16.gmra.mxu0 %v2725
      %v8369 = vpop.f32.mrf.mxu0
      %v8370 = vadd.f32 %v6857, %v8369
      %v8371 = vpop.f32.mrf.mxu0
      %v8372 = vpop.f32.mrf.mxu0
      %v8373 = vpop.f32.mrf.mxu0
      %8374 = vdwg.mxu0
      %8375 = vmatprep.subr.bf16.mxu0 0
      %8376 = vmatpush1.bf16.msra.mxu0 0
      %8377 = vmatprep.subr.bf16.mxu0 0
      %8378 = vmatpush1.bf16.msra.mxu0 0
      %8379 = vmatprep.subr.bf16.mxu0 0
      %8380 = vmatpush1.bf16.msra.mxu0 0
      %8381 = vmatprep.subr.bf16.mxu0 0
      %8382 = vmatpush1.bf16.msra.mxu0 0
      %8383 = vmatprep.subr.bf16.mxu0 0
      %8384 = vmatpush1.bf16.msra.mxu0 %v5198
      %8385 = vmatprep.subr.bf16.mxu0 0
      %8386 = vmatpush1.bf16.msra.mxu0 %v5197
      %8387 = vmatprep.subr.bf16.mxu0 0
      %8388 = vmatpush1.bf16.msra.mxu0 %v5196
      %8389 = vmatprep.subr.bf16.mxu0 0
      %8390 = vmatpush1.bf16.msra.mxu0 %v5195
      %8391 = vmatprep.subr.bf16.mxu0 0
      %8392 = vmatpush2.bf16.msra.mxu0 0
      %8393 = vmatprep.subr.bf16.mxu0 0
      %8394 = vmatpush2.bf16.msra.mxu0 0
      %8395 = vmatprep.subr.bf16.mxu0 0
      %8396 = vmatpush2.bf16.msra.mxu0 0
      %8397 = vmatprep.subr.bf16.mxu0 0
      %8398 = vmatpush2.bf16.msra.mxu0 0
      %8399 = vmatprep.subr.bf16.mxu0 0
      %8400 = vmatpush2.bf16.msra.mxu0 0
      %8401 = vmatprep.subr.bf16.mxu0 0
      %8402 = vmatpush2.bf16.msra.mxu0 0
      %8403 = vmatprep.subr.bf16.mxu0 0
      %8404 = vmatpush2.bf16.msra.mxu0 0
      %8405 = vmatprep.subr.bf16.mxu0 0
      %8406 = vmatpush2.bf16.msra.mxu0 0
      %8407 = vmatprep.mubr.bf16.mxu0 0
      %8408 = vmatmul.mubr.bf16.gmra.mxu0 %v2792
      %v8409 = vpop.f32.mrf.mxu0
      %v8410 = vadd.f32 %v6897, %v8409
      %v8411 = vpop.f32.mrf.mxu0
      %v8412 = vpop.f32.mrf.mxu0
      %v8413 = vpop.f32.mrf.mxu0
      %8414 = vdwg.mxu0
      %8415 = vmatprep.subr.bf16.mxu0 0
      %8416 = vmatpush1.bf16.msra.mxu0 0
      %8417 = vmatprep.subr.bf16.mxu0 0
      %8418 = vmatpush1.bf16.msra.mxu0 0
      %8419 = vmatprep.subr.bf16.mxu0 0
      %8420 = vmatpush1.bf16.msra.mxu0 0
      %8421 = vmatprep.subr.bf16.mxu0 0
      %8422 = vmatpush1.bf16.msra.mxu0 0
      %8423 = vmatprep.subr.bf16.mxu0 0
      %8424 = vmatpush1.bf16.msra.mxu0 %v5265
      %8425 = vmatprep.subr.bf16.mxu0 0
      %8426 = vmatpush1.bf16.msra.mxu0 %v5264
      %8427 = vmatprep.subr.bf16.mxu0 0
      %8428 = vmatpush1.bf16.msra.mxu0 %v5263
      %8429 = vmatprep.subr.bf16.mxu0 0
      %8430 = vmatpush1.bf16.msra.mxu0 %v5262
      %8431 = vmatprep.subr.bf16.mxu0 0
      %8432 = vmatpush2.bf16.msra.mxu0 0
      %8433 = vmatprep.subr.bf16.mxu0 0
      %8434 = vmatpush2.bf16.msra.mxu0 0
      %8435 = vmatprep.subr.bf16.mxu0 0
      %8436 = vmatpush2.bf16.msra.mxu0 0
      %8437 = vmatprep.subr.bf16.mxu0 0
      %8438 = vmatpush2.bf16.msra.mxu0 0
      %8439 = vmatprep.subr.bf16.mxu0 0
      %8440 = vmatpush2.bf16.msra.mxu0 0
      %8441 = vmatprep.subr.bf16.mxu0 0
      %8442 = vmatpush2.bf16.msra.mxu0 0
      %8443 = vmatprep.subr.bf16.mxu0 0
      %8444 = vmatpush2.bf16.msra.mxu0 0
      %8445 = vmatprep.subr.bf16.mxu0 0
      %8446 = vmatpush2.bf16.msra.mxu0 0
      %8447 = vmatprep.mubr.bf16.mxu0 0
      %8448 = vmatmul.mubr.bf16.gmra.mxu0 %v2859
      %v8449 = vpop.f32.mrf.mxu0
      %v8450 = vadd.f32 %v6937, %v8449
      %v8451 = vpop.f32.mrf.mxu0
      %v8452 = vpop.f32.mrf.mxu0
      %v8453 = vpop.f32.mrf.mxu0
      %8454 = vdwg.mxu0
      %8455 = vmatprep.subr.bf16.mxu0 0
      %8456 = vmatpush1.bf16.msra.mxu0 0
      %8457 = vmatprep.subr.bf16.mxu0 0
      %8458 = vmatpush1.bf16.msra.mxu0 0
      %8459 = vmatprep.subr.bf16.mxu0 0
      %8460 = vmatpush1.bf16.msra.mxu0 0
      %8461 = vmatprep.subr.bf16.mxu0 0
      %8462 = vmatpush1.bf16.msra.mxu0 0
      %8463 = vmatprep.subr.bf16.mxu0 0
      %8464 = vmatpush1.bf16.msra.mxu0 %v5332
      %8465 = vmatprep.subr.bf16.mxu0 0
      %8466 = vmatpush1.bf16.msra.mxu0 %v5331
      %8467 = vmatprep.subr.bf16.mxu0 0
      %8468 = vmatpush1.bf16.msra.mxu0 %v5330
      %8469 = vmatprep.subr.bf16.mxu0 0
      %8470 = vmatpush1.bf16.msra.mxu0 %v5329
      %8471 = vmatprep.subr.bf16.mxu0 0
      %8472 = vmatpush2.bf16.msra.mxu0 0
      %8473 = vmatprep.subr.bf16.mxu0 0
      %8474 = vmatpush2.bf16.msra.mxu0 0
      %8475 = vmatprep.subr.bf16.mxu0 0
      %8476 = vmatpush2.bf16.msra.mxu0 0
      %8477 = vmatprep.subr.bf16.mxu0 0
      %8478 = vmatpush2.bf16.msra.mxu0 0
      %8479 = vmatprep.subr.bf16.mxu0 0
      %8480 = vmatpush2.bf16.msra.mxu0 0
      %8481 = vmatprep.subr.bf16.mxu0 0
      %8482 = vmatpush2.bf16.msra.mxu0 0
      %8483 = vmatprep.subr.bf16.mxu0 0
      %8484 = vmatpush2.bf16.msra.mxu0 0
      %8485 = vmatprep.subr.bf16.mxu0 0
      %8486 = vmatpush2.bf16.msra.mxu0 0
      %8487 = vmatprep.mubr.bf16.mxu0 0
      %8488 = vmatmul.mubr.bf16.gmra.mxu0 %v2926
      %v8489 = vpop.f32.mrf.mxu0
      %v8490 = vadd.f32 %v6977, %v8489
      %v8491 = vpop.f32.mrf.mxu0
      %v8492 = vpop.f32.mrf.mxu0
      %v8493 = vpop.f32.mrf.mxu0
      %8494 = vdwg.mxu0
      %8495 = vmatprep.subr.bf16.mxu0 0
      %8496 = vmatpush1.bf16.msra.mxu0 0
      %8497 = vmatprep.subr.bf16.mxu0 0
      %8498 = vmatpush1.bf16.msra.mxu0 0
      %8499 = vmatprep.subr.bf16.mxu0 0
      %8500 = vmatpush1.bf16.msra.mxu0 0
      %8501 = vmatprep.subr.bf16.mxu0 0
      %8502 = vmatpush1.bf16.msra.mxu0 0
      %8503 = vmatprep.subr.bf16.mxu0 0
      %8504 = vmatpush1.bf16.msra.mxu0 %v5399
      %8505 = vmatprep.subr.bf16.mxu0 0
      %8506 = vmatpush1.bf16.msra.mxu0 %v5398
      %8507 = vmatprep.subr.bf16.mxu0 0
      %8508 = vmatpush1.bf16.msra.mxu0 %v5397
      %8509 = vmatprep.subr.bf16.mxu0 0
      %8510 = vmatpush1.bf16.msra.mxu0 %v5396
      %8511 = vmatprep.subr.bf16.mxu0 0
      %8512 = vmatpush2.bf16.msra.mxu0 0
      %8513 = vmatprep.subr.bf16.mxu0 0
      %8514 = vmatpush2.bf16.msra.mxu0 0
      %8515 = vmatprep.subr.bf16.mxu0 0
      %8516 = vmatpush2.bf16.msra.mxu0 0
      %8517 = vmatprep.subr.bf16.mxu0 0
      %8518 = vmatpush2.bf16.msra.mxu0 0
      %8519 = vmatprep.subr.bf16.mxu0 0
      %8520 = vmatpush2.bf16.msra.mxu0 0
      %8521 = vmatprep.subr.bf16.mxu0 0
      %8522 = vmatpush2.bf16.msra.mxu0 0
      %8523 = vmatprep.subr.bf16.mxu0 0
      %8524 = vmatpush2.bf16.msra.mxu0 0
      %8525 = vmatprep.subr.bf16.mxu0 0
      %8526 = vmatpush2.bf16.msra.mxu0 0
      %8527 = vmatprep.mubr.bf16.mxu0 0
      %8528 = vmatmul.mubr.bf16.gmra.mxu0 %v2993
      %v8529 = vpop.f32.mrf.mxu0
      %v8530 = vadd.f32 %v7017, %v8529
      %v8531 = vpop.f32.mrf.mxu0
      %v8532 = vpop.f32.mrf.mxu0
      %v8533 = vpop.f32.mrf.mxu0
      %8534 = vdwg.mxu0
      %8535 = vmatprep.subr.bf16.mxu0 0
      %8536 = vmatpush1.bf16.msra.mxu0 0
      %8537 = vmatprep.subr.bf16.mxu0 0
      %8538 = vmatpush1.bf16.msra.mxu0 0
      %8539 = vmatprep.subr.bf16.mxu0 0
      %8540 = vmatpush1.bf16.msra.mxu0 0
      %8541 = vmatprep.subr.bf16.mxu0 0
      %8542 = vmatpush1.bf16.msra.mxu0 0
      %8543 = vmatprep.subr.bf16.mxu0 0
      %8544 = vmatpush1.bf16.msra.mxu0 %v5466
      %8545 = vmatprep.subr.bf16.mxu0 0
      %8546 = vmatpush1.bf16.msra.mxu0 %v5465
      %8547 = vmatprep.subr.bf16.mxu0 0
      %8548 = vmatpush1.bf16.msra.mxu0 %v5464
      %8549 = vmatprep.subr.bf16.mxu0 0
      %8550 = vmatpush1.bf16.msra.mxu0 %v5463
      %8551 = vmatprep.subr.bf16.mxu0 0
      %8552 = vmatpush2.bf16.msra.mxu0 0
      %8553 = vmatprep.subr.bf16.mxu0 0
      %8554 = vmatpush2.bf16.msra.mxu0 0
      %8555 = vmatprep.subr.bf16.mxu0 0
      %8556 = vmatpush2.bf16.msra.mxu0 0
      %8557 = vmatprep.subr.bf16.mxu0 0
      %8558 = vmatpush2.bf16.msra.mxu0 0
      %8559 = vmatprep.subr.bf16.mxu0 0
      %8560 = vmatpush2.bf16.msra.mxu0 0
      %8561 = vmatprep.subr.bf16.mxu0 0
      %8562 = vmatpush2.bf16.msra.mxu0 0
      %8563 = vmatprep.subr.bf16.mxu0 0
      %8564 = vmatpush2.bf16.msra.mxu0 0
      %8565 = vmatprep.subr.bf16.mxu0 0
      %8566 = vmatpush2.bf16.msra.mxu0 0
      %8567 = vmatprep.mubr.bf16.mxu0 0
      %8568 = vmatmul.mubr.bf16.gmra.mxu0 %v3060
      %v8569 = vpop.f32.mrf.mxu0
      %v8570 = vadd.f32 %v7057, %v8569
      %v8571 = vpop.f32.mrf.mxu0
      %v8572 = vpop.f32.mrf.mxu0
      %v8573 = vpop.f32.mrf.mxu0
      %8574 = vdwg.mxu0
      %8575 = vmatprep.subr.bf16.mxu0 0
      %8576 = vmatpush1.bf16.msra.mxu0 0
      %8577 = vmatprep.subr.bf16.mxu0 0
      %8578 = vmatpush1.bf16.msra.mxu0 0
      %8579 = vmatprep.subr.bf16.mxu0 0
      %8580 = vmatpush1.bf16.msra.mxu0 0
      %8581 = vmatprep.subr.bf16.mxu0 0
      %8582 = vmatpush1.bf16.msra.mxu0 0
      %8583 = vmatprep.subr.bf16.mxu0 0
      %8584 = vmatpush1.bf16.msra.mxu0 %v5533
      %8585 = vmatprep.subr.bf16.mxu0 0
      %8586 = vmatpush1.bf16.msra.mxu0 %v5532
      %8587 = vmatprep.subr.bf16.mxu0 0
      %8588 = vmatpush1.bf16.msra.mxu0 %v5531
      %8589 = vmatprep.subr.bf16.mxu0 0
      %8590 = vmatpush1.bf16.msra.mxu0 %v5530
      %8591 = vmatprep.subr.bf16.mxu0 0
      %8592 = vmatpush2.bf16.msra.mxu0 0
      %8593 = vmatprep.subr.bf16.mxu0 0
      %8594 = vmatpush2.bf16.msra.mxu0 0
      %8595 = vmatprep.subr.bf16.mxu0 0
      %8596 = vmatpush2.bf16.msra.mxu0 0
      %8597 = vmatprep.subr.bf16.mxu0 0
      %8598 = vmatpush2.bf16.msra.mxu0 0
      %8599 = vmatprep.subr.bf16.mxu0 0
      %8600 = vmatpush2.bf16.msra.mxu0 0
      %8601 = vmatprep.subr.bf16.mxu0 0
      %8602 = vmatpush2.bf16.msra.mxu0 0
      %8603 = vmatprep.subr.bf16.mxu0 0
      %8604 = vmatpush2.bf16.msra.mxu0 0
      %8605 = vmatprep.subr.bf16.mxu0 0
      %8606 = vmatpush2.bf16.msra.mxu0 0
      %8607 = vmatprep.mubr.bf16.mxu0 0
      %8608 = vmatmul.mubr.bf16.gmra.mxu0 %v3127
      %v8609 = vpop.f32.mrf.mxu0
      %v8610 = vadd.f32 %v7097, %v8609
      %v8611 = vpop.f32.mrf.mxu0
      %v8612 = vpop.f32.mrf.mxu0
      %v8613 = vpop.f32.mrf.mxu0
      %8614 = vdwg.mxu0
      %8615 = vmatprep.subr.bf16.mxu0 0
      %8616 = vmatpush1.bf16.msra.mxu0 0
      %8617 = vmatprep.subr.bf16.mxu0 0
      %8618 = vmatpush1.bf16.msra.mxu0 0
      %8619 = vmatprep.subr.bf16.mxu0 0
      %8620 = vmatpush1.bf16.msra.mxu0 0
      %8621 = vmatprep.subr.bf16.mxu0 0
      %8622 = vmatpush1.bf16.msra.mxu0 0
      %8623 = vmatprep.subr.bf16.mxu0 0
      %8624 = vmatpush1.bf16.msra.mxu0 %v5600
      %8625 = vmatprep.subr.bf16.mxu0 0
      %8626 = vmatpush1.bf16.msra.mxu0 %v5599
      %8627 = vmatprep.subr.bf16.mxu0 0
      %8628 = vmatpush1.bf16.msra.mxu0 %v5598
      %8629 = vmatprep.subr.bf16.mxu0 0
      %8630 = vmatpush1.bf16.msra.mxu0 %v5597
      %8631 = vmatprep.subr.bf16.mxu0 0
      %8632 = vmatpush2.bf16.msra.mxu0 0
      %8633 = vmatprep.subr.bf16.mxu0 0
      %8634 = vmatpush2.bf16.msra.mxu0 0
      %8635 = vmatprep.subr.bf16.mxu0 0
      %8636 = vmatpush2.bf16.msra.mxu0 0
      %8637 = vmatprep.subr.bf16.mxu0 0
      %8638 = vmatpush2.bf16.msra.mxu0 0
      %8639 = vmatprep.subr.bf16.mxu0 0
      %8640 = vmatpush2.bf16.msra.mxu0 0
      %8641 = vmatprep.subr.bf16.mxu0 0
      %8642 = vmatpush2.bf16.msra.mxu0 0
      %8643 = vmatprep.subr.bf16.mxu0 0
      %8644 = vmatpush2.bf16.msra.mxu0 0
      %8645 = vmatprep.subr.bf16.mxu0 0
      %8646 = vmatpush2.bf16.msra.mxu0 0
      %8647 = vmatprep.mubr.bf16.mxu0 0
      %8648 = vmatmul.mubr.bf16.gmra.mxu0 %v3194
      %v8649 = vpop.f32.mrf.mxu0
      %v8650 = vadd.f32 %v7137, %v8649
      %v8651 = vpop.f32.mrf.mxu0
      %v8652 = vpop.f32.mrf.mxu0
      %v8653 = vpop.f32.mrf.mxu0
      %8654 = vdwg.mxu0
      %8655 = vmatprep.subr.bf16.mxu0 0
      %8656 = vmatpush1.bf16.msra.mxu0 0
      %8657 = vmatprep.subr.bf16.mxu0 0
      %8658 = vmatpush1.bf16.msra.mxu0 0
      %8659 = vmatprep.subr.bf16.mxu0 0
      %8660 = vmatpush1.bf16.msra.mxu0 0
      %8661 = vmatprep.subr.bf16.mxu0 0
      %8662 = vmatpush1.bf16.msra.mxu0 0
      %8663 = vmatprep.subr.bf16.mxu0 0
      %8664 = vmatpush1.bf16.msra.mxu0 %v5667
      %8665 = vmatprep.subr.bf16.mxu0 0
      %8666 = vmatpush1.bf16.msra.mxu0 %v5666
      %8667 = vmatprep.subr.bf16.mxu0 0
      %8668 = vmatpush1.bf16.msra.mxu0 %v5665
      %8669 = vmatprep.subr.bf16.mxu0 0
      %8670 = vmatpush1.bf16.msra.mxu0 %v5664
      %8671 = vmatprep.subr.bf16.mxu0 0
      %8672 = vmatpush2.bf16.msra.mxu0 0
      %8673 = vmatprep.subr.bf16.mxu0 0
      %8674 = vmatpush2.bf16.msra.mxu0 0
      %8675 = vmatprep.subr.bf16.mxu0 0
      %8676 = vmatpush2.bf16.msra.mxu0 0
      %8677 = vmatprep.subr.bf16.mxu0 0
      %8678 = vmatpush2.bf16.msra.mxu0 0
      %8679 = vmatprep.subr.bf16.mxu0 0
      %8680 = vmatpush2.bf16.msra.mxu0 0
      %8681 = vmatprep.subr.bf16.mxu0 0
      %8682 = vmatpush2.bf16.msra.mxu0 0
      %8683 = vmatprep.subr.bf16.mxu0 0
      %8684 = vmatpush2.bf16.msra.mxu0 0
      %8685 = vmatprep.subr.bf16.mxu0 0
      %8686 = vmatpush2.bf16.msra.mxu0 0
      %8687 = vmatprep.mubr.bf16.mxu0 0
      %8688 = vmatmul.mubr.bf16.gmra.mxu0 %v3261
      %v8689 = vpop.f32.mrf.mxu0
      %v8690 = vadd.f32 %v7177, %v8689
      %v8691 = vpop.f32.mrf.mxu0
      %v8692 = vpop.f32.mrf.mxu0
      %v8693 = vpop.f32.mrf.mxu0
      %8694 = vdwg.mxu0
      %8695 = vmatprep.subr.bf16.mxu0 0
      %8696 = vmatpush1.bf16.msra.mxu0 0
      %8697 = vmatprep.subr.bf16.mxu0 0
      %8698 = vmatpush1.bf16.msra.mxu0 0
      %8699 = vmatprep.subr.bf16.mxu0 0
      %8700 = vmatpush1.bf16.msra.mxu0 0
      %8701 = vmatprep.subr.bf16.mxu0 0
      %8702 = vmatpush1.bf16.msra.mxu0 0
      %8703 = vmatprep.subr.bf16.mxu0 0
      %8704 = vmatpush1.bf16.msra.mxu0 %v5734
      %8705 = vmatprep.subr.bf16.mxu0 0
      %8706 = vmatpush1.bf16.msra.mxu0 %v5733
      %8707 = vmatprep.subr.bf16.mxu0 0
      %8708 = vmatpush1.bf16.msra.mxu0 %v5732
      %8709 = vmatprep.subr.bf16.mxu0 0
      %8710 = vmatpush1.bf16.msra.mxu0 %v5731
      %8711 = vmatprep.subr.bf16.mxu0 0
      %8712 = vmatpush2.bf16.msra.mxu0 0
      %8713 = vmatprep.subr.bf16.mxu0 0
      %8714 = vmatpush2.bf16.msra.mxu0 0
      %8715 = vmatprep.subr.bf16.mxu0 0
      %8716 = vmatpush2.bf16.msra.mxu0 0
      %8717 = vmatprep.subr.bf16.mxu0 0
      %8718 = vmatpush2.bf16.msra.mxu0 0
      %8719 = vmatprep.subr.bf16.mxu0 0
      %8720 = vmatpush2.bf16.msra.mxu0 0
      %8721 = vmatprep.subr.bf16.mxu0 0
      %8722 = vmatpush2.bf16.msra.mxu0 0
      %8723 = vmatprep.subr.bf16.mxu0 0
      %8724 = vmatpush2.bf16.msra.mxu0 0
      %8725 = vmatprep.subr.bf16.mxu0 0
      %8726 = vmatpush2.bf16.msra.mxu0 0
      %8727 = vmatprep.mubr.bf16.mxu0 0
      %8728 = vmatmul.mubr.bf16.gmra.mxu0 %v3328
      %v8729 = vpop.f32.mrf.mxu0
      %v8730 = vadd.f32 %v7217, %v8729
      %v8731 = vpop.f32.mrf.mxu0
      %v8732 = vpop.f32.mrf.mxu0
      %v8733 = vpop.f32.mrf.mxu0
      %8734 = vdwg.mxu0
      %8735 = vst.msk [vmem:[%s306] sm:$0x3] %vm7258, %v7330
      %8736 = vst.msk [vmem:[%s306 + $0x2] sm:$0x3] %vm7258, %v7370
      %8737 = vst.msk [vmem:[%s306 + $0x4] sm:$0x3] %vm7258, %v7410
      %8738 = vst.msk [vmem:[%s306 + $0x6] sm:$0x3] %vm7258, %v7450
      %8739 = vst.msk [vmem:[%s306 + $0x8] sm:$0x3] %vm7258, %v7490
      %8740 = vst.msk [vmem:[%s306 + $0xa] sm:$0x3] %vm7258, %v7530
      %8741 = vst.msk [vmem:[%s306 + $0xc] sm:$0x3] %vm7258, %v7570
      %8742 = vst.msk [vmem:[%s306 + $0xe] sm:$0x3] %vm7258, %v7610
      %8743 = vst.msk [vmem:[%s306 + $0x10] sm:$0x3] %vm7258, %v7650
      %8744 = vst.msk [vmem:[%s306 + $0x12] sm:$0x3] %vm7258, %v7690
      %8745 = vst.msk [vmem:[%s306 + $0x14] sm:$0x3] %vm7258, %v7730
      %8746 = vst.msk [vmem:[%s306 + $0x16] sm:$0x3] %vm7258, %v7770
      %8747 = vst.msk [vmem:[%s306 + $0x18] sm:$0x3] %vm7258, %v7810
      %8748 = vst.msk [vmem:[%s306 + $0x1a] sm:$0x3] %vm7258, %v7850
      %8749 = vst.msk [vmem:[%s306 + $0x1c] sm:$0x3] %vm7258, %v7890
      %8750 = vst.msk [vmem:[%s306 + $0x1e] sm:$0x3] %vm7258, %v7930
      %8751 = vst.msk [vmem:[%s306 + $0x20] sm:$0x3] %vm7258, %v7970
      %8752 = vst.msk [vmem:[%s306 + $0x22] sm:$0x3] %vm7258, %v8010
      %8753 = vst.msk [vmem:[%s306 + $0x24] sm:$0x3] %vm7258, %v8050
      %8754 = vst.msk [vmem:[%s306 + $0x26] sm:$0x3] %vm7258, %v8090
      %8755 = vst.msk [vmem:[%s306 + $0x28] sm:$0x3] %vm7258, %v8130
      %8756 = vst.msk [vmem:[%s306 + $0x2a] sm:$0x3] %vm7258, %v8170
      %8757 = vst.msk [vmem:[%s306 + $0x2c] sm:$0x3] %vm7258, %v8210
      %8758 = vst.msk [vmem:[%s306 + $0x2e] sm:$0x3] %vm7258, %v8250
      %8759 = vst.msk [vmem:[%s306 + $0x30] sm:$0x3] %vm7258, %v8290
      %8760 = vst.msk [vmem:[%s306 + $0x32] sm:$0x3] %vm7258, %v8330
      %8761 = vst.msk [vmem:[%s306 + $0x34] sm:$0x3] %vm7258, %v8370
      %8762 = vst.msk [vmem:[%s306 + $0x36] sm:$0x3] %vm7258, %v8410
      %8763 = vst.msk [vmem:[%s306 + $0x38] sm:$0x3] %vm7258, %v8450
      %8764 = vst.msk [vmem:[%s306 + $0x3a] sm:$0x3] %vm7258, %v8490
      %8765 = vst.msk [vmem:[%s306 + $0x3c] sm:$0x3] %vm7258, %v8530
      %8766 = vst.msk [vmem:[%s306 + $0x3e] sm:$0x3] %vm7258, %v8570
      %8767 = vst.msk [vmem:[%s306 + $0x40] sm:$0x3] %vm7258, %v8610
      %8768 = vst.msk [vmem:[%s306 + $0x42] sm:$0x3] %vm7258, %v8650
      %8769 = vst.msk [vmem:[%s306 + $0x44] sm:$0x3] %vm7258, %v8690
      %8770 = vst.msk [vmem:[%s306 + $0x46] sm:$0x3] %vm7258, %v8730
      %s8771 = smul.u32 36, %s17
      %p8772 = scmp.lt.s32.totalorder %s8771, 71
      %s8773 = scalar_select %p8772, %s8771, 71
      %s8774 = smul.addr %s8773, 2
      %s8775 = scalar_lea.vmem %s4, %s8774
      %s8776 = smul.u32 36, %s17
      %p8777 = scmp.lt.s32.totalorder %s8776, 71
      %s8778 = scalar_select %p8777, %s8776, 71
      %s8779 = smul.addr %s8778, 2
      %s8780 = scalar_lea.vmem %s5, %s8779
      // Predicated region
      $region37: #{fno2d_forward.11} parent=35 // pred_check
        %p8781 = pneg %p139
      $region38: #{fno2d_forward.11} parent=35 // pred_check_branch
        %8783 = sbr.rel (%p8781) target = $region40
      $region39: #{fno2d_forward.11} parent=35 // pred_region
        %s8784 = smul.u32 36, %s17
      $region40: #{fno2d_forward.11} parent=35 // pred_fallthru
        _
      // Predicated region
      $region41: #{fno2d_forward.11} parent=35 // pred_check
        %p8785 = pneg %p165
      $region42: #{fno2d_forward.11} parent=35 // pred_check_branch
        %8787 = sbr.rel (%p8785) target = $region44
      $region43: #{fno2d_forward.11} parent=35 // pred_region
        %s8788 = smul.u32 36, %s17
      $region44: #{fno2d_forward.11} parent=35 // pred_fallthru
        _
    $region36: #{fno2d_forward.11} parent=5 // pred_fallthru
      _
    %p8789 = scmp.le.s32.totalorder 2, %s12
    // Predicated region
    $region45: #{fno2d_forward.11} parent=5 // pred_check
      %p8790 = pneg %p8789
    $region46: #{fno2d_forward.11} parent=5 // pred_check_branch
      %8792 = sbr.rel (%p8790) target = $region48
    $region47: #{fno2d_forward.11} parent=5 // pred_region
      %s8793 = ssub.s32 %s12, 2
      // Predicated region
      $region49: #{fno2d_forward.11} parent=47 // pred_check
        %p8794 = pneg %p145
      $region50: #{fno2d_forward.11} parent=47 // pred_check_branch
        %8796 = sbr.rel (%p8794) target = $region52
      $region51: #{fno2d_forward.11} parent=47 // pred_region
        %s8797 = smul.u32 36, %s18
        %p8798 = scmp.lt.s32.totalorder %s8797, 71
        %s8799 = scalar_select %p8798, %s8797, 71
        %s8800 = smul.addr %s8799, 2
        %s8801 = scalar_lea.vmem %s4, %s8800
      $region52: #{fno2d_forward.11} parent=47 // pred_fallthru
        _
      // Predicated region
      $region53: #{fno2d_forward.11} parent=47 // pred_check
        %p8802 = pneg %p171
      $region54: #{fno2d_forward.11} parent=47 // pred_check_branch
        %8804 = sbr.rel (%p8802) target = $region56
      $region55: #{fno2d_forward.11} parent=47 // pred_region
        %s8805 = smul.u32 36, %s18
        %p8806 = scmp.lt.s32.totalorder %s8805, 71
        %s8807 = scalar_select %p8806, %s8805, 71
        %s8808 = smul.addr %s8807, 2
        %s8809 = scalar_lea.vmem %s5, %s8808
      $region56: #{fno2d_forward.11} parent=47 // pred_fallthru
        _
    $region48: #{fno2d_forward.11} parent=5 // pred_fallthru
      _
  $region6: #{fno2d_forward.11} parent=0 // loop_footer
    %s16 = sadd.s32 1, %s12
  $region7: #{fno2d_forward.11} parent=0 // loop_footer_branch
    %11 = sbr.rel target = $region3
  $region8: #{fno2d_forward.11} parent=0 // loop_exit
    _

// kernel: fno2d_forward.12
$region0: #{fno2d_forward.12}
  #allocation0 [shape = 'u32[]', space=smem, size = 0x4, offset = 0x4, fixed_abs, tag = 'smem constant byte address 0x4 - core index']
  #allocation1 [shape = 'u32[144,128]{1,0:T(1,128)}', space=vmem, size = 0x12000, scoped, tag = 'internal scratch']
  %s0 = inlined_call_operand.vmem [shape: bf16[512,64], index: 0, kind: input, shape index: {}]
  %s1 = inlined_call_operand.vmem [shape: bf16[64,64], index: 1, kind: input, shape index: {}]
  %s2 = inlined_call_operand.vmem [shape: f32[1,64], index: 2, kind: input, shape index: {}]
  %s3 = inlined_call_operand.vmem [shape: f32[512,64], index: 3, kind: input, shape index: {}]
  %s4 = inlined_call_operand.vmem [shape: bf16[512,64], index: 4, kind: output, shape index: {}]
  %s5 = sld [smem:[#allocation0]]
  $region49: #{fno2d_forward.12} parent=0
    _
  %s7 = ssub.s32 1, %s5
  %s8 = scalar_select 0, %s7, %s5
  loop: start=0, step=1, limit=4
  $region2: #{fno2d_forward.12} parent=0 // loop_pre_header
    _
  $region3: #{fno2d_forward.12} parent=0 // loop_header
    %s10 = sphi 0, %s14
    %p11 = scmp.ge.s32.totalorder %s10, 4
    %s20 = sphi 0, %s22
    %s23 = sphi 0, %s20
    %s24 = sphi 0, %s23
    %s40 = sphi 0, %s24
    %s44 = sphi 0, %s44
    %s46 = sphi 0, %s44
    %s47 = sphi 0, %s46
    %s61 = sphi 0, %s47
    %s65 = sphi 0, %s65
    %s67 = sphi 0, %s65
    %s68 = sphi 0, %s67
    %s82 = sphi 0, %s68
    %s88 = sphi 0, %s90
    %s91 = sphi 0, %s88
    %s92 = sphi 0, %s91
    %s108 = sphi 0, %s92
    %s114 = sphi 0, %s116
    %s117 = sphi 0, %s114
    %s118 = sphi 0, %s117
    %s134 = sphi 0, %s118
  $region4: #{fno2d_forward.12} parent=0 // loop_header_branch
    %13 = sbr.rel (%p11) target = $region8
  $region5: #{fno2d_forward.12} parent=0 // loop_body
    %s15 = ssub.s32 %s10, 1
    %s16 = ssub.s32 %s10, 2
    %s17 = sadd.s32 %s10, 1
    %s18 = ssub.s32 %s10, %s17
    %p19 = scmp.eq.s32.totalorder %s18, 0
    %s21 = sadd.s32 %s20, 1
    %s22 = scalar_select %p19, %s20, %s21
    %p25 = pneg %p19
    %p26 = scmp.eq.s32.totalorder %s10, 1
    %p27 = por %p25, %p26
    %p28 = scmp.ne.s32.totalorder %s20, %s23
    %p29 = scmp.eq.s32.totalorder %s10, 0
    %p30 = por %p28, %p29
    %p31 = scmp.ne.s32.totalorder %s20, %s23
    %p32 = scmp.eq.s32.totalorder %s15, 1
    %p33 = por %p31, %p32
    %p34 = scmp.ne.s32.totalorder %s23, %s24
    %p35 = scmp.eq.s32.totalorder %s15, 0
    %p36 = por %p34, %p35
    %p37 = scmp.ne.s32.totalorder %s23, %s24
    %p38 = scmp.eq.s32.totalorder %s16, 1
    %p39 = por %p37, %p38
    %p41 = scmp.ne.s32.totalorder %s24, %s40
    %p42 = scmp.eq.s32.totalorder %s16, 0
    %p43 = por %p41, %p42
    %s45 = sadd.s32 %s44, 1
    %p48 = scmp.eq.s32.totalorder %s10, 1
    %p49 = scmp.ne.s32.totalorder %s44, %s46
    %p50 = scmp.eq.s32.totalorder %s10, 0
    %p51 = por %p49, %p50
    %p52 = scmp.ne.s32.totalorder %s44, %s46
    %p53 = scmp.eq.s32.totalorder %s15, 1
    %p54 = por %p52, %p53
    %p55 = scmp.ne.s32.totalorder %s46, %s47
    %p56 = scmp.eq.s32.totalorder %s15, 0
    %p57 = por %p55, %p56
    %p58 = scmp.ne.s32.totalorder %s46, %s47
    %p59 = scmp.eq.s32.totalorder %s16, 1
    %p60 = por %p58, %p59
    %p62 = scmp.ne.s32.totalorder %s47, %s61
    %p63 = scmp.eq.s32.totalorder %s16, 0
    %p64 = por %p62, %p63
    %s66 = sadd.s32 %s65, 1
    %p69 = scmp.eq.s32.totalorder %s10, 1
    %p70 = scmp.ne.s32.totalorder %s65, %s67
    %p71 = scmp.eq.s32.totalorder %s10, 0
    %p72 = por %p70, %p71
    %p73 = scmp.ne.s32.totalorder %s65, %s67
    %p74 = scmp.eq.s32.totalorder %s15, 1
    %p75 = por %p73, %p74
    %p76 = scmp.ne.s32.totalorder %s67, %s68
    %p77 = scmp.eq.s32.totalorder %s15, 0
    %p78 = por %p76, %p77
    %p79 = scmp.ne.s32.totalorder %s67, %s68
    %p80 = scmp.eq.s32.totalorder %s16, 1
    %p81 = por %p79, %p80
    %p83 = scmp.ne.s32.totalorder %s68, %s82
    %p84 = scmp.eq.s32.totalorder %s16, 0
    %p85 = por %p83, %p84
    %s86 = ssub.s32 %s10, %s17
    %p87 = scmp.eq.s32.totalorder %s86, 0
    %s89 = sadd.s32 %s88, 1
    %s90 = scalar_select %p87, %s88, %s89
    %p93 = pneg %p87
    %p94 = scmp.eq.s32.totalorder %s10, 1
    %p95 = por %p93, %p94
    %p96 = scmp.ne.s32.totalorder %s88, %s91
    %p97 = scmp.eq.s32.totalorder %s10, 0
    %p98 = por %p96, %p97
    %p99 = scmp.ne.s32.totalorder %s88, %s91
    %p100 = scmp.eq.s32.totalorder %s15, 1
    %p101 = por %p99, %p100
    %p102 = scmp.ne.s32.totalorder %s91, %s92
    %p103 = scmp.eq.s32.totalorder %s15, 0
    %p104 = por %p102, %p103
    %p105 = scmp.ne.s32.totalorder %s91, %s92
    %p106 = scmp.eq.s32.totalorder %s16, 1
    %p107 = por %p105, %p106
    %p109 = scmp.ne.s32.totalorder %s92, %s108
    %p110 = scmp.eq.s32.totalorder %s16, 0
    %p111 = por %p109, %p110
    %s112 = ssub.s32 %s10, %s17
    %p113 = scmp.eq.s32.totalorder %s112, 0
    %s115 = sadd.s32 %s114, 1
    %s116 = scalar_select %p113, %s114, %s115
    %p119 = pneg %p113
    %p120 = scmp.eq.s32.totalorder %s10, 1
    %p121 = por %p119, %p120
    %p122 = scmp.ne.s32.totalorder %s114, %s117
    %p123 = scmp.eq.s32.totalorder %s10, 0
    %p124 = por %p122, %p123
    %p125 = scmp.ne.s32.totalorder %s114, %s117
    %p126 = scmp.eq.s32.totalorder %s15, 1
    %p127 = por %p125, %p126
    %p128 = scmp.ne.s32.totalorder %s117, %s118
    %p129 = scmp.eq.s32.totalorder %s15, 0
    %p130 = por %p128, %p129
    %p131 = scmp.ne.s32.totalorder %s117, %s118
    %p132 = scmp.eq.s32.totalorder %s16, 1
    %p133 = por %p131, %p132
    %p135 = scmp.ne.s32.totalorder %s118, %s134
    %p136 = scmp.eq.s32.totalorder %s16, 0
    %p137 = por %p135, %p136
    %p138 = scmp.le.s32.totalorder 1, %s10
    %p139 = scmp.lt.s32.totalorder %s10, 3
    %p140 = pnand %p138, %p139
    %p141 = pneg %p140
    // Predicated region
    $region9: #{fno2d_forward.12} parent=5 // pred_check
      _
    $region10: #{fno2d_forward.12} parent=5 // pred_check_branch
      %143 = sbr.rel (%p140) target = $region12
    $region11: #{fno2d_forward.12} parent=5 // pred_region
      %s144 = ssub.s32 %s10, 1
      // Predicated region
      $region13: #{fno2d_forward.12} parent=11 // pred_check
        %p145 = pneg %p57
      $region14: #{fno2d_forward.12} parent=11 // pred_check_branch
        %147 = sbr.rel (%p145) target = $region16
      $region15: #{fno2d_forward.12} parent=11 // pred_region
        _
      $region16: #{fno2d_forward.12} parent=11 // pred_fallthru
        _
      // Predicated region
      $region17: #{fno2d_forward.12} parent=11 // pred_check
        %p148 = pneg %p78
      $region18: #{fno2d_forward.12} parent=11 // pred_check_branch
        %150 = sbr.rel (%p148) target = $region20
      $region19: #{fno2d_forward.12} parent=11 // pred_region
        _
      $region20: #{fno2d_forward.12} parent=11 // pred_fallthru
        _
    $region12: #{fno2d_forward.12} parent=5 // pred_fallthru
      _
    %p151 = scmp.lt.s32.totalorder %s10, 2
    // Predicated region
    $region21: #{fno2d_forward.12} parent=5 // pred_check
      %p152 = pneg %p151
    $region22: #{fno2d_forward.12} parent=5 // pred_check_branch
      %154 = sbr.rel (%p152) target = $region24
    $region23: #{fno2d_forward.12} parent=5 // pred_region
      // Predicated region
      $region25: #{fno2d_forward.12} parent=23 // pred_check
        %p155 = pneg %p30
      $region26: #{fno2d_forward.12} parent=23 // pred_check_branch
        %157 = sbr.rel (%p155) target = $region28
      $region27: #{fno2d_forward.12} parent=23 // pred_region
        %s158 = smul.u32 32, %s10
        %p159 = scmp.lt.s32.totalorder %s158, 63
        %s160 = scalar_select %p159, %s158, 63
        %s161 = smul.addr %s160, 4
        %s162 = scalar_lea.vmem %s0, %s161
        %s163 = smul.u32 32, %s10
      $region28: #{fno2d_forward.12} parent=23 // pred_fallthru
        _
      // Predicated region
      $region29: #{fno2d_forward.12} parent=23 // pred_check
        %p164 = pneg %p98
      $region30: #{fno2d_forward.12} parent=23 // pred_check_branch
        %166 = sbr.rel (%p164) target = $region32
      $region31: #{fno2d_forward.12} parent=23 // pred_region
        %s167 = smul.u32 32, %s10
        %p168 = scmp.lt.s32.totalorder %s167, 63
        %s169 = scalar_select %p168, %s167, 63
        %s170 = smul.addr %s169, 8
        %s171 = scalar_lea.vmem %s3, %s170
        %s172 = smul.u32 32, %s10
      $region32: #{fno2d_forward.12} parent=23 // pred_fallthru
        _
    $region24: #{fno2d_forward.12} parent=5 // pred_fallthru
      _
    %p173 = scmp.le.s32.totalorder 1, %s10
    %p174 = scmp.lt.s32.totalorder %s10, 3
    %p175 = pnand %p173, %p174
    %p176 = pneg %p175
    // Predicated region
    $region33: #{fno2d_forward.12} parent=5 // pred_check
      _
    $region34: #{fno2d_forward.12} parent=5 // pred_check_branch
      %178 = sbr.rel (%p175) target = $region36
    $region35: #{fno2d_forward.12} parent=5 // pred_region
      %s179 = ssub.s32 %s10, 1
      %s180 = smul.u32 32, %s15
      %p181 = scmp.lt.s32.totalorder %s180, 63
      %s182 = scalar_select %p181, %s180, 63
      %s183 = smul.addr %s182, 4
      %s184 = scalar_lea.vmem %s0, %s183
      %p185 = pneg %p36
      %p186 = pneg %p33
      %p187 = pneg %p57
      %p188 = pneg %p54
      %p189 = pneg %p78
      %p190 = pneg %p75
      %s191 = smul.u32 32, %s15
      %p192 = scmp.lt.s32.totalorder %s191, 63
      %s193 = scalar_select %p192, %s191, 63
      %s194 = smul.addr %s193, 8
      %s195 = scalar_lea.vmem %s3, %s194
      %p196 = pneg %p104
      %p197 = pneg %p101
      %p198 = pneg %p130
      %p199 = pneg %p127
      %s200 = smul.u32 32, %s15
      %p201 = scmp.lt.s32.totalorder %s200, 63
      %s202 = scalar_select %p201, %s200, 63
      %s203 = smul.addr %s202, 4
      %s204 = scalar_lea.vmem %s4, %s203
      %s205 = smul.u32 32, %s15
      %p206 = scmp.lt.s32.totalorder %s205, 63
      %s207 = scalar_select %p206, %s205, 63
      %s208 = smul.addr %s207, 4
      %s209 = scalar_lea.vmem %s0, %s208
      %s210 = smul.u32 32, %s15
      %s211 = smul.u32 32, %s15
      %p212 = scmp.lt.s32.totalorder %s211, 63
      %s213 = scalar_select %p212, %s211, 63
      %s214 = smul.addr %s213, 8
      %s215 = scalar_lea.vmem %s3, %s214
      %s216 = smul.u32 32, %s15
      %s217 = smul.u32 32, %s15
      %p218 = scmp.lt.s32.totalorder %s217, 63
      %s219 = scalar_select %p218, %s217, 63
      %s220 = smul.addr %s219, 4
      %s221 = scalar_lea.vmem %s4, %s220
      %s222 = smul.u32 32, %s15
      %v224 = vld [vmem:[%s209] sm:$0xf]
      %v225 = vld [vmem:[%s209 + $0x4] sm:$0xf]
      %v226 = vld [vmem:[%s209 + $0x8] sm:$0xf]
      %v227 = vld [vmem:[%s209 + $0xc] sm:$0xf]
      %v228 = vld [vmem:[%s209 + $0x10] sm:$0xf]
      %v229 = vld [vmem:[%s209 + $0x14] sm:$0xf]
      %v230 = vld [vmem:[%s209 + $0x18] sm:$0xf]
      %v231 = vld [vmem:[%s209 + $0x1c] sm:$0xf]
      %v232 = vld [vmem:[%s209 + $0x20] sm:$0xf]
      %v233 = vld [vmem:[%s209 + $0x24] sm:$0xf]
      %v234 = vld [vmem:[%s209 + $0x28] sm:$0xf]
      %v235 = vld [vmem:[%s209 + $0x2c] sm:$0xf]
      %v236 = vld [vmem:[%s209 + $0x30] sm:$0xf]
      %v237 = vld [vmem:[%s209 + $0x34] sm:$0xf]
      %v238 = vld [vmem:[%s209 + $0x38] sm:$0xf]
      %v239 = vld [vmem:[%s209 + $0x3c] sm:$0xf]
      %v240 = vld [vmem:[%s209 + $0x40] sm:$0xf]
      %v241 = vld [vmem:[%s209 + $0x44] sm:$0xf]
      %v242 = vld [vmem:[%s209 + $0x48] sm:$0xf]
      %v243 = vld [vmem:[%s209 + $0x4c] sm:$0xf]
      %v244 = vld [vmem:[%s209 + $0x50] sm:$0xf]
      %v245 = vld [vmem:[%s209 + $0x54] sm:$0xf]
      %v246 = vld [vmem:[%s209 + $0x58] sm:$0xf]
      %v247 = vld [vmem:[%s209 + $0x5c] sm:$0xf]
      %v248 = vld [vmem:[%s209 + $0x60] sm:$0xf]
      %v249 = vld [vmem:[%s209 + $0x64] sm:$0xf]
      %v250 = vld [vmem:[%s209 + $0x68] sm:$0xf]
      %v251 = vld [vmem:[%s209 + $0x6c] sm:$0xf]
      %v252 = vld [vmem:[%s209 + $0x70] sm:$0xf]
      %v253 = vld [vmem:[%s209 + $0x74] sm:$0xf]
      %v254 = vld [vmem:[%s209 + $0x78] sm:$0xf]
      %v255 = vld [vmem:[%s209 + $0x7c] sm:$0xf]
      %v256 = vld [vmem:[%s1] sm:$0xf]
      %v257 = vld [vmem:[%s1 + $0x4] sm:$0xf]
      %v258 = vld [vmem:[%s1 + $0x8] sm:$0xf]
      %v259 = vld [vmem:[%s1 + $0xc] sm:$0xf]
      %v260 = vld [vmem:[%s1 + $0x10] sm:$0xf]
      %v261 = vld [vmem:[%s1 + $0x14] sm:$0xf]
      %v262 = vld [vmem:[%s1 + $0x18] sm:$0xf]
      %v263 = vld [vmem:[%s1 + $0x1c] sm:$0xf]
      %v264 = vld [vmem:[%s2] sm:$0x1]
      %v266 = vlaneseq
      %v267 = vshrl.u32 %v266, 7
      %v268 = vsub.s32 0, %v267
      %v269 = vrot.slane %v264, %v268
      %v303 = vunpack.c.l.b16 %v224
      %v304 = vunpack.c.l.b16 %v225
      %v305 = vunpack.c.l.b16 %v226
      %v306 = vunpack.c.l.b16 %v227
      %v307 = vunpack.c.l.b16 %v228
      %v308 = vunpack.c.l.b16 %v229
      %v309 = vunpack.c.l.b16 %v230
      %v310 = vunpack.c.l.b16 %v231
      %v311 = vunpack.c.l.b16 %v232
      %v312 = vunpack.c.l.b16 %v233
      %v313 = vunpack.c.l.b16 %v234
      %v314 = vunpack.c.l.b16 %v235
      %v315 = vunpack.c.l.b16 %v236
      %v316 = vunpack.c.l.b16 %v237
      %v317 = vunpack.c.l.b16 %v238
      %v318 = vunpack.c.l.b16 %v239
      %v319 = vunpack.c.l.b16 %v240
      %v320 = vunpack.c.l.b16 %v241
      %v321 = vunpack.c.l.b16 %v242
      %v322 = vunpack.c.l.b16 %v243
      %v323 = vunpack.c.l.b16 %v244
      %v324 = vunpack.c.l.b16 %v245
      %v325 = vunpack.c.l.b16 %v246
      %v326 = vunpack.c.l.b16 %v247
      %v327 = vunpack.c.l.b16 %v248
      %v328 = vunpack.c.l.b16 %v249
      %v329 = vunpack.c.l.b16 %v250
      %v330 = vunpack.c.l.b16 %v251
      %v331 = vunpack.c.l.b16 %v252
      %v332 = vunpack.c.l.b16 %v253
      %v333 = vunpack.c.l.b16 %v254
      %v334 = vunpack.c.l.b16 %v255
      %v335 = vpack.c.b16 %v304, %v303
      %v336 = vpack.c.b16 %v306, %v305
      %v337 = vpack.c.b16 %v308, %v307
      %v338 = vpack.c.b16 %v310, %v309
      %v339 = vpack.c.b16 %v312, %v311
      %v340 = vpack.c.b16 %v314, %v313
      %v341 = vpack.c.b16 %v316, %v315
      %v342 = vpack.c.b16 %v318, %v317
      %v343 = vpack.c.b16 %v320, %v319
      %v344 = vpack.c.b16 %v322, %v321
      %v345 = vpack.c.b16 %v324, %v323
      %v346 = vpack.c.b16 %v326, %v325
      %v347 = vpack.c.b16 %v328, %v327
      %v348 = vpack.c.b16 %v330, %v329
      %v349 = vpack.c.b16 %v332, %v331
      %v350 = vpack.c.b16 %v334, %v333
      %v359 = vunpack.c.l.b16 %v256
      %v360 = vunpack.c.l.b16 %v257
      %v361 = vunpack.c.l.b16 %v258
      %v362 = vunpack.c.l.b16 %v259
      %v363 = vunpack.c.l.b16 %v260
      %v364 = vunpack.c.l.b16 %v261
      %v365 = vunpack.c.l.b16 %v262
      %v366 = vunpack.c.l.b16 %v263
      %v367 = vpack.c.b16 %v360, %v359
      %v368 = vpack.c.b16 %v362, %v361
      %v369 = vpack.c.b16 %v364, %v363
      %v370 = vpack.c.b16 %v366, %v365
      %vm375 = vcmask 523264
      %v377 = vsel %vm375, %v335, 0
      %v380 = vsel %vm375, %v336, 0
      %v383 = vsel %vm375, %v337, 0
      %v386 = vsel %vm375, %v338, 0
      %v389 = vsel %vm375, %v339, 0
      %v392 = vsel %vm375, %v340, 0
      %v395 = vsel %vm375, %v341, 0
      %v398 = vsel %vm375, %v342, 0
      %v401 = vsel %vm375, %v343, 0
      %v404 = vsel %vm375, %v344, 0
      %v407 = vsel %vm375, %v345, 0
      %v410 = vsel %vm375, %v346, 0
      %v413 = vsel %vm375, %v347, 0
      %v416 = vsel %vm375, %v348, 0
      %v419 = vsel %vm375, %v349, 0
      %v422 = vsel %vm375, %v350, 0
      %424 = vmatprep.subr.bf16.mxu0 0
      %425 = vmatpush1.bf16.msra.mxu0 0
      %426 = vmatprep.subr.bf16.mxu0 0
      %427 = vmatpush1.bf16.msra.mxu0 0
      %428 = vmatprep.subr.bf16.mxu0 0
      %429 = vmatpush1.bf16.msra.mxu0 0
      %430 = vmatprep.subr.bf16.mxu0 0
      %431 = vmatpush1.bf16.msra.mxu0 0
      %432 = vmatprep.subr.bf16.mxu0 0
      %433 = vmatpush1.bf16.msra.mxu0 %v370
      %434 = vmatprep.subr.bf16.mxu0 0
      %435 = vmatpush1.bf16.msra.mxu0 %v369
      %436 = vmatprep.subr.bf16.mxu0 0
      %437 = vmatpush1.bf16.msra.mxu0 %v368
      %438 = vmatprep.subr.bf16.mxu0 0
      %439 = vmatpush1.bf16.msra.mxu0 %v367
      %440 = vmatprep.subr.bf16.mxu0 0
      %441 = vmatpush2.bf16.msra.mxu0 0
      %442 = vmatprep.subr.bf16.mxu0 0
      %443 = vmatpush2.bf16.msra.mxu0 0
      %444 = vmatprep.subr.bf16.mxu0 0
      %445 = vmatpush2.bf16.msra.mxu0 0
      %446 = vmatprep.subr.bf16.mxu0 0
      %447 = vmatpush2.bf16.msra.mxu0 0
      %448 = vmatprep.subr.bf16.mxu0 0
      %449 = vmatpush2.bf16.msra.mxu0 0
      %450 = vmatprep.subr.bf16.mxu0 0
      %451 = vmatpush2.bf16.msra.mxu0 0
      %452 = vmatprep.subr.bf16.mxu0 0
      %453 = vmatpush2.bf16.msra.mxu0 0
      %454 = vmatprep.subr.bf16.mxu0 0
      %455 = vmatpush2.bf16.msra.mxu0 0
      %456 = vmatprep.mubr.bf16.mxu0 0
      %457 = vmatmul.mubr.bf16.gmra.mxu0 %v377
      %v458 = vpop.f32.mrf.mxu0
      %v459 = vadd.f32 %v269, %v458
      %v460 = vpop.f32.mrf.mxu0
      %v461 = vpop.f32.mrf.mxu0
      %v462 = vadd.f32 %v269, %v461
      %v463 = vpop.f32.mrf.mxu0
      %464 = vmatprep.mubr.bf16.mxu0 0
      %465 = vmatmul.mubr.bf16.gmra.mxu0 %v380
      %v466 = vpop.f32.mrf.mxu0
      %v467 = vadd.f32 %v269, %v466
      %v468 = vpop.f32.mrf.mxu0
      %v469 = vpop.f32.mrf.mxu0
      %v470 = vadd.f32 %v269, %v469
      %v471 = vpop.f32.mrf.mxu0
      %472 = vmatprep.mubr.bf16.mxu0 0
      %473 = vmatmul.mubr.bf16.gmra.mxu0 %v383
      %v474 = vpop.f32.mrf.mxu0
      %v475 = vadd.f32 %v269, %v474
      %v476 = vpop.f32.mrf.mxu0
      %v477 = vpop.f32.mrf.mxu0
      %v478 = vadd.f32 %v269, %v477
      %v479 = vpop.f32.mrf.mxu0
      %480 = vmatprep.mubr.bf16.mxu0 0
      %481 = vmatmul.mubr.bf16.gmra.mxu0 %v386
      %v482 = vpop.f32.mrf.mxu0
      %v483 = vadd.f32 %v269, %v482
      %v484 = vpop.f32.mrf.mxu0
      %v485 = vpop.f32.mrf.mxu0
      %v486 = vadd.f32 %v269, %v485
      %v487 = vpop.f32.mrf.mxu0
      %488 = vmatprep.mubr.bf16.mxu0 0
      %489 = vmatmul.mubr.bf16.gmra.mxu0 %v389
      %v490 = vpop.f32.mrf.mxu0
      %v491 = vadd.f32 %v269, %v490
      %v492 = vpop.f32.mrf.mxu0
      %v493 = vpop.f32.mrf.mxu0
      %v494 = vadd.f32 %v269, %v493
      %v495 = vpop.f32.mrf.mxu0
      %496 = vmatprep.mubr.bf16.mxu0 0
      %497 = vmatmul.mubr.bf16.gmra.mxu0 %v392
      %v498 = vpop.f32.mrf.mxu0
      %v499 = vadd.f32 %v269, %v498
      %v500 = vpop.f32.mrf.mxu0
      %v501 = vpop.f32.mrf.mxu0
      %v502 = vadd.f32 %v269, %v501
      %v503 = vpop.f32.mrf.mxu0
      %504 = vmatprep.mubr.bf16.mxu0 0
      %505 = vmatmul.mubr.bf16.gmra.mxu0 %v395
      %v506 = vpop.f32.mrf.mxu0
      %v507 = vadd.f32 %v269, %v506
      %v508 = vpop.f32.mrf.mxu0
      %v509 = vpop.f32.mrf.mxu0
      %v510 = vadd.f32 %v269, %v509
      %v511 = vpop.f32.mrf.mxu0
      %512 = vmatprep.mubr.bf16.mxu0 0
      %513 = vmatmul.mubr.bf16.gmra.mxu0 %v398
      %v514 = vpop.f32.mrf.mxu0
      %v515 = vadd.f32 %v269, %v514
      %v516 = vpop.f32.mrf.mxu0
      %v517 = vpop.f32.mrf.mxu0
      %v518 = vadd.f32 %v269, %v517
      %v519 = vpop.f32.mrf.mxu0
      %520 = vmatprep.mubr.bf16.mxu0 0
      %521 = vmatmul.mubr.bf16.gmra.mxu0 %v401
      %v522 = vpop.f32.mrf.mxu0
      %v523 = vadd.f32 %v269, %v522
      %v524 = vpop.f32.mrf.mxu0
      %v525 = vpop.f32.mrf.mxu0
      %v526 = vadd.f32 %v269, %v525
      %v527 = vpop.f32.mrf.mxu0
      %528 = vmatprep.mubr.bf16.mxu0 0
      %529 = vmatmul.mubr.bf16.gmra.mxu0 %v404
      %v530 = vpop.f32.mrf.mxu0
      %v531 = vadd.f32 %v269, %v530
      %v532 = vpop.f32.mrf.mxu0
      %v533 = vpop.f32.mrf.mxu0
      %v534 = vadd.f32 %v269, %v533
      %v535 = vpop.f32.mrf.mxu0
      %536 = vmatprep.mubr.bf16.mxu0 0
      %537 = vmatmul.mubr.bf16.gmra.mxu0 %v407
      %v538 = vpop.f32.mrf.mxu0
      %v539 = vadd.f32 %v269, %v538
      %v540 = vpop.f32.mrf.mxu0
      %v541 = vpop.f32.mrf.mxu0
      %v542 = vadd.f32 %v269, %v541
      %v543 = vpop.f32.mrf.mxu0
      %544 = vmatprep.mubr.bf16.mxu0 0
      %545 = vmatmul.mubr.bf16.gmra.mxu0 %v410
      %v546 = vpop.f32.mrf.mxu0
      %v547 = vadd.f32 %v269, %v546
      %v548 = vpop.f32.mrf.mxu0
      %v549 = vpop.f32.mrf.mxu0
      %v550 = vadd.f32 %v269, %v549
      %v551 = vpop.f32.mrf.mxu0
      %552 = vmatprep.mubr.bf16.mxu0 0
      %553 = vmatmul.mubr.bf16.gmra.mxu0 %v413
      %v554 = vpop.f32.mrf.mxu0
      %v555 = vadd.f32 %v269, %v554
      %v556 = vpop.f32.mrf.mxu0
      %v557 = vpop.f32.mrf.mxu0
      %v558 = vadd.f32 %v269, %v557
      %v559 = vpop.f32.mrf.mxu0
      %560 = vmatprep.mubr.bf16.mxu0 0
      %561 = vmatmul.mubr.bf16.gmra.mxu0 %v416
      %v562 = vpop.f32.mrf.mxu0
      %v563 = vadd.f32 %v269, %v562
      %v564 = vpop.f32.mrf.mxu0
      %v565 = vpop.f32.mrf.mxu0
      %v566 = vadd.f32 %v269, %v565
      %v567 = vpop.f32.mrf.mxu0
      %568 = vmatprep.mubr.bf16.mxu0 0
      %569 = vmatmul.mubr.bf16.gmra.mxu0 %v419
      %v570 = vpop.f32.mrf.mxu0
      %v571 = vadd.f32 %v269, %v570
      %v572 = vpop.f32.mrf.mxu0
      %v573 = vpop.f32.mrf.mxu0
      %v574 = vadd.f32 %v269, %v573
      %v575 = vpop.f32.mrf.mxu0
      %576 = vmatprep.mubr.bf16.mxu0 0
      %577 = vmatmul.mubr.bf16.gmra.mxu0 %v422
      %v578 = vpop.f32.mrf.mxu0
      %v579 = vadd.f32 %v269, %v578
      %v580 = vpop.f32.mrf.mxu0
      %v581 = vpop.f32.mrf.mxu0
      %v582 = vadd.f32 %v269, %v581
      %v583 = vpop.f32.mrf.mxu0
      %584 = vdwg.mxu0
      %v585 = vld [vmem:[%s215] sm:$0xff]
      %v586 = vld [vmem:[%s215 + $0x8] sm:$0xff]
      %v587 = vld [vmem:[%s215 + $0x10] sm:$0xff]
      %v588 = vld [vmem:[%s215 + $0x18] sm:$0xff]
      %v589 = vld [vmem:[%s215 + $0x20] sm:$0xff]
      %v590 = vld [vmem:[%s215 + $0x28] sm:$0xff]
      %v591 = vld [vmem:[%s215 + $0x30] sm:$0xff]
      %v592 = vld [vmem:[%s215 + $0x38] sm:$0xff]
      %v593 = vld [vmem:[%s215 + $0x40] sm:$0xff]
      %v594 = vld [vmem:[%s215 + $0x48] sm:$0xff]
      %v595 = vld [vmem:[%s215 + $0x50] sm:$0xff]
      %v596 = vld [vmem:[%s215 + $0x58] sm:$0xff]
      %v597 = vld [vmem:[%s215 + $0x60] sm:$0xff]
      %v598 = vld [vmem:[%s215 + $0x68] sm:$0xff]
      %v599 = vld [vmem:[%s215 + $0x70] sm:$0xff]
      %v600 = vld [vmem:[%s215 + $0x78] sm:$0xff]
      %v601 = vld [vmem:[%s215 + $0x80] sm:$0xff]
      %v602 = vld [vmem:[%s215 + $0x88] sm:$0xff]
      %v603 = vld [vmem:[%s215 + $0x90] sm:$0xff]
      %v604 = vld [vmem:[%s215 + $0x98] sm:$0xff]
      %v605 = vld [vmem:[%s215 + $0xa0] sm:$0xff]
      %v606 = vld [vmem:[%s215 + $0xa8] sm:$0xff]
      %v607 = vld [vmem:[%s215 + $0xb0] sm:$0xff]
      %v608 = vld [vmem:[%s215 + $0xb8] sm:$0xff]
      %v609 = vld [vmem:[%s215 + $0xc0] sm:$0xff]
      %v610 = vld [vmem:[%s215 + $0xc8] sm:$0xff]
      %v611 = vld [vmem:[%s215 + $0xd0] sm:$0xff]
      %v612 = vld [vmem:[%s215 + $0xd8] sm:$0xff]
      %v613 = vld [vmem:[%s215 + $0xe0] sm:$0xff]
      %v614 = vld [vmem:[%s215 + $0xe8] sm:$0xff]
      %v615 = vld [vmem:[%s215 + $0xf0] sm:$0xff]
      %v616 = vld [vmem:[%s215 + $0xf8] sm:$0xff]
      %v617 = vadd.f32 %v459, %v585
      %v618 = vadd.f32 %v462, %v586
      %v619 = vadd.f32 %v467, %v587
      %v620 = vadd.f32 %v470, %v588
      %v621 = vadd.f32 %v475, %v589
      %v622 = vadd.f32 %v478, %v590
      %v623 = vadd.f32 %v483, %v591
      %v624 = vadd.f32 %v486, %v592
      %v625 = vadd.f32 %v491, %v593
      %v626 = vadd.f32 %v494, %v594
      %v627 = vadd.f32 %v499, %v595
      %v628 = vadd.f32 %v502, %v596
      %v629 = vadd.f32 %v507, %v597
      %v630 = vadd.f32 %v510, %v598
      %v631 = vadd.f32 %v515, %v599
      %v632 = vadd.f32 %v518, %v600
      %v633 = vadd.f32 %v523, %v601
      %v634 = vadd.f32 %v526, %v602
      %v635 = vadd.f32 %v531, %v603
      %v636 = vadd.f32 %v534, %v604
      %v637 = vadd.f32 %v539, %v605
      %v638 = vadd.f32 %v542, %v606
      %v639 = vadd.f32 %v547, %v607
      %v640 = vadd.f32 %v550, %v608
      %v641 = vadd.f32 %v555, %v609
      %v642 = vadd.f32 %v558, %v610
      %v643 = vadd.f32 %v563, %v611
      %v644 = vadd.f32 %v566, %v612
      %v645 = vadd.f32 %v571, %v613
      %v646 = vadd.f32 %v574, %v614
      %v647 = vadd.f32 %v579, %v615
      %v648 = vadd.f32 %v582, %v616
      %v649 = vmax.f32 %v617, 0.0
      %v650 = vmax.f32 %v618, 0.0
      %v651 = vmax.f32 %v619, 0.0
      %v652 = vmax.f32 %v620, 0.0
      %v653 = vmax.f32 %v621, 0.0
      %v654 = vmax.f32 %v622, 0.0
      %v655 = vmax.f32 %v623, 0.0
      %v656 = vmax.f32 %v624, 0.0
      %v657 = vmax.f32 %v625, 0.0
      %v658 = vmax.f32 %v626, 0.0
      %v659 = vmax.f32 %v627, 0.0
      %v660 = vmax.f32 %v628, 0.0
      %v661 = vmax.f32 %v629, 0.0
      %v662 = vmax.f32 %v630, 0.0
      %v663 = vmax.f32 %v631, 0.0
      %v664 = vmax.f32 %v632, 0.0
      %v665 = vmax.f32 %v633, 0.0
      %v666 = vmax.f32 %v634, 0.0
      %v667 = vmax.f32 %v635, 0.0
      %v668 = vmax.f32 %v636, 0.0
      %v669 = vmax.f32 %v637, 0.0
      %v670 = vmax.f32 %v638, 0.0
      %v671 = vmax.f32 %v639, 0.0
      %v672 = vmax.f32 %v640, 0.0
      %v673 = vmax.f32 %v641, 0.0
      %v674 = vmax.f32 %v642, 0.0
      %v675 = vmax.f32 %v643, 0.0
      %v676 = vmax.f32 %v644, 0.0
      %v677 = vmax.f32 %v645, 0.0
      %v678 = vmax.f32 %v646, 0.0
      %v679 = vmax.f32 %v647, 0.0
      %v680 = vmax.f32 %v648, 0.0
      %v681 = vpack.c.bf16 %v650, %v649
      %v682 = vpack.c.bf16 %v652, %v651
      %v683 = vpack.c.bf16 %v654, %v653
      %v684 = vpack.c.bf16 %v656, %v655
      %v685 = vpack.c.bf16 %v658, %v657
      %v686 = vpack.c.bf16 %v660, %v659
      %v687 = vpack.c.bf16 %v662, %v661
      %v688 = vpack.c.bf16 %v664, %v663
      %v689 = vpack.c.bf16 %v666, %v665
      %v690 = vpack.c.bf16 %v668, %v667
      %v691 = vpack.c.bf16 %v670, %v669
      %v692 = vpack.c.bf16 %v672, %v671
      %v693 = vpack.c.bf16 %v674, %v673
      %v694 = vpack.c.bf16 %v676, %v675
      %v695 = vpack.c.bf16 %v678, %v677
      %v696 = vpack.c.bf16 %v680, %v679
      %v713 = vunpack.c.l.b16 %v681
      %v714 = vunpack.c.h.b16 %v681
      %v715 = vunpack.c.l.b16 %v682
      %v716 = vunpack.c.h.b16 %v682
      %v717 = vunpack.c.l.b16 %v683
      %v718 = vunpack.c.h.b16 %v683
      %v719 = vunpack.c.l.b16 %v684
      %v720 = vunpack.c.h.b16 %v684
      %v721 = vunpack.c.l.b16 %v685
      %v722 = vunpack.c.h.b16 %v685
      %v723 = vunpack.c.l.b16 %v686
      %v724 = vunpack.c.h.b16 %v686
      %v725 = vunpack.c.l.b16 %v687
      %v726 = vunpack.c.h.b16 %v687
      %v727 = vunpack.c.l.b16 %v688
      %v728 = vunpack.c.h.b16 %v688
      %v729 = vunpack.c.l.b16 %v689
      %v730 = vunpack.c.h.b16 %v689
      %v731 = vunpack.c.l.b16 %v690
      %v732 = vunpack.c.h.b16 %v690
      %v733 = vunpack.c.l.b16 %v691
      %v734 = vunpack.c.h.b16 %v691
      %v735 = vunpack.c.l.b16 %v692
      %v736 = vunpack.c.h.b16 %v692
      %v737 = vunpack.c.l.b16 %v693
      %v738 = vunpack.c.h.b16 %v693
      %v739 = vunpack.c.l.b16 %v694
      %v740 = vunpack.c.h.b16 %v694
      %v741 = vunpack.c.l.b16 %v695
      %v742 = vunpack.c.h.b16 %v695
      %v743 = vunpack.c.l.b16 %v696
      %v744 = vunpack.c.h.b16 %v696
      %v745 = vpack.c.b16 %v713, %v713
      %v746 = vpack.c.b16 %v714, %v714
      %v747 = vpack.c.b16 %v715, %v715
      %v748 = vpack.c.b16 %v716, %v716
      %v749 = vpack.c.b16 %v717, %v717
      %v750 = vpack.c.b16 %v718, %v718
      %v751 = vpack.c.b16 %v719, %v719
      %v752 = vpack.c.b16 %v720, %v720
      %v753 = vpack.c.b16 %v721, %v721
      %v754 = vpack.c.b16 %v722, %v722
      %v755 = vpack.c.b16 %v723, %v723
      %v756 = vpack.c.b16 %v724, %v724
      %v757 = vpack.c.b16 %v725, %v725
      %v758 = vpack.c.b16 %v726, %v726
      %v759 = vpack.c.b16 %v727, %v727
      %v760 = vpack.c.b16 %v728, %v728
      %v761 = vpack.c.b16 %v729, %v729
      %v762 = vpack.c.b16 %v730, %v730
      %v763 = vpack.c.b16 %v731, %v731
      %v764 = vpack.c.b16 %v732, %v732
      %v765 = vpack.c.b16 %v733, %v733
      %v766 = vpack.c.b16 %v734, %v734
      %v767 = vpack.c.b16 %v735, %v735
      %v768 = vpack.c.b16 %v736, %v736
      %v769 = vpack.c.b16 %v737, %v737
      %v770 = vpack.c.b16 %v738, %v738
      %v771 = vpack.c.b16 %v739, %v739
      %v772 = vpack.c.b16 %v740, %v740
      %v773 = vpack.c.b16 %v741, %v741
      %v774 = vpack.c.b16 %v742, %v742
      %v775 = vpack.c.b16 %v743, %v743
      %v776 = vpack.c.b16 %v744, %v744
      %vm809 = vcmask 519168
      %810 = vst.msk [vmem:[%s221] sm:$0xf] %vm809, %v745
      %811 = vst.msk [vmem:[%s221 + $0x4] sm:$0xf] %vm809, %v746
      %812 = vst.msk [vmem:[%s221 + $0x8] sm:$0xf] %vm809, %v747
      %813 = vst.msk [vmem:[%s221 + $0xc] sm:$0xf] %vm809, %v748
      %814 = vst.msk [vmem:[%s221 + $0x10] sm:$0xf] %vm809, %v749
      %815 = vst.msk [vmem:[%s221 + $0x14] sm:$0xf] %vm809, %v750
      %816 = vst.msk [vmem:[%s221 + $0x18] sm:$0xf] %vm809, %v751
      %817 = vst.msk [vmem:[%s221 + $0x1c] sm:$0xf] %vm809, %v752
      %818 = vst.msk [vmem:[%s221 + $0x20] sm:$0xf] %vm809, %v753
      %819 = vst.msk [vmem:[%s221 + $0x24] sm:$0xf] %vm809, %v754
      %820 = vst.msk [vmem:[%s221 + $0x28] sm:$0xf] %vm809, %v755
      %821 = vst.msk [vmem:[%s221 + $0x2c] sm:$0xf] %vm809, %v756
      %822 = vst.msk [vmem:[%s221 + $0x30] sm:$0xf] %vm809, %v757
      %823 = vst.msk [vmem:[%s221 + $0x34] sm:$0xf] %vm809, %v758
      %824 = vst.msk [vmem:[%s221 + $0x38] sm:$0xf] %vm809, %v759
      %825 = vst.msk [vmem:[%s221 + $0x3c] sm:$0xf] %vm809, %v760
      %826 = vst.msk [vmem:[%s221 + $0x40] sm:$0xf] %vm809, %v761
      %827 = vst.msk [vmem:[%s221 + $0x44] sm:$0xf] %vm809, %v762
      %828 = vst.msk [vmem:[%s221 + $0x48] sm:$0xf] %vm809, %v763
      %829 = vst.msk [vmem:[%s221 + $0x4c] sm:$0xf] %vm809, %v764
      %830 = vst.msk [vmem:[%s221 + $0x50] sm:$0xf] %vm809, %v765
      %831 = vst.msk [vmem:[%s221 + $0x54] sm:$0xf] %vm809, %v766
      %832 = vst.msk [vmem:[%s221 + $0x58] sm:$0xf] %vm809, %v767
      %833 = vst.msk [vmem:[%s221 + $0x5c] sm:$0xf] %vm809, %v768
      %834 = vst.msk [vmem:[%s221 + $0x60] sm:$0xf] %vm809, %v769
      %835 = vst.msk [vmem:[%s221 + $0x64] sm:$0xf] %vm809, %v770
      %836 = vst.msk [vmem:[%s221 + $0x68] sm:$0xf] %vm809, %v771
      %837 = vst.msk [vmem:[%s221 + $0x6c] sm:$0xf] %vm809, %v772
      %838 = vst.msk [vmem:[%s221 + $0x70] sm:$0xf] %vm809, %v773
      %839 = vst.msk [vmem:[%s221 + $0x74] sm:$0xf] %vm809, %v774
      %840 = vst.msk [vmem:[%s221 + $0x78] sm:$0xf] %vm809, %v775
      %841 = vst.msk [vmem:[%s221 + $0x7c] sm:$0xf] %vm809, %v776
      %s842 = smul.u32 32, %s15
      %p843 = scmp.lt.s32.totalorder %s842, 63
      %s844 = scalar_select %p843, %s842, 63
      %s845 = smul.addr %s844, 4
      %s846 = scalar_lea.vmem %s4, %s845
      // Predicated region
      $region37: #{fno2d_forward.12} parent=35 // pred_check
        %p847 = pneg %p127
      $region38: #{fno2d_forward.12} parent=35 // pred_check_branch
        %849 = sbr.rel (%p847) target = $region40
      $region39: #{fno2d_forward.12} parent=35 // pred_region
        %s850 = smul.u32 32, %s15
      $region40: #{fno2d_forward.12} parent=35 // pred_fallthru
        _
    $region36: #{fno2d_forward.12} parent=5 // pred_fallthru
      _
    %p851 = scmp.le.s32.totalorder 2, %s10
    // Predicated region
    $region41: #{fno2d_forward.12} parent=5 // pred_check
      %p852 = pneg %p851
    $region42: #{fno2d_forward.12} parent=5 // pred_check_branch
      %854 = sbr.rel (%p852) target = $region44
    $region43: #{fno2d_forward.12} parent=5 // pred_region
      %s855 = ssub.s32 %s10, 2
      // Predicated region
      $region45: #{fno2d_forward.12} parent=43 // pred_check
        %p856 = pneg %p133
      $region46: #{fno2d_forward.12} parent=43 // pred_check_branch
        %858 = sbr.rel (%p856) target = $region48
      $region47: #{fno2d_forward.12} parent=43 // pred_region
        %s859 = smul.u32 32, %s16
        %p860 = scmp.lt.s32.totalorder %s859, 63
        %s861 = scalar_select %p860, %s859, 63
        %s862 = smul.addr %s861, 4
        %s863 = scalar_lea.vmem %s4, %s862
      $region48: #{fno2d_forward.12} parent=43 // pred_fallthru
        _
    $region44: #{fno2d_forward.12} parent=5 // pred_fallthru
      _
  $region6: #{fno2d_forward.12} parent=0 // loop_footer
    %s14 = sadd.s32 1, %s10
  $region7: #{fno2d_forward.12} parent=0 // loop_footer_branch
    %9 = sbr.rel target = $region3
  $region8: #{fno2d_forward.12} parent=0 // loop_exit
    _

// kernel: fno2d_forward.19
$region0: #{fno2d_forward.19}
  #allocation0 [shape = 'u32[]', space=smem, size = 0x4, offset = 0x4, fixed_abs, tag = 'smem constant byte address 0x4 - core index']
  #allocation1 [shape = 'u32[144,128]{1,0:T(1,128)}', space=vmem, size = 0x12000, scoped, tag = 'internal scratch']
  #allocation2 [shape = 'f32[1,1]{1,0:T(1,128)S(1)}', space=vmem, size = 0x200, scoped, tag = 'scoped memory for fno2d_forward.19']
  %s0 = inlined_call_operand.vmem [shape: bf16[512,64], index: 0, kind: input, shape index: {}]
  %s1 = inlined_call_operand.vmem [shape: bf16[64,128], index: 1, kind: input, shape index: {}]
  %s2 = inlined_call_operand.vmem [shape: f32[1,128], index: 2, kind: input, shape index: {}]
  %s3 = inlined_call_operand.vmem [shape: bf16[1,128], index: 3, kind: input, shape index: {}]
  %s4 = inlined_call_operand.<no memory space> [shape: f32[1,1], index: 4, kind: input, shape index: {}]
  %s5 = inlined_call_operand.vmem [shape: f32[512,1], index: 5, kind: output, shape index: {}]
  %s6 = sld [smem:[#allocation0]]
  $region53: #{fno2d_forward.19} parent=0
    _
  %s8 = ssub.s32 1, %s6
  %s9 = scalar_select 0, %s8, %s6
  %v10 = vstv %s4
  %11 = vst [vmem:[#allocation2] sm:$0x1] %v10
  loop: start=0, step=1, limit=4
  $region2: #{fno2d_forward.19} parent=0 // loop_pre_header
    _
  $region3: #{fno2d_forward.19} parent=0 // loop_header
    %s13 = sphi 0, %s17
    %p14 = scmp.ge.s32.totalorder %s13, 4
    %s23 = sphi 0, %s25
    %s26 = sphi 0, %s23
    %s27 = sphi 0, %s26
    %s43 = sphi 0, %s27
    %s47 = sphi 0, %s47
    %s49 = sphi 0, %s47
    %s50 = sphi 0, %s49
    %s64 = sphi 0, %s50
    %s68 = sphi 0, %s68
    %s70 = sphi 0, %s68
    %s71 = sphi 0, %s70
    %s85 = sphi 0, %s71
    %s89 = sphi 0, %s89
    %s91 = sphi 0, %s89
    %s92 = sphi 0, %s91
    %s106 = sphi 0, %s92
    %s110 = sphi 0, %s110
    %s112 = sphi 0, %s110
    %s113 = sphi 0, %s112
    %s127 = sphi 0, %s113
    %s133 = sphi 0, %s135
    %s136 = sphi 0, %s133
    %s137 = sphi 0, %s136
    %s153 = sphi 0, %s137
  $region4: #{fno2d_forward.19} parent=0 // loop_header_branch
    %16 = sbr.rel (%p14) target = $region8
  $region5: #{fno2d_forward.19} parent=0 // loop_body
    %s18 = ssub.s32 %s13, 1
    %s19 = ssub.s32 %s13, 2
    %s20 = sadd.s32 %s13, 1
    %s21 = ssub.s32 %s13, %s20
    %p22 = scmp.eq.s32.totalorder %s21, 0
    %s24 = sadd.s32 %s23, 1
    %s25 = scalar_select %p22, %s23, %s24
    %p28 = pneg %p22
    %p29 = scmp.eq.s32.totalorder %s13, 1
    %p30 = por %p28, %p29
    %p31 = scmp.ne.s32.totalorder %s23, %s26
    %p32 = scmp.eq.s32.totalorder %s13, 0
    %p33 = por %p31, %p32
    %p34 = scmp.ne.s32.totalorder %s23, %s26
    %p35 = scmp.eq.s32.totalorder %s18, 1
    %p36 = por %p34, %p35
    %p37 = scmp.ne.s32.totalorder %s26, %s27
    %p38 = scmp.eq.s32.totalorder %s18, 0
    %p39 = por %p37, %p38
    %p40 = scmp.ne.s32.totalorder %s26, %s27
    %p41 = scmp.eq.s32.totalorder %s19, 1
    %p42 = por %p40, %p41
    %p44 = scmp.ne.s32.totalorder %s27, %s43
    %p45 = scmp.eq.s32.totalorder %s19, 0
    %p46 = por %p44, %p45
    %s48 = sadd.s32 %s47, 1
    %p51 = scmp.eq.s32.totalorder %s13, 1
    %p52 = scmp.ne.s32.totalorder %s47, %s49
    %p53 = scmp.eq.s32.totalorder %s13, 0
    %p54 = por %p52, %p53
    %p55 = scmp.ne.s32.totalorder %s47, %s49
    %p56 = scmp.eq.s32.totalorder %s18, 1
    %p57 = por %p55, %p56
    %p58 = scmp.ne.s32.totalorder %s49, %s50
    %p59 = scmp.eq.s32.totalorder %s18, 0
    %p60 = por %p58, %p59
    %p61 = scmp.ne.s32.totalorder %s49, %s50
    %p62 = scmp.eq.s32.totalorder %s19, 1
    %p63 = por %p61, %p62
    %p65 = scmp.ne.s32.totalorder %s50, %s64
    %p66 = scmp.eq.s32.totalorder %s19, 0
    %p67 = por %p65, %p66
    %s69 = sadd.s32 %s68, 1
    %p72 = scmp.eq.s32.totalorder %s13, 1
    %p73 = scmp.ne.s32.totalorder %s68, %s70
    %p74 = scmp.eq.s32.totalorder %s13, 0
    %p75 = por %p73, %p74
    %p76 = scmp.ne.s32.totalorder %s68, %s70
    %p77 = scmp.eq.s32.totalorder %s18, 1
    %p78 = por %p76, %p77
    %p79 = scmp.ne.s32.totalorder %s70, %s71
    %p80 = scmp.eq.s32.totalorder %s18, 0
    %p81 = por %p79, %p80
    %p82 = scmp.ne.s32.totalorder %s70, %s71
    %p83 = scmp.eq.s32.totalorder %s19, 1
    %p84 = por %p82, %p83
    %p86 = scmp.ne.s32.totalorder %s71, %s85
    %p87 = scmp.eq.s32.totalorder %s19, 0
    %p88 = por %p86, %p87
    %s90 = sadd.s32 %s89, 1
    %p93 = scmp.eq.s32.totalorder %s13, 1
    %p94 = scmp.ne.s32.totalorder %s89, %s91
    %p95 = scmp.eq.s32.totalorder %s13, 0
    %p96 = por %p94, %p95
    %p97 = scmp.ne.s32.totalorder %s89, %s91
    %p98 = scmp.eq.s32.totalorder %s18, 1
    %p99 = por %p97, %p98
    %p100 = scmp.ne.s32.totalorder %s91, %s92
    %p101 = scmp.eq.s32.totalorder %s18, 0
    %p102 = por %p100, %p101
    %p103 = scmp.ne.s32.totalorder %s91, %s92
    %p104 = scmp.eq.s32.totalorder %s19, 1
    %p105 = por %p103, %p104
    %p107 = scmp.ne.s32.totalorder %s92, %s106
    %p108 = scmp.eq.s32.totalorder %s19, 0
    %p109 = por %p107, %p108
    %s111 = sadd.s32 %s110, 1
    %p114 = scmp.eq.s32.totalorder %s13, 1
    %p115 = scmp.ne.s32.totalorder %s110, %s112
    %p116 = scmp.eq.s32.totalorder %s13, 0
    %p117 = por %p115, %p116
    %p118 = scmp.ne.s32.totalorder %s110, %s112
    %p119 = scmp.eq.s32.totalorder %s18, 1
    %p120 = por %p118, %p119
    %p121 = scmp.ne.s32.totalorder %s112, %s113
    %p122 = scmp.eq.s32.totalorder %s18, 0
    %p123 = por %p121, %p122
    %p124 = scmp.ne.s32.totalorder %s112, %s113
    %p125 = scmp.eq.s32.totalorder %s19, 1
    %p126 = por %p124, %p125
    %p128 = scmp.ne.s32.totalorder %s113, %s127
    %p129 = scmp.eq.s32.totalorder %s19, 0
    %p130 = por %p128, %p129
    %s131 = ssub.s32 %s13, %s20
    %p132 = scmp.eq.s32.totalorder %s131, 0
    %s134 = sadd.s32 %s133, 1
    %s135 = scalar_select %p132, %s133, %s134
    %p138 = pneg %p132
    %p139 = scmp.eq.s32.totalorder %s13, 1
    %p140 = por %p138, %p139
    %p141 = scmp.ne.s32.totalorder %s133, %s136
    %p142 = scmp.eq.s32.totalorder %s13, 0
    %p143 = por %p141, %p142
    %p144 = scmp.ne.s32.totalorder %s133, %s136
    %p145 = scmp.eq.s32.totalorder %s18, 1
    %p146 = por %p144, %p145
    %p147 = scmp.ne.s32.totalorder %s136, %s137
    %p148 = scmp.eq.s32.totalorder %s18, 0
    %p149 = por %p147, %p148
    %p150 = scmp.ne.s32.totalorder %s136, %s137
    %p151 = scmp.eq.s32.totalorder %s19, 1
    %p152 = por %p150, %p151
    %p154 = scmp.ne.s32.totalorder %s137, %s153
    %p155 = scmp.eq.s32.totalorder %s19, 0
    %p156 = por %p154, %p155
    %p157 = scmp.le.s32.totalorder 1, %s13
    %p158 = scmp.lt.s32.totalorder %s13, 3
    %p159 = pnand %p157, %p158
    %p160 = pneg %p159
    // Predicated region
    $region9: #{fno2d_forward.19} parent=5 // pred_check
      _
    $region10: #{fno2d_forward.19} parent=5 // pred_check_branch
      %162 = sbr.rel (%p159) target = $region12
    $region11: #{fno2d_forward.19} parent=5 // pred_region
      %s163 = ssub.s32 %s13, 1
      // Predicated region
      $region13: #{fno2d_forward.19} parent=11 // pred_check
        %p164 = pneg %p60
      $region14: #{fno2d_forward.19} parent=11 // pred_check_branch
        %166 = sbr.rel (%p164) target = $region16
      $region15: #{fno2d_forward.19} parent=11 // pred_region
        _
      $region16: #{fno2d_forward.19} parent=11 // pred_fallthru
        _
      // Predicated region
      $region17: #{fno2d_forward.19} parent=11 // pred_check
        %p167 = pneg %p81
      $region18: #{fno2d_forward.19} parent=11 // pred_check_branch
        %169 = sbr.rel (%p167) target = $region20
      $region19: #{fno2d_forward.19} parent=11 // pred_region
        _
      $region20: #{fno2d_forward.19} parent=11 // pred_fallthru
        _
      // Predicated region
      $region21: #{fno2d_forward.19} parent=11 // pred_check
        %p170 = pneg %p102
      $region22: #{fno2d_forward.19} parent=11 // pred_check_branch
        %172 = sbr.rel (%p170) target = $region24
      $region23: #{fno2d_forward.19} parent=11 // pred_region
        _
      $region24: #{fno2d_forward.19} parent=11 // pred_fallthru
        _
      // Predicated region
      $region25: #{fno2d_forward.19} parent=11 // pred_check
        %p173 = pneg %p123
      $region26: #{fno2d_forward.19} parent=11 // pred_check_branch
        %175 = sbr.rel (%p173) target = $region28
      $region27: #{fno2d_forward.19} parent=11 // pred_region
        _
      $region28: #{fno2d_forward.19} parent=11 // pred_fallthru
        _
    $region12: #{fno2d_forward.19} parent=5 // pred_fallthru
      _
    %p176 = scmp.lt.s32.totalorder %s13, 2
    // Predicated region
    $region29: #{fno2d_forward.19} parent=5 // pred_check
      %p177 = pneg %p176
    $region30: #{fno2d_forward.19} parent=5 // pred_check_branch
      %179 = sbr.rel (%p177) target = $region32
    $region31: #{fno2d_forward.19} parent=5 // pred_region
      // Predicated region
      $region33: #{fno2d_forward.19} parent=31 // pred_check
        %p180 = pneg %p33
      $region34: #{fno2d_forward.19} parent=31 // pred_check_branch
        %182 = sbr.rel (%p180) target = $region36
      $region35: #{fno2d_forward.19} parent=31 // pred_region
        %s183 = smul.u32 32, %s13
        %p184 = scmp.lt.s32.totalorder %s183, 63
        %s185 = scalar_select %p184, %s183, 63
        %s186 = smul.addr %s185, 4
        %s187 = scalar_lea.vmem %s0, %s186
        %s188 = smul.u32 32, %s13
      $region36: #{fno2d_forward.19} parent=31 // pred_fallthru
        _
    $region32: #{fno2d_forward.19} parent=5 // pred_fallthru
      _
    %p189 = scmp.le.s32.totalorder 1, %s13
    %p190 = scmp.lt.s32.totalorder %s13, 3
    %p191 = pnand %p189, %p190
    %p192 = pneg %p191
    // Predicated region
    $region37: #{fno2d_forward.19} parent=5 // pred_check
      _
    $region38: #{fno2d_forward.19} parent=5 // pred_check_branch
      %194 = sbr.rel (%p191) target = $region40
    $region39: #{fno2d_forward.19} parent=5 // pred_region
      %s195 = ssub.s32 %s13, 1
      %s196 = smul.u32 32, %s18
      %p197 = scmp.lt.s32.totalorder %s196, 63
      %s198 = scalar_select %p197, %s196, 63
      %s199 = smul.addr %s198, 4
      %s200 = scalar_lea.vmem %s0, %s199
      %p201 = pneg %p39
      %p202 = pneg %p36
      %p203 = pneg %p60
      %p204 = pneg %p57
      %p205 = pneg %p81
      %p206 = pneg %p78
      %p207 = pneg %p102
      %p208 = pneg %p99
      %p209 = pneg %p123
      %p210 = pneg %p120
      %p211 = pneg %p149
      %p212 = pneg %p146
      %s213 = smul.u32 32, %s18
      %p214 = scmp.lt.s32.totalorder %s213, 63
      %s215 = scalar_select %p214, %s213, 63
      %s216 = smul.addr %s215, 8
      %s217 = scalar_lea.vmem %s5, %s216
      %s218 = smul.u32 32, %s18
      %p219 = scmp.lt.s32.totalorder %s218, 63
      %s220 = scalar_select %p219, %s218, 63
      %s221 = smul.addr %s220, 4
      %s222 = scalar_lea.vmem %s0, %s221
      %s223 = smul.u32 32, %s18
      %s224 = smul.u32 32, %s18
      %p225 = scmp.lt.s32.totalorder %s224, 63
      %s226 = scalar_select %p225, %s224, 63
      %s227 = smul.addr %s226, 8
      %s228 = scalar_lea.vmem %s5, %s227
      %s229 = smul.u32 32, %s18
      %v231 = vld [vmem:[%s222] sm:$0xf]
      %v232 = vld [vmem:[%s222 + $0x4] sm:$0xf]
      %v233 = vld [vmem:[%s222 + $0x8] sm:$0xf]
      %v234 = vld [vmem:[%s222 + $0xc] sm:$0xf]
      %v235 = vld [vmem:[%s222 + $0x10] sm:$0xf]
      %v236 = vld [vmem:[%s222 + $0x14] sm:$0xf]
      %v237 = vld [vmem:[%s222 + $0x18] sm:$0xf]
      %v238 = vld [vmem:[%s222 + $0x1c] sm:$0xf]
      %v239 = vld [vmem:[%s222 + $0x20] sm:$0xf]
      %v240 = vld [vmem:[%s222 + $0x24] sm:$0xf]
      %v241 = vld [vmem:[%s222 + $0x28] sm:$0xf]
      %v242 = vld [vmem:[%s222 + $0x2c] sm:$0xf]
      %v243 = vld [vmem:[%s222 + $0x30] sm:$0xf]
      %v244 = vld [vmem:[%s222 + $0x34] sm:$0xf]
      %v245 = vld [vmem:[%s222 + $0x38] sm:$0xf]
      %v246 = vld [vmem:[%s222 + $0x3c] sm:$0xf]
      %v247 = vld [vmem:[%s222 + $0x40] sm:$0xf]
      %v248 = vld [vmem:[%s222 + $0x44] sm:$0xf]
      %v249 = vld [vmem:[%s222 + $0x48] sm:$0xf]
      %v250 = vld [vmem:[%s222 + $0x4c] sm:$0xf]
      %v251 = vld [vmem:[%s222 + $0x50] sm:$0xf]
      %v252 = vld [vmem:[%s222 + $0x54] sm:$0xf]
      %v253 = vld [vmem:[%s222 + $0x58] sm:$0xf]
      %v254 = vld [vmem:[%s222 + $0x5c] sm:$0xf]
      %v255 = vld [vmem:[%s222 + $0x60] sm:$0xf]
      %v256 = vld [vmem:[%s222 + $0x64] sm:$0xf]
      %v257 = vld [vmem:[%s222 + $0x68] sm:$0xf]
      %v258 = vld [vmem:[%s222 + $0x6c] sm:$0xf]
      %v259 = vld [vmem:[%s222 + $0x70] sm:$0xf]
      %v260 = vld [vmem:[%s222 + $0x74] sm:$0xf]
      %v261 = vld [vmem:[%s222 + $0x78] sm:$0xf]
      %v262 = vld [vmem:[%s222 + $0x7c] sm:$0xf]
      %v263 = vld [vmem:[%s1] sm:$0xf]
      %v264 = vld [vmem:[%s1 + $0x4] sm:$0xf]
      %v265 = vld [vmem:[%s1 + $0x8] sm:$0xf]
      %v266 = vld [vmem:[%s1 + $0xc] sm:$0xf]
      %v267 = vld [vmem:[%s1 + $0x10] sm:$0xf]
      %v268 = vld [vmem:[%s1 + $0x14] sm:$0xf]
      %v269 = vld [vmem:[%s1 + $0x18] sm:$0xf]
      %v270 = vld [vmem:[%s1 + $0x1c] sm:$0xf]
      %v271 = vld [vmem:[%s2] sm:$0x1]
      %v273 = vlaneseq
      %v274 = vshrl.u32 %v273, 7
      %v275 = vsub.s32 0, %v274
      %v276 = vrot.slane %v271, %v275
      %v310 = vunpack.c.l.b16 %v231
      %v311 = vunpack.c.l.b16 %v232
      %v312 = vunpack.c.l.b16 %v233
      %v313 = vunpack.c.l.b16 %v234
      %v314 = vunpack.c.l.b16 %v235
      %v315 = vunpack.c.l.b16 %v236
      %v316 = vunpack.c.l.b16 %v237
      %v317 = vunpack.c.l.b16 %v238
      %v318 = vunpack.c.l.b16 %v239
      %v319 = vunpack.c.l.b16 %v240
      %v320 = vunpack.c.l.b16 %v241
      %v321 = vunpack.c.l.b16 %v242
      %v322 = vunpack.c.l.b16 %v243
      %v323 = vunpack.c.l.b16 %v244
      %v324 = vunpack.c.l.b16 %v245
      %v325 = vunpack.c.l.b16 %v246
      %v326 = vunpack.c.l.b16 %v247
      %v327 = vunpack.c.l.b16 %v248
      %v328 = vunpack.c.l.b16 %v249
      %v329 = vunpack.c.l.b16 %v250
      %v330 = vunpack.c.l.b16 %v251
      %v331 = vunpack.c.l.b16 %v252
      %v332 = vunpack.c.l.b16 %v253
      %v333 = vunpack.c.l.b16 %v254
      %v334 = vunpack.c.l.b16 %v255
      %v335 = vunpack.c.l.b16 %v256
      %v336 = vunpack.c.l.b16 %v257
      %v337 = vunpack.c.l.b16 %v258
      %v338 = vunpack.c.l.b16 %v259
      %v339 = vunpack.c.l.b16 %v260
      %v340 = vunpack.c.l.b16 %v261
      %v341 = vunpack.c.l.b16 %v262
      %v342 = vpack.c.b16 %v311, %v310
      %v343 = vpack.c.b16 %v313, %v312
      %v344 = vpack.c.b16 %v315, %v314
      %v345 = vpack.c.b16 %v317, %v316
      %v346 = vpack.c.b16 %v319, %v318
      %v347 = vpack.c.b16 %v321, %v320
      %v348 = vpack.c.b16 %v323, %v322
      %v349 = vpack.c.b16 %v325, %v324
      %v350 = vpack.c.b16 %v327, %v326
      %v351 = vpack.c.b16 %v329, %v328
      %v352 = vpack.c.b16 %v331, %v330
      %v353 = vpack.c.b16 %v333, %v332
      %v354 = vpack.c.b16 %v335, %v334
      %v355 = vpack.c.b16 %v337, %v336
      %v356 = vpack.c.b16 %v339, %v338
      %v357 = vpack.c.b16 %v341, %v340
      %v366 = vunpack.c.l.b16 %v263
      %v367 = vunpack.c.l.b16 %v264
      %v368 = vunpack.c.l.b16 %v265
      %v369 = vunpack.c.l.b16 %v266
      %v370 = vunpack.c.l.b16 %v267
      %v371 = vunpack.c.l.b16 %v268
      %v372 = vunpack.c.l.b16 %v269
      %v373 = vunpack.c.l.b16 %v270
      %v374 = vpack.c.b16 %v367, %v366
      %v375 = vpack.c.b16 %v369, %v368
      %v376 = vpack.c.b16 %v371, %v370
      %v377 = vpack.c.b16 %v373, %v372
      %vm382 = vcmask 523264
      %v384 = vsel %vm382, %v342, 0
      %v387 = vsel %vm382, %v343, 0
      %v390 = vsel %vm382, %v344, 0
      %v393 = vsel %vm382, %v345, 0
      %v396 = vsel %vm382, %v346, 0
      %v399 = vsel %vm382, %v347, 0
      %v402 = vsel %vm382, %v348, 0
      %v405 = vsel %vm382, %v349, 0
      %v408 = vsel %vm382, %v350, 0
      %v411 = vsel %vm382, %v351, 0
      %v414 = vsel %vm382, %v352, 0
      %v417 = vsel %vm382, %v353, 0
      %v420 = vsel %vm382, %v354, 0
      %v423 = vsel %vm382, %v355, 0
      %v426 = vsel %vm382, %v356, 0
      %v429 = vsel %vm382, %v357, 0
      %431 = vmatprep.subr.bf16.mxu0 0
      %432 = vmatpush1.bf16.msra.mxu0 0
      %433 = vmatprep.subr.bf16.mxu0 0
      %434 = vmatpush1.bf16.msra.mxu0 0
      %435 = vmatprep.subr.bf16.mxu0 0
      %436 = vmatpush1.bf16.msra.mxu0 0
      %437 = vmatprep.subr.bf16.mxu0 0
      %438 = vmatpush1.bf16.msra.mxu0 0
      %439 = vmatprep.subr.bf16.mxu0 0
      %440 = vmatpush1.bf16.msra.mxu0 %v377
      %441 = vmatprep.subr.bf16.mxu0 0
      %442 = vmatpush1.bf16.msra.mxu0 %v376
      %443 = vmatprep.subr.bf16.mxu0 0
      %444 = vmatpush1.bf16.msra.mxu0 %v375
      %445 = vmatprep.subr.bf16.mxu0 0
      %446 = vmatpush1.bf16.msra.mxu0 %v374
      %447 = vmatprep.subr.bf16.mxu0 0
      %448 = vmatpush2.bf16.msra.mxu0 0
      %449 = vmatprep.subr.bf16.mxu0 0
      %450 = vmatpush2.bf16.msra.mxu0 0
      %451 = vmatprep.subr.bf16.mxu0 0
      %452 = vmatpush2.bf16.msra.mxu0 0
      %453 = vmatprep.subr.bf16.mxu0 0
      %454 = vmatpush2.bf16.msra.mxu0 0
      %455 = vmatprep.subr.bf16.mxu0 0
      %456 = vmatpush2.bf16.msra.mxu0 0
      %457 = vmatprep.subr.bf16.mxu0 0
      %458 = vmatpush2.bf16.msra.mxu0 0
      %459 = vmatprep.subr.bf16.mxu0 0
      %460 = vmatpush2.bf16.msra.mxu0 0
      %461 = vmatprep.subr.bf16.mxu0 0
      %462 = vmatpush2.bf16.msra.mxu0 0
      %463 = vmatprep.mubr.bf16.mxu0 0
      %464 = vmatmul.mubr.bf16.gmra.mxu0 %v384
      %v465 = vpop.f32.mrf.mxu0
      %v466 = vadd.f32 %v276, %v465
      %v467 = vpop.f32.mrf.mxu0
      %v468 = vpop.f32.mrf.mxu0
      %v469 = vadd.f32 %v276, %v468
      %v470 = vpop.f32.mrf.mxu0
      %471 = vmatprep.mubr.bf16.mxu0 0
      %472 = vmatmul.mubr.bf16.gmra.mxu0 %v387
      %v473 = vpop.f32.mrf.mxu0
      %v474 = vadd.f32 %v276, %v473
      %v475 = vpop.f32.mrf.mxu0
      %v476 = vpop.f32.mrf.mxu0
      %v477 = vadd.f32 %v276, %v476
      %v478 = vpop.f32.mrf.mxu0
      %479 = vmatprep.mubr.bf16.mxu0 0
      %480 = vmatmul.mubr.bf16.gmra.mxu0 %v390
      %v481 = vpop.f32.mrf.mxu0
      %v482 = vadd.f32 %v276, %v481
      %v483 = vpop.f32.mrf.mxu0
      %v484 = vpop.f32.mrf.mxu0
      %v485 = vadd.f32 %v276, %v484
      %v486 = vpop.f32.mrf.mxu0
      %487 = vmatprep.mubr.bf16.mxu0 0
      %488 = vmatmul.mubr.bf16.gmra.mxu0 %v393
      %v489 = vpop.f32.mrf.mxu0
      %v490 = vadd.f32 %v276, %v489
      %v491 = vpop.f32.mrf.mxu0
      %v492 = vpop.f32.mrf.mxu0
      %v493 = vadd.f32 %v276, %v492
      %v494 = vpop.f32.mrf.mxu0
      %495 = vmatprep.mubr.bf16.mxu0 0
      %496 = vmatmul.mubr.bf16.gmra.mxu0 %v396
      %v497 = vpop.f32.mrf.mxu0
      %v498 = vadd.f32 %v276, %v497
      %v499 = vpop.f32.mrf.mxu0
      %v500 = vpop.f32.mrf.mxu0
      %v501 = vadd.f32 %v276, %v500
      %v502 = vpop.f32.mrf.mxu0
      %503 = vmatprep.mubr.bf16.mxu0 0
      %504 = vmatmul.mubr.bf16.gmra.mxu0 %v399
      %v505 = vpop.f32.mrf.mxu0
      %v506 = vadd.f32 %v276, %v505
      %v507 = vpop.f32.mrf.mxu0
      %v508 = vpop.f32.mrf.mxu0
      %v509 = vadd.f32 %v276, %v508
      %v510 = vpop.f32.mrf.mxu0
      %511 = vmatprep.mubr.bf16.mxu0 0
      %512 = vmatmul.mubr.bf16.gmra.mxu0 %v402
      %v513 = vpop.f32.mrf.mxu0
      %v514 = vadd.f32 %v276, %v513
      %v515 = vpop.f32.mrf.mxu0
      %v516 = vpop.f32.mrf.mxu0
      %v517 = vadd.f32 %v276, %v516
      %v518 = vpop.f32.mrf.mxu0
      %519 = vmatprep.mubr.bf16.mxu0 0
      %520 = vmatmul.mubr.bf16.gmra.mxu0 %v405
      %v521 = vpop.f32.mrf.mxu0
      %v522 = vadd.f32 %v276, %v521
      %v523 = vpop.f32.mrf.mxu0
      %v524 = vpop.f32.mrf.mxu0
      %v525 = vadd.f32 %v276, %v524
      %v526 = vpop.f32.mrf.mxu0
      %527 = vmatprep.mubr.bf16.mxu0 0
      %528 = vmatmul.mubr.bf16.gmra.mxu0 %v408
      %v529 = vpop.f32.mrf.mxu0
      %v530 = vadd.f32 %v276, %v529
      %v531 = vpop.f32.mrf.mxu0
      %v532 = vpop.f32.mrf.mxu0
      %v533 = vadd.f32 %v276, %v532
      %v534 = vpop.f32.mrf.mxu0
      %535 = vmatprep.mubr.bf16.mxu0 0
      %536 = vmatmul.mubr.bf16.gmra.mxu0 %v411
      %v537 = vpop.f32.mrf.mxu0
      %v538 = vadd.f32 %v276, %v537
      %v539 = vpop.f32.mrf.mxu0
      %v540 = vpop.f32.mrf.mxu0
      %v541 = vadd.f32 %v276, %v540
      %v542 = vpop.f32.mrf.mxu0
      %543 = vmatprep.mubr.bf16.mxu0 0
      %544 = vmatmul.mubr.bf16.gmra.mxu0 %v414
      %v545 = vpop.f32.mrf.mxu0
      %v546 = vadd.f32 %v276, %v545
      %v547 = vpop.f32.mrf.mxu0
      %v548 = vpop.f32.mrf.mxu0
      %v549 = vadd.f32 %v276, %v548
      %v550 = vpop.f32.mrf.mxu0
      %551 = vmatprep.mubr.bf16.mxu0 0
      %552 = vmatmul.mubr.bf16.gmra.mxu0 %v417
      %v553 = vpop.f32.mrf.mxu0
      %v554 = vadd.f32 %v276, %v553
      %v555 = vpop.f32.mrf.mxu0
      %v556 = vpop.f32.mrf.mxu0
      %v557 = vadd.f32 %v276, %v556
      %v558 = vpop.f32.mrf.mxu0
      %559 = vmatprep.mubr.bf16.mxu0 0
      %560 = vmatmul.mubr.bf16.gmra.mxu0 %v420
      %v561 = vpop.f32.mrf.mxu0
      %v562 = vadd.f32 %v276, %v561
      %v563 = vpop.f32.mrf.mxu0
      %v564 = vpop.f32.mrf.mxu0
      %v565 = vadd.f32 %v276, %v564
      %v566 = vpop.f32.mrf.mxu0
      %567 = vmatprep.mubr.bf16.mxu0 0
      %568 = vmatmul.mubr.bf16.gmra.mxu0 %v423
      %v569 = vpop.f32.mrf.mxu0
      %v570 = vadd.f32 %v276, %v569
      %v571 = vpop.f32.mrf.mxu0
      %v572 = vpop.f32.mrf.mxu0
      %v573 = vadd.f32 %v276, %v572
      %v574 = vpop.f32.mrf.mxu0
      %575 = vmatprep.mubr.bf16.mxu0 0
      %576 = vmatmul.mubr.bf16.gmra.mxu0 %v426
      %v577 = vpop.f32.mrf.mxu0
      %v578 = vadd.f32 %v276, %v577
      %v579 = vpop.f32.mrf.mxu0
      %v580 = vpop.f32.mrf.mxu0
      %v581 = vadd.f32 %v276, %v580
      %v582 = vpop.f32.mrf.mxu0
      %583 = vmatprep.mubr.bf16.mxu0 0
      %584 = vmatmul.mubr.bf16.gmra.mxu0 %v429
      %v585 = vpop.f32.mrf.mxu0
      %v586 = vadd.f32 %v276, %v585
      %v587 = vpop.f32.mrf.mxu0
      %v588 = vpop.f32.mrf.mxu0
      %v589 = vadd.f32 %v276, %v588
      %v590 = vpop.f32.mrf.mxu0
      %591 = vdwg.mxu0
      %v592 = vmax.f32 %v466, 0.0
      %v593 = vmax.f32 %v469, 0.0
      %v594 = vmax.f32 %v474, 0.0
      %v595 = vmax.f32 %v477, 0.0
      %v596 = vmax.f32 %v482, 0.0
      %v597 = vmax.f32 %v485, 0.0
      %v598 = vmax.f32 %v490, 0.0
      %v599 = vmax.f32 %v493, 0.0
      %v600 = vmax.f32 %v498, 0.0
      %v601 = vmax.f32 %v501, 0.0
      %v602 = vmax.f32 %v506, 0.0
      %v603 = vmax.f32 %v509, 0.0
      %v604 = vmax.f32 %v514, 0.0
      %v605 = vmax.f32 %v517, 0.0
      %v606 = vmax.f32 %v522, 0.0
      %v607 = vmax.f32 %v525, 0.0
      %v608 = vmax.f32 %v530, 0.0
      %v609 = vmax.f32 %v533, 0.0
      %v610 = vmax.f32 %v538, 0.0
      %v611 = vmax.f32 %v541, 0.0
      %v612 = vmax.f32 %v546, 0.0
      %v613 = vmax.f32 %v549, 0.0
      %v614 = vmax.f32 %v554, 0.0
      %v615 = vmax.f32 %v557, 0.0
      %v616 = vmax.f32 %v562, 0.0
      %v617 = vmax.f32 %v565, 0.0
      %v618 = vmax.f32 %v570, 0.0
      %v619 = vmax.f32 %v573, 0.0
      %v620 = vmax.f32 %v578, 0.0
      %v621 = vmax.f32 %v581, 0.0
      %v622 = vmax.f32 %v586, 0.0
      %v623 = vmax.f32 %v589, 0.0
      %v624 = vld [vmem:[%s3] sm:$0x1]
      %v625 = vunpack.c.l.bf16 %v624
      %v626 = vlaneseq
      %v627 = vshrl.u32 %v626, 7
      %v628 = vsub.s32 0, %v627
      %v629 = vrot.slane %v625, %v628
      %v630 = vmul.f32 %v592, %v629
      %v631 = vmul.f32 %v593, %v629
      %v632 = vmul.f32 %v594, %v629
      %v633 = vmul.f32 %v595, %v629
      %v634 = vmul.f32 %v596, %v629
      %v635 = vmul.f32 %v597, %v629
      %v636 = vmul.f32 %v598, %v629
      %v637 = vmul.f32 %v599, %v629
      %v638 = vmul.f32 %v600, %v629
      %v639 = vmul.f32 %v601, %v629
      %v640 = vmul.f32 %v602, %v629
      %v641 = vmul.f32 %v603, %v629
      %v642 = vmul.f32 %v604, %v629
      %v643 = vmul.f32 %v605, %v629
      %v644 = vmul.f32 %v606, %v629
      %v645 = vmul.f32 %v607, %v629
      %v646 = vmul.f32 %v608, %v629
      %v647 = vmul.f32 %v609, %v629
      %v648 = vmul.f32 %v610, %v629
      %v649 = vmul.f32 %v611, %v629
      %v650 = vmul.f32 %v612, %v629
      %v651 = vmul.f32 %v613, %v629
      %v652 = vmul.f32 %v614, %v629
      %v653 = vmul.f32 %v615, %v629
      %v654 = vmul.f32 %v616, %v629
      %v655 = vmul.f32 %v617, %v629
      %v656 = vmul.f32 %v618, %v629
      %v657 = vmul.f32 %v619, %v629
      %v658 = vmul.f32 %v620, %v629
      %v659 = vmul.f32 %v621, %v629
      %v660 = vmul.f32 %v622, %v629
      %v661 = vmul.f32 %v623, %v629
      %662 = vadd.xlane.f32.xlu0 %v630
      %v663 = vpop.xlane.xlu0 %662
      %664 = vadd.xlane.f32.xlu0 %v631
      %v665 = vpop.xlane.xlu0 %664
      %666 = vadd.xlane.f32.xlu0 %v632
      %v667 = vpop.xlane.xlu0 %666
      %668 = vadd.xlane.f32.xlu0 %v633
      %v669 = vpop.xlane.xlu0 %668
      %670 = vadd.xlane.f32.xlu0 %v634
      %v671 = vpop.xlane.xlu0 %670
      %672 = vadd.xlane.f32.xlu0 %v635
      %v673 = vpop.xlane.xlu0 %672
      %674 = vadd.xlane.f32.xlu0 %v636
      %v675 = vpop.xlane.xlu0 %674
      %676 = vadd.xlane.f32.xlu0 %v637
      %v677 = vpop.xlane.xlu0 %676
      %678 = vadd.xlane.f32.xlu0 %v638
      %v679 = vpop.xlane.xlu0 %678
      %680 = vadd.xlane.f32.xlu0 %v639
      %v681 = vpop.xlane.xlu0 %680
      %682 = vadd.xlane.f32.xlu0 %v640
      %v683 = vpop.xlane.xlu0 %682
      %684 = vadd.xlane.f32.xlu0 %v641
      %v685 = vpop.xlane.xlu0 %684
      %686 = vadd.xlane.f32.xlu0 %v642
      %v687 = vpop.xlane.xlu0 %686
      %688 = vadd.xlane.f32.xlu0 %v643
      %v689 = vpop.xlane.xlu0 %688
      %690 = vadd.xlane.f32.xlu0 %v644
      %v691 = vpop.xlane.xlu0 %690
      %692 = vadd.xlane.f32.xlu0 %v645
      %v693 = vpop.xlane.xlu0 %692
      %694 = vadd.xlane.f32.xlu0 %v646
      %v695 = vpop.xlane.xlu0 %694
      %696 = vadd.xlane.f32.xlu0 %v647
      %v697 = vpop.xlane.xlu0 %696
      %698 = vadd.xlane.f32.xlu0 %v648
      %v699 = vpop.xlane.xlu0 %698
      %700 = vadd.xlane.f32.xlu0 %v649
      %v701 = vpop.xlane.xlu0 %700
      %702 = vadd.xlane.f32.xlu0 %v650
      %v703 = vpop.xlane.xlu0 %702
      %704 = vadd.xlane.f32.xlu0 %v651
      %v705 = vpop.xlane.xlu0 %704
      %706 = vadd.xlane.f32.xlu0 %v652
      %v707 = vpop.xlane.xlu0 %706
      %708 = vadd.xlane.f32.xlu0 %v653
      %v709 = vpop.xlane.xlu0 %708
      %710 = vadd.xlane.f32.xlu0 %v654
      %v711 = vpop.xlane.xlu0 %710
      %712 = vadd.xlane.f32.xlu0 %v655
      %v713 = vpop.xlane.xlu0 %712
      %714 = vadd.xlane.f32.xlu0 %v656
      %v715 = vpop.xlane.xlu0 %714
      %716 = vadd.xlane.f32.xlu0 %v657
      %v717 = vpop.xlane.xlu0 %716
      %718 = vadd.xlane.f32.xlu0 %v658
      %v719 = vpop.xlane.xlu0 %718
      %720 = vadd.xlane.f32.xlu0 %v659
      %v721 = vpop.xlane.xlu0 %720
      %722 = vadd.xlane.f32.xlu0 %v660
      %v723 = vpop.xlane.xlu0 %722
      %724 = vadd.xlane.f32.xlu0 %v661
      %v725 = vpop.xlane.xlu0 %724
      %v726 = vld [vmem:[#allocation2] sm:$0x1]
      %v728 = vlaneseq
      %v729 = vshrl.u32 %v728, 7
      %v730 = vsub.s32 0, %v729
      %v731 = vrot.slane %v726, %v730
      %v733 = vadd.f32 %v663, %v731
      %v734 = vadd.f32 %v665, %v731
      %v735 = vadd.f32 %v667, %v731
      %v736 = vadd.f32 %v669, %v731
      %v737 = vadd.f32 %v671, %v731
      %v738 = vadd.f32 %v673, %v731
      %v739 = vadd.f32 %v675, %v731
      %v740 = vadd.f32 %v677, %v731
      %v741 = vadd.f32 %v679, %v731
      %v742 = vadd.f32 %v681, %v731
      %v743 = vadd.f32 %v683, %v731
      %v744 = vadd.f32 %v685, %v731
      %v745 = vadd.f32 %v687, %v731
      %v746 = vadd.f32 %v689, %v731
      %v747 = vadd.f32 %v691, %v731
      %v748 = vadd.f32 %v693, %v731
      %v749 = vadd.f32 %v695, %v731
      %v750 = vadd.f32 %v697, %v731
      %v751 = vadd.f32 %v699, %v731
      %v752 = vadd.f32 %v701, %v731
      %v753 = vadd.f32 %v703, %v731
      %v754 = vadd.f32 %v705, %v731
      %v755 = vadd.f32 %v707, %v731
      %v756 = vadd.f32 %v709, %v731
      %v757 = vadd.f32 %v711, %v731
      %v758 = vadd.f32 %v713, %v731
      %v759 = vadd.f32 %v715, %v731
      %v760 = vadd.f32 %v717, %v731
      %v761 = vadd.f32 %v719, %v731
      %v762 = vadd.f32 %v721, %v731
      %v763 = vadd.f32 %v723, %v731
      %v764 = vadd.f32 %v725, %v731
      %vm765 = vcmask 7168
      %766 = vst.msk [vmem:[%s228] sm:$0xff] %vm765, %v733
      %767 = vst.msk [vmem:[%s228 + $0x8] sm:$0xff] %vm765, %v734
      %768 = vst.msk [vmem:[%s228 + $0x10] sm:$0xff] %vm765, %v735
      %769 = vst.msk [vmem:[%s228 + $0x18] sm:$0xff] %vm765, %v736
      %770 = vst.msk [vmem:[%s228 + $0x20] sm:$0xff] %vm765, %v737
      %771 = vst.msk [vmem:[%s228 + $0x28] sm:$0xff] %vm765, %v738
      %772 = vst.msk [vmem:[%s228 + $0x30] sm:$0xff] %vm765, %v739
      %773 = vst.msk [vmem:[%s228 + $0x38] sm:$0xff] %vm765, %v740
      %774 = vst.msk [vmem:[%s228 + $0x40] sm:$0xff] %vm765, %v741
      %775 = vst.msk [vmem:[%s228 + $0x48] sm:$0xff] %vm765, %v742
      %776 = vst.msk [vmem:[%s228 + $0x50] sm:$0xff] %vm765, %v743
      %777 = vst.msk [vmem:[%s228 + $0x58] sm:$0xff] %vm765, %v744
      %778 = vst.msk [vmem:[%s228 + $0x60] sm:$0xff] %vm765, %v745
      %779 = vst.msk [vmem:[%s228 + $0x68] sm:$0xff] %vm765, %v746
      %780 = vst.msk [vmem:[%s228 + $0x70] sm:$0xff] %vm765, %v747
      %781 = vst.msk [vmem:[%s228 + $0x78] sm:$0xff] %vm765, %v748
      %782 = vst.msk [vmem:[%s228 + $0x80] sm:$0xff] %vm765, %v749
      %783 = vst.msk [vmem:[%s228 + $0x88] sm:$0xff] %vm765, %v750
      %784 = vst.msk [vmem:[%s228 + $0x90] sm:$0xff] %vm765, %v751
      %785 = vst.msk [vmem:[%s228 + $0x98] sm:$0xff] %vm765, %v752
      %786 = vst.msk [vmem:[%s228 + $0xa0] sm:$0xff] %vm765, %v753
      %787 = vst.msk [vmem:[%s228 + $0xa8] sm:$0xff] %vm765, %v754
      %788 = vst.msk [vmem:[%s228 + $0xb0] sm:$0xff] %vm765, %v755
      %789 = vst.msk [vmem:[%s228 + $0xb8] sm:$0xff] %vm765, %v756
      %790 = vst.msk [vmem:[%s228 + $0xc0] sm:$0xff] %vm765, %v757
      %791 = vst.msk [vmem:[%s228 + $0xc8] sm:$0xff] %vm765, %v758
      %792 = vst.msk [vmem:[%s228 + $0xd0] sm:$0xff] %vm765, %v759
      %793 = vst.msk [vmem:[%s228 + $0xd8] sm:$0xff] %vm765, %v760
      %794 = vst.msk [vmem:[%s228 + $0xe0] sm:$0xff] %vm765, %v761
      %795 = vst.msk [vmem:[%s228 + $0xe8] sm:$0xff] %vm765, %v762
      %796 = vst.msk [vmem:[%s228 + $0xf0] sm:$0xff] %vm765, %v763
      %797 = vst.msk [vmem:[%s228 + $0xf8] sm:$0xff] %vm765, %v764
      %s798 = smul.u32 32, %s18
      %p799 = scmp.lt.s32.totalorder %s798, 63
      %s800 = scalar_select %p799, %s798, 63
      %s801 = smul.addr %s800, 8
      %s802 = scalar_lea.vmem %s5, %s801
      // Predicated region
      $region41: #{fno2d_forward.19} parent=39 // pred_check
        %p803 = pneg %p146
      $region42: #{fno2d_forward.19} parent=39 // pred_check_branch
        %805 = sbr.rel (%p803) target = $region44
      $region43: #{fno2d_forward.19} parent=39 // pred_region
        %s806 = smul.u32 32, %s18
      $region44: #{fno2d_forward.19} parent=39 // pred_fallthru
        _
    $region40: #{fno2d_forward.19} parent=5 // pred_fallthru
      _
    %p807 = scmp.le.s32.totalorder 2, %s13
    // Predicated region
    $region45: #{fno2d_forward.19} parent=5 // pred_check
      %p808 = pneg %p807
    $region46: #{fno2d_forward.19} parent=5 // pred_check_branch
      %810 = sbr.rel (%p808) target = $region48
    $region47: #{fno2d_forward.19} parent=5 // pred_region
      %s811 = ssub.s32 %s13, 2
      // Predicated region
      $region49: #{fno2d_forward.19} parent=47 // pred_check
        %p812 = pneg %p152
      $region50: #{fno2d_forward.19} parent=47 // pred_check_branch
        %814 = sbr.rel (%p812) target = $region52
      $region51: #{fno2d_forward.19} parent=47 // pred_region
        %s815 = smul.u32 32, %s19
        %p816 = scmp.lt.s32.totalorder %s815, 63
        %s817 = scalar_select %p816, %s815, 63
        %s818 = smul.addr %s817, 8
        %s819 = scalar_lea.vmem %s5, %s818
      $region52: #{fno2d_forward.19} parent=47 // pred_fallthru
        _
    $region48: #{fno2d_forward.19} parent=5 // pred_fallthru
      _
  $region6: #{fno2d_forward.19} parent=0 // loop_footer
    %s17 = sadd.s32 1, %s13
  $region7: #{fno2d_forward.19} parent=0 // loop_footer_branch
    %12 = sbr.rel target = $region3
  $region8: #{fno2d_forward.19} parent=0 // loop_exit
    _

</llo_original>
